<compile_context>
chip_gen: v5e
topology: v5e:2x2
jax: 0.10.0
libtpu: 0.0.40
codegen_flags: <defaults>
</compile_context>

<pallas_src>
import jax
import jax.numpy as jnp
from jax import lax
from jax.experimental import pallas as pl
from jax.experimental.pallas import tpu as pltpu


def _round_up(x, m):
    return (x + m - 1) // m * m


def _choose_tile_rows(h4, w4):
    """Largest row tile <= 32 that divides 4H and keeps the output block lane
    dim a multiple of 128 (or is the whole image)."""
    cap = min(h4, 32)
    for tr in range(cap, 0, -1):
        if h4 % tr == 0 and ((tr * w4) % 128 == 0 or tr == h4):
            return tr
    return h4


def _make_kernel(*, c_in, H, W, Cp, TR, T):
    W4 = 4 * W
    L1 = H * W               # conv1 output tile (whole small image)
    L2 = (TR + 2) * W4       # conv2 output tile (+1 row halo each side)
    L3 = TR * W4             # conv3 / final output tile

    def kernel(x_ref, w1_ref, b1_ref, w2_ref, b2_ref, w3_ref, b3_ref,
               ml1_ref, mr1_ref, ml2_ref, mr2_ref, repw_ref,
               o_ref, patches_ref, s1_ref, sup_ref, s2_ref):
        t = pl.program_id(1)

        # ---------- conv1 (+ReLU) and 4x nearest upsample: once per image ----
        @pl.when(t == 0)
        def _body_and_upsample():
            sup_ref[...] = jnp.zeros_like(sup_ref)
            s2_ref[...] = jnp.zeros_like(s2_ref)
            # in-VMEM im2col of the (channel/row padded) input, K = 9*Cp
            for dy in range(3):
                for dx in range(3):
                    ti = dy * 3 + dx
                    start = (dy + 1) * W + (dx - 1)
                    slab = x_ref[0, :, start:start + L1]
                    if dx == 0:
                        slab = slab * ml1_ref[:, :L1]
                    if dx == 2:
                        slab = slab * mr1_ref[:, :L1]
                    patches_ref[ti * Cp:(ti + 1) * Cp, :L1] = slab
            r1 = jnp.dot(w1_ref[...], patches_ref[:, :L1],
                         preferred_element_type=jnp.float32)
            s1_ref[...] = jnp.maximum(r1 + b1_ref[...], 0.0)
            # nearest x4: column replication via a 0/1 matmul, row replication
            # by scattering each replicated row into the per-tile VMEM slabs.
            for y in range(H):
                row = s1_ref[:, y * W:(y + 1) * W]                    # (Cp, W)
                rep = jnp.dot(row, repw_ref[...],
                              preferred_element_type=jnp.float32)     # (Cp, 4W)
                for r in range(4 * y, 4 * y + 4):
                    for tt in range(T):
                        if tt * TR - 2 <= r <= tt * TR + TR + 1:
                            loc = r - tt * TR + 3
                            sup_ref[tt, :, loc * W4:(loc + 1) * W4] = rep

        # ---------- conv2 on this row tile (reads its VMEM slab) -------------
        for dy in range(3):
            for dx in range(3):
                ti = dy * 3 + dx
                start = (dy + 1) * W4 + (dx - 1)
                slab = sup_ref[t, :, start:start + L2]
                if dx == 0:
                    slab = slab * ml2_ref[:, :L2]
                if dx == 2:
                    slab = slab * mr2_ref[:, :L2]
                patches_ref[ti * Cp:(ti + 1) * Cp, :L2] = slab
        r2 = jnp.dot(w2_ref[...], patches_ref[:, :L2],
                     preferred_element_type=jnp.float32)
        s2_ref[:, W4:W4 + L2] = r2 + b2_ref[...]

        # rows of conv2 output that lie outside the image are conv3's zero pad
        @pl.when(t == 0)
        def _zero_top_halo():
            s2_ref[:, W4:2 * W4] = jnp.zeros((Cp, W4), jnp.float32)

        @pl.when(t == T - 1)
        def _zero_bottom_halo():
            s2_ref[:, (TR + 2) * W4:(TR + 3) * W4] = jnp.zeros((Cp, W4),
                                                               jnp.float32)

        # ---------- conv3 on this row tile -> lane-dense NCHW output ---------
        for dy in range(3):
            for dx in range(3):
                ti = dy * 3 + dx
                start = (dy + 1) * W4 + (dx - 1)
                slab = s2_ref[:, start:start + L3]
                if dx == 0:
                    slab = slab * ml2_ref[:, :L3]
                if dx == 2:
                    slab = slab * mr2_ref[:, :L3]
                patches_ref[ti * Cp:(ti + 1) * Cp, :L3] = slab
        r3 = jnp.dot(w3_ref[...], patches_ref[:, :L3],
                     preferred_element_type=jnp.float32)
        r3 = r3 + b3_ref[...]
        o_ref[0, :, :] = r3[:c_in, :]

    return kernel


def conv_up_forward(x, params):
    """Pallas Conv_up.forward. x: (N, c_in, H, W) f32 NCHW -> (N, c_in, 4H, 4W)."""
    f32 = jnp.float32
    N, c_in, H, W = x.shape
    mid_c = params["w1"].shape[0]
    Cp = _round_up(max(c_in, mid_c), 8)           # common padded channel count
    H4, W4 = 4 * H, 4 * W
    TR = _choose_tile_rows(H4, W4)
    T = H4 // TR
    L1 = H * W
    L2 = (TR + 2) * W4
    L3 = TR * W4

    # ---- wrapper glue operates only on the tiny pre-upsample tensors --------
    xp = jnp.zeros((N, Cp, H + 4, W), f32).at[:, :c_in, 2:2 + H, :].set(
        x.astype(f32))
    xp = xp.reshape(N, Cp, (H + 4) * W)

    def prep_w(w, cout, cin):
        wp = jnp.zeros((Cp, Cp, 3, 3), f32).at[:cout, :cin].set(w.astype(f32))
        return jnp.transpose(wp, (0, 2, 3, 1)).reshape(Cp, 9 * Cp)

    def prep_b(b, cout):
        return jnp.zeros((Cp, 1), f32).at[:cout, 0].set(b.astype(f32))

    w1, b1 = prep_w(params["w1"], mid_c, c_in), prep_b(params["b1"], mid_c)
    w2, b2 = prep_w(params["w2"], c_in, mid_c), prep_b(params["b2"], c_in)
    w3, b3 = prep_w(params["w3"], c_in, c_in), prep_b(params["b3"], c_in)

    col1 = jnp.arange(L1, dtype=jnp.int32) % W
    ml1 = (col1 != 0).astype(f32).reshape(1, L1)
    mr1 = (col1 != W - 1).astype(f32).reshape(1, L1)
    col2 = jnp.arange(L2, dtype=jnp.int32) % W4
    ml2 = (col2 != 0).astype(f32).reshape(1, L2)
    mr2 = (col2 != W4 - 1).astype(f32).reshape(1, L2)
    repw = jnp.repeat(jnp.eye(W, dtype=f32), 4, axis=1)      # (W, 4W) nearest x4

    kernel = _make_kernel(c_in=c_in, H=H, W=W, Cp=Cp, TR=TR, T=T)

    grid_spec = pltpu.PrefetchScalarGridSpec(
        num_scalar_prefetch=0,
        grid=(N, T),
        in_specs=[
            pl.BlockSpec((1, Cp, (H + 4) * W), lambda n, t: (n, 0, 0)),
            pl.BlockSpec((Cp, 9 * Cp), lambda n, t: (0, 0)),
            pl.BlockSpec((Cp, 1), lambda n, t: (0, 0)),
            pl.BlockSpec((Cp, 9 * Cp), lambda n, t: (0, 0)),
            pl.BlockSpec((Cp, 1), lambda n, t: (0, 0)),
            pl.BlockSpec((Cp, 9 * Cp), lambda n, t: (0, 0)),
            pl.BlockSpec((Cp, 1), lambda n, t: (0, 0)),
            pl.BlockSpec((1, L1), lambda n, t: (0, 0)),
            pl.BlockSpec((1, L1), lambda n, t: (0, 0)),
            pl.BlockSpec((1, L2), lambda n, t: (0, 0)),
            pl.BlockSpec((1, L2), lambda n, t: (0, 0)),
            pl.BlockSpec((W, W4), lambda n, t: (0, 0)),
        ],
        out_specs=pl.BlockSpec((1, c_in, L3), lambda n, t: (n, 0, t)),
        scratch_shapes=[
            pltpu.VMEM((9 * Cp, max(L1, L2)), f32),    # shared im2col patches
            pltpu.VMEM((Cp, L1), f32),                 # conv1 output (pre-upsample)
            pltpu.VMEM((T, Cp, (TR + 6) * W4), f32),   # upsampled per-tile slabs
            pltpu.VMEM((Cp, (TR + 4) * W4), f32),      # conv2 tile (+halo rows)
        ],
    )

    out = pl.pallas_call(
        kernel,
        out_shape=jax.ShapeDtypeStruct((N, c_in, H4 * W4), f32),
        grid_spec=grid_spec,
        compiler_params=pltpu.CompilerParams(
            dimension_semantics=("parallel", "arbitrary")),
    )(xp, w1, b1, w2, b2, w3, b3, ml1, mr1, ml2, mr2, repw)
    return out.reshape(N, c_in, H4, W4)


# ----------------------- pure-JAX reference (for checking) -------------------
def _conv3x3_ref(x, w, b):
    y = lax.conv_general_dilated(
        x, w, window_strides=(1, 1), padding="SAME",
        dimension_numbers=("NCHW", "OIHW", "NCHW"))
    return y + b.reshape(1, -1, 1, 1)


def conv_up_reference(x, params):
    h = jnp.maximum(_conv3x3_ref(x, params["w1"], params["b1"]), 0.0)
    h = jnp.repeat(jnp.repeat(h, 4, axis=2), 4, axis=3)
    h = _conv3x3_ref(h, params["w2"], params["b2"])
    h = _conv3x3_ref(h, params["w3"], params["b3"])
    return h


if __name__ == "__main__":
    def run_case(seed, n, c_in, mid_c, h, w):
        ks = jax.random.split(jax.random.PRNGKey(seed), 7)
        x = jax.random.normal(ks[0], (n, c_in, h, w), jnp.float32)
        params = {  # PyTorch-style OIHW weights
            "w1": 0.1 * jax.random.normal(ks[1], (mid_c, c_in, 3, 3), jnp.float32),
            "b1": 0.1 * jax.random.normal(ks[2], (mid_c,), jnp.float32),
            "w2": 0.1 * jax.random.normal(ks[3], (c_in, mid_c, 3, 3), jnp.float32),
            "b2": 0.1 * jax.random.normal(ks[4], (c_in,), jnp.float32),
            "w3": 0.1 * jax.random.normal(ks[5], (c_in, c_in, 3, 3), jnp.float32),
            "b3": 0.1 * jax.random.normal(ks[6], (c_in,), jnp.float32),
        }
        out = jax.block_until_ready(conv_up_forward(x, params))
        assert out.shape == (n, c_in, 4 * h, 4 * w), out.shape
        ref = jax.block_until_ready(conv_up_reference(x, params))
        err = float(jnp.max(jnp.abs(out - ref)))
        assert err < 2e-4, f"max abs err {err}"

    run_case(0, 2, 4, 8, 16, 16)   # primary case: two row tiles per image
    run_case(1, 1, 3, 6, 12, 8)    # exercises channel padding + non-square
    print("KERNEL_OK")
</pallas_src>

<mosaic_0001>
module attributes {stable_mosaic.version = 11 : i64} {
  func.func @kernel(%arg0: i32, %arg1: i32, %arg2: memref<1x8x320xf32, #tpu.memory_space<vmem>>, %arg3: memref<8x72xf32, #tpu.memory_space<vmem>>, %arg4: memref<8x1xf32, #tpu.memory_space<vmem>>, %arg5: memref<8x72xf32, #tpu.memory_space<vmem>>, %arg6: memref<8x1xf32, #tpu.memory_space<vmem>>, %arg7: memref<8x72xf32, #tpu.memory_space<vmem>>, %arg8: memref<8x1xf32, #tpu.memory_space<vmem>>, %arg9: memref<1x256xf32, #tpu.memory_space<vmem>>, %arg10: memref<1x256xf32, #tpu.memory_space<vmem>>, %arg11: memref<1x2176xf32, #tpu.memory_space<vmem>>, %arg12: memref<1x2176xf32, #tpu.memory_space<vmem>>, %arg13: memref<16x64xf32, #tpu.memory_space<vmem>>, %arg14: memref<1x4x2048xf32, #tpu.memory_space<vmem>>, %arg15: memref<72x2176xf32, #tpu.memory_space<vmem>>, %arg16: memref<8x256xf32, #tpu.memory_space<vmem>>, %arg17: memref<2x8x2432xf32, #tpu.memory_space<vmem>>, %arg18: memref<8x2304xf32, #tpu.memory_space<vmem>>) attributes {dimension_semantics = [#tpu.dimension_semantics<parallel>, #tpu.dimension_semantics<arbitrary>], iteration_bounds = array<i64: 2, 2>, scalar_prefetch = 0 : i64, scratch_operands = 4 : i64, tpu.core_type = #tpu.core_type<tc>, window_params = [{transform_indices = @transform_0, window_bounds = array<i64: 1, 8, 320>}, {pipeline_mode = #tpu.pipeline_mode<synchronous>, transform_indices = @transform_1, window_bounds = array<i64: 8, 72>}, {pipeline_mode = #tpu.pipeline_mode<synchronous>, transform_indices = @transform_2, window_bounds = array<i64: 8, 1>}, {pipeline_mode = #tpu.pipeline_mode<synchronous>, transform_indices = @transform_3, window_bounds = array<i64: 8, 72>}, {pipeline_mode = #tpu.pipeline_mode<synchronous>, transform_indices = @transform_4, window_bounds = array<i64: 8, 1>}, {pipeline_mode = #tpu.pipeline_mode<synchronous>, transform_indices = @transform_5, window_bounds = array<i64: 8, 72>}, {pipeline_mode = #tpu.pipeline_mode<synchronous>, transform_indices = @transform_6, window_bounds = array<i64: 8, 1>}, {pipeline_mode = #tpu.pipeline_mode<synchronous>, transform_indices = @transform_7, window_bounds = array<i64: 1, 256>}, {pipeline_mode = #tpu.pipeline_mode<synchronous>, transform_indices = @transform_8, window_bounds = array<i64: 1, 256>}, {pipeline_mode = #tpu.pipeline_mode<synchronous>, transform_indices = @transform_9, window_bounds = array<i64: 1, 2176>}, {pipeline_mode = #tpu.pipeline_mode<synchronous>, transform_indices = @transform_10, window_bounds = array<i64: 1, 2176>}, {pipeline_mode = #tpu.pipeline_mode<synchronous>, transform_indices = @transform_11, window_bounds = array<i64: 16, 64>}, {transform_indices = @transform_12, window_bounds = array<i64: 1, 4, 2048>}]} {
    %c0_i32 = arith.constant 0 : i32
    %0 = arith.cmpi eq, %arg1, %c0_i32 : i32
    %1 = arith.extui %0 : i1 to i32
    %c0_i32_0 = arith.constant 0 : i32
    %2 = arith.cmpi ne, %1, %c0_i32_0 : i32
    scf.if %2 {
      %cst_101 = arith.constant 0.000000e+00 : f32
      %116 = vector.broadcast %cst_101 : f32 to vector<2x8x2432xf32>
      %c0_102 = arith.constant 0 : index
      %c0_103 = arith.constant 0 : index
      %c0_104 = arith.constant 0 : index
      %117 = vector.load %arg17[%c0_102, %c0_103, %c0_104] : memref<2x8x2432xf32, #tpu.memory_space<vmem>>, vector<2x8x2432xf32>
      tpu.vector_store %arg17[%c0_102, %c0_103, %c0_104], %116 {strides = array<i32>} : memref<2x8x2432xf32, #tpu.memory_space<vmem>>, vector<2x8x2432xf32>,
      %cst_105 = arith.constant 0.000000e+00 : f32
      %118 = vector.broadcast %cst_105 : f32 to vector<8x2304xf32>
      %c0_106 = arith.constant 0 : index
      %c0_107 = arith.constant 0 : index
      %119 = vector.load %arg18[%c0_106, %c0_107] : memref<8x2304xf32, #tpu.memory_space<vmem>>, vector<8x2304xf32>
      tpu.vector_store %arg18[%c0_106, %c0_107], %118 {strides = array<i32>} : memref<8x2304xf32, #tpu.memory_space<vmem>>, vector<8x2304xf32>,
      %c0_108 = arith.constant 0 : index
      %c0_109 = arith.constant 0 : index
      %c15 = arith.constant 15 : index
      %120 = vector.load %arg2[%c0_108, %c0_109, %c15] : memref<1x8x320xf32, #tpu.memory_space<vmem>>, vector<1x8x256xf32>
      %121 = vector.shape_cast %120 : vector<1x8x256xf32> to vector<8x256xf32>
      %c0_110 = arith.constant 0 : index
      %c0_111 = arith.constant 0 : index
      %122 = vector.load %arg9[%c0_110, %c0_111] : memref<1x256xf32, #tpu.memory_space<vmem>>, vector<1x256xf32>
      %123 = vector.broadcast %122 : vector<1x256xf32> to vector<8x256xf32>
      %124 = arith.mulf %121, %123 : vector<8x256xf32>
      %c0_112 = arith.constant 0 : index
      %c0_113 = arith.constant 0 : index
      %125 = vector.load %arg15[%c0_112, %c0_113] : memref<72x2176xf32, #tpu.memory_space<vmem>>, vector<8x256xf32>
      tpu.vector_store %arg15[%c0_112, %c0_113], %124 {strides = array<i32>} : memref<72x2176xf32, #tpu.memory_space<vmem>>, vector<8x256xf32>,
      %c0_114 = arith.constant 0 : index
      %c0_115 = arith.constant 0 : index
      %c16_116 = arith.constant 16 : index
      %126 = vector.load %arg2[%c0_114, %c0_115, %c16_116] : memref<1x8x320xf32, #tpu.memory_space<vmem>>, vector<1x8x256xf32>
      %127 = vector.shape_cast %126 : vector<1x8x256xf32> to vector<8x256xf32>
      %c8_117 = arith.constant 8 : index
      %c0_118 = arith.constant 0 : index
      %128 = vector.load %arg15[%c8_117, %c0_118] : memref<72x2176xf32, #tpu.memory_space<vmem>>, vector<8x256xf32>
      tpu.vector_store %arg15[%c8_117, %c0_118], %127 {strides = array<i32>} : memref<72x2176xf32, #tpu.memory_space<vmem>>, vector<8x256xf32>,
      %c0_119 = arith.constant 0 : index
      %c0_120 = arith.constant 0 : index
      %c17 = arith.constant 17 : index
      %129 = vector.load %arg2[%c0_119, %c0_120, %c17] : memref<1x8x320xf32, #tpu.memory_space<vmem>>, vector<1x8x256xf32>
      %130 = vector.shape_cast %129 : vector<1x8x256xf32> to vector<8x256xf32>
      %c0_121 = arith.constant 0 : index
      %c0_122 = arith.constant 0 : index
      %131 = vector.load %arg10[%c0_121, %c0_122] : memref<1x256xf32, #tpu.memory_space<vmem>>, vector<1x256xf32>
      %132 = vector.broadcast %131 : vector<1x256xf32> to vector<8x256xf32>
      %133 = arith.mulf %130, %132 : vector<8x256xf32>
      %c16_123 = arith.constant 16 : index
      %c0_124 = arith.constant 0 : index
      %134 = vector.load %arg15[%c16_123, %c0_124] : memref<72x2176xf32, #tpu.memory_space<vmem>>, vector<8x256xf32>
      tpu.vector_store %arg15[%c16_123, %c0_124], %133 {strides = array<i32>} : memref<72x2176xf32, #tpu.memory_space<vmem>>, vector<8x256xf32>,
      %c0_125 = arith.constant 0 : index
      %c0_126 = arith.constant 0 : index
      %c31 = arith.constant 31 : index
      %135 = vector.load %arg2[%c0_125, %c0_126, %c31] : memref<1x8x320xf32, #tpu.memory_space<vmem>>, vector<1x8x256xf32>
      %136 = vector.shape_cast %135 : vector<1x8x256xf32> to vector<8x256xf32>
      %c0_127 = arith.constant 0 : index
      %c0_128 = arith.constant 0 : index
      %137 = vector.load %arg9[%c0_127, %c0_128] : memref<1x256xf32, #tpu.memory_space<vmem>>, vector<1x256xf32>
      %138 = vector.broadcast %137 : vector<1x256xf32> to vector<8x256xf32>
      %139 = arith.mulf %136, %138 : vector<8x256xf32>
      %c24_129 = arith.constant 24 : index
      %c0_130 = arith.constant 0 : index
      %140 = vector.load %arg15[%c24_129, %c0_130] : memref<72x2176xf32, #tpu.memory_space<vmem>>, vector<8x256xf32>
      tpu.vector_store %arg15[%c24_129, %c0_130], %139 {strides = array<i32>} : memref<72x2176xf32, #tpu.memory_space<vmem>>, vector<8x256xf32>,
      %c0_131 = arith.constant 0 : index
      %c0_132 = arith.constant 0 : index
      %c32_133 = arith.constant 32 : index
      %141 = vector.load %arg2[%c0_131, %c0_132, %c32_133] : memref<1x8x320xf32, #tpu.memory_space<vmem>>, vector<1x8x256xf32>
      %142 = vector.shape_cast %141 : vector<1x8x256xf32> to vector<8x256xf32>
      %c32_134 = arith.constant 32 : index
      %c0_135 = arith.constant 0 : index
      %143 = vector.load %arg15[%c32_134, %c0_135] : memref<72x2176xf32, #tpu.memory_space<vmem>>, vector<8x256xf32>
      tpu.vector_store %arg15[%c32_134, %c0_135], %142 {strides = array<i32>} : memref<72x2176xf32, #tpu.memory_space<vmem>>, vector<8x256xf32>,
      %c0_136 = arith.constant 0 : index
      %c0_137 = arith.constant 0 : index
      %c33 = arith.constant 33 : index
      %144 = vector.load %arg2[%c0_136, %c0_137, %c33] : memref<1x8x320xf32, #tpu.memory_space<vmem>>, vector<1x8x256xf32>
      %145 = vector.shape_cast %144 : vector<1x8x256xf32> to vector<8x256xf32>
      %c0_138 = arith.constant 0 : index
      %c0_139 = arith.constant 0 : index
      %146 = vector.load %arg10[%c0_138, %c0_139] : memref<1x256xf32, #tpu.memory_space<vmem>>, vector<1x256xf32>
      %147 = vector.broadcast %146 : vector<1x256xf32> to vector<8x256xf32>
      %148 = arith.mulf %145, %147 : vector<8x256xf32>
      %c40_140 = arith.constant 40 : index
      %c0_141 = arith.constant 0 : index
      %149 = vector.load %arg15[%c40_140, %c0_141] : memref<72x2176xf32, #tpu.memory_space<vmem>>, vector<8x256xf32>
      tpu.vector_store %arg15[%c40_140, %c0_141], %148 {strides = array<i32>} : memref<72x2176xf32, #tpu.memory_space<vmem>>, vector<8x256xf32>,
      %c0_142 = arith.constant 0 : index
      %c0_143 = arith.constant 0 : index
      %c47 = arith.constant 47 : index
      %150 = vector.load %arg2[%c0_142, %c0_143, %c47] : memref<1x8x320xf32, #tpu.memory_space<vmem>>, vector<1x8x256xf32>
      %151 = vector.shape_cast %150 : vector<1x8x256xf32> to vector<8x256xf32>
      %c0_144 = arith.constant 0 : index
      %c0_145 = arith.constant 0 : index
      %152 = vector.load %arg9[%c0_144, %c0_145] : memref<1x256xf32, #tpu.memory_space<vmem>>, vector<1x256xf32>
      %153 = vector.broadcast %152 : vector<1x256xf32> to vector<8x256xf32>
      %154 = arith.mulf %151, %153 : vector<8x256xf32>
      %c48_146 = arith.constant 48 : index
      %c0_147 = arith.constant 0 : index
      %155 = vector.load %arg15[%c48_146, %c0_147] : memref<72x2176xf32, #tpu.memory_space<vmem>>, vector<8x256xf32>
      tpu.vector_store %arg15[%c48_146, %c0_147], %154 {strides = array<i32>} : memref<72x2176xf32, #tpu.memory_space<vmem>>, vector<8x256xf32>,
      %c0_148 = arith.constant 0 : index
      %c0_149 = arith.constant 0 : index
      %c48_150 = arith.constant 48 : index
      %156 = vector.load %arg2[%c0_148, %c0_149, %c48_150] : memref<1x8x320xf32, #tpu.memory_space<vmem>>, vector<1x8x256xf32>
      %157 = vector.shape_cast %156 : vector<1x8x256xf32> to vector<8x256xf32>
      %c56_151 = arith.constant 56 : index
      %c0_152 = arith.constant 0 : index
      %158 = vector.load %arg15[%c56_151, %c0_152] : memref<72x2176xf32, #tpu.memory_space<vmem>>, vector<8x256xf32>
      tpu.vector_store %arg15[%c56_151, %c0_152], %157 {strides = array<i32>} : memref<72x2176xf32, #tpu.memory_space<vmem>>, vector<8x256xf32>,
      %c0_153 = arith.constant 0 : index
      %c0_154 = arith.constant 0 : index
      %c49 = arith.constant 49 : index
      %159 = vector.load %arg2[%c0_153, %c0_154, %c49] : memref<1x8x320xf32, #tpu.memory_space<vmem>>, vector<1x8x256xf32>
      %160 = vector.shape_cast %159 : vector<1x8x256xf32> to vector<8x256xf32>
      %c0_155 = arith.constant 0 : index
      %c0_156 = arith.constant 0 : index
      %161 = vector.load %arg10[%c0_155, %c0_156] : memref<1x256xf32, #tpu.memory_space<vmem>>, vector<1x256xf32>
      %162 = vector.broadcast %161 : vector<1x256xf32> to vector<8x256xf32>
      %163 = arith.mulf %160, %162 : vector<8x256xf32>
      %c64_157 = arith.constant 64 : index
      %c0_158 = arith.constant 0 : index
      %164 = vector.load %arg15[%c64_157, %c0_158] : memref<72x2176xf32, #tpu.memory_space<vmem>>, vector<8x256xf32>
      tpu.vector_store %arg15[%c64_157, %c0_158], %163 {strides = array<i32>} : memref<72x2176xf32, #tpu.memory_space<vmem>>, vector<8x256xf32>,
      %c0_159 = arith.constant 0 : index
      %c0_160 = arith.constant 0 : index
      %165 = vector.load %arg3[%c0_159, %c0_160] : memref<8x72xf32, #tpu.memory_space<vmem>>, vector<8x72xf32>
      %c0_161 = arith.constant 0 : index
      %c0_162 = arith.constant 0 : index
      %166 = vector.load %arg15[%c0_161, %c0_162] : memref<72x2176xf32, #tpu.memory_space<vmem>>, vector<72x256xf32>
      %cst_163 = arith.constant dense<0.000000e+00> : vector<8x256xf32>
      %167 = tpu.matmul %165, %166, %cst_163 {dimension_numbers = #tpu.dot_dimension_numbers<[1], [0], [0], [1], [0, 0, 1, 1], [], []>} : vector<8x72xf32>, vector<72x256xf32>, vector<8x256xf32> -> vector<8x256xf32>
      %c0_164 = arith.constant 0 : index
      %c0_165 = arith.constant 0 : index
      %168 = vector.load %arg4[%c0_164, %c0_165] : memref<8x1xf32, #tpu.memory_space<vmem>>, vector<8x1xf32>
      %169 = vector.broadcast %168 : vector<8x1xf32> to vector<8x256xf32>
      %170 = arith.addf %167, %169 : vector<8x256xf32>
      %cst_166 = arith.constant 0.000000e+00 : f32
      %171 = vector.broadcast %cst_166 : f32 to vector<8x256xf32>
      %172 = arith.maximumf %170, %171 : vector<8x256xf32>
      %c0_167 = arith.constant 0 : index
      %c0_168 = arith.constant 0 : index
      %173 = vector.load %arg16[%c0_167, %c0_168] : memref<8x256xf32, #tpu.memory_space<vmem>>, vector<8x256xf32>
      tpu.vector_store %arg16[%c0_167, %c0_168], %172 {strides = array<i32>} : memref<8x256xf32, #tpu.memory_space<vmem>>, vector<8x256xf32>,
      %c0_169 = arith.constant 0 : index
      %c0_170 = arith.constant 0 : index
      %174 = vector.load %arg16[%c0_169, %c0_170] : memref<8x256xf32, #tpu.memory_space<vmem>>, vector<8x16xf32>
      %c0_171 = arith.constant 0 : index
      %c0_172 = arith.constant 0 : index
      %175 = vector.load %arg13[%c0_171, %c0_172] : memref<16x64xf32, #tpu.memory_space<vmem>>, vector<16x64xf32>
      %cst_173 = arith.constant dense<0.000000e+00> : vector<8x64xf32>
      %176 = tpu.matmul %174, %175, %cst_173 {dimension_numbers = #tpu.dot_dimension_numbers<[1], [0], [0], [1], [0, 0, 1, 1], [], []>} : vector<8x16xf32>, vector<16x64xf32>, vector<8x64xf32> -> vector<8x64xf32>
      %c0_174 = arith.constant 0 : index
      %c0_175 = arith.constant 0 : index
      %c192_176 = arith.constant 192 : index
      %177 = vector.load %arg17[%c0_174, %c0_175, %c192_176] : memref<2x8x2432xf32, #tpu.memory_space<vmem>>, vector<1x8x64xf32>
      %178 = vector.shape_cast %177 : vector<1x8x64xf32> to vector<8x64xf32>
      %179 = vector.shape_cast %176 : vector<8x64xf32> to vector<1x8x64xf32>
      tpu.vector_store %arg17[%c0_174, %c0_175, %c192_176], %179 {strides = array<i32>} : memref<2x8x2432xf32, #tpu.memory_space<vmem>>, vector<1x8x64xf32>,
      %c0_177 = arith.constant 0 : index
      %c0_178 = arith.constant 0 : index
      %c256 = arith.constant 256 : index
      %180 = vector.load %arg17[%c0_177, %c0_178, %c256] : memref<2x8x2432xf32, #tpu.memory_space<vmem>>, vector<1x8x64xf32>
      %181 = vector.shape_cast %180 : vector<1x8x64xf32> to vector<8x64xf32>
      %182 = vector.shape_cast %176 : vector<8x64xf32> to vector<1x8x64xf32>
      tpu.vector_store %arg17[%c0_177, %c0_178, %c256], %182 {strides = array<i32>} : memref<2x8x2432xf32, #tpu.memory_space<vmem>>, vector<1x8x64xf32>,
      %c0_179 = arith.constant 0 : index
      %c0_180 = arith.constant 0 : index
      %c320 = arith.constant 320 : index
      %183 = vector.load %arg17[%c0_179, %c0_180, %c320] : memref<2x8x2432xf32, #tpu.memory_space<vmem>>, vector<1x8x64xf32>
      %184 = vector.shape_cast %183 : vector<1x8x64xf32> to vector<8x64xf32>
      %185 = vector.shape_cast %176 : vector<8x64xf32> to vector<1x8x64xf32>
      tpu.vector_store %arg17[%c0_179, %c0_180, %c320], %185 {strides = array<i32>} : memref<2x8x2432xf32, #tpu.memory_space<vmem>>, vector<1x8x64xf32>,
      %c0_181 = arith.constant 0 : index
      %c0_182 = arith.constant 0 : index
      %c384 = arith.constant 384 : index
      %186 = vector.load %arg17[%c0_181, %c0_182, %c384] : memref<2x8x2432xf32, #tpu.memory_space<vmem>>, vector<1x8x64xf32>
      %187 = vector.shape_cast %186 : vector<1x8x64xf32> to vector<8x64xf32>
      %188 = vector.shape_cast %176 : vector<8x64xf32> to vector<1x8x64xf32>
      tpu.vector_store %arg17[%c0_181, %c0_182, %c384], %188 {strides = array<i32>} : memref<2x8x2432xf32, #tpu.memory_space<vmem>>, vector<1x8x64xf32>,
      %c0_183 = arith.constant 0 : index
      %c16_184 = arith.constant 16 : index
      %189 = vector.load %arg16[%c0_183, %c16_184] : memref<8x256xf32, #tpu.memory_space<vmem>>, vector<8x16xf32>
      %c0_185 = arith.constant 0 : index
      %c0_186 = arith.constant 0 : index
      %190 = vector.load %arg13[%c0_185, %c0_186] : memref<16x64xf32, #tpu.memory_space<vmem>>, vector<16x64xf32>
      %cst_187 = arith.constant dense<0.000000e+00> : vector<8x64xf32>
      %191 = tpu.matmul %189, %190, %cst_187 {dimension_numbers = #tpu.dot_dimension_numbers<[1], [0], [0], [1], [0, 0, 1, 1], [], []>} : vector<8x16xf32>, vector<16x64xf32>, vector<8x64xf32> -> vector<8x64xf32>
      %c0_188 = arith.constant 0 : index
      %c0_189 = arith.constant 0 : index
      %c448 = arith.constant 448 : index
      %192 = vector.load %arg17[%c0_188, %c0_189, %c448] : memref<2x8x2432xf32, #tpu.memory_space<vmem>>, vector<1x8x64xf32>
      %193 = vector.shape_cast %192 : vector<1x8x64xf32> to vector<8x64xf32>
      %194 = vector.shape_cast %191 : vector<8x64xf32> to vector<1x8x64xf32>
      tpu.vector_store %arg17[%c0_188, %c0_189, %c448], %194 {strides = array<i32>} : memref<2x8x2432xf32, #tpu.memory_space<vmem>>, vector<1x8x64xf32>,
      %c0_190 = arith.constant 0 : index
      %c0_191 = arith.constant 0 : index
      %c512 = arith.constant 512 : index
      %195 = vector.load %arg17[%c0_190, %c0_191, %c512] : memref<2x8x2432xf32, #tpu.memory_space<vmem>>, vector<1x8x64xf32>
      %196 = vector.shape_cast %195 : vector<1x8x64xf32> to vector<8x64xf32>
      %197 = vector.shape_cast %191 : vector<8x64xf32> to vector<1x8x64xf32>
      tpu.vector_store %arg17[%c0_190, %c0_191, %c512], %197 {strides = array<i32>} : memref<2x8x2432xf32, #tpu.memory_space<vmem>>, vector<1x8x64xf32>,
      %c0_192 = arith.constant 0 : index
      %c0_193 = arith.constant 0 : index
      %c576 = arith.constant 576 : index
      %198 = vector.load %arg17[%c0_192, %c0_193, %c576] : memref<2x8x2432xf32, #tpu.memory_space<vmem>>, vector<1x8x64xf32>
      %199 = vector.shape_cast %198 : vector<1x8x64xf32> to vector<8x64xf32>
      %200 = vector.shape_cast %191 : vector<8x64xf32> to vector<1x8x64xf32>
      tpu.vector_store %arg17[%c0_192, %c0_193, %c576], %200 {strides = array<i32>} : memref<2x8x2432xf32, #tpu.memory_space<vmem>>, vector<1x8x64xf32>,
      %c0_194 = arith.constant 0 : index
      %c0_195 = arith.constant 0 : index
      %c640 = arith.constant 640 : index
      %201 = vector.load %arg17[%c0_194, %c0_195, %c640] : memref<2x8x2432xf32, #tpu.memory_space<vmem>>, vector<1x8x64xf32>
      %202 = vector.shape_cast %201 : vector<1x8x64xf32> to vector<8x64xf32>
      %203 = vector.shape_cast %191 : vector<8x64xf32> to vector<1x8x64xf32>
      tpu.vector_store %arg17[%c0_194, %c0_195, %c640], %203 {strides = array<i32>} : memref<2x8x2432xf32, #tpu.memory_space<vmem>>, vector<1x8x64xf32>,
      %c0_196 = arith.constant 0 : index
      %c32_197 = arith.constant 32 : index
      %204 = vector.load %arg16[%c0_196, %c32_197] : memref<8x256xf32, #tpu.memory_space<vmem>>, vector<8x16xf32>
      %c0_198 = arith.constant 0 : index
      %c0_199 = arith.constant 0 : index
      %205 = vector.load %arg13[%c0_198, %c0_199] : memref<16x64xf32, #tpu.memory_space<vmem>>, vector<16x64xf32>
      %cst_200 = arith.constant dense<0.000000e+00> : vector<8x64xf32>
      %206 = tpu.matmul %204, %205, %cst_200 {dimension_numbers = #tpu.dot_dimension_numbers<[1], [0], [0], [1], [0, 0, 1, 1], [], []>} : vector<8x16xf32>, vector<16x64xf32>, vector<8x64xf32> -> vector<8x64xf32>
      %c0_201 = arith.constant 0 : index
      %c0_202 = arith.constant 0 : index
      %c704 = arith.constant 704 : index
      %207 = vector.load %arg17[%c0_201, %c0_202, %c704] : memref<2x8x2432xf32, #tpu.memory_space<vmem>>, vector<1x8x64xf32>
      %208 = vector.shape_cast %207 : vector<1x8x64xf32> to vector<8x64xf32>
      %209 = vector.shape_cast %206 : vector<8x64xf32> to vector<1x8x64xf32>
      tpu.vector_store %arg17[%c0_201, %c0_202, %c704], %209 {strides = array<i32>} : memref<2x8x2432xf32, #tpu.memory_space<vmem>>, vector<1x8x64xf32>,
      %c0_203 = arith.constant 0 : index
      %c0_204 = arith.constant 0 : index
      %c768 = arith.constant 768 : index
      %210 = vector.load %arg17[%c0_203, %c0_204, %c768] : memref<2x8x2432xf32, #tpu.memory_space<vmem>>, vector<1x8x64xf32>
      %211 = vector.shape_cast %210 : vector<1x8x64xf32> to vector<8x64xf32>
      %212 = vector.shape_cast %206 : vector<8x64xf32> to vector<1x8x64xf32>
      tpu.vector_store %arg17[%c0_203, %c0_204, %c768], %212 {strides = array<i32>} : memref<2x8x2432xf32, #tpu.memory_space<vmem>>, vector<1x8x64xf32>,
      %c0_205 = arith.constant 0 : index
      %c0_206 = arith.constant 0 : index
      %c832 = arith.constant 832 : index
      %213 = vector.load %arg17[%c0_205, %c0_206, %c832] : memref<2x8x2432xf32, #tpu.memory_space<vmem>>, vector<1x8x64xf32>
      %214 = vector.shape_cast %213 : vector<1x8x64xf32> to vector<8x64xf32>
      %215 = vector.shape_cast %206 : vector<8x64xf32> to vector<1x8x64xf32>
      tpu.vector_store %arg17[%c0_205, %c0_206, %c832], %215 {strides = array<i32>} : memref<2x8x2432xf32, #tpu.memory_space<vmem>>, vector<1x8x64xf32>,
      %c0_207 = arith.constant 0 : index
      %c0_208 = arith.constant 0 : index
      %c896 = arith.constant 896 : index
      %216 = vector.load %arg17[%c0_207, %c0_208, %c896] : memref<2x8x2432xf32, #tpu.memory_space<vmem>>, vector<1x8x64xf32>
      %217 = vector.shape_cast %216 : vector<1x8x64xf32> to vector<8x64xf32>
      %218 = vector.shape_cast %206 : vector<8x64xf32> to vector<1x8x64xf32>
      tpu.vector_store %arg17[%c0_207, %c0_208, %c896], %218 {strides = array<i32>} : memref<2x8x2432xf32, #tpu.memory_space<vmem>>, vector<1x8x64xf32>,
      %c0_209 = arith.constant 0 : index
      %c48_210 = arith.constant 48 : index
      %219 = vector.load %arg16[%c0_209, %c48_210] : memref<8x256xf32, #tpu.memory_space<vmem>>, vector<8x16xf32>
      %c0_211 = arith.constant 0 : index
      %c0_212 = arith.constant 0 : index
      %220 = vector.load %arg13[%c0_211, %c0_212] : memref<16x64xf32, #tpu.memory_space<vmem>>, vector<16x64xf32>
      %cst_213 = arith.constant dense<0.000000e+00> : vector<8x64xf32>
      %221 = tpu.matmul %219, %220, %cst_213 {dimension_numbers = #tpu.dot_dimension_numbers<[1], [0], [0], [1], [0, 0, 1, 1], [], []>} : vector<8x16xf32>, vector<16x64xf32>, vector<8x64xf32> -> vector<8x64xf32>
      %c0_214 = arith.constant 0 : index
      %c0_215 = arith.constant 0 : index
      %c960 = arith.constant 960 : index
      %222 = vector.load %arg17[%c0_214, %c0_215, %c960] : memref<2x8x2432xf32, #tpu.memory_space<vmem>>, vector<1x8x64xf32>
      %223 = vector.shape_cast %222 : vector<1x8x64xf32> to vector<8x64xf32>
      %224 = vector.shape_cast %221 : vector<8x64xf32> to vector<1x8x64xf32>
      tpu.vector_store %arg17[%c0_214, %c0_215, %c960], %224 {strides = array<i32>} : memref<2x8x2432xf32, #tpu.memory_space<vmem>>, vector<1x8x64xf32>,
      %c0_216 = arith.constant 0 : index
      %c0_217 = arith.constant 0 : index
      %c1024 = arith.constant 1024 : index
      %225 = vector.load %arg17[%c0_216, %c0_217, %c1024] : memref<2x8x2432xf32, #tpu.memory_space<vmem>>, vector<1x8x64xf32>
      %226 = vector.shape_cast %225 : vector<1x8x64xf32> to vector<8x64xf32>
      %227 = vector.shape_cast %221 : vector<8x64xf32> to vector<1x8x64xf32>
      tpu.vector_store %arg17[%c0_216, %c0_217, %c1024], %227 {strides = array<i32>} : memref<2x8x2432xf32, #tpu.memory_space<vmem>>, vector<1x8x64xf32>,
      %c0_218 = arith.constant 0 : index
      %c0_219 = arith.constant 0 : index
      %c1088 = arith.constant 1088 : index
      %228 = vector.load %arg17[%c0_218, %c0_219, %c1088] : memref<2x8x2432xf32, #tpu.memory_space<vmem>>, vector<1x8x64xf32>
      %229 = vector.shape_cast %228 : vector<1x8x64xf32> to vector<8x64xf32>
      %230 = vector.shape_cast %221 : vector<8x64xf32> to vector<1x8x64xf32>
      tpu.vector_store %arg17[%c0_218, %c0_219, %c1088], %230 {strides = array<i32>} : memref<2x8x2432xf32, #tpu.memory_space<vmem>>, vector<1x8x64xf32>,
      %c0_220 = arith.constant 0 : index
      %c0_221 = arith.constant 0 : index
      %c1152 = arith.constant 1152 : index
      %231 = vector.load %arg17[%c0_220, %c0_221, %c1152] : memref<2x8x2432xf32, #tpu.memory_space<vmem>>, vector<1x8x64xf32>
      %232 = vector.shape_cast %231 : vector<1x8x64xf32> to vector<8x64xf32>
      %233 = vector.shape_cast %221 : vector<8x64xf32> to vector<1x8x64xf32>
      tpu.vector_store %arg17[%c0_220, %c0_221, %c1152], %233 {strides = array<i32>} : memref<2x8x2432xf32, #tpu.memory_space<vmem>>, vector<1x8x64xf32>,
      %c0_222 = arith.constant 0 : index
      %c64_223 = arith.constant 64 : index
      %234 = vector.load %arg16[%c0_222, %c64_223] : memref<8x256xf32, #tpu.memory_space<vmem>>, vector<8x16xf32>
      %c0_224 = arith.constant 0 : index
      %c0_225 = arith.constant 0 : index
      %235 = vector.load %arg13[%c0_224, %c0_225] : memref<16x64xf32, #tpu.memory_space<vmem>>, vector<16x64xf32>
      %cst_226 = arith.constant dense<0.000000e+00> : vector<8x64xf32>
      %236 = tpu.matmul %234, %235, %cst_226 {dimension_numbers = #tpu.dot_dimension_numbers<[1], [0], [0], [1], [0, 0, 1, 1], [], []>} : vector<8x16xf32>, vector<16x64xf32>, vector<8x64xf32> -> vector<8x64xf32>
      %c0_227 = arith.constant 0 : index
      %c0_228 = arith.constant 0 : index
      %c1216 = arith.constant 1216 : index
      %237 = vector.load %arg17[%c0_227, %c0_228, %c1216] : memref<2x8x2432xf32, #tpu.memory_space<vmem>>, vector<1x8x64xf32>
      %238 = vector.shape_cast %237 : vector<1x8x64xf32> to vector<8x64xf32>
      %239 = vector.shape_cast %236 : vector<8x64xf32> to vector<1x8x64xf32>
      tpu.vector_store %arg17[%c0_227, %c0_228, %c1216], %239 {strides = array<i32>} : memref<2x8x2432xf32, #tpu.memory_space<vmem>>, vector<1x8x64xf32>,
      %c0_229 = arith.constant 0 : index
      %c0_230 = arith.constant 0 : index
      %c1280 = arith.constant 1280 : index
      %240 = vector.load %arg17[%c0_229, %c0_230, %c1280] : memref<2x8x2432xf32, #tpu.memory_space<vmem>>, vector<1x8x64xf32>
      %241 = vector.shape_cast %240 : vector<1x8x64xf32> to vector<8x64xf32>
      %242 = vector.shape_cast %236 : vector<8x64xf32> to vector<1x8x64xf32>
      tpu.vector_store %arg17[%c0_229, %c0_230, %c1280], %242 {strides = array<i32>} : memref<2x8x2432xf32, #tpu.memory_space<vmem>>, vector<1x8x64xf32>,
      %c0_231 = arith.constant 0 : index
      %c0_232 = arith.constant 0 : index
      %c1344 = arith.constant 1344 : index
      %243 = vector.load %arg17[%c0_231, %c0_232, %c1344] : memref<2x8x2432xf32, #tpu.memory_space<vmem>>, vector<1x8x64xf32>
      %244 = vector.shape_cast %243 : vector<1x8x64xf32> to vector<8x64xf32>
      %245 = vector.shape_cast %236 : vector<8x64xf32> to vector<1x8x64xf32>
      tpu.vector_store %arg17[%c0_231, %c0_232, %c1344], %245 {strides = array<i32>} : memref<2x8x2432xf32, #tpu.memory_space<vmem>>, vector<1x8x64xf32>,
      %c0_233 = arith.constant 0 : index
      %c0_234 = arith.constant 0 : index
      %c1408 = arith.constant 1408 : index
      %246 = vector.load %arg17[%c0_233, %c0_234, %c1408] : memref<2x8x2432xf32, #tpu.memory_space<vmem>>, vector<1x8x64xf32>
      %247 = vector.shape_cast %246 : vector<1x8x64xf32> to vector<8x64xf32>
      %248 = vector.shape_cast %236 : vector<8x64xf32> to vector<1x8x64xf32>
      tpu.vector_store %arg17[%c0_233, %c0_234, %c1408], %248 {strides = array<i32>} : memref<2x8x2432xf32, #tpu.memory_space<vmem>>, vector<1x8x64xf32>,
      %c0_235 = arith.constant 0 : index
      %c80 = arith.constant 80 : index
      %249 = vector.load %arg16[%c0_235, %c80] : memref<8x256xf32, #tpu.memory_space<vmem>>, vector<8x16xf32>
      %c0_236 = arith.constant 0 : index
      %c0_237 = arith.constant 0 : index
      %250 = vector.load %arg13[%c0_236, %c0_237] : memref<16x64xf32, #tpu.memory_space<vmem>>, vector<16x64xf32>
      %cst_238 = arith.constant dense<0.000000e+00> : vector<8x64xf32>
      %251 = tpu.matmul %249, %250, %cst_238 {dimension_numbers = #tpu.dot_dimension_numbers<[1], [0], [0], [1], [0, 0, 1, 1], [], []>} : vector<8x16xf32>, vector<16x64xf32>, vector<8x64xf32> -> vector<8x64xf32>
      %c0_239 = arith.constant 0 : index
      %c0_240 = arith.constant 0 : index
      %c1472 = arith.constant 1472 : index
      %252 = vector.load %arg17[%c0_239, %c0_240, %c1472] : memref<2x8x2432xf32, #tpu.memory_space<vmem>>, vector<1x8x64xf32>
      %253 = vector.shape_cast %252 : vector<1x8x64xf32> to vector<8x64xf32>
      %254 = vector.shape_cast %251 : vector<8x64xf32> to vector<1x8x64xf32>
      tpu.vector_store %arg17[%c0_239, %c0_240, %c1472], %254 {strides = array<i32>} : memref<2x8x2432xf32, #tpu.memory_space<vmem>>, vector<1x8x64xf32>,
      %c0_241 = arith.constant 0 : index
      %c0_242 = arith.constant 0 : index
      %c1536 = arith.constant 1536 : index
      %255 = vector.load %arg17[%c0_241, %c0_242, %c1536] : memref<2x8x2432xf32, #tpu.memory_space<vmem>>, vector<1x8x64xf32>
      %256 = vector.shape_cast %255 : vector<1x8x64xf32> to vector<8x64xf32>
      %257 = vector.shape_cast %251 : vector<8x64xf32> to vector<1x8x64xf32>
      tpu.vector_store %arg17[%c0_241, %c0_242, %c1536], %257 {strides = array<i32>} : memref<2x8x2432xf32, #tpu.memory_space<vmem>>, vector<1x8x64xf32>,
      %c0_243 = arith.constant 0 : index
      %c0_244 = arith.constant 0 : index
      %c1600 = arith.constant 1600 : index
      %258 = vector.load %arg17[%c0_243, %c0_244, %c1600] : memref<2x8x2432xf32, #tpu.memory_space<vmem>>, vector<1x8x64xf32>
      %259 = vector.shape_cast %258 : vector<1x8x64xf32> to vector<8x64xf32>
      %260 = vector.shape_cast %251 : vector<8x64xf32> to vector<1x8x64xf32>
      tpu.vector_store %arg17[%c0_243, %c0_244, %c1600], %260 {strides = array<i32>} : memref<2x8x2432xf32, #tpu.memory_space<vmem>>, vector<1x8x64xf32>,
      %c0_245 = arith.constant 0 : index
      %c0_246 = arith.constant 0 : index
      %c1664 = arith.constant 1664 : index
      %261 = vector.load %arg17[%c0_245, %c0_246, %c1664] : memref<2x8x2432xf32, #tpu.memory_space<vmem>>, vector<1x8x64xf32>
      %262 = vector.shape_cast %261 : vector<1x8x64xf32> to vector<8x64xf32>
      %263 = vector.shape_cast %251 : vector<8x64xf32> to vector<1x8x64xf32>
      tpu.vector_store %arg17[%c0_245, %c0_246, %c1664], %263 {strides = array<i32>} : memref<2x8x2432xf32, #tpu.memory_space<vmem>>, vector<1x8x64xf32>,
      %c0_247 = arith.constant 0 : index
      %c96 = arith.constant 96 : index
      %264 = vector.load %arg16[%c0_247, %c96] : memref<8x256xf32, #tpu.memory_space<vmem>>, vector<8x16xf32>
      %c0_248 = arith.constant 0 : index
      %c0_249 = arith.constant 0 : index
      %265 = vector.load %arg13[%c0_248, %c0_249] : memref<16x64xf32, #tpu.memory_space<vmem>>, vector<16x64xf32>
      %cst_250 = arith.constant dense<0.000000e+00> : vector<8x64xf32>
      %266 = tpu.matmul %264, %265, %cst_250 {dimension_numbers = #tpu.dot_dimension_numbers<[1], [0], [0], [1], [0, 0, 1, 1], [], []>} : vector<8x16xf32>, vector<16x64xf32>, vector<8x64xf32> -> vector<8x64xf32>
      %c0_251 = arith.constant 0 : index
      %c0_252 = arith.constant 0 : index
      %c1728 = arith.constant 1728 : index
      %267 = vector.load %arg17[%c0_251, %c0_252, %c1728] : memref<2x8x2432xf32, #tpu.memory_space<vmem>>, vector<1x8x64xf32>
      %268 = vector.shape_cast %267 : vector<1x8x64xf32> to vector<8x64xf32>
      %269 = vector.shape_cast %266 : vector<8x64xf32> to vector<1x8x64xf32>
      tpu.vector_store %arg17[%c0_251, %c0_252, %c1728], %269 {strides = array<i32>} : memref<2x8x2432xf32, #tpu.memory_space<vmem>>, vector<1x8x64xf32>,
      %c0_253 = arith.constant 0 : index
      %c0_254 = arith.constant 0 : index
      %c1792 = arith.constant 1792 : index
      %270 = vector.load %arg17[%c0_253, %c0_254, %c1792] : memref<2x8x2432xf32, #tpu.memory_space<vmem>>, vector<1x8x64xf32>
      %271 = vector.shape_cast %270 : vector<1x8x64xf32> to vector<8x64xf32>
      %272 = vector.shape_cast %266 : vector<8x64xf32> to vector<1x8x64xf32>
      tpu.vector_store %arg17[%c0_253, %c0_254, %c1792], %272 {strides = array<i32>} : memref<2x8x2432xf32, #tpu.memory_space<vmem>>, vector<1x8x64xf32>,
      %c0_255 = arith.constant 0 : index
      %c0_256 = arith.constant 0 : index
      %c1856 = arith.constant 1856 : index
      %273 = vector.load %arg17[%c0_255, %c0_256, %c1856] : memref<2x8x2432xf32, #tpu.memory_space<vmem>>, vector<1x8x64xf32>
      %274 = vector.shape_cast %273 : vector<1x8x64xf32> to vector<8x64xf32>
      %275 = vector.shape_cast %266 : vector<8x64xf32> to vector<1x8x64xf32>
      tpu.vector_store %arg17[%c0_255, %c0_256, %c1856], %275 {strides = array<i32>} : memref<2x8x2432xf32, #tpu.memory_space<vmem>>, vector<1x8x64xf32>,
      %c0_257 = arith.constant 0 : index
      %c0_258 = arith.constant 0 : index
      %c1920 = arith.constant 1920 : index
      %276 = vector.load %arg17[%c0_257, %c0_258, %c1920] : memref<2x8x2432xf32, #tpu.memory_space<vmem>>, vector<1x8x64xf32>
      %277 = vector.shape_cast %276 : vector<1x8x64xf32> to vector<8x64xf32>
      %278 = vector.shape_cast %266 : vector<8x64xf32> to vector<1x8x64xf32>
      tpu.vector_store %arg17[%c0_257, %c0_258, %c1920], %278 {strides = array<i32>} : memref<2x8x2432xf32, #tpu.memory_space<vmem>>, vector<1x8x64xf32>,
      %c0_259 = arith.constant 0 : index
      %c112 = arith.constant 112 : index
      %279 = vector.load %arg16[%c0_259, %c112] : memref<8x256xf32, #tpu.memory_space<vmem>>, vector<8x16xf32>
      %c0_260 = arith.constant 0 : index
      %c0_261 = arith.constant 0 : index
      %280 = vector.load %arg13[%c0_260, %c0_261] : memref<16x64xf32, #tpu.memory_space<vmem>>, vector<16x64xf32>
      %cst_262 = arith.constant dense<0.000000e+00> : vector<8x64xf32>
      %281 = tpu.matmul %279, %280, %cst_262 {dimension_numbers = #tpu.dot_dimension_numbers<[1], [0], [0], [1], [0, 0, 1, 1], [], []>} : vector<8x16xf32>, vector<16x64xf32>, vector<8x64xf32> -> vector<8x64xf32>
      %c0_263 = arith.constant 0 : index
      %c0_264 = arith.constant 0 : index
      %c1984 = arith.constant 1984 : index
      %282 = vector.load %arg17[%c0_263, %c0_264, %c1984] : memref<2x8x2432xf32, #tpu.memory_space<vmem>>, vector<1x8x64xf32>
      %283 = vector.shape_cast %282 : vector<1x8x64xf32> to vector<8x64xf32>
      %284 = vector.shape_cast %281 : vector<8x64xf32> to vector<1x8x64xf32>
      tpu.vector_store %arg17[%c0_263, %c0_264, %c1984], %284 {strides = array<i32>} : memref<2x8x2432xf32, #tpu.memory_space<vmem>>, vector<1x8x64xf32>,
      %c0_265 = arith.constant 0 : index
      %c0_266 = arith.constant 0 : index
      %c2048 = arith.constant 2048 : index
      %285 = vector.load %arg17[%c0_265, %c0_266, %c2048] : memref<2x8x2432xf32, #tpu.memory_space<vmem>>, vector<1x8x64xf32>
      %286 = vector.shape_cast %285 : vector<1x8x64xf32> to vector<8x64xf32>
      %287 = vector.shape_cast %281 : vector<8x64xf32> to vector<1x8x64xf32>
      tpu.vector_store %arg17[%c0_265, %c0_266, %c2048], %287 {strides = array<i32>} : memref<2x8x2432xf32, #tpu.memory_space<vmem>>, vector<1x8x64xf32>,
      %c0_267 = arith.constant 0 : index
      %c0_268 = arith.constant 0 : index
      %c2112 = arith.constant 2112 : index
      %288 = vector.load %arg17[%c0_267, %c0_268, %c2112] : memref<2x8x2432xf32, #tpu.memory_space<vmem>>, vector<1x8x64xf32>
      %289 = vector.shape_cast %288 : vector<1x8x64xf32> to vector<8x64xf32>
      %290 = vector.shape_cast %281 : vector<8x64xf32> to vector<1x8x64xf32>
      tpu.vector_store %arg17[%c0_267, %c0_268, %c2112], %290 {strides = array<i32>} : memref<2x8x2432xf32, #tpu.memory_space<vmem>>, vector<1x8x64xf32>,
      %c1 = arith.constant 1 : index
      %c0_269 = arith.constant 0 : index
      %c64_270 = arith.constant 64 : index
      %291 = vector.load %arg17[%c1, %c0_269, %c64_270] : memref<2x8x2432xf32, #tpu.memory_space<vmem>>, vector<1x8x64xf32>
      %292 = vector.shape_cast %291 : vector<1x8x64xf32> to vector<8x64xf32>
      %293 = vector.shape_cast %281 : vector<8x64xf32> to vector<1x8x64xf32>
      tpu.vector_store %arg17[%c1, %c0_269, %c64_270], %293 {strides = array<i32>} : memref<2x8x2432xf32, #tpu.memory_space<vmem>>, vector<1x8x64xf32>,
      %c0_271 = arith.constant 0 : index
      %c0_272 = arith.constant 0 : index
      %c2176 = arith.constant 2176 : index
      %294 = vector.load %arg17[%c0_271, %c0_272, %c2176] : memref<2x8x2432xf32, #tpu.memory_space<vmem>>, vector<1x8x64xf32>
      %295 = vector.shape_cast %294 : vector<1x8x64xf32> to vector<8x64xf32>
      %296 = vector.shape_cast %281 : vector<8x64xf32> to vector<1x8x64xf32>
      tpu.vector_store %arg17[%c0_271, %c0_272, %c2176], %296 {strides = array<i32>} : memref<2x8x2432xf32, #tpu.memory_space<vmem>>, vector<1x8x64xf32>,
      %c1_273 = arith.constant 1 : index
      %c0_274 = arith.constant 0 : index
      %c128_275 = arith.constant 128 : index
      %297 = vector.load %arg17[%c1_273, %c0_274, %c128_275] : memref<2x8x2432xf32, #tpu.memory_space<vmem>>, vector<1x8x64xf32>
      %298 = vector.shape_cast %297 : vector<1x8x64xf32> to vector<8x64xf32>
      %299 = vector.shape_cast %281 : vector<8x64xf32> to vector<1x8x64xf32>
      tpu.vector_store %arg17[%c1_273, %c0_274, %c128_275], %299 {strides = array<i32>} : memref<2x8x2432xf32, #tpu.memory_space<vmem>>, vector<1x8x64xf32>,
      %c0_276 = arith.constant 0 : index
      %c128_277 = arith.constant 128 : index
      %300 = vector.load %arg16[%c0_276, %c128_277] : memref<8x256xf32, #tpu.memory_space<vmem>>, vector<8x16xf32>
      %c0_278 = arith.constant 0 : index
      %c0_279 = arith.constant 0 : index
      %301 = vector.load %arg13[%c0_278, %c0_279] : memref<16x64xf32, #tpu.memory_space<vmem>>, vector<16x64xf32>
      %cst_280 = arith.constant dense<0.000000e+00> : vector<8x64xf32>
      %302 = tpu.matmul %300, %301, %cst_280 {dimension_numbers = #tpu.dot_dimension_numbers<[1], [0], [0], [1], [0, 0, 1, 1], [], []>} : vector<8x16xf32>, vector<16x64xf32>, vector<8x64xf32> -> vector<8x64xf32>
      %c0_281 = arith.constant 0 : index
      %c0_282 = arith.constant 0 : index
      %c2240 = arith.constant 2240 : index
      %303 = vector.load %arg17[%c0_281, %c0_282, %c2240] : memref<2x8x2432xf32, #tpu.memory_space<vmem>>, vector<1x8x64xf32>
      %304 = vector.shape_cast %303 : vector<1x8x64xf32> to vector<8x64xf32>
      %305 = vector.shape_cast %302 : vector<8x64xf32> to vector<1x8x64xf32>
      tpu.vector_store %arg17[%c0_281, %c0_282, %c2240], %305 {strides = array<i32>} : memref<2x8x2432xf32, #tpu.memory_space<vmem>>, vector<1x8x64xf32>,
      %c1_283 = arith.constant 1 : index
      %c0_284 = arith.constant 0 : index
      %c192_285 = arith.constant 192 : index
      %306 = vector.load %arg17[%c1_283, %c0_284, %c192_285] : memref<2x8x2432xf32, #tpu.memory_space<vmem>>, vector<1x8x64xf32>
      %307 = vector.shape_cast %306 : vector<1x8x64xf32> to vector<8x64xf32>
      %308 = vector.shape_cast %302 : vector<8x64xf32> to vector<1x8x64xf32>
      tpu.vector_store %arg17[%c1_283, %c0_284, %c192_285], %308 {strides = array<i32>} : memref<2x8x2432xf32, #tpu.memory_space<vmem>>, vector<1x8x64xf32>,
      %c0_286 = arith.constant 0 : index
      %c0_287 = arith.constant 0 : index
      %c2304 = arith.constant 2304 : index
      %309 = vector.load %arg17[%c0_286, %c0_287, %c2304] : memref<2x8x2432xf32, #tpu.memory_space<vmem>>, vector<1x8x64xf32>
      %310 = vector.shape_cast %309 : vector<1x8x64xf32> to vector<8x64xf32>
      %311 = vector.shape_cast %302 : vector<8x64xf32> to vector<1x8x64xf32>
      tpu.vector_store %arg17[%c0_286, %c0_287, %c2304], %311 {strides = array<i32>} : memref<2x8x2432xf32, #tpu.memory_space<vmem>>, vector<1x8x64xf32>,
      %c1_288 = arith.constant 1 : index
      %c0_289 = arith.constant 0 : index
      %c256_290 = arith.constant 256 : index
      %312 = vector.load %arg17[%c1_288, %c0_289, %c256_290] : memref<2x8x2432xf32, #tpu.memory_space<vmem>>, vector<1x8x64xf32>
      %313 = vector.shape_cast %312 : vector<1x8x64xf32> to vector<8x64xf32>
      %314 = vector.shape_cast %302 : vector<8x64xf32> to vector<1x8x64xf32>
      tpu.vector_store %arg17[%c1_288, %c0_289, %c256_290], %314 {strides = array<i32>} : memref<2x8x2432xf32, #tpu.memory_space<vmem>>, vector<1x8x64xf32>,
      %c1_291 = arith.constant 1 : index
      %c0_292 = arith.constant 0 : index
      %c320_293 = arith.constant 320 : index
      %315 = vector.load %arg17[%c1_291, %c0_292, %c320_293] : memref<2x8x2432xf32, #tpu.memory_space<vmem>>, vector<1x8x64xf32>
      %316 = vector.shape_cast %315 : vector<1x8x64xf32> to vector<8x64xf32>
      %317 = vector.shape_cast %302 : vector<8x64xf32> to vector<1x8x64xf32>
      tpu.vector_store %arg17[%c1_291, %c0_292, %c320_293], %317 {strides = array<i32>} : memref<2x8x2432xf32, #tpu.memory_space<vmem>>, vector<1x8x64xf32>,
      %c1_294 = arith.constant 1 : index
      %c0_295 = arith.constant 0 : index
      %c384_296 = arith.constant 384 : index
      %318 = vector.load %arg17[%c1_294, %c0_295, %c384_296] : memref<2x8x2432xf32, #tpu.memory_space<vmem>>, vector<1x8x64xf32>
      %319 = vector.shape_cast %318 : vector<1x8x64xf32> to vector<8x64xf32>
      %320 = vector.shape_cast %302 : vector<8x64xf32> to vector<1x8x64xf32>
      tpu.vector_store %arg17[%c1_294, %c0_295, %c384_296], %320 {strides = array<i32>} : memref<2x8x2432xf32, #tpu.memory_space<vmem>>, vector<1x8x64xf32>,
      %c0_297 = arith.constant 0 : index
      %c144 = arith.constant 144 : index
      %321 = vector.load %arg16[%c0_297, %c144] : memref<8x256xf32, #tpu.memory_space<vmem>>, vector<8x16xf32>
      %c0_298 = arith.constant 0 : index
      %c0_299 = arith.constant 0 : index
      %322 = vector.load %arg13[%c0_298, %c0_299] : memref<16x64xf32, #tpu.memory_space<vmem>>, vector<16x64xf32>
      %cst_300 = arith.constant dense<0.000000e+00> : vector<8x64xf32>
      %323 = tpu.matmul %321, %322, %cst_300 {dimension_numbers = #tpu.dot_dimension_numbers<[1], [0], [0], [1], [0, 0, 1, 1], [], []>} : vector<8x16xf32>, vector<16x64xf32>, vector<8x64xf32> -> vector<8x64xf32>
      %c1_301 = arith.constant 1 : index
      %c0_302 = arith.constant 0 : index
      %c448_303 = arith.constant 448 : index
      %324 = vector.load %arg17[%c1_301, %c0_302, %c448_303] : memref<2x8x2432xf32, #tpu.memory_space<vmem>>, vector<1x8x64xf32>
      %325 = vector.shape_cast %324 : vector<1x8x64xf32> to vector<8x64xf32>
      %326 = vector.shape_cast %323 : vector<8x64xf32> to vector<1x8x64xf32>
      tpu.vector_store %arg17[%c1_301, %c0_302, %c448_303], %326 {strides = array<i32>} : memref<2x8x2432xf32, #tpu.memory_space<vmem>>, vector<1x8x64xf32>,
      %c1_304 = arith.constant 1 : index
      %c0_305 = arith.constant 0 : index
      %c512_306 = arith.constant 512 : index
      %327 = vector.load %arg17[%c1_304, %c0_305, %c512_306] : memref<2x8x2432xf32, #tpu.memory_space<vmem>>, vector<1x8x64xf32>
      %328 = vector.shape_cast %327 : vector<1x8x64xf32> to vector<8x64xf32>
      %329 = vector.shape_cast %323 : vector<8x64xf32> to vector<1x8x64xf32>
      tpu.vector_store %arg17[%c1_304, %c0_305, %c512_306], %329 {strides = array<i32>} : memref<2x8x2432xf32, #tpu.memory_space<vmem>>, vector<1x8x64xf32>,
      %c1_307 = arith.constant 1 : index
      %c0_308 = arith.constant 0 : index
      %c576_309 = arith.constant 576 : index
      %330 = vector.load %arg17[%c1_307, %c0_308, %c576_309] : memref<2x8x2432xf32, #tpu.memory_space<vmem>>, vector<1x8x64xf32>
      %331 = vector.shape_cast %330 : vector<1x8x64xf32> to vector<8x64xf32>
      %332 = vector.shape_cast %323 : vector<8x64xf32> to vector<1x8x64xf32>
      tpu.vector_store %arg17[%c1_307, %c0_308, %c576_309], %332 {strides = array<i32>} : memref<2x8x2432xf32, #tpu.memory_space<vmem>>, vector<1x8x64xf32>,
      %c1_310 = arith.constant 1 : index
      %c0_311 = arith.constant 0 : index
      %c640_312 = arith.constant 640 : index
      %333 = vector.load %arg17[%c1_310, %c0_311, %c640_312] : memref<2x8x2432xf32, #tpu.memory_space<vmem>>, vector<1x8x64xf32>
      %334 = vector.shape_cast %333 : vector<1x8x64xf32> to vector<8x64xf32>
      %335 = vector.shape_cast %323 : vector<8x64xf32> to vector<1x8x64xf32>
      tpu.vector_store %arg17[%c1_310, %c0_311, %c640_312], %335 {strides = array<i32>} : memref<2x8x2432xf32, #tpu.memory_space<vmem>>, vector<1x8x64xf32>,
      %c0_313 = arith.constant 0 : index
      %c160 = arith.constant 160 : index
      %336 = vector.load %arg16[%c0_313, %c160] : memref<8x256xf32, #tpu.memory_space<vmem>>, vector<8x16xf32>
      %c0_314 = arith.constant 0 : index
      %c0_315 = arith.constant 0 : index
      %337 = vector.load %arg13[%c0_314, %c0_315] : memref<16x64xf32, #tpu.memory_space<vmem>>, vector<16x64xf32>
      %cst_316 = arith.constant dense<0.000000e+00> : vector<8x64xf32>
      %338 = tpu.matmul %336, %337, %cst_316 {dimension_numbers = #tpu.dot_dimension_numbers<[1], [0], [0], [1], [0, 0, 1, 1], [], []>} : vector<8x16xf32>, vector<16x64xf32>, vector<8x64xf32> -> vector<8x64xf32>
      %c1_317 = arith.constant 1 : index
      %c0_318 = arith.constant 0 : index
      %c704_319 = arith.constant 704 : index
      %339 = vector.load %arg17[%c1_317, %c0_318, %c704_319] : memref<2x8x2432xf32, #tpu.memory_space<vmem>>, vector<1x8x64xf32>
      %340 = vector.shape_cast %339 : vector<1x8x64xf32> to vector<8x64xf32>
      %341 = vector.shape_cast %338 : vector<8x64xf32> to vector<1x8x64xf32>
      tpu.vector_store %arg17[%c1_317, %c0_318, %c704_319], %341 {strides = array<i32>} : memref<2x8x2432xf32, #tpu.memory_space<vmem>>, vector<1x8x64xf32>,
      %c1_320 = arith.constant 1 : index
      %c0_321 = arith.constant 0 : index
      %c768_322 = arith.constant 768 : index
      %342 = vector.load %arg17[%c1_320, %c0_321, %c768_322] : memref<2x8x2432xf32, #tpu.memory_space<vmem>>, vector<1x8x64xf32>
      %343 = vector.shape_cast %342 : vector<1x8x64xf32> to vector<8x64xf32>
      %344 = vector.shape_cast %338 : vector<8x64xf32> to vector<1x8x64xf32>
      tpu.vector_store %arg17[%c1_320, %c0_321, %c768_322], %344 {strides = array<i32>} : memref<2x8x2432xf32, #tpu.memory_space<vmem>>, vector<1x8x64xf32>,
      %c1_323 = arith.constant 1 : index
      %c0_324 = arith.constant 0 : index
      %c832_325 = arith.constant 832 : index
      %345 = vector.load %arg17[%c1_323, %c0_324, %c832_325] : memref<2x8x2432xf32, #tpu.memory_space<vmem>>, vector<1x8x64xf32>
      %346 = vector.shape_cast %345 : vector<1x8x64xf32> to vector<8x64xf32>
      %347 = vector.shape_cast %338 : vector<8x64xf32> to vector<1x8x64xf32>
      tpu.vector_store %arg17[%c1_323, %c0_324, %c832_325], %347 {strides = array<i32>} : memref<2x8x2432xf32, #tpu.memory_space<vmem>>, vector<1x8x64xf32>,
      %c1_326 = arith.constant 1 : index
      %c0_327 = arith.constant 0 : index
      %c896_328 = arith.constant 896 : index
      %348 = vector.load %arg17[%c1_326, %c0_327, %c896_328] : memref<2x8x2432xf32, #tpu.memory_space<vmem>>, vector<1x8x64xf32>
      %349 = vector.shape_cast %348 : vector<1x8x64xf32> to vector<8x64xf32>
      %350 = vector.shape_cast %338 : vector<8x64xf32> to vector<1x8x64xf32>
      tpu.vector_store %arg17[%c1_326, %c0_327, %c896_328], %350 {strides = array<i32>} : memref<2x8x2432xf32, #tpu.memory_space<vmem>>, vector<1x8x64xf32>,
      %c0_329 = arith.constant 0 : index
      %c176 = arith.constant 176 : index
      %351 = vector.load %arg16[%c0_329, %c176] : memref<8x256xf32, #tpu.memory_space<vmem>>, vector<8x16xf32>
      %c0_330 = arith.constant 0 : index
      %c0_331 = arith.constant 0 : index
      %352 = vector.load %arg13[%c0_330, %c0_331] : memref<16x64xf32, #tpu.memory_space<vmem>>, vector<16x64xf32>
      %cst_332 = arith.constant dense<0.000000e+00> : vector<8x64xf32>
      %353 = tpu.matmul %351, %352, %cst_332 {dimension_numbers = #tpu.dot_dimension_numbers<[1], [0], [0], [1], [0, 0, 1, 1], [], []>} : vector<8x16xf32>, vector<16x64xf32>, vector<8x64xf32> -> vector<8x64xf32>
      %c1_333 = arith.constant 1 : index
      %c0_334 = arith.constant 0 : index
      %c960_335 = arith.constant 960 : index
      %354 = vector.load %arg17[%c1_333, %c0_334, %c960_335] : memref<2x8x2432xf32, #tpu.memory_space<vmem>>, vector<1x8x64xf32>
      %355 = vector.shape_cast %354 : vector<1x8x64xf32> to vector<8x64xf32>
      %356 = vector.shape_cast %353 : vector<8x64xf32> to vector<1x8x64xf32>
      tpu.vector_store %arg17[%c1_333, %c0_334, %c960_335], %356 {strides = array<i32>} : memref<2x8x2432xf32, #tpu.memory_space<vmem>>, vector<1x8x64xf32>,
      %c1_336 = arith.constant 1 : index
      %c0_337 = arith.constant 0 : index
      %c1024_338 = arith.constant 1024 : index
      %357 = vector.load %arg17[%c1_336, %c0_337, %c1024_338] : memref<2x8x2432xf32, #tpu.memory_space<vmem>>, vector<1x8x64xf32>
      %358 = vector.shape_cast %357 : vector<1x8x64xf32> to vector<8x64xf32>
      %359 = vector.shape_cast %353 : vector<8x64xf32> to vector<1x8x64xf32>
      tpu.vector_store %arg17[%c1_336, %c0_337, %c1024_338], %359 {strides = array<i32>} : memref<2x8x2432xf32, #tpu.memory_space<vmem>>, vector<1x8x64xf32>,
      %c1_339 = arith.constant 1 : index
      %c0_340 = arith.constant 0 : index
      %c1088_341 = arith.constant 1088 : index
      %360 = vector.load %arg17[%c1_339, %c0_340, %c1088_341] : memref<2x8x2432xf32, #tpu.memory_space<vmem>>, vector<1x8x64xf32>
      %361 = vector.shape_cast %360 : vector<1x8x64xf32> to vector<8x64xf32>
      %362 = vector.shape_cast %353 : vector<8x64xf32> to vector<1x8x64xf32>
      tpu.vector_store %arg17[%c1_339, %c0_340, %c1088_341], %362 {strides = array<i32>} : memref<2x8x2432xf32, #tpu.memory_space<vmem>>, vector<1x8x64xf32>,
      %c1_342 = arith.constant 1 : index
      %c0_343 = arith.constant 0 : index
      %c1152_344 = arith.constant 1152 : index
      %363 = vector.load %arg17[%c1_342, %c0_343, %c1152_344] : memref<2x8x2432xf32, #tpu.memory_space<vmem>>, vector<1x8x64xf32>
      %364 = vector.shape_cast %363 : vector<1x8x64xf32> to vector<8x64xf32>
      %365 = vector.shape_cast %353 : vector<8x64xf32> to vector<1x8x64xf32>
      tpu.vector_store %arg17[%c1_342, %c0_343, %c1152_344], %365 {strides = array<i32>} : memref<2x8x2432xf32, #tpu.memory_space<vmem>>, vector<1x8x64xf32>,
      %c0_345 = arith.constant 0 : index
      %c192_346 = arith.constant 192 : index
      %366 = vector.load %arg16[%c0_345, %c192_346] : memref<8x256xf32, #tpu.memory_space<vmem>>, vector<8x16xf32>
      %c0_347 = arith.constant 0 : index
      %c0_348 = arith.constant 0 : index
      %367 = vector.load %arg13[%c0_347, %c0_348] : memref<16x64xf32, #tpu.memory_space<vmem>>, vector<16x64xf32>
      %cst_349 = arith.constant dense<0.000000e+00> : vector<8x64xf32>
      %368 = tpu.matmul %366, %367, %cst_349 {dimension_numbers = #tpu.dot_dimension_numbers<[1], [0], [0], [1], [0, 0, 1, 1], [], []>} : vector<8x16xf32>, vector<16x64xf32>, vector<8x64xf32> -> vector<8x64xf32>
      %c1_350 = arith.constant 1 : index
      %c0_351 = arith.constant 0 : index
      %c1216_352 = arith.constant 1216 : index
      %369 = vector.load %arg17[%c1_350, %c0_351, %c1216_352] : memref<2x8x2432xf32, #tpu.memory_space<vmem>>, vector<1x8x64xf32>
      %370 = vector.shape_cast %369 : vector<1x8x64xf32> to vector<8x64xf32>
      %371 = vector.shape_cast %368 : vector<8x64xf32> to vector<1x8x64xf32>
      tpu.vector_store %arg17[%c1_350, %c0_351, %c1216_352], %371 {strides = array<i32>} : memref<2x8x2432xf32, #tpu.memory_space<vmem>>, vector<1x8x64xf32>,
      %c1_353 = arith.constant 1 : index
      %c0_354 = arith.constant 0 : index
      %c1280_355 = arith.constant 1280 : index
      %372 = vector.load %arg17[%c1_353, %c0_354, %c1280_355] : memref<2x8x2432xf32, #tpu.memory_space<vmem>>, vector<1x8x64xf32>
      %373 = vector.shape_cast %372 : vector<1x8x64xf32> to vector<8x64xf32>
      %374 = vector.shape_cast %368 : vector<8x64xf32> to vector<1x8x64xf32>
      tpu.vector_store %arg17[%c1_353, %c0_354, %c1280_355], %374 {strides = array<i32>} : memref<2x8x2432xf32, #tpu.memory_space<vmem>>, vector<1x8x64xf32>,
      %c1_356 = arith.constant 1 : index
      %c0_357 = arith.constant 0 : index
      %c1344_358 = arith.constant 1344 : index
      %375 = vector.load %arg17[%c1_356, %c0_357, %c1344_358] : memref<2x8x2432xf32, #tpu.memory_space<vmem>>, vector<1x8x64xf32>
      %376 = vector.shape_cast %375 : vector<1x8x64xf32> to vector<8x64xf32>
      %377 = vector.shape_cast %368 : vector<8x64xf32> to vector<1x8x64xf32>
      tpu.vector_store %arg17[%c1_356, %c0_357, %c1344_358], %377 {strides = array<i32>} : memref<2x8x2432xf32, #tpu.memory_space<vmem>>, vector<1x8x64xf32>,
      %c1_359 = arith.constant 1 : index
      %c0_360 = arith.constant 0 : index
      %c1408_361 = arith.constant 1408 : index
      %378 = vector.load %arg17[%c1_359, %c0_360, %c1408_361] : memref<2x8x2432xf32, #tpu.memory_space<vmem>>, vector<1x8x64xf32>
      %379 = vector.shape_cast %378 : vector<1x8x64xf32> to vector<8x64xf32>
      %380 = vector.shape_cast %368 : vector<8x64xf32> to vector<1x8x64xf32>
      tpu.vector_store %arg17[%c1_359, %c0_360, %c1408_361], %380 {strides = array<i32>} : memref<2x8x2432xf32, #tpu.memory_space<vmem>>, vector<1x8x64xf32>,
      %c0_362 = arith.constant 0 : index
      %c208 = arith.constant 208 : index
      %381 = vector.load %arg16[%c0_362, %c208] : memref<8x256xf32, #tpu.memory_space<vmem>>, vector<8x16xf32>
      %c0_363 = arith.constant 0 : index
      %c0_364 = arith.constant 0 : index
      %382 = vector.load %arg13[%c0_363, %c0_364] : memref<16x64xf32, #tpu.memory_space<vmem>>, vector<16x64xf32>
      %cst_365 = arith.constant dense<0.000000e+00> : vector<8x64xf32>
      %383 = tpu.matmul %381, %382, %cst_365 {dimension_numbers = #tpu.dot_dimension_numbers<[1], [0], [0], [1], [0, 0, 1, 1], [], []>} : vector<8x16xf32>, vector<16x64xf32>, vector<8x64xf32> -> vector<8x64xf32>
      %c1_366 = arith.constant 1 : index
      %c0_367 = arith.constant 0 : index
      %c1472_368 = arith.constant 1472 : index
      %384 = vector.load %arg17[%c1_366, %c0_367, %c1472_368] : memref<2x8x2432xf32, #tpu.memory_space<vmem>>, vector<1x8x64xf32>
      %385 = vector.shape_cast %384 : vector<1x8x64xf32> to vector<8x64xf32>
      %386 = vector.shape_cast %383 : vector<8x64xf32> to vector<1x8x64xf32>
      tpu.vector_store %arg17[%c1_366, %c0_367, %c1472_368], %386 {strides = array<i32>} : memref<2x8x2432xf32, #tpu.memory_space<vmem>>, vector<1x8x64xf32>,
      %c1_369 = arith.constant 1 : index
      %c0_370 = arith.constant 0 : index
      %c1536_371 = arith.constant 1536 : index
      %387 = vector.load %arg17[%c1_369, %c0_370, %c1536_371] : memref<2x8x2432xf32, #tpu.memory_space<vmem>>, vector<1x8x64xf32>
      %388 = vector.shape_cast %387 : vector<1x8x64xf32> to vector<8x64xf32>
      %389 = vector.shape_cast %383 : vector<8x64xf32> to vector<1x8x64xf32>
      tpu.vector_store %arg17[%c1_369, %c0_370, %c1536_371], %389 {strides = array<i32>} : memref<2x8x2432xf32, #tpu.memory_space<vmem>>, vector<1x8x64xf32>,
      %c1_372 = arith.constant 1 : index
      %c0_373 = arith.constant 0 : index
      %c1600_374 = arith.constant 1600 : index
      %390 = vector.load %arg17[%c1_372, %c0_373, %c1600_374] : memref<2x8x2432xf32, #tpu.memory_space<vmem>>, vector<1x8x64xf32>
      %391 = vector.shape_cast %390 : vector<1x8x64xf32> to vector<8x64xf32>
      %392 = vector.shape_cast %383 : vector<8x64xf32> to vector<1x8x64xf32>
      tpu.vector_store %arg17[%c1_372, %c0_373, %c1600_374], %392 {strides = array<i32>} : memref<2x8x2432xf32, #tpu.memory_space<vmem>>, vector<1x8x64xf32>,
      %c1_375 = arith.constant 1 : index
      %c0_376 = arith.constant 0 : index
      %c1664_377 = arith.constant 1664 : index
      %393 = vector.load %arg17[%c1_375, %c0_376, %c1664_377] : memref<2x8x2432xf32, #tpu.memory_space<vmem>>, vector<1x8x64xf32>
      %394 = vector.shape_cast %393 : vector<1x8x64xf32> to vector<8x64xf32>
      %395 = vector.shape_cast %383 : vector<8x64xf32> to vector<1x8x64xf32>
      tpu.vector_store %arg17[%c1_375, %c0_376, %c1664_377], %395 {strides = array<i32>} : memref<2x8x2432xf32, #tpu.memory_space<vmem>>, vector<1x8x64xf32>,
      %c0_378 = arith.constant 0 : index
      %c224 = arith.constant 224 : index
      %396 = vector.load %arg16[%c0_378, %c224] : memref<8x256xf32, #tpu.memory_space<vmem>>, vector<8x16xf32>
      %c0_379 = arith.constant 0 : index
      %c0_380 = arith.constant 0 : index
      %397 = vector.load %arg13[%c0_379, %c0_380] : memref<16x64xf32, #tpu.memory_space<vmem>>, vector<16x64xf32>
      %cst_381 = arith.constant dense<0.000000e+00> : vector<8x64xf32>
      %398 = tpu.matmul %396, %397, %cst_381 {dimension_numbers = #tpu.dot_dimension_numbers<[1], [0], [0], [1], [0, 0, 1, 1], [], []>} : vector<8x16xf32>, vector<16x64xf32>, vector<8x64xf32> -> vector<8x64xf32>
      %c1_382 = arith.constant 1 : index
      %c0_383 = arith.constant 0 : index
      %c1728_384 = arith.constant 1728 : index
      %399 = vector.load %arg17[%c1_382, %c0_383, %c1728_384] : memref<2x8x2432xf32, #tpu.memory_space<vmem>>, vector<1x8x64xf32>
      %400 = vector.shape_cast %399 : vector<1x8x64xf32> to vector<8x64xf32>
      %401 = vector.shape_cast %398 : vector<8x64xf32> to vector<1x8x64xf32>
      tpu.vector_store %arg17[%c1_382, %c0_383, %c1728_384], %401 {strides = array<i32>} : memref<2x8x2432xf32, #tpu.memory_space<vmem>>, vector<1x8x64xf32>,
      %c1_385 = arith.constant 1 : index
      %c0_386 = arith.constant 0 : index
      %c1792_387 = arith.constant 1792 : index
      %402 = vector.load %arg17[%c1_385, %c0_386, %c1792_387] : memref<2x8x2432xf32, #tpu.memory_space<vmem>>, vector<1x8x64xf32>
      %403 = vector.shape_cast %402 : vector<1x8x64xf32> to vector<8x64xf32>
      %404 = vector.shape_cast %398 : vector<8x64xf32> to vector<1x8x64xf32>
      tpu.vector_store %arg17[%c1_385, %c0_386, %c1792_387], %404 {strides = array<i32>} : memref<2x8x2432xf32, #tpu.memory_space<vmem>>, vector<1x8x64xf32>,
      %c1_388 = arith.constant 1 : index
      %c0_389 = arith.constant 0 : index
      %c1856_390 = arith.constant 1856 : index
      %405 = vector.load %arg17[%c1_388, %c0_389, %c1856_390] : memref<2x8x2432xf32, #tpu.memory_space<vmem>>, vector<1x8x64xf32>
      %406 = vector.shape_cast %405 : vector<1x8x64xf32> to vector<8x64xf32>
      %407 = vector.shape_cast %398 : vector<8x64xf32> to vector<1x8x64xf32>
      tpu.vector_store %arg17[%c1_388, %c0_389, %c1856_390], %407 {strides = array<i32>} : memref<2x8x2432xf32, #tpu.memory_space<vmem>>, vector<1x8x64xf32>,
      %c1_391 = arith.constant 1 : index
      %c0_392 = arith.constant 0 : index
      %c1920_393 = arith.constant 1920 : index
      %408 = vector.load %arg17[%c1_391, %c0_392, %c1920_393] : memref<2x8x2432xf32, #tpu.memory_space<vmem>>, vector<1x8x64xf32>
      %409 = vector.shape_cast %408 : vector<1x8x64xf32> to vector<8x64xf32>
      %410 = vector.shape_cast %398 : vector<8x64xf32> to vector<1x8x64xf32>
      tpu.vector_store %arg17[%c1_391, %c0_392, %c1920_393], %410 {strides = array<i32>} : memref<2x8x2432xf32, #tpu.memory_space<vmem>>, vector<1x8x64xf32>,
      %c0_394 = arith.constant 0 : index
      %c240 = arith.constant 240 : index
      %411 = vector.load %arg16[%c0_394, %c240] : memref<8x256xf32, #tpu.memory_space<vmem>>, vector<8x16xf32>
      %c0_395 = arith.constant 0 : index
      %c0_396 = arith.constant 0 : index
      %412 = vector.load %arg13[%c0_395, %c0_396] : memref<16x64xf32, #tpu.memory_space<vmem>>, vector<16x64xf32>
      %cst_397 = arith.constant dense<0.000000e+00> : vector<8x64xf32>
      %413 = tpu.matmul %411, %412, %cst_397 {dimension_numbers = #tpu.dot_dimension_numbers<[1], [0], [0], [1], [0, 0, 1, 1], [], []>} : vector<8x16xf32>, vector<16x64xf32>, vector<8x64xf32> -> vector<8x64xf32>
      %c1_398 = arith.constant 1 : index
      %c0_399 = arith.constant 0 : index
      %c1984_400 = arith.constant 1984 : index
      %414 = vector.load %arg17[%c1_398, %c0_399, %c1984_400] : memref<2x8x2432xf32, #tpu.memory_space<vmem>>, vector<1x8x64xf32>
      %415 = vector.shape_cast %414 : vector<1x8x64xf32> to vector<8x64xf32>
      %416 = vector.shape_cast %413 : vector<8x64xf32> to vector<1x8x64xf32>
      tpu.vector_store %arg17[%c1_398, %c0_399, %c1984_400], %416 {strides = array<i32>} : memref<2x8x2432xf32, #tpu.memory_space<vmem>>, vector<1x8x64xf32>,
      %c1_401 = arith.constant 1 : index
      %c0_402 = arith.constant 0 : index
      %c2048_403 = arith.constant 2048 : index
      %417 = vector.load %arg17[%c1_401, %c0_402, %c2048_403] : memref<2x8x2432xf32, #tpu.memory_space<vmem>>, vector<1x8x64xf32>
      %418 = vector.shape_cast %417 : vector<1x8x64xf32> to vector<8x64xf32>
      %419 = vector.shape_cast %413 : vector<8x64xf32> to vector<1x8x64xf32>
      tpu.vector_store %arg17[%c1_401, %c0_402, %c2048_403], %419 {strides = array<i32>} : memref<2x8x2432xf32, #tpu.memory_space<vmem>>, vector<1x8x64xf32>,
      %c1_404 = arith.constant 1 : index
      %c0_405 = arith.constant 0 : index
      %c2112_406 = arith.constant 2112 : index
      %420 = vector.load %arg17[%c1_404, %c0_405, %c2112_406] : memref<2x8x2432xf32, #tpu.memory_space<vmem>>, vector<1x8x64xf32>
      %421 = vector.shape_cast %420 : vector<1x8x64xf32> to vector<8x64xf32>
      %422 = vector.shape_cast %413 : vector<8x64xf32> to vector<1x8x64xf32>
      tpu.vector_store %arg17[%c1_404, %c0_405, %c2112_406], %422 {strides = array<i32>} : memref<2x8x2432xf32, #tpu.memory_space<vmem>>, vector<1x8x64xf32>,
      %c1_407 = arith.constant 1 : index
      %c0_408 = arith.constant 0 : index
      %c2176_409 = arith.constant 2176 : index
      %423 = vector.load %arg17[%c1_407, %c0_408, %c2176_409] : memref<2x8x2432xf32, #tpu.memory_space<vmem>>, vector<1x8x64xf32>
      %424 = vector.shape_cast %423 : vector<1x8x64xf32> to vector<8x64xf32>
      %425 = vector.shape_cast %413 : vector<8x64xf32> to vector<1x8x64xf32>
      tpu.vector_store %arg17[%c1_407, %c0_408, %c2176_409], %425 {strides = array<i32>} : memref<2x8x2432xf32, #tpu.memory_space<vmem>>, vector<1x8x64xf32>,
    } else {
    }
    %3 = arith.index_cast %arg1 : i32 to index
    %c0 = arith.constant 0 : index
    %c63 = arith.constant 63 : index
    %4 = vector.load %arg17[%3, %c0, %c63] : memref<2x8x2432xf32, #tpu.memory_space<vmem>>, vector<1x8x2176xf32>
    %5 = vector.shape_cast %4 : vector<1x8x2176xf32> to vector<8x2176xf32>
    %c0_1 = arith.constant 0 : index
    %c0_2 = arith.constant 0 : index
    %6 = vector.load %arg11[%c0_1, %c0_2] : memref<1x2176xf32, #tpu.memory_space<vmem>>, vector<1x2176xf32>
    %7 = vector.broadcast %6 : vector<1x2176xf32> to vector<8x2176xf32>
    %8 = arith.mulf %5, %7 : vector<8x2176xf32>
    %c0_3 = arith.constant 0 : index
    %c0_4 = arith.constant 0 : index
    %9 = vector.load %arg15[%c0_3, %c0_4] : memref<72x2176xf32, #tpu.memory_space<vmem>>, vector<8x2176xf32>
    tpu.vector_store %arg15[%c0_3, %c0_4], %8 {strides = array<i32>} : memref<72x2176xf32, #tpu.memory_space<vmem>>, vector<8x2176xf32>,
    %10 = arith.index_cast %arg1 : i32 to index
    %c0_5 = arith.constant 0 : index
    %c64 = arith.constant 64 : index
    %11 = vector.load %arg17[%10, %c0_5, %c64] : memref<2x8x2432xf32, #tpu.memory_space<vmem>>, vector<1x8x2176xf32>
    %12 = vector.shape_cast %11 : vector<1x8x2176xf32> to vector<8x2176xf32>
    %c8 = arith.constant 8 : index
    %c0_6 = arith.constant 0 : index
    %13 = vector.load %arg15[%c8, %c0_6] : memref<72x2176xf32, #tpu.memory_space<vmem>>, vector<8x2176xf32>
    tpu.vector_store %arg15[%c8, %c0_6], %12 {strides = array<i32>} : memref<72x2176xf32, #tpu.memory_space<vmem>>, vector<8x2176xf32>,
    %14 = arith.index_cast %arg1 : i32 to index
    %c0_7 = arith.constant 0 : index
    %c65 = arith.constant 65 : index
    %15 = vector.load %arg17[%14, %c0_7, %c65] : memref<2x8x2432xf32, #tpu.memory_space<vmem>>, vector<1x8x2176xf32>
    %16 = vector.shape_cast %15 : vector<1x8x2176xf32> to vector<8x2176xf32>
    %c0_8 = arith.constant 0 : index
    %c0_9 = arith.constant 0 : index
    %17 = vector.load %arg12[%c0_8, %c0_9] : memref<1x2176xf32, #tpu.memory_space<vmem>>, vector<1x2176xf32>
    %18 = vector.broadcast %17 : vector<1x2176xf32> to vector<8x2176xf32>
    %19 = arith.mulf %16, %18 : vector<8x2176xf32>
    %c16 = arith.constant 16 : index
    %c0_10 = arith.constant 0 : index
    %20 = vector.load %arg15[%c16, %c0_10] : memref<72x2176xf32, #tpu.memory_space<vmem>>, vector<8x2176xf32>
    tpu.vector_store %arg15[%c16, %c0_10], %19 {strides = array<i32>} : memref<72x2176xf32, #tpu.memory_space<vmem>>, vector<8x2176xf32>,
    %21 = arith.index_cast %arg1 : i32 to index
    %c0_11 = arith.constant 0 : index
    %c127 = arith.constant 127 : index
    %22 = vector.load %arg17[%21, %c0_11, %c127] : memref<2x8x2432xf32, #tpu.memory_space<vmem>>, vector<1x8x2176xf32>
    %23 = vector.shape_cast %22 : vector<1x8x2176xf32> to vector<8x2176xf32>
    %c0_12 = arith.constant 0 : index
    %c0_13 = arith.constant 0 : index
    %24 = vector.load %arg11[%c0_12, %c0_13] : memref<1x2176xf32, #tpu.memory_space<vmem>>, vector<1x2176xf32>
    %25 = vector.broadcast %24 : vector<1x2176xf32> to vector<8x2176xf32>
    %26 = arith.mulf %23, %25 : vector<8x2176xf32>
    %c24 = arith.constant 24 : index
    %c0_14 = arith.constant 0 : index
    %27 = vector.load %arg15[%c24, %c0_14] : memref<72x2176xf32, #tpu.memory_space<vmem>>, vector<8x2176xf32>
    tpu.vector_store %arg15[%c24, %c0_14], %26 {strides = array<i32>} : memref<72x2176xf32, #tpu.memory_space<vmem>>, vector<8x2176xf32>,
    %28 = arith.index_cast %arg1 : i32 to index
    %c0_15 = arith.constant 0 : index
    %c128 = arith.constant 128 : index
    %29 = vector.load %arg17[%28, %c0_15, %c128] : memref<2x8x2432xf32, #tpu.memory_space<vmem>>, vector<1x8x2176xf32>
    %30 = vector.shape_cast %29 : vector<1x8x2176xf32> to vector<8x2176xf32>
    %c32 = arith.constant 32 : index
    %c0_16 = arith.constant 0 : index
    %31 = vector.load %arg15[%c32, %c0_16] : memref<72x2176xf32, #tpu.memory_space<vmem>>, vector<8x2176xf32>
    tpu.vector_store %arg15[%c32, %c0_16], %30 {strides = array<i32>} : memref<72x2176xf32, #tpu.memory_space<vmem>>, vector<8x2176xf32>,
    %32 = arith.index_cast %arg1 : i32 to index
    %c0_17 = arith.constant 0 : index
    %c129 = arith.constant 129 : index
    %33 = vector.load %arg17[%32, %c0_17, %c129] : memref<2x8x2432xf32, #tpu.memory_space<vmem>>, vector<1x8x2176xf32>
    %34 = vector.shape_cast %33 : vector<1x8x2176xf32> to vector<8x2176xf32>
    %c0_18 = arith.constant 0 : index
    %c0_19 = arith.constant 0 : index
    %35 = vector.load %arg12[%c0_18, %c0_19] : memref<1x2176xf32, #tpu.memory_space<vmem>>, vector<1x2176xf32>
    %36 = vector.broadcast %35 : vector<1x2176xf32> to vector<8x2176xf32>
    %37 = arith.mulf %34, %36 : vector<8x2176xf32>
    %c40 = arith.constant 40 : index
    %c0_20 = arith.constant 0 : index
    %38 = vector.load %arg15[%c40, %c0_20] : memref<72x2176xf32, #tpu.memory_space<vmem>>, vector<8x2176xf32>
    tpu.vector_store %arg15[%c40, %c0_20], %37 {strides = array<i32>} : memref<72x2176xf32, #tpu.memory_space<vmem>>, vector<8x2176xf32>,
    %39 = arith.index_cast %arg1 : i32 to index
    %c0_21 = arith.constant 0 : index
    %c191 = arith.constant 191 : index
    %40 = vector.load %arg17[%39, %c0_21, %c191] : memref<2x8x2432xf32, #tpu.memory_space<vmem>>, vector<1x8x2176xf32>
    %41 = vector.shape_cast %40 : vector<1x8x2176xf32> to vector<8x2176xf32>
    %c0_22 = arith.constant 0 : index
    %c0_23 = arith.constant 0 : index
    %42 = vector.load %arg11[%c0_22, %c0_23] : memref<1x2176xf32, #tpu.memory_space<vmem>>, vector<1x2176xf32>
    %43 = vector.broadcast %42 : vector<1x2176xf32> to vector<8x2176xf32>
    %44 = arith.mulf %41, %43 : vector<8x2176xf32>
    %c48 = arith.constant 48 : index
    %c0_24 = arith.constant 0 : index
    %45 = vector.load %arg15[%c48, %c0_24] : memref<72x2176xf32, #tpu.memory_space<vmem>>, vector<8x2176xf32>
    tpu.vector_store %arg15[%c48, %c0_24], %44 {strides = array<i32>} : memref<72x2176xf32, #tpu.memory_space<vmem>>, vector<8x2176xf32>,
    %46 = arith.index_cast %arg1 : i32 to index
    %c0_25 = arith.constant 0 : index
    %c192 = arith.constant 192 : index
    %47 = vector.load %arg17[%46, %c0_25, %c192] : memref<2x8x2432xf32, #tpu.memory_space<vmem>>, vector<1x8x2176xf32>
    %48 = vector.shape_cast %47 : vector<1x8x2176xf32> to vector<8x2176xf32>
    %c56 = arith.constant 56 : index
    %c0_26 = arith.constant 0 : index
    %49 = vector.load %arg15[%c56, %c0_26] : memref<72x2176xf32, #tpu.memory_space<vmem>>, vector<8x2176xf32>
    tpu.vector_store %arg15[%c56, %c0_26], %48 {strides = array<i32>} : memref<72x2176xf32, #tpu.memory_space<vmem>>, vector<8x2176xf32>,
    %50 = arith.index_cast %arg1 : i32 to index
    %c0_27 = arith.constant 0 : index
    %c193 = arith.constant 193 : index
    %51 = vector.load %arg17[%50, %c0_27, %c193] : memref<2x8x2432xf32, #tpu.memory_space<vmem>>, vector<1x8x2176xf32>
    %52 = vector.shape_cast %51 : vector<1x8x2176xf32> to vector<8x2176xf32>
    %c0_28 = arith.constant 0 : index
    %c0_29 = arith.constant 0 : index
    %53 = vector.load %arg12[%c0_28, %c0_29] : memref<1x2176xf32, #tpu.memory_space<vmem>>, vector<1x2176xf32>
    %54 = vector.broadcast %53 : vector<1x2176xf32> to vector<8x2176xf32>
    %55 = arith.mulf %52, %54 : vector<8x2176xf32>
    %c64_30 = arith.constant 64 : index
    %c0_31 = arith.constant 0 : index
    %56 = vector.load %arg15[%c64_30, %c0_31] : memref<72x2176xf32, #tpu.memory_space<vmem>>, vector<8x2176xf32>
    tpu.vector_store %arg15[%c64_30, %c0_31], %55 {strides = array<i32>} : memref<72x2176xf32, #tpu.memory_space<vmem>>, vector<8x2176xf32>,
    %c0_32 = arith.constant 0 : index
    %c0_33 = arith.constant 0 : index
    %57 = vector.load %arg5[%c0_32, %c0_33] : memref<8x72xf32, #tpu.memory_space<vmem>>, vector<8x72xf32>
    %c0_34 = arith.constant 0 : index
    %c0_35 = arith.constant 0 : index
    %58 = vector.load %arg15[%c0_34, %c0_35] : memref<72x2176xf32, #tpu.memory_space<vmem>>, vector<72x2176xf32>
    %cst = arith.constant dense<0.000000e+00> : vector<8x2176xf32>
    %59 = tpu.matmul %57, %58, %cst {dimension_numbers = #tpu.dot_dimension_numbers<[1], [0], [0], [1], [0, 0, 1, 1], [], []>} : vector<8x72xf32>, vector<72x2176xf32>, vector<8x2176xf32> -> vector<8x2176xf32>
    %c0_36 = arith.constant 0 : index
    %c0_37 = arith.constant 0 : index
    %60 = vector.load %arg6[%c0_36, %c0_37] : memref<8x1xf32, #tpu.memory_space<vmem>>, vector<8x1xf32>
    %61 = vector.broadcast %60 : vector<8x1xf32> to vector<8x2176xf32>
    %62 = arith.addf %59, %61 : vector<8x2176xf32>
    %c0_38 = arith.constant 0 : index
    %c64_39 = arith.constant 64 : index
    %63 = vector.load %arg18[%c0_38, %c64_39] : memref<8x2304xf32, #tpu.memory_space<vmem>>, vector<8x2176xf32>
    tpu.vector_store %arg18[%c0_38, %c64_39], %62 {strides = array<i32>} : memref<8x2304xf32, #tpu.memory_space<vmem>>, vector<8x2176xf32>,
    %c0_i32_40 = arith.constant 0 : i32
    %64 = arith.cmpi eq, %arg1, %c0_i32_40 : i32
    %65 = arith.extui %64 : i1 to i32
    %c0_i32_41 = arith.constant 0 : i32
    %66 = arith.cmpi ne, %65, %c0_i32_41 : i32
    scf.if %66 {
      %cst_101 = arith.constant 0.000000e+00 : f32
      %116 = vector.broadcast %cst_101 : f32 to vector<8x64xf32>
      %c0_102 = arith.constant 0 : index
      %c64_103 = arith.constant 64 : index
      %117 = vector.load %arg18[%c0_102, %c64_103] : memref<8x2304xf32, #tpu.memory_space<vmem>>, vector<8x64xf32>
      tpu.vector_store %arg18[%c0_102, %c64_103], %116 {strides = array<i32>} : memref<8x2304xf32, #tpu.memory_space<vmem>>, vector<8x64xf32>,
    } else {
    }
    %c1_i32 = arith.constant 1 : i32
    %67 = arith.cmpi eq, %arg1, %c1_i32 : i32
    %68 = arith.extui %67 : i1 to i32
    %c0_i32_42 = arith.constant 0 : i32
    %69 = arith.cmpi ne, %68, %c0_i32_42 : i32
    scf.if %69 {
      %cst_101 = arith.constant 0.000000e+00 : f32
      %116 = vector.broadcast %cst_101 : f32 to vector<8x64xf32>
      %c0_102 = arith.constant 0 : index
      %c2176 = arith.constant 2176 : index
      %117 = vector.load %arg18[%c0_102, %c2176] : memref<8x2304xf32, #tpu.memory_space<vmem>>, vector<8x64xf32>
      tpu.vector_store %arg18[%c0_102, %c2176], %116 {strides = array<i32>} : memref<8x2304xf32, #tpu.memory_space<vmem>>, vector<8x64xf32>,
    } else {
    }
    %c0_43 = arith.constant 0 : index
    %c63_44 = arith.constant 63 : index
    %70 = vector.load %arg18[%c0_43, %c63_44] : memref<8x2304xf32, #tpu.memory_space<vmem>>, vector<8x2048xf32>
    %c0_45 = arith.constant 0 : index
    %c0_46 = arith.constant 0 : index
    %71 = vector.load %arg11[%c0_45, %c0_46] : memref<1x2176xf32, #tpu.memory_space<vmem>>, vector<1x2048xf32>
    %72 = vector.broadcast %71 : vector<1x2048xf32> to vector<8x2048xf32>
    %73 = arith.mulf %70, %72 : vector<8x2048xf32>
    %c0_47 = arith.constant 0 : index
    %c0_48 = arith.constant 0 : index
    %74 = vector.load %arg15[%c0_47, %c0_48] : memref<72x2176xf32, #tpu.memory_space<vmem>>, vector<8x2048xf32>
    tpu.vector_store %arg15[%c0_47, %c0_48], %73 {strides = array<i32>} : memref<72x2176xf32, #tpu.memory_space<vmem>>, vector<8x2048xf32>,
    %c0_49 = arith.constant 0 : index
    %c64_50 = arith.constant 64 : index
    %75 = vector.load %arg18[%c0_49, %c64_50] : memref<8x2304xf32, #tpu.memory_space<vmem>>, vector<8x2048xf32>
    %c8_51 = arith.constant 8 : index
    %c0_52 = arith.constant 0 : index
    %76 = vector.load %arg15[%c8_51, %c0_52] : memref<72x2176xf32, #tpu.memory_space<vmem>>, vector<8x2048xf32>
    tpu.vector_store %arg15[%c8_51, %c0_52], %75 {strides = array<i32>} : memref<72x2176xf32, #tpu.memory_space<vmem>>, vector<8x2048xf32>,
    %c0_53 = arith.constant 0 : index
    %c65_54 = arith.constant 65 : index
    %77 = vector.load %arg18[%c0_53, %c65_54] : memref<8x2304xf32, #tpu.memory_space<vmem>>, vector<8x2048xf32>
    %c0_55 = arith.constant 0 : index
    %c0_56 = arith.constant 0 : index
    %78 = vector.load %arg12[%c0_55, %c0_56] : memref<1x2176xf32, #tpu.memory_space<vmem>>, vector<1x2048xf32>
    %79 = vector.broadcast %78 : vector<1x2048xf32> to vector<8x2048xf32>
    %80 = arith.mulf %77, %79 : vector<8x2048xf32>
    %c16_57 = arith.constant 16 : index
    %c0_58 = arith.constant 0 : index
    %81 = vector.load %arg15[%c16_57, %c0_58] : memref<72x2176xf32, #tpu.memory_space<vmem>>, vector<8x2048xf32>
    tpu.vector_store %arg15[%c16_57, %c0_58], %80 {strides = array<i32>} : memref<72x2176xf32, #tpu.memory_space<vmem>>, vector<8x2048xf32>,
    %c0_59 = arith.constant 0 : index
    %c127_60 = arith.constant 127 : index
    %82 = vector.load %arg18[%c0_59, %c127_60] : memref<8x2304xf32, #tpu.memory_space<vmem>>, vector<8x2048xf32>
    %c0_61 = arith.constant 0 : index
    %c0_62 = arith.constant 0 : index
    %83 = vector.load %arg11[%c0_61, %c0_62] : memref<1x2176xf32, #tpu.memory_space<vmem>>, vector<1x2048xf32>
    %84 = vector.broadcast %83 : vector<1x2048xf32> to vector<8x2048xf32>
    %85 = arith.mulf %82, %84 : vector<8x2048xf32>
    %c24_63 = arith.constant 24 : index
    %c0_64 = arith.constant 0 : index
    %86 = vector.load %arg15[%c24_63, %c0_64] : memref<72x2176xf32, #tpu.memory_space<vmem>>, vector<8x2048xf32>
    tpu.vector_store %arg15[%c24_63, %c0_64], %85 {strides = array<i32>} : memref<72x2176xf32, #tpu.memory_space<vmem>>, vector<8x2048xf32>,
    %c0_65 = arith.constant 0 : index
    %c128_66 = arith.constant 128 : index
    %87 = vector.load %arg18[%c0_65, %c128_66] : memref<8x2304xf32, #tpu.memory_space<vmem>>, vector<8x2048xf32>
    %c32_67 = arith.constant 32 : index
    %c0_68 = arith.constant 0 : index
    %88 = vector.load %arg15[%c32_67, %c0_68] : memref<72x2176xf32, #tpu.memory_space<vmem>>, vector<8x2048xf32>
    tpu.vector_store %arg15[%c32_67, %c0_68], %87 {strides = array<i32>} : memref<72x2176xf32, #tpu.memory_space<vmem>>, vector<8x2048xf32>,
    %c0_69 = arith.constant 0 : index
    %c129_70 = arith.constant 129 : index
    %89 = vector.load %arg18[%c0_69, %c129_70] : memref<8x2304xf32, #tpu.memory_space<vmem>>, vector<8x2048xf32>
    %c0_71 = arith.constant 0 : index
    %c0_72 = arith.constant 0 : index
    %90 = vector.load %arg12[%c0_71, %c0_72] : memref<1x2176xf32, #tpu.memory_space<vmem>>, vector<1x2048xf32>
    %91 = vector.broadcast %90 : vector<1x2048xf32> to vector<8x2048xf32>
    %92 = arith.mulf %89, %91 : vector<8x2048xf32>
    %c40_73 = arith.constant 40 : index
    %c0_74 = arith.constant 0 : index
    %93 = vector.load %arg15[%c40_73, %c0_74] : memref<72x2176xf32, #tpu.memory_space<vmem>>, vector<8x2048xf32>
    tpu.vector_store %arg15[%c40_73, %c0_74], %92 {strides = array<i32>} : memref<72x2176xf32, #tpu.memory_space<vmem>>, vector<8x2048xf32>,
    %c0_75 = arith.constant 0 : index
    %c191_76 = arith.constant 191 : index
    %94 = vector.load %arg18[%c0_75, %c191_76] : memref<8x2304xf32, #tpu.memory_space<vmem>>, vector<8x2048xf32>
    %c0_77 = arith.constant 0 : index
    %c0_78 = arith.constant 0 : index
    %95 = vector.load %arg11[%c0_77, %c0_78] : memref<1x2176xf32, #tpu.memory_space<vmem>>, vector<1x2048xf32>
    %96 = vector.broadcast %95 : vector<1x2048xf32> to vector<8x2048xf32>
    %97 = arith.mulf %94, %96 : vector<8x2048xf32>
    %c48_79 = arith.constant 48 : index
    %c0_80 = arith.constant 0 : index
    %98 = vector.load %arg15[%c48_79, %c0_80] : memref<72x2176xf32, #tpu.memory_space<vmem>>, vector<8x2048xf32>
    tpu.vector_store %arg15[%c48_79, %c0_80], %97 {strides = array<i32>} : memref<72x2176xf32, #tpu.memory_space<vmem>>, vector<8x2048xf32>,
    %c0_81 = arith.constant 0 : index
    %c192_82 = arith.constant 192 : index
    %99 = vector.load %arg18[%c0_81, %c192_82] : memref<8x2304xf32, #tpu.memory_space<vmem>>, vector<8x2048xf32>
    %c56_83 = arith.constant 56 : index
    %c0_84 = arith.constant 0 : index
    %100 = vector.load %arg15[%c56_83, %c0_84] : memref<72x2176xf32, #tpu.memory_space<vmem>>, vector<8x2048xf32>
    tpu.vector_store %arg15[%c56_83, %c0_84], %99 {strides = array<i32>} : memref<72x2176xf32, #tpu.memory_space<vmem>>, vector<8x2048xf32>,
    %c0_85 = arith.constant 0 : index
    %c193_86 = arith.constant 193 : index
    %101 = vector.load %arg18[%c0_85, %c193_86] : memref<8x2304xf32, #tpu.memory_space<vmem>>, vector<8x2048xf32>
    %c0_87 = arith.constant 0 : index
    %c0_88 = arith.constant 0 : index
    %102 = vector.load %arg12[%c0_87, %c0_88] : memref<1x2176xf32, #tpu.memory_space<vmem>>, vector<1x2048xf32>
    %103 = vector.broadcast %102 : vector<1x2048xf32> to vector<8x2048xf32>
    %104 = arith.mulf %101, %103 : vector<8x2048xf32>
    %c64_89 = arith.constant 64 : index
    %c0_90 = arith.constant 0 : index
    %105 = vector.load %arg15[%c64_89, %c0_90] : memref<72x2176xf32, #tpu.memory_space<vmem>>, vector<8x2048xf32>
    tpu.vector_store %arg15[%c64_89, %c0_90], %104 {strides = array<i32>} : memref<72x2176xf32, #tpu.memory_space<vmem>>, vector<8x2048xf32>,
    %c0_91 = arith.constant 0 : index
    %c0_92 = arith.constant 0 : index
    %106 = vector.load %arg7[%c0_91, %c0_92] : memref<8x72xf32, #tpu.memory_space<vmem>>, vector<8x72xf32>
    %c0_93 = arith.constant 0 : index
    %c0_94 = arith.constant 0 : index
    %107 = vector.load %arg15[%c0_93, %c0_94] : memref<72x2176xf32, #tpu.memory_space<vmem>>, vector<72x2048xf32>
    %cst_95 = arith.constant dense<0.000000e+00> : vector<8x2048xf32>
    %108 = tpu.matmul %106, %107, %cst_95 {dimension_numbers = #tpu.dot_dimension_numbers<[1], [0], [0], [1], [0, 0, 1, 1], [], []>} : vector<8x72xf32>, vector<72x2048xf32>, vector<8x2048xf32> -> vector<8x2048xf32>
    %c0_96 = arith.constant 0 : index
    %c0_97 = arith.constant 0 : index
    %109 = vector.load %arg8[%c0_96, %c0_97] : memref<8x1xf32, #tpu.memory_space<vmem>>, vector<8x1xf32>
    %110 = vector.broadcast %109 : vector<8x1xf32> to vector<8x2048xf32>
    %111 = arith.addf %108, %110 : vector<8x2048xf32>
    %112 = vector.extract_strided_slice %111 {offsets = [0, 0], sizes = [4, 2048], strides = [1, 1]} : vector<8x2048xf32> to vector<4x2048xf32>
    %c0_98 = arith.constant 0 : index
    %c0_99 = arith.constant 0 : index
    %c0_100 = arith.constant 0 : index
    %113 = vector.load %arg14[%c0_98, %c0_99, %c0_100] : memref<1x4x2048xf32, #tpu.memory_space<vmem>>, vector<1x4x2048xf32>
    %114 = vector.shape_cast %113 : vector<1x4x2048xf32> to vector<4x2048xf32>
    %115 = vector.shape_cast %112 : vector<4x2048xf32> to vector<1x4x2048xf32>
    tpu.vector_store %arg14[%c0_98, %c0_99, %c0_100], %115 {strides = array<i32>} : memref<1x4x2048xf32, #tpu.memory_space<vmem>>, vector<1x4x2048xf32>,
    return
  }
  func.func @transform_0(%arg0: i32, %arg1: i32) -> (i32, i32, i32) {
    %c0_i32 = arith.constant 0 : i32
    %c0_i32_0 = arith.constant 0 : i32
    %c0_i32_1 = arith.constant 0 : i32
    return %arg0, %c0_i32, %c0_i32_0 : i32, i32, i32
  }
  func.func @transform_1(%arg0: i32, %arg1: i32) -> (i32, i32) {
    %c0_i32 = arith.constant 0 : i32
    %c0_i32_0 = arith.constant 0 : i32
    %c0_i32_1 = arith.constant 0 : i32
    return %c0_i32, %c0_i32_0 : i32, i32
  }
  func.func @transform_2(%arg0: i32, %arg1: i32) -> (i32, i32) {
    %c0_i32 = arith.constant 0 : i32
    %c0_i32_0 = arith.constant 0 : i32
    %c0_i32_1 = arith.constant 0 : i32
    return %c0_i32, %c0_i32_0 : i32, i32
  }
  func.func @transform_3(%arg0: i32, %arg1: i32) -> (i32, i32) {
    %c0_i32 = arith.constant 0 : i32
    %c0_i32_0 = arith.constant 0 : i32
    %c0_i32_1 = arith.constant 0 : i32
    return %c0_i32, %c0_i32_0 : i32, i32
  }
  func.func @transform_4(%arg0: i32, %arg1: i32) -> (i32, i32) {
    %c0_i32 = arith.constant 0 : i32
    %c0_i32_0 = arith.constant 0 : i32
    %c0_i32_1 = arith.constant 0 : i32
    return %c0_i32, %c0_i32_0 : i32, i32
  }
  func.func @transform_5(%arg0: i32, %arg1: i32) -> (i32, i32) {
    %c0_i32 = arith.constant 0 : i32
    %c0_i32_0 = arith.constant 0 : i32
    %c0_i32_1 = arith.constant 0 : i32
    return %c0_i32, %c0_i32_0 : i32, i32
  }
  func.func @transform_6(%arg0: i32, %arg1: i32) -> (i32, i32) {
    %c0_i32 = arith.constant 0 : i32
    %c0_i32_0 = arith.constant 0 : i32
    %c0_i32_1 = arith.constant 0 : i32
    return %c0_i32, %c0_i32_0 : i32, i32
  }
  func.func @transform_7(%arg0: i32, %arg1: i32) -> (i32, i32) {
    %c0_i32 = arith.constant 0 : i32
    %c0_i32_0 = arith.constant 0 : i32
    %c0_i32_1 = arith.constant 0 : i32
    return %c0_i32, %c0_i32_0 : i32, i32
  }
  func.func @transform_8(%arg0: i32, %arg1: i32) -> (i32, i32) {
    %c0_i32 = arith.constant 0 : i32
    %c0_i32_0 = arith.constant 0 : i32
    %c0_i32_1 = arith.constant 0 : i32
    return %c0_i32, %c0_i32_0 : i32, i32
  }
  func.func @transform_9(%arg0: i32, %arg1: i32) -> (i32, i32) {
    %c0_i32 = arith.constant 0 : i32
    %c0_i32_0 = arith.constant 0 : i32
    %c0_i32_1 = arith.constant 0 : i32
    return %c0_i32, %c0_i32_0 : i32, i32
  }
  func.func @transform_10(%arg0: i32, %arg1: i32) -> (i32, i32) {
    %c0_i32 = arith.constant 0 : i32
    %c0_i32_0 = arith.constant 0 : i32
    %c0_i32_1 = arith.constant 0 : i32
    return %c0_i32, %c0_i32_0 : i32, i32
  }
  func.func @transform_11(%arg0: i32, %arg1: i32) -> (i32, i32) {
    %c0_i32 = arith.constant 0 : i32
    %c0_i32_0 = arith.constant 0 : i32
    %c0_i32_1 = arith.constant 0 : i32
    return %c0_i32, %c0_i32_0 : i32, i32
  }
  func.func @transform_12(%arg0: i32, %arg1: i32) -> (i32, i32, i32) {
    %c0_i32 = arith.constant 0 : i32
    %c0_i32_0 = arith.constant 0 : i32
    return %arg0, %c0_i32, %arg1 : i32, i32, i32
  }
}

</mosaic_0001>

<llo_original>
// kernel: tpu_custom_call.1
$region0: #{tpu_custom_call.1}
  #allocation0 [shape = 'u32[]', space=smem, size = 0x4, offset = 0x4, fixed_abs, tag = 'smem constant byte address 0x4 - core index']
  #allocation1 [shape = 'u32[72,128]{1,0:T(1,128)}', space=vmem, size = 0x9000, scoped, tag = 'internal scratch']
  #allocation2 [shape = 'f32[72,2176]{1,0:T(8,128)}', space=vmem, size = 0x99000, scoped, tag = 'scratch operand']
  #allocation3 [shape = 'f32[8,256]{1,0:T(8,128)}', space=vmem, size = 0x2000, scoped, tag = 'scratch operand']
  #allocation4 [shape = 'f32[2,8,2432]{2,1,0:T(8,128)}', space=vmem, size = 0x26000, scoped, tag = 'scratch operand']
  #allocation5 [shape = 'f32[8,2304]{1,0:T(8,128)}', space=vmem, size = 0x12000, scoped, tag = 'scratch operand']
  %s0 = inlined_call_operand.hbm [shape: f32[2,8,320], index: 0, kind: input, shape index: {}]
  %s1 = inlined_call_operand.vmem [shape: f32[8,72], index: 1, kind: input, shape index: {}]
  %s2 = inlined_call_operand.vmem [shape: f32[8,1], index: 2, kind: input, shape index: {}]
  %s3 = inlined_call_operand.hbm [shape: f32[8,72], index: 3, kind: input, shape index: {}]
  %s4 = inlined_call_operand.vmem [shape: f32[8,1], index: 4, kind: input, shape index: {}]
  %s5 = inlined_call_operand.hbm [shape: f32[8,72], index: 5, kind: input, shape index: {}]
  %s6 = inlined_call_operand.vmem [shape: f32[8,1], index: 6, kind: input, shape index: {}]
  %s7 = inlined_call_operand.vmem [shape: f32[1,256], index: 7, kind: input, shape index: {}]
  %s8 = inlined_call_operand.vmem [shape: f32[1,256], index: 8, kind: input, shape index: {}]
  %s9 = inlined_call_operand.vmem [shape: f32[1,2176], index: 9, kind: input, shape index: {}]
  %s10 = inlined_call_operand.hbm [shape: f32[1,2176], index: 10, kind: input, shape index: {}]
  %s11 = inlined_call_operand.hbm [shape: f32[16,64], index: 11, kind: input, shape index: {}]
  %s12 = inlined_call_operand.hbm [shape: f32[2,4,4096], index: 12, kind: output, shape index: {}]
  %s13 = sld [smem:[#allocation0]]
  $region113: #{tpu_custom_call.1} parent=0
    _
  %s15 = ssub.s32 1, %s13
  %s16 = scalar_select 0, %s15, %s13
  $region1: #{tpu_custom_call.1} parent=0
    #allocation6 [shape = 'u8[24576]{0}', space=vmem, size = 0x6000, scoped, tag = 'input window, operand 0']
    #allocation7 [shape = 's32[2]{0}', space=sflag, size = 0x8, scoped, tag = 'scoped memory for tpu_custom_call.1']
    #allocation8 [shape = 's32[2]{0}', space=sflag, size = 0x8, scoped, tag = 'scoped memory for tpu_custom_call.1']
    #allocation9 [shape = 'u8[4096]{0}', space=vmem, size = 0x1000, scoped, tag = 'input window, operand 3, single buffered']
    #allocation10 [shape = 's32[1]{0}', space=sflag, size = 0x4, scoped, tag = 'scoped memory for tpu_custom_call.1']
    #allocation11 [shape = 'u8[4096]{0}', space=vmem, size = 0x1000, scoped, tag = 'input window, operand 5, single buffered']
    #allocation12 [shape = 'u8[8704]{0}', space=vmem, size = 0x2400, scoped, tag = 'input window, operand 10, single buffered']
    #allocation13 [shape = 's32[1]{0}', space=sflag, size = 0x4, scoped, tag = 'scoped memory for tpu_custom_call.1']
    #allocation14 [shape = 'u8[8192]{0}', space=vmem, size = 0x2000, scoped, tag = 'input window, operand 11, single buffered']
    #allocation15 [shape = 'u8[65536]{0}', space=vmem, size = 0x10000, scoped, tag = 'output window, operand 0']
    %17 = vsyncpa [#allocation7], 0
    %s18 = scalar_lea.sflag [#allocation7], 1
    %19 = vsyncpa %s18, 0
    %20 = vsyncpa [#allocation10], 0
    %21 = vsyncpa [#allocation13], 0
    %22 = vsyncpa [#allocation8], 0
    %s23 = scalar_lea.sflag [#allocation8], 1
    %24 = vsyncpa %s23, 0
    loop: start=0, step=1, limit=6
    $region2: #{tpu_custom_call.1} parent=1 // loop_pre_header
      _
    $region3: #{tpu_custom_call.1} parent=1 // loop_header
      %s26 = sphi 0, %s30
      %p27 = scmp.ge.s32.totalorder %s26, 6
      %s33 = sphi 0, %s45
      %s34 = sphi 0, %s41
      %s35 = sphi 0, %s33
      %s36 = sphi 0, %s34
      %s37 = sphi 0, %s35
      %s38 = sphi 0, %s36
      %s48 = sphi 0, %s50
      %s51 = sphi 0, %s48
      %s52 = sphi 0, %s51
      %s68 = sphi 0, %s52
      %s72 = sphi 0, %s72
      %s74 = sphi 0, %s72
      %s75 = sphi 0, %s74
      %s89 = sphi 0, %s75
      %s93 = sphi 0, %s93
      %s95 = sphi 0, %s93
      %s96 = sphi 0, %s95
      %s110 = sphi 0, %s96
      %s114 = sphi 0, %s114
      %s116 = sphi 0, %s114
      %s117 = sphi 0, %s116
      %s131 = sphi 0, %s117
      %s135 = sphi 0, %s135
      %s137 = sphi 0, %s135
      %s138 = sphi 0, %s137
      %s152 = sphi 0, %s138
      %s156 = sphi 0, %s156
      %s158 = sphi 0, %s156
      %s159 = sphi 0, %s158
      %s173 = sphi 0, %s159
      %s177 = sphi 0, %s177
      %s179 = sphi 0, %s177
      %s180 = sphi 0, %s179
      %s194 = sphi 0, %s180
      %s198 = sphi 0, %s198
      %s200 = sphi 0, %s198
      %s201 = sphi 0, %s200
      %s215 = sphi 0, %s201
      %s219 = sphi 0, %s219
      %s221 = sphi 0, %s219
      %s222 = sphi 0, %s221
      %s236 = sphi 0, %s222
      %s240 = sphi 0, %s240
      %s242 = sphi 0, %s240
      %s243 = sphi 0, %s242
      %s257 = sphi 0, %s243
      %s261 = sphi 0, %s261
      %s263 = sphi 0, %s261
      %s264 = sphi 0, %s263
      %s278 = sphi 0, %s264
      %s282 = sphi 0, %s282
      %s284 = sphi 0, %s282
      %s285 = sphi 0, %s284
      %s299 = sphi 0, %s285
      %s307 = sphi 0, %s309
      %s310 = sphi 0, %s307
      %s311 = sphi 0, %s310
      %s327 = sphi 0, %s311
    $region4: #{tpu_custom_call.1} parent=1 // loop_header_branch
      %29 = sbr.rel (%p27) target = $region8
    $region5: #{tpu_custom_call.1} parent=1 // loop_body
      %s31 = ssub.s32 %s26, 1
      %s32 = ssub.s32 %s26, 2
      %s39 = sadd.s32 1, %s34
      %p40 = scmp.ge.s32.totalorder %s39, 2
      %s41 = scalar_select %p40, 0, %s39
      %s42 = sadd.s32 1, %s33
      %s43 = scalar_select %p40, %s42, %s33
      %p44 = scmp.ge.s32.totalorder %s43, 2
      %s45 = scalar_select %p44, 0, %s43
      %s46 = ssub.s32 %s33, %s45
      %p47 = scmp.eq.s32.totalorder %s46, 0
      %s49 = sadd.s32 %s48, 1
      %s50 = scalar_select %p47, %s48, %s49
      %p53 = pneg %p47
      %p54 = scmp.eq.s32.totalorder %s26, 3
      %p55 = por %p53, %p54
      %p56 = scmp.ne.s32.totalorder %s48, %s51
      %p57 = scmp.eq.s32.totalorder %s26, 0
      %p58 = por %p56, %p57
      %p59 = scmp.ne.s32.totalorder %s48, %s51
      %p60 = scmp.eq.s32.totalorder %s31, 3
      %p61 = por %p59, %p60
      %p62 = scmp.ne.s32.totalorder %s51, %s52
      %p63 = scmp.eq.s32.totalorder %s31, 0
      %p64 = por %p62, %p63
      %p65 = scmp.ne.s32.totalorder %s51, %s52
      %p66 = scmp.eq.s32.totalorder %s32, 3
      %p67 = por %p65, %p66
      %p69 = scmp.ne.s32.totalorder %s52, %s68
      %p70 = scmp.eq.s32.totalorder %s32, 0
      %p71 = por %p69, %p70
      %s73 = sadd.s32 %s72, 1
      %p76 = scmp.eq.s32.totalorder %s26, 3
      %p77 = scmp.ne.s32.totalorder %s72, %s74
      %p78 = scmp.eq.s32.totalorder %s26, 0
      %p79 = por %p77, %p78
      %p80 = scmp.ne.s32.totalorder %s72, %s74
      %p81 = scmp.eq.s32.totalorder %s31, 3
      %p82 = por %p80, %p81
      %p83 = scmp.ne.s32.totalorder %s74, %s75
      %p84 = scmp.eq.s32.totalorder %s31, 0
      %p85 = por %p83, %p84
      %p86 = scmp.ne.s32.totalorder %s74, %s75
      %p87 = scmp.eq.s32.totalorder %s32, 3
      %p88 = por %p86, %p87
      %p90 = scmp.ne.s32.totalorder %s75, %s89
      %p91 = scmp.eq.s32.totalorder %s32, 0
      %p92 = por %p90, %p91
      %s94 = sadd.s32 %s93, 1
      %p97 = scmp.eq.s32.totalorder %s26, 3
      %p98 = scmp.ne.s32.totalorder %s93, %s95
      %p99 = scmp.eq.s32.totalorder %s26, 0
      %p100 = por %p98, %p99
      %p101 = scmp.ne.s32.totalorder %s93, %s95
      %p102 = scmp.eq.s32.totalorder %s31, 3
      %p103 = por %p101, %p102
      %p104 = scmp.ne.s32.totalorder %s95, %s96
      %p105 = scmp.eq.s32.totalorder %s31, 0
      %p106 = por %p104, %p105
      %p107 = scmp.ne.s32.totalorder %s95, %s96
      %p108 = scmp.eq.s32.totalorder %s32, 3
      %p109 = por %p107, %p108
      %p111 = scmp.ne.s32.totalorder %s96, %s110
      %p112 = scmp.eq.s32.totalorder %s32, 0
      %p113 = por %p111, %p112
      %s115 = sadd.s32 %s114, 1
      %p118 = scmp.eq.s32.totalorder %s26, 3
      %p119 = scmp.ne.s32.totalorder %s114, %s116
      %p120 = scmp.eq.s32.totalorder %s26, 0
      %p121 = por %p119, %p120
      %p122 = scmp.ne.s32.totalorder %s114, %s116
      %p123 = scmp.eq.s32.totalorder %s31, 3
      %p124 = por %p122, %p123
      %p125 = scmp.ne.s32.totalorder %s116, %s117
      %p126 = scmp.eq.s32.totalorder %s31, 0
      %p127 = por %p125, %p126
      %p128 = scmp.ne.s32.totalorder %s116, %s117
      %p129 = scmp.eq.s32.totalorder %s32, 3
      %p130 = por %p128, %p129
      %p132 = scmp.ne.s32.totalorder %s117, %s131
      %p133 = scmp.eq.s32.totalorder %s32, 0
      %p134 = por %p132, %p133
      %s136 = sadd.s32 %s135, 1
      %p139 = scmp.eq.s32.totalorder %s26, 3
      %p140 = scmp.ne.s32.totalorder %s135, %s137
      %p141 = scmp.eq.s32.totalorder %s26, 0
      %p142 = por %p140, %p141
      %p143 = scmp.ne.s32.totalorder %s135, %s137
      %p144 = scmp.eq.s32.totalorder %s31, 3
      %p145 = por %p143, %p144
      %p146 = scmp.ne.s32.totalorder %s137, %s138
      %p147 = scmp.eq.s32.totalorder %s31, 0
      %p148 = por %p146, %p147
      %p149 = scmp.ne.s32.totalorder %s137, %s138
      %p150 = scmp.eq.s32.totalorder %s32, 3
      %p151 = por %p149, %p150
      %p153 = scmp.ne.s32.totalorder %s138, %s152
      %p154 = scmp.eq.s32.totalorder %s32, 0
      %p155 = por %p153, %p154
      %s157 = sadd.s32 %s156, 1
      %p160 = scmp.eq.s32.totalorder %s26, 3
      %p161 = scmp.ne.s32.totalorder %s156, %s158
      %p162 = scmp.eq.s32.totalorder %s26, 0
      %p163 = por %p161, %p162
      %p164 = scmp.ne.s32.totalorder %s156, %s158
      %p165 = scmp.eq.s32.totalorder %s31, 3
      %p166 = por %p164, %p165
      %p167 = scmp.ne.s32.totalorder %s158, %s159
      %p168 = scmp.eq.s32.totalorder %s31, 0
      %p169 = por %p167, %p168
      %p170 = scmp.ne.s32.totalorder %s158, %s159
      %p171 = scmp.eq.s32.totalorder %s32, 3
      %p172 = por %p170, %p171
      %p174 = scmp.ne.s32.totalorder %s159, %s173
      %p175 = scmp.eq.s32.totalorder %s32, 0
      %p176 = por %p174, %p175
      %s178 = sadd.s32 %s177, 1
      %p181 = scmp.eq.s32.totalorder %s26, 3
      %p182 = scmp.ne.s32.totalorder %s177, %s179
      %p183 = scmp.eq.s32.totalorder %s26, 0
      %p184 = por %p182, %p183
      %p185 = scmp.ne.s32.totalorder %s177, %s179
      %p186 = scmp.eq.s32.totalorder %s31, 3
      %p187 = por %p185, %p186
      %p188 = scmp.ne.s32.totalorder %s179, %s180
      %p189 = scmp.eq.s32.totalorder %s31, 0
      %p190 = por %p188, %p189
      %p191 = scmp.ne.s32.totalorder %s179, %s180
      %p192 = scmp.eq.s32.totalorder %s32, 3
      %p193 = por %p191, %p192
      %p195 = scmp.ne.s32.totalorder %s180, %s194
      %p196 = scmp.eq.s32.totalorder %s32, 0
      %p197 = por %p195, %p196
      %s199 = sadd.s32 %s198, 1
      %p202 = scmp.eq.s32.totalorder %s26, 3
      %p203 = scmp.ne.s32.totalorder %s198, %s200
      %p204 = scmp.eq.s32.totalorder %s26, 0
      %p205 = por %p203, %p204
      %p206 = scmp.ne.s32.totalorder %s198, %s200
      %p207 = scmp.eq.s32.totalorder %s31, 3
      %p208 = por %p206, %p207
      %p209 = scmp.ne.s32.totalorder %s200, %s201
      %p210 = scmp.eq.s32.totalorder %s31, 0
      %p211 = por %p209, %p210
      %p212 = scmp.ne.s32.totalorder %s200, %s201
      %p213 = scmp.eq.s32.totalorder %s32, 3
      %p214 = por %p212, %p213
      %p216 = scmp.ne.s32.totalorder %s201, %s215
      %p217 = scmp.eq.s32.totalorder %s32, 0
      %p218 = por %p216, %p217
      %s220 = sadd.s32 %s219, 1
      %p223 = scmp.eq.s32.totalorder %s26, 3
      %p224 = scmp.ne.s32.totalorder %s219, %s221
      %p225 = scmp.eq.s32.totalorder %s26, 0
      %p226 = por %p224, %p225
      %p227 = scmp.ne.s32.totalorder %s219, %s221
      %p228 = scmp.eq.s32.totalorder %s31, 3
      %p229 = por %p227, %p228
      %p230 = scmp.ne.s32.totalorder %s221, %s222
      %p231 = scmp.eq.s32.totalorder %s31, 0
      %p232 = por %p230, %p231
      %p233 = scmp.ne.s32.totalorder %s221, %s222
      %p234 = scmp.eq.s32.totalorder %s32, 3
      %p235 = por %p233, %p234
      %p237 = scmp.ne.s32.totalorder %s222, %s236
      %p238 = scmp.eq.s32.totalorder %s32, 0
      %p239 = por %p237, %p238
      %s241 = sadd.s32 %s240, 1
      %p244 = scmp.eq.s32.totalorder %s26, 3
      %p245 = scmp.ne.s32.totalorder %s240, %s242
      %p246 = scmp.eq.s32.totalorder %s26, 0
      %p247 = por %p245, %p246
      %p248 = scmp.ne.s32.totalorder %s240, %s242
      %p249 = scmp.eq.s32.totalorder %s31, 3
      %p250 = por %p248, %p249
      %p251 = scmp.ne.s32.totalorder %s242, %s243
      %p252 = scmp.eq.s32.totalorder %s31, 0
      %p253 = por %p251, %p252
      %p254 = scmp.ne.s32.totalorder %s242, %s243
      %p255 = scmp.eq.s32.totalorder %s32, 3
      %p256 = por %p254, %p255
      %p258 = scmp.ne.s32.totalorder %s243, %s257
      %p259 = scmp.eq.s32.totalorder %s32, 0
      %p260 = por %p258, %p259
      %s262 = sadd.s32 %s261, 1
      %p265 = scmp.eq.s32.totalorder %s26, 3
      %p266 = scmp.ne.s32.totalorder %s261, %s263
      %p267 = scmp.eq.s32.totalorder %s26, 0
      %p268 = por %p266, %p267
      %p269 = scmp.ne.s32.totalorder %s261, %s263
      %p270 = scmp.eq.s32.totalorder %s31, 3
      %p271 = por %p269, %p270
      %p272 = scmp.ne.s32.totalorder %s263, %s264
      %p273 = scmp.eq.s32.totalorder %s31, 0
      %p274 = por %p272, %p273
      %p275 = scmp.ne.s32.totalorder %s263, %s264
      %p276 = scmp.eq.s32.totalorder %s32, 3
      %p277 = por %p275, %p276
      %p279 = scmp.ne.s32.totalorder %s264, %s278
      %p280 = scmp.eq.s32.totalorder %s32, 0
      %p281 = por %p279, %p280
      %s283 = sadd.s32 %s282, 1
      %p286 = scmp.eq.s32.totalorder %s26, 3
      %p287 = scmp.ne.s32.totalorder %s282, %s284
      %p288 = scmp.eq.s32.totalorder %s26, 0
      %p289 = por %p287, %p288
      %p290 = scmp.ne.s32.totalorder %s282, %s284
      %p291 = scmp.eq.s32.totalorder %s31, 3
      %p292 = por %p290, %p291
      %p293 = scmp.ne.s32.totalorder %s284, %s285
      %p294 = scmp.eq.s32.totalorder %s31, 0
      %p295 = por %p293, %p294
      %p296 = scmp.ne.s32.totalorder %s284, %s285
      %p297 = scmp.eq.s32.totalorder %s32, 3
      %p298 = por %p296, %p297
      %p300 = scmp.ne.s32.totalorder %s285, %s299
      %p301 = scmp.eq.s32.totalorder %s32, 0
      %p302 = por %p300, %p301
      %s303 = ssub.s32 %s33, %s45
      %s304 = ssub.s32 %s34, %s41
      %s305 = sor.u32 %s303, %s304
      %p306 = scmp.eq.s32.totalorder %s305, 0
      %s308 = sadd.s32 %s307, 1
      %s309 = scalar_select %p306, %s307, %s308
      %p312 = pneg %p306
      %p313 = scmp.eq.s32.totalorder %s26, 3
      %p314 = por %p312, %p313
      %p315 = scmp.ne.s32.totalorder %s307, %s310
      %p316 = scmp.eq.s32.totalorder %s26, 0
      %p317 = por %p315, %p316
      %p318 = scmp.ne.s32.totalorder %s307, %s310
      %p319 = scmp.eq.s32.totalorder %s31, 3
      %p320 = por %p318, %p319
      %p321 = scmp.ne.s32.totalorder %s310, %s311
      %p322 = scmp.eq.s32.totalorder %s31, 0
      %p323 = por %p321, %p322
      %p324 = scmp.ne.s32.totalorder %s310, %s311
      %p325 = scmp.eq.s32.totalorder %s32, 3
      %p326 = por %p324, %p325
      %p328 = scmp.ne.s32.totalorder %s311, %s327
      %p329 = scmp.eq.s32.totalorder %s32, 0
      %p330 = por %p328, %p329
      %p331 = scmp.le.s32.totalorder 1, %s26
      %p332 = scmp.lt.s32.totalorder %s26, 5
      %p333 = pnand %p331, %p332
      %p334 = pneg %p333
      // Predicated region
      $region9: #{tpu_custom_call.1} parent=5 // pred_check
        _
      $region10: #{tpu_custom_call.1} parent=5 // pred_check_branch
        %336 = sbr.rel (%p333) target = $region12
      $region11: #{tpu_custom_call.1} parent=5 // pred_region
        %s337 = ssub.s32 %s26, 1
        // Predicated region
        $region13: #{tpu_custom_call.1} parent=11 // pred_check
          %p338 = pneg %p85
        $region14: #{tpu_custom_call.1} parent=11 // pred_check_branch
          %340 = sbr.rel (%p338) target = $region16
        $region15: #{tpu_custom_call.1} parent=11 // pred_region
          _
        $region16: #{tpu_custom_call.1} parent=11 // pred_fallthru
          _
        // Predicated region
        $region17: #{tpu_custom_call.1} parent=11 // pred_check
          %p341 = pneg %p106
        $region18: #{tpu_custom_call.1} parent=11 // pred_check_branch
          %343 = sbr.rel (%p341) target = $region20
        $region19: #{tpu_custom_call.1} parent=11 // pred_region
          _
        $region20: #{tpu_custom_call.1} parent=11 // pred_fallthru
          _
        // Predicated region
        $region21: #{tpu_custom_call.1} parent=11 // pred_check
          %p344 = pneg %p127
        $region22: #{tpu_custom_call.1} parent=11 // pred_check_branch
          %346 = sbr.rel (%p344) target = $region24
        $region23: #{tpu_custom_call.1} parent=11 // pred_region
          %348 = vsyncadd [#allocation10], 0
          %s350 = sshll.u32 %s3, 4
          %s351 = int_to_ptr.hbm [resolvable:$true] %s350
          %s352 = sshll.u32 [#allocation9], 4
          %s353 = int_to_ptr.vmem [resolvable:$true] %s352
          %355 = dma.hbm_to_vmem [thread:$0]  %s351, 128, %s353, [#allocation10]
        $region24: #{tpu_custom_call.1} parent=11 // pred_fallthru
          _
        // Predicated region
        $region25: #{tpu_custom_call.1} parent=11 // pred_check
          %p356 = pneg %p148
        $region26: #{tpu_custom_call.1} parent=11 // pred_check_branch
          %358 = sbr.rel (%p356) target = $region28
        $region27: #{tpu_custom_call.1} parent=11 // pred_region
          _
        $region28: #{tpu_custom_call.1} parent=11 // pred_fallthru
          _
        // Predicated region
        $region29: #{tpu_custom_call.1} parent=11 // pred_check
          %p359 = pneg %p169
        $region30: #{tpu_custom_call.1} parent=11 // pred_check_branch
          %361 = sbr.rel (%p359) target = $region32
        $region31: #{tpu_custom_call.1} parent=11 // pred_region
          %363 = vsyncadd [#allocation10], 0
          %s365 = sshll.u32 %s5, 4
          %s366 = int_to_ptr.hbm [resolvable:$true] %s365
          %s367 = sshll.u32 [#allocation11], 4
          %s368 = int_to_ptr.vmem [resolvable:$true] %s367
          %370 = dma.hbm_to_vmem [thread:$0]  %s366, 128, %s368, [#allocation10]
        $region32: #{tpu_custom_call.1} parent=11 // pred_fallthru
          _
        // Predicated region
        $region33: #{tpu_custom_call.1} parent=11 // pred_check
          %p371 = pneg %p190
        $region34: #{tpu_custom_call.1} parent=11 // pred_check_branch
          %373 = sbr.rel (%p371) target = $region36
        $region35: #{tpu_custom_call.1} parent=11 // pred_region
          _
        $region36: #{tpu_custom_call.1} parent=11 // pred_fallthru
          _
        // Predicated region
        $region37: #{tpu_custom_call.1} parent=11 // pred_check
          %p374 = pneg %p211
        $region38: #{tpu_custom_call.1} parent=11 // pred_check_branch
          %376 = sbr.rel (%p374) target = $region40
        $region39: #{tpu_custom_call.1} parent=11 // pred_region
          _
        $region40: #{tpu_custom_call.1} parent=11 // pred_fallthru
          _
        // Predicated region
        $region41: #{tpu_custom_call.1} parent=11 // pred_check
          %p377 = pneg %p232
        $region42: #{tpu_custom_call.1} parent=11 // pred_check_branch
          %379 = sbr.rel (%p377) target = $region44
        $region43: #{tpu_custom_call.1} parent=11 // pred_region
          _
        $region44: #{tpu_custom_call.1} parent=11 // pred_fallthru
          _
        // Predicated region
        $region45: #{tpu_custom_call.1} parent=11 // pred_check
          %p380 = pneg %p253
        $region46: #{tpu_custom_call.1} parent=11 // pred_check_branch
          %382 = sbr.rel (%p380) target = $region48
        $region47: #{tpu_custom_call.1} parent=11 // pred_region
          _
        $region48: #{tpu_custom_call.1} parent=11 // pred_fallthru
          _
        // Predicated region
        $region49: #{tpu_custom_call.1} parent=11 // pred_check
          %p383 = pneg %p274
        $region50: #{tpu_custom_call.1} parent=11 // pred_check_branch
          %385 = sbr.rel (%p383) target = $region52
        $region51: #{tpu_custom_call.1} parent=11 // pred_region
          %387 = vsyncadd [#allocation13], 0
          %s389 = sshll.u32 %s10, 4
          %s390 = int_to_ptr.hbm [resolvable:$true] %s389
          %s391 = sshll.u32 [#allocation12], 4
          %s392 = int_to_ptr.vmem [resolvable:$true] %s391
          %394 = dma.hbm_to_vmem [thread:$0]  %s390, 272, %s392, [#allocation13]
        $region52: #{tpu_custom_call.1} parent=11 // pred_fallthru
          _
        // Predicated region
        $region53: #{tpu_custom_call.1} parent=11 // pred_check
          %p395 = pneg %p295
        $region54: #{tpu_custom_call.1} parent=11 // pred_check_branch
          %397 = sbr.rel (%p395) target = $region56
        $region55: #{tpu_custom_call.1} parent=11 // pred_region
          %399 = vsyncadd [#allocation13], 0
          %s400 = sshll.u32 %s11, 4
          %s401 = int_to_ptr.hbm [resolvable:$true] %s400
          %s402 = sshll.u32 [#allocation14], 4
          %s403 = int_to_ptr.vmem [resolvable:$true] %s402
          %408 = dma.hbm_to_vmem [thread:$0]  %s401, 256, %s403, [#allocation13], 128, 128, 8
        $region56: #{tpu_custom_call.1} parent=11 // pred_fallthru
          _
      $region12: #{tpu_custom_call.1} parent=5 // pred_fallthru
        _
      %p409 = scmp.lt.s32.totalorder %s26, 4
      // Predicated region
      $region57: #{tpu_custom_call.1} parent=5 // pred_check
        %p410 = pneg %p409
      $region58: #{tpu_custom_call.1} parent=5 // pred_check_branch
        %412 = sbr.rel (%p410) target = $region60
      $region59: #{tpu_custom_call.1} parent=5 // pred_region
        // Predicated region
        $region61: #{tpu_custom_call.1} parent=59 // pred_check
          %p413 = pneg %p58
        $region62: #{tpu_custom_call.1} parent=59 // pred_check_branch
          %415 = sbr.rel (%p413) target = $region64
        $region63: #{tpu_custom_call.1} parent=59 // pred_region
          %s416 = sand.u32 %s48, 1
          %s417 = scalar_lea.sflag [#allocation7], %s416
          %s418 = sand.u32 %s48, 1
          %s419 = smul.addr %s418, 24
          %s420 = scalar_lea.vmem [#allocation6], %s419
          %422 = vsyncadd %s417, 0
          %s423 = smul.addr %s33, 3
          %s424 = smul.addr %s423, 8
          %s425 = scalar_lea.hbm %s0, %s424
          %s427 = sshll.u32 %s425, 4
          %s428 = int_to_ptr.hbm [resolvable:$true] %s427
          %s429 = sshll.u32 %s420, 4
          %s430 = int_to_ptr.vmem [resolvable:$true] %s429
          %432 = dma.hbm_to_vmem [thread:$0]  %s428, 384, %s430, %s417
        $region64: #{tpu_custom_call.1} parent=59 // pred_fallthru
          _
      $region60: #{tpu_custom_call.1} parent=5 // pred_fallthru
        _
      %p433 = scmp.le.s32.totalorder 1, %s26
      %p434 = scmp.lt.s32.totalorder %s26, 5
      %p435 = pnand %p433, %p434
      %p436 = pneg %p435
      // Predicated region
      $region65: #{tpu_custom_call.1} parent=5 // pred_check
        _
      $region66: #{tpu_custom_call.1} parent=5 // pred_check_branch
        %438 = sbr.rel (%p435) target = $region68
      $region67: #{tpu_custom_call.1} parent=5 // pred_region
        %s439 = ssub.s32 %s26, 1
        %s440 = sand.u32 %s51, 1
        %s441 = scalar_lea.sflag [#allocation7], %s440
        %s442 = sand.u32 %s51, 1
        %s443 = smul.addr %s442, 24
        %s444 = scalar_lea.vmem [#allocation6], %s443
        // Predicated region
        $region69: #{tpu_custom_call.1} parent=67 // pred_check
          %p445 = pneg %p64
        $region70: #{tpu_custom_call.1} parent=67 // pred_check_branch
          %447 = sbr.rel (%p445) target = $region72
        $region71: #{tpu_custom_call.1} parent=67 // pred_region
          %449 = dma.done %s441, 384
        $region72: #{tpu_custom_call.1} parent=67 // pred_fallthru
          _
        // Predicated region
        $region73: #{tpu_custom_call.1} parent=67 // pred_check
          %p450 = pneg %p127
        $region74: #{tpu_custom_call.1} parent=67 // pred_check_branch
          %452 = sbr.rel (%p450) target = $region76
        $region75: #{tpu_custom_call.1} parent=67 // pred_region
          %454 = dma.done [#allocation10], 128
        $region76: #{tpu_custom_call.1} parent=67 // pred_fallthru
          _
        // Predicated region
        $region77: #{tpu_custom_call.1} parent=67 // pred_check
          %p455 = pneg %p169
        $region78: #{tpu_custom_call.1} parent=67 // pred_check_branch
          %457 = sbr.rel (%p455) target = $region80
        $region79: #{tpu_custom_call.1} parent=67 // pred_region
          %459 = dma.done [#allocation10], 128
        $region80: #{tpu_custom_call.1} parent=67 // pred_fallthru
          _
        // Predicated region
        $region81: #{tpu_custom_call.1} parent=67 // pred_check
          %p460 = pneg %p274
        $region82: #{tpu_custom_call.1} parent=67 // pred_check_branch
          %462 = sbr.rel (%p460) target = $region84
        $region83: #{tpu_custom_call.1} parent=67 // pred_region
          %464 = dma.done [#allocation13], 272
        $region84: #{tpu_custom_call.1} parent=67 // pred_fallthru
          _
        // Predicated region
        $region85: #{tpu_custom_call.1} parent=67 // pred_check
          %p465 = pneg %p295
        $region86: #{tpu_custom_call.1} parent=67 // pred_check_branch
          %467 = sbr.rel (%p465) target = $region88
        $region87: #{tpu_custom_call.1} parent=67 // pred_region
          %469 = dma.done [#allocation13], 256
        $region88: #{tpu_custom_call.1} parent=67 // pred_fallthru
          _
        %s470 = sand.u32 %s51, 1
        %s471 = scalar_lea.sflag [#allocation7], %s470
        %s472 = sand.u32 %s51, 1
        %s473 = smul.addr %s472, 24
        %s474 = scalar_lea.vmem [#allocation6], %s473
        %p475 = pneg %p64
        %p476 = pneg %p61
        %p477 = pneg %p85
        %p478 = pneg %p82
        %p479 = pneg %p106
        %p480 = pneg %p103
        %p481 = pneg %p127
        %p482 = pneg %p124
        %p483 = pneg %p148
        %p484 = pneg %p145
        %p485 = pneg %p169
        %p486 = pneg %p166
        %p487 = pneg %p190
        %p488 = pneg %p187
        %p489 = pneg %p211
        %p490 = pneg %p208
        %p491 = pneg %p232
        %p492 = pneg %p229
        %p493 = pneg %p253
        %p494 = pneg %p250
        %p495 = pneg %p274
        %p496 = pneg %p271
        %p497 = pneg %p295
        %p498 = pneg %p292
        %p499 = pneg %p323
        %p500 = pneg %p320
        %s501 = sand.u32 %s310, 1
        %s502 = scalar_lea.sflag [#allocation8], %s501
        %s503 = sand.u32 %s310, 1
        %s504 = smul.addr %s503, 64
        %s505 = scalar_lea.vmem [#allocation15], %s504
        %s506 = smul.u32 16, %s36
        %p507 = scmp.eq.s32.totalorder %s36, 0
        // Predicated region
        $region89: #{tpu_custom_call.1} parent=67 // pred_check
          %p508 = pneg %p507
        $region90: #{tpu_custom_call.1} parent=67 // pred_check_branch
          %510 = sbr.rel (%p508) target = $region92
        $region91: #{tpu_custom_call.1} parent=67 // pred_region
          %511 = vst [vmem:[#allocation4] sm:$0xff] 0.0
          %512 = vst [vmem:[#allocation4 + $0x8] sm:$0xff] 0.0
          %513 = vst [vmem:[#allocation4 + $0x10] sm:$0xff] 0.0
          %514 = vst [vmem:[#allocation4 + $0x18] sm:$0xff] 0.0
          %515 = vst [vmem:[#allocation4 + $0x20] sm:$0xff] 0.0
          %516 = vst [vmem:[#allocation4 + $0x28] sm:$0xff] 0.0
          %517 = vst [vmem:[#allocation4 + $0x30] sm:$0xff] 0.0
          %518 = vst [vmem:[#allocation4 + $0x38] sm:$0xff] 0.0
          %519 = vst [vmem:[#allocation4 + $0x40] sm:$0xff] 0.0
          %520 = vst [vmem:[#allocation4 + $0x48] sm:$0xff] 0.0
          %521 = vst [vmem:[#allocation4 + $0x50] sm:$0xff] 0.0
          %522 = vst [vmem:[#allocation4 + $0x58] sm:$0xff] 0.0
          %523 = vst [vmem:[#allocation4 + $0x60] sm:$0xff] 0.0
          %524 = vst [vmem:[#allocation4 + $0x68] sm:$0xff] 0.0
          %525 = vst [vmem:[#allocation4 + $0x70] sm:$0xff] 0.0
          %526 = vst [vmem:[#allocation4 + $0x78] sm:$0xff] 0.0
          %527 = vst [vmem:[#allocation4 + $0x80] sm:$0xff] 0.0
          %528 = vst [vmem:[#allocation4 + $0x88] sm:$0xff] 0.0
          %529 = vst [vmem:[#allocation4 + $0x90] sm:$0xff] 0.0
          %530 = vst [vmem:[#allocation4 + $0x98] sm:$0xff] 0.0
          %531 = vst [vmem:[#allocation4 + $0xa0] sm:$0xff] 0.0
          %532 = vst [vmem:[#allocation4 + $0xa8] sm:$0xff] 0.0
          %533 = vst [vmem:[#allocation4 + $0xb0] sm:$0xff] 0.0
          %534 = vst [vmem:[#allocation4 + $0xb8] sm:$0xff] 0.0
          %535 = vst [vmem:[#allocation4 + $0xc0] sm:$0xff] 0.0
          %536 = vst [vmem:[#allocation4 + $0xc8] sm:$0xff] 0.0
          %537 = vst [vmem:[#allocation4 + $0xd0] sm:$0xff] 0.0
          %538 = vst [vmem:[#allocation4 + $0xd8] sm:$0xff] 0.0
          %539 = vst [vmem:[#allocation4 + $0xe0] sm:$0xff] 0.0
          %540 = vst [vmem:[#allocation4 + $0xe8] sm:$0xff] 0.0
          %541 = vst [vmem:[#allocation4 + $0xf0] sm:$0xff] 0.0
          %542 = vst [vmem:[#allocation4 + $0xf8] sm:$0xff] 0.0
          %543 = vst [vmem:[#allocation4 + $0x100] sm:$0xff] 0.0
          %544 = vst [vmem:[#allocation4 + $0x108] sm:$0xff] 0.0
          %545 = vst [vmem:[#allocation4 + $0x110] sm:$0xff] 0.0
          %546 = vst [vmem:[#allocation4 + $0x118] sm:$0xff] 0.0
          %547 = vst [vmem:[#allocation4 + $0x120] sm:$0xff] 0.0
          %548 = vst [vmem:[#allocation4 + $0x128] sm:$0xff] 0.0
          %549 = vst [vmem:[#allocation5] sm:$0xff] 0.0
          %550 = vst [vmem:[#allocation5 + $0x8] sm:$0xff] 0.0
          %551 = vst [vmem:[#allocation5 + $0x10] sm:$0xff] 0.0
          %552 = vst [vmem:[#allocation5 + $0x18] sm:$0xff] 0.0
          %553 = vst [vmem:[#allocation5 + $0x20] sm:$0xff] 0.0
          %554 = vst [vmem:[#allocation5 + $0x28] sm:$0xff] 0.0
          %555 = vst [vmem:[#allocation5 + $0x30] sm:$0xff] 0.0
          %556 = vst [vmem:[#allocation5 + $0x38] sm:$0xff] 0.0
          %557 = vst [vmem:[#allocation5 + $0x40] sm:$0xff] 0.0
          %558 = vst [vmem:[#allocation5 + $0x48] sm:$0xff] 0.0
          %559 = vst [vmem:[#allocation5 + $0x50] sm:$0xff] 0.0
          %560 = vst [vmem:[#allocation5 + $0x58] sm:$0xff] 0.0
          %561 = vst [vmem:[#allocation5 + $0x60] sm:$0xff] 0.0
          %562 = vst [vmem:[#allocation5 + $0x68] sm:$0xff] 0.0
          %563 = vst [vmem:[#allocation5 + $0x70] sm:$0xff] 0.0
          %564 = vst [vmem:[#allocation5 + $0x78] sm:$0xff] 0.0
          %565 = vst [vmem:[#allocation5 + $0x80] sm:$0xff] 0.0
          %566 = vst [vmem:[#allocation5 + $0x88] sm:$0xff] 0.0
          %v567 = vld [vmem:[%s444] sm:$0xff]
          %v568 = vld [vmem:[%s444 + $0x8] sm:$0xff]
          %v569 = vld [vmem:[%s444 + $0x10] sm:$0xff]
          %v570 = vld [vmem:[%s7] sm:$0x3]
          %v572 = vperm.slane %v570, 0
          %v573 = vperm.slane %v570, 1
          %574 = vrot.lane.b32.xlu0 %v572, 15
          %v575 = vpop.permute.xlu0 %574
          %576 = vrot.lane.b32.xlu0 %v573, 15
          %v577 = vpop.permute.xlu0 %576
          %vm578 = vcmask 121856
          %v579 = vsel %vm578, %v575, %v577
          %v583 = vmul.f32 %v567, %v575
          %v584 = vmul.f32 %v568, %v579
          %v585 = vmul.f32 %v569, %v577
          %589 = vrot.lane.b32.xlu0 %v583, 113
          %v590 = vpop.permute.xlu0 %589
          %591 = vrot.lane.b32.xlu0 %v584, 113
          %v592 = vpop.permute.xlu0 %591
          %593 = vrot.lane.b32.xlu0 %v585, 113
          %v594 = vpop.permute.xlu0 %593
          %vm595 = vcmask 924672
          %v596 = vsel %vm595, %v590, %v592
          %v597 = vsel %vm595, %v592, %v594
          %600 = vst [vmem:[#allocation2] sm:$0xff] %v596
          %601 = vst [vmem:[#allocation2 + $0x8] sm:$0xff] %v597
          %v602 = vld [vmem:[%s444] sm:$0xff]
          %v603 = vld [vmem:[%s444 + $0x8] sm:$0xff]
          %v604 = vld [vmem:[%s444 + $0x10] sm:$0xff]
          %608 = vrot.lane.b32.xlu0 %v602, 112
          %v609 = vpop.permute.xlu0 %608
          %610 = vrot.lane.b32.xlu0 %v603, 112
          %v611 = vpop.permute.xlu0 %610
          %612 = vrot.lane.b32.xlu0 %v604, 112
          %v613 = vpop.permute.xlu0 %612
          %vm614 = vcmask 916480
          %v615 = vsel %vm614, %v609, %v611
          %v616 = vsel %vm614, %v611, %v613
          %619 = vst [vmem:[#allocation2 + $0x88] sm:$0xff] %v615
          %620 = vst [vmem:[#allocation2 + $0x90] sm:$0xff] %v616
          %v621 = vld [vmem:[%s444] sm:$0xff]
          %v622 = vld [vmem:[%s444 + $0x8] sm:$0xff]
          %v623 = vld [vmem:[%s444 + $0x10] sm:$0xff]
          %v624 = vld [vmem:[%s8] sm:$0x3]
          %v626 = vperm.slane %v624, 0
          %v627 = vperm.slane %v624, 1
          %628 = vrot.lane.b32.xlu0 %v626, 17
          %v629 = vpop.permute.xlu0 %628
          %630 = vrot.lane.b32.xlu0 %v627, 17
          %v631 = vpop.permute.xlu0 %630
          %vm632 = vcmask 138240
          %v633 = vsel %vm632, %v629, %v631
          %v637 = vmul.f32 %v621, %v629
          %v638 = vmul.f32 %v622, %v633
          %v639 = vmul.f32 %v623, %v631
          %643 = vrot.lane.b32.xlu0 %v637, 111
          %v644 = vpop.permute.xlu0 %643
          %645 = vrot.lane.b32.xlu0 %v638, 111
          %v646 = vpop.permute.xlu0 %645
          %647 = vrot.lane.b32.xlu0 %v639, 111
          %v648 = vpop.permute.xlu0 %647
          %vm649 = vcmask 908288
          %v650 = vsel %vm649, %v644, %v646
          %v651 = vsel %vm649, %v646, %v648
          %654 = vst [vmem:[#allocation2 + $0x110] sm:$0xff] %v650
          %655 = vst [vmem:[#allocation2 + $0x118] sm:$0xff] %v651
          %v656 = vld [vmem:[%s444] sm:$0xff]
          %v657 = vld [vmem:[%s444 + $0x8] sm:$0xff]
          %v658 = vld [vmem:[%s444 + $0x10] sm:$0xff]
          %v659 = vld [vmem:[%s7] sm:$0x3]
          %v661 = vperm.slane %v659, 0
          %v662 = vperm.slane %v659, 1
          %663 = vrot.lane.b32.xlu0 %v661, 31
          %v664 = vpop.permute.xlu0 %663
          %665 = vrot.lane.b32.xlu0 %v662, 31
          %v666 = vpop.permute.xlu0 %665
          %vm667 = vcmask 252928
          %v668 = vsel %vm667, %v664, %v666
          %v672 = vmul.f32 %v656, %v664
          %v673 = vmul.f32 %v657, %v668
          %v674 = vmul.f32 %v658, %v666
          %678 = vrot.lane.b32.xlu0 %v672, 97
          %v679 = vpop.permute.xlu0 %678
          %680 = vrot.lane.b32.xlu0 %v673, 97
          %v681 = vpop.permute.xlu0 %680
          %682 = vrot.lane.b32.xlu0 %v674, 97
          %v683 = vpop.permute.xlu0 %682
          %vm684 = vcmask 793600
          %v685 = vsel %vm684, %v679, %v681
          %v686 = vsel %vm684, %v681, %v683
          %689 = vst [vmem:[#allocation2 + $0x198] sm:$0xff] %v685
          %690 = vst [vmem:[#allocation2 + $0x1a0] sm:$0xff] %v686
          %v691 = vld [vmem:[%s444] sm:$0xff]
          %v692 = vld [vmem:[%s444 + $0x8] sm:$0xff]
          %v693 = vld [vmem:[%s444 + $0x10] sm:$0xff]
          %697 = vrot.lane.b32.xlu0 %v691, 96
          %v698 = vpop.permute.xlu0 %697
          %699 = vrot.lane.b32.xlu0 %v692, 96
          %v700 = vpop.permute.xlu0 %699
          %701 = vrot.lane.b32.xlu0 %v693, 96
          %v702 = vpop.permute.xlu0 %701
          %vm703 = vcmask 785408
          %v704 = vsel %vm703, %v698, %v700
          %v705 = vsel %vm703, %v700, %v702
          %708 = vst [vmem:[#allocation2 + $0x220] sm:$0xff] %v704
          %709 = vst [vmem:[#allocation2 + $0x228] sm:$0xff] %v705
          %v710 = vld [vmem:[%s444] sm:$0xff]
          %v711 = vld [vmem:[%s444 + $0x8] sm:$0xff]
          %v712 = vld [vmem:[%s444 + $0x10] sm:$0xff]
          %v713 = vld [vmem:[%s8] sm:$0x3]
          %v715 = vperm.slane %v713, 0
          %v716 = vperm.slane %v713, 1
          %717 = vrot.lane.b32.xlu0 %v715, 33
          %v718 = vpop.permute.xlu0 %717
          %719 = vrot.lane.b32.xlu0 %v716, 33
          %v720 = vpop.permute.xlu0 %719
          %vm721 = vcmask 269312
          %v722 = vsel %vm721, %v718, %v720
          %v726 = vmul.f32 %v710, %v718
          %v727 = vmul.f32 %v711, %v722
          %v728 = vmul.f32 %v712, %v720
          %732 = vrot.lane.b32.xlu0 %v726, 95
          %v733 = vpop.permute.xlu0 %732
          %734 = vrot.lane.b32.xlu0 %v727, 95
          %v735 = vpop.permute.xlu0 %734
          %736 = vrot.lane.b32.xlu0 %v728, 95
          %v737 = vpop.permute.xlu0 %736
          %vm738 = vcmask 777216
          %v739 = vsel %vm738, %v733, %v735
          %v740 = vsel %vm738, %v735, %v737
          %743 = vst [vmem:[#allocation2 + $0x2a8] sm:$0xff] %v739
          %744 = vst [vmem:[#allocation2 + $0x2b0] sm:$0xff] %v740
          %v745 = vld [vmem:[%s444] sm:$0xff]
          %v746 = vld [vmem:[%s444 + $0x8] sm:$0xff]
          %v747 = vld [vmem:[%s444 + $0x10] sm:$0xff]
          %v748 = vld [vmem:[%s7] sm:$0x3]
          %v750 = vperm.slane %v748, 0
          %v751 = vperm.slane %v748, 1
          %752 = vrot.lane.b32.xlu0 %v750, 47
          %v753 = vpop.permute.xlu0 %752
          %754 = vrot.lane.b32.xlu0 %v751, 47
          %v755 = vpop.permute.xlu0 %754
          %vm756 = vcmask 384000
          %v757 = vsel %vm756, %v753, %v755
          %v761 = vmul.f32 %v745, %v753
          %v762 = vmul.f32 %v746, %v757
          %v763 = vmul.f32 %v747, %v755
          %767 = vrot.lane.b32.xlu0 %v761, 81
          %v768 = vpop.permute.xlu0 %767
          %769 = vrot.lane.b32.xlu0 %v762, 81
          %v770 = vpop.permute.xlu0 %769
          %771 = vrot.lane.b32.xlu0 %v763, 81
          %v772 = vpop.permute.xlu0 %771
          %vm773 = vcmask 662528
          %v774 = vsel %vm773, %v768, %v770
          %v775 = vsel %vm773, %v770, %v772
          %778 = vst [vmem:[#allocation2 + $0x330] sm:$0xff] %v774
          %779 = vst [vmem:[#allocation2 + $0x338] sm:$0xff] %v775
          %v780 = vld [vmem:[%s444] sm:$0xff]
          %v781 = vld [vmem:[%s444 + $0x8] sm:$0xff]
          %v782 = vld [vmem:[%s444 + $0x10] sm:$0xff]
          %786 = vrot.lane.b32.xlu0 %v780, 80
          %v787 = vpop.permute.xlu0 %786
          %788 = vrot.lane.b32.xlu0 %v781, 80
          %v789 = vpop.permute.xlu0 %788
          %790 = vrot.lane.b32.xlu0 %v782, 80
          %v791 = vpop.permute.xlu0 %790
          %vm792 = vcmask 654336
          %v793 = vsel %vm792, %v787, %v789
          %v794 = vsel %vm792, %v789, %v791
          %797 = vst [vmem:[#allocation2 + $0x3b8] sm:$0xff] %v793
          %798 = vst [vmem:[#allocation2 + $0x3c0] sm:$0xff] %v794
          %v799 = vld [vmem:[%s444] sm:$0xff]
          %v800 = vld [vmem:[%s444 + $0x8] sm:$0xff]
          %v801 = vld [vmem:[%s444 + $0x10] sm:$0xff]
          %v802 = vld [vmem:[%s8] sm:$0x3]
          %v804 = vperm.slane %v802, 0
          %v805 = vperm.slane %v802, 1
          %806 = vrot.lane.b32.xlu0 %v804, 49
          %v807 = vpop.permute.xlu0 %806
          %808 = vrot.lane.b32.xlu0 %v805, 49
          %v809 = vpop.permute.xlu0 %808
          %vm810 = vcmask 400384
          %v811 = vsel %vm810, %v807, %v809
          %v815 = vmul.f32 %v799, %v807
          %v816 = vmul.f32 %v800, %v811
          %v817 = vmul.f32 %v801, %v809
          %821 = vrot.lane.b32.xlu0 %v815, 79
          %v822 = vpop.permute.xlu0 %821
          %823 = vrot.lane.b32.xlu0 %v816, 79
          %v824 = vpop.permute.xlu0 %823
          %825 = vrot.lane.b32.xlu0 %v817, 79
          %v826 = vpop.permute.xlu0 %825
          %vm827 = vcmask 646144
          %v828 = vsel %vm827, %v822, %v824
          %v829 = vsel %vm827, %v824, %v826
          %832 = vst [vmem:[#allocation2 + $0x440] sm:$0xff] %v828
          %833 = vst [vmem:[#allocation2 + $0x448] sm:$0xff] %v829
          %v834 = vld [vmem:[%s1] sm:$0xff]
          %v835 = vld [vmem:[#allocation2] sm:$0xff]
          %v836 = vld [vmem:[#allocation2 + $0x8] sm:$0xff]
          %v837 = vld [vmem:[#allocation2 + $0x88] sm:$0xff]
          %v838 = vld [vmem:[#allocation2 + $0x90] sm:$0xff]
          %v839 = vld [vmem:[#allocation2 + $0x110] sm:$0xff]
          %v840 = vld [vmem:[#allocation2 + $0x118] sm:$0xff]
          %v841 = vld [vmem:[#allocation2 + $0x198] sm:$0xff]
          %v842 = vld [vmem:[#allocation2 + $0x1a0] sm:$0xff]
          %v843 = vld [vmem:[#allocation2 + $0x220] sm:$0xff]
          %v844 = vld [vmem:[#allocation2 + $0x228] sm:$0xff]
          %v845 = vld [vmem:[#allocation2 + $0x2a8] sm:$0xff]
          %v846 = vld [vmem:[#allocation2 + $0x2b0] sm:$0xff]
          %v847 = vld [vmem:[#allocation2 + $0x330] sm:$0xff]
          %v848 = vld [vmem:[#allocation2 + $0x338] sm:$0xff]
          %v849 = vld [vmem:[#allocation2 + $0x3b8] sm:$0xff]
          %v850 = vld [vmem:[#allocation2 + $0x3c0] sm:$0xff]
          %v851 = vld [vmem:[#allocation2 + $0x440] sm:$0xff]
          %v852 = vld [vmem:[#allocation2 + $0x448] sm:$0xff]
          %v853 = vld [vmem:[%s2] sm:$0xff]
          %855 = vset.pattern.permute.xlu0 0
          %856 = vperm.xlu0 %855, %v853
          %v857 = vpop.permute.xlu0 %856
          %vm859 = vcmask 588800
          %v861 = vsel %vm859, %v834, 0
          %863 = vmatpush.msra.mxu0 0.0
          %864 = vmatpush.msra.mxu0 0.0
          %865 = vmatpush.msra.mxu0 0.0
          %866 = vmatpush.msra.mxu0 0.0
          %867 = vmatpush.msra.mxu0 0.0
          %868 = vmatpush.msra.mxu0 0.0
          %869 = vmatpush.msra.mxu0 0.0
          %870 = vmatpush.msra.mxu0 %v851
          %871 = vmatpush.msra.mxu0 %v849
          %872 = vmatpush.msra.mxu0 %v847
          %873 = vmatpush.msra.mxu0 %v845
          %874 = vmatpush.msra.mxu0 %v843
          %875 = vmatpush.msra.mxu0 %v841
          %876 = vmatpush.msra.mxu0 %v839
          %877 = vmatpush.msra.mxu0 %v837
          %878 = vmatpush.msra.mxu0 %v835
          %879 = vmatmul.f32.gmra.mxu0 %v861
          %v880 = vpop.f32.mrf.mxu0
          %v881 = vadd.f32 %v857, %v880
          %882 = vdwg.mxu0
          %883 = vmatpush.msra.mxu0 0.0
          %884 = vmatpush.msra.mxu0 0.0
          %885 = vmatpush.msra.mxu0 0.0
          %886 = vmatpush.msra.mxu0 0.0
          %887 = vmatpush.msra.mxu0 0.0
          %888 = vmatpush.msra.mxu0 0.0
          %889 = vmatpush.msra.mxu0 0.0
          %890 = vmatpush.msra.mxu0 %v852
          %891 = vmatpush.msra.mxu0 %v850
          %892 = vmatpush.msra.mxu0 %v848
          %893 = vmatpush.msra.mxu0 %v846
          %894 = vmatpush.msra.mxu0 %v844
          %895 = vmatpush.msra.mxu0 %v842
          %896 = vmatpush.msra.mxu0 %v840
          %897 = vmatpush.msra.mxu0 %v838
          %898 = vmatpush.msra.mxu0 %v836
          %899 = vmatmul.f32.gmra.mxu0 %v861
          %v900 = vpop.f32.mrf.mxu0
          %v901 = vadd.f32 %v857, %v900
          %902 = vdwg.mxu0
          %v903 = vmax.f32 %v881, 0.0
          %v904 = vmax.f32 %v901, 0.0
          %905 = vst [vmem:[#allocation3] sm:$0xff] %v903
          %906 = vst [vmem:[#allocation3 + $0x8] sm:$0xff] %v904
          %v907 = vld [vmem:[#allocation3] sm:$0xff]
          %v908 = vld [vmem:[#allocation14] sm:$0xff]
          %v909 = vld [vmem:[#allocation14 + $0x8] sm:$0xff]
          %vm910 = vcmask 130048
          %v912 = vsel %vm910, %v907, 0
          %914 = vmatpush.msra.mxu0 0.0
          %915 = vmatpush.msra.mxu0 0.0
          %916 = vmatpush.msra.mxu0 0.0
          %917 = vmatpush.msra.mxu0 0.0
          %918 = vmatpush.msra.mxu0 0.0
          %919 = vmatpush.msra.mxu0 0.0
          %920 = vmatpush.msra.mxu0 0.0
          %921 = vmatpush.msra.mxu0 0.0
          %922 = vmatpush.msra.mxu0 0.0
          %923 = vmatpush.msra.mxu0 0.0
          %924 = vmatpush.msra.mxu0 0.0
          %925 = vmatpush.msra.mxu0 0.0
          %926 = vmatpush.msra.mxu0 0.0
          %927 = vmatpush.msra.mxu0 0.0
          %928 = vmatpush.msra.mxu0 %v909
          %929 = vmatpush.msra.mxu0 %v908
          %930 = vmatmul.f32.gmra.mxu0 %v912
          %v931 = vpop.f32.mrf.mxu0
          %v932 = vadd.f32 0.0, %v931
          %933 = vdwg.mxu0
          %935 = vrot.lane.b32.xlu0 %v932, 64
          %v936 = vpop.permute.xlu0 %935
          %vm938 = vcmask 1048064
          %939 = vst.msk [vmem:[#allocation4 + $0x8] sm:$0xff] %vm938, %v936
          %vm940 = vcmask 523264
          %941 = vst.msk [vmem:[#allocation4 + $0x10] sm:$0xff] %vm940, %v932
          %942 = vst.msk [vmem:[#allocation4 + $0x10] sm:$0xff] %vm938, %v936
          %943 = vst.msk [vmem:[#allocation4 + $0x18] sm:$0xff] %vm940, %v932
          %v944 = vld [vmem:[#allocation3] sm:$0xff]
          %v945 = vld [vmem:[#allocation14] sm:$0xff]
          %v946 = vld [vmem:[#allocation14 + $0x8] sm:$0xff]
          %948 = vrot.lane.b32.xlu0 %v944, 112
          %v949 = vpop.permute.xlu0 %948
          %v950 = vsel %vm910, %v949, 0
          %952 = vmatpush.msra.mxu0 0.0
          %953 = vmatpush.msra.mxu0 0.0
          %954 = vmatpush.msra.mxu0 0.0
          %955 = vmatpush.msra.mxu0 0.0
          %956 = vmatpush.msra.mxu0 0.0
          %957 = vmatpush.msra.mxu0 0.0
          %958 = vmatpush.msra.mxu0 0.0
          %959 = vmatpush.msra.mxu0 0.0
          %960 = vmatpush.msra.mxu0 0.0
          %961 = vmatpush.msra.mxu0 0.0
          %962 = vmatpush.msra.mxu0 0.0
          %963 = vmatpush.msra.mxu0 0.0
          %964 = vmatpush.msra.mxu0 0.0
          %965 = vmatpush.msra.mxu0 0.0
          %966 = vmatpush.msra.mxu0 %v946
          %967 = vmatpush.msra.mxu0 %v945
          %968 = vmatmul.f32.gmra.mxu0 %v950
          %v969 = vpop.f32.mrf.mxu0
          %v970 = vadd.f32 0.0, %v969
          %971 = vdwg.mxu0
          %973 = vrot.lane.b32.xlu0 %v970, 64
          %v974 = vpop.permute.xlu0 %973
          %976 = vst.msk [vmem:[#allocation4 + $0x18] sm:$0xff] %vm938, %v974
          %977 = vst.msk [vmem:[#allocation4 + $0x20] sm:$0xff] %vm940, %v970
          %978 = vst.msk [vmem:[#allocation4 + $0x20] sm:$0xff] %vm938, %v974
          %979 = vst.msk [vmem:[#allocation4 + $0x28] sm:$0xff] %vm940, %v970
          %v980 = vld [vmem:[#allocation3] sm:$0xff]
          %v981 = vld [vmem:[#allocation14] sm:$0xff]
          %v982 = vld [vmem:[#allocation14 + $0x8] sm:$0xff]
          %984 = vrot.lane.b32.xlu0 %v980, 96
          %v985 = vpop.permute.xlu0 %984
          %v986 = vsel %vm910, %v985, 0
          %988 = vmatpush.msra.mxu0 0.0
          %989 = vmatpush.msra.mxu0 0.0
          %990 = vmatpush.msra.mxu0 0.0
          %991 = vmatpush.msra.mxu0 0.0
          %992 = vmatpush.msra.mxu0 0.0
          %993 = vmatpush.msra.mxu0 0.0
          %994 = vmatpush.msra.mxu0 0.0
          %995 = vmatpush.msra.mxu0 0.0
          %996 = vmatpush.msra.mxu0 0.0
          %997 = vmatpush.msra.mxu0 0.0
          %998 = vmatpush.msra.mxu0 0.0
          %999 = vmatpush.msra.mxu0 0.0
          %1000 = vmatpush.msra.mxu0 0.0
          %1001 = vmatpush.msra.mxu0 0.0
          %1002 = vmatpush.msra.mxu0 %v982
          %1003 = vmatpush.msra.mxu0 %v981
          %1004 = vmatmul.f32.gmra.mxu0 %v986
          %v1005 = vpop.f32.mrf.mxu0
          %v1006 = vadd.f32 0.0, %v1005
          %1007 = vdwg.mxu0
          %1009 = vrot.lane.b32.xlu0 %v1006, 64
          %v1010 = vpop.permute.xlu0 %1009
          %1012 = vst.msk [vmem:[#allocation4 + $0x28] sm:$0xff] %vm938, %v1010
          %1013 = vst.msk [vmem:[#allocation4 + $0x30] sm:$0xff] %vm940, %v1006
          %1014 = vst.msk [vmem:[#allocation4 + $0x30] sm:$0xff] %vm938, %v1010
          %1015 = vst.msk [vmem:[#allocation4 + $0x38] sm:$0xff] %vm940, %v1006
          %v1016 = vld [vmem:[#allocation3] sm:$0xff]
          %v1017 = vld [vmem:[#allocation14] sm:$0xff]
          %v1018 = vld [vmem:[#allocation14 + $0x8] sm:$0xff]
          %1020 = vrot.lane.b32.xlu0 %v1016, 80
          %v1021 = vpop.permute.xlu0 %1020
          %v1022 = vsel %vm910, %v1021, 0
          %1024 = vmatpush.msra.mxu0 0.0
          %1025 = vmatpush.msra.mxu0 0.0
          %1026 = vmatpush.msra.mxu0 0.0
          %1027 = vmatpush.msra.mxu0 0.0
          %1028 = vmatpush.msra.mxu0 0.0
          %1029 = vmatpush.msra.mxu0 0.0
          %1030 = vmatpush.msra.mxu0 0.0
          %1031 = vmatpush.msra.mxu0 0.0
          %1032 = vmatpush.msra.mxu0 0.0
          %1033 = vmatpush.msra.mxu0 0.0
          %1034 = vmatpush.msra.mxu0 0.0
          %1035 = vmatpush.msra.mxu0 0.0
          %1036 = vmatpush.msra.mxu0 0.0
          %1037 = vmatpush.msra.mxu0 0.0
          %1038 = vmatpush.msra.mxu0 %v1018
          %1039 = vmatpush.msra.mxu0 %v1017
          %1040 = vmatmul.f32.gmra.mxu0 %v1022
          %v1041 = vpop.f32.mrf.mxu0
          %v1042 = vadd.f32 0.0, %v1041
          %1043 = vdwg.mxu0
          %1045 = vrot.lane.b32.xlu0 %v1042, 64
          %v1046 = vpop.permute.xlu0 %1045
          %1048 = vst.msk [vmem:[#allocation4 + $0x38] sm:$0xff] %vm938, %v1046
          %1049 = vst.msk [vmem:[#allocation4 + $0x40] sm:$0xff] %vm940, %v1042
          %1050 = vst.msk [vmem:[#allocation4 + $0x40] sm:$0xff] %vm938, %v1046
          %1051 = vst.msk [vmem:[#allocation4 + $0x48] sm:$0xff] %vm940, %v1042
          %v1052 = vld [vmem:[#allocation3] sm:$0xff]
          %v1053 = vld [vmem:[#allocation14] sm:$0xff]
          %v1054 = vld [vmem:[#allocation14 + $0x8] sm:$0xff]
          %1056 = vrot.lane.b32.xlu0 %v1052, 64
          %v1057 = vpop.permute.xlu0 %1056
          %v1058 = vsel %vm910, %v1057, 0
          %1060 = vmatpush.msra.mxu0 0.0
          %1061 = vmatpush.msra.mxu0 0.0
          %1062 = vmatpush.msra.mxu0 0.0
          %1063 = vmatpush.msra.mxu0 0.0
          %1064 = vmatpush.msra.mxu0 0.0
          %1065 = vmatpush.msra.mxu0 0.0
          %1066 = vmatpush.msra.mxu0 0.0
          %1067 = vmatpush.msra.mxu0 0.0
          %1068 = vmatpush.msra.mxu0 0.0
          %1069 = vmatpush.msra.mxu0 0.0
          %1070 = vmatpush.msra.mxu0 0.0
          %1071 = vmatpush.msra.mxu0 0.0
          %1072 = vmatpush.msra.mxu0 0.0
          %1073 = vmatpush.msra.mxu0 0.0
          %1074 = vmatpush.msra.mxu0 %v1054
          %1075 = vmatpush.msra.mxu0 %v1053
          %1076 = vmatmul.f32.gmra.mxu0 %v1058
          %v1077 = vpop.f32.mrf.mxu0
          %v1078 = vadd.f32 0.0, %v1077
          %1079 = vdwg.mxu0
          %1081 = vrot.lane.b32.xlu0 %v1078, 64
          %v1082 = vpop.permute.xlu0 %1081
          %1084 = vst.msk [vmem:[#allocation4 + $0x48] sm:$0xff] %vm938, %v1082
          %1085 = vst.msk [vmem:[#allocation4 + $0x50] sm:$0xff] %vm940, %v1078
          %1086 = vst.msk [vmem:[#allocation4 + $0x50] sm:$0xff] %vm938, %v1082
          %1087 = vst.msk [vmem:[#allocation4 + $0x58] sm:$0xff] %vm940, %v1078
          %v1088 = vld [vmem:[#allocation3] sm:$0xff]
          %v1089 = vld [vmem:[#allocation14] sm:$0xff]
          %v1090 = vld [vmem:[#allocation14 + $0x8] sm:$0xff]
          %1092 = vrot.lane.b32.xlu0 %v1088, 48
          %v1093 = vpop.permute.xlu0 %1092
          %v1094 = vsel %vm910, %v1093, 0
          %1096 = vmatpush.msra.mxu0 0.0
          %1097 = vmatpush.msra.mxu0 0.0
          %1098 = vmatpush.msra.mxu0 0.0
          %1099 = vmatpush.msra.mxu0 0.0
          %1100 = vmatpush.msra.mxu0 0.0
          %1101 = vmatpush.msra.mxu0 0.0
          %1102 = vmatpush.msra.mxu0 0.0
          %1103 = vmatpush.msra.mxu0 0.0
          %1104 = vmatpush.msra.mxu0 0.0
          %1105 = vmatpush.msra.mxu0 0.0
          %1106 = vmatpush.msra.mxu0 0.0
          %1107 = vmatpush.msra.mxu0 0.0
          %1108 = vmatpush.msra.mxu0 0.0
          %1109 = vmatpush.msra.mxu0 0.0
          %1110 = vmatpush.msra.mxu0 %v1090
          %1111 = vmatpush.msra.mxu0 %v1089
          %1112 = vmatmul.f32.gmra.mxu0 %v1094
          %v1113 = vpop.f32.mrf.mxu0
          %v1114 = vadd.f32 0.0, %v1113
          %1115 = vdwg.mxu0
          %1117 = vrot.lane.b32.xlu0 %v1114, 64
          %v1118 = vpop.permute.xlu0 %1117
          %1120 = vst.msk [vmem:[#allocation4 + $0x58] sm:$0xff] %vm938, %v1118
          %1121 = vst.msk [vmem:[#allocation4 + $0x60] sm:$0xff] %vm940, %v1114
          %1122 = vst.msk [vmem:[#allocation4 + $0x60] sm:$0xff] %vm938, %v1118
          %1123 = vst.msk [vmem:[#allocation4 + $0x68] sm:$0xff] %vm940, %v1114
          %v1124 = vld [vmem:[#allocation3] sm:$0xff]
          %v1125 = vld [vmem:[#allocation14] sm:$0xff]
          %v1126 = vld [vmem:[#allocation14 + $0x8] sm:$0xff]
          %1128 = vrot.lane.b32.xlu0 %v1124, 32
          %v1129 = vpop.permute.xlu0 %1128
          %v1130 = vsel %vm910, %v1129, 0
          %1132 = vmatpush.msra.mxu0 0.0
          %1133 = vmatpush.msra.mxu0 0.0
          %1134 = vmatpush.msra.mxu0 0.0
          %1135 = vmatpush.msra.mxu0 0.0
          %1136 = vmatpush.msra.mxu0 0.0
          %1137 = vmatpush.msra.mxu0 0.0
          %1138 = vmatpush.msra.mxu0 0.0
          %1139 = vmatpush.msra.mxu0 0.0
          %1140 = vmatpush.msra.mxu0 0.0
          %1141 = vmatpush.msra.mxu0 0.0
          %1142 = vmatpush.msra.mxu0 0.0
          %1143 = vmatpush.msra.mxu0 0.0
          %1144 = vmatpush.msra.mxu0 0.0
          %1145 = vmatpush.msra.mxu0 0.0
          %1146 = vmatpush.msra.mxu0 %v1126
          %1147 = vmatpush.msra.mxu0 %v1125
          %1148 = vmatmul.f32.gmra.mxu0 %v1130
          %v1149 = vpop.f32.mrf.mxu0
          %v1150 = vadd.f32 0.0, %v1149
          %1151 = vdwg.mxu0
          %1153 = vrot.lane.b32.xlu0 %v1150, 64
          %v1154 = vpop.permute.xlu0 %1153
          %1156 = vst.msk [vmem:[#allocation4 + $0x68] sm:$0xff] %vm938, %v1154
          %1157 = vst.msk [vmem:[#allocation4 + $0x70] sm:$0xff] %vm940, %v1150
          %1158 = vst.msk [vmem:[#allocation4 + $0x70] sm:$0xff] %vm938, %v1154
          %1159 = vst.msk [vmem:[#allocation4 + $0x78] sm:$0xff] %vm940, %v1150
          %v1160 = vld [vmem:[#allocation3] sm:$0xff]
          %v1161 = vld [vmem:[#allocation14] sm:$0xff]
          %v1162 = vld [vmem:[#allocation14 + $0x8] sm:$0xff]
          %1164 = vrot.lane.b32.xlu0 %v1160, 16
          %v1165 = vpop.permute.xlu0 %1164
          %v1166 = vsel %vm910, %v1165, 0
          %1168 = vmatpush.msra.mxu0 0.0
          %1169 = vmatpush.msra.mxu0 0.0
          %1170 = vmatpush.msra.mxu0 0.0
          %1171 = vmatpush.msra.mxu0 0.0
          %1172 = vmatpush.msra.mxu0 0.0
          %1173 = vmatpush.msra.mxu0 0.0
          %1174 = vmatpush.msra.mxu0 0.0
          %1175 = vmatpush.msra.mxu0 0.0
          %1176 = vmatpush.msra.mxu0 0.0
          %1177 = vmatpush.msra.mxu0 0.0
          %1178 = vmatpush.msra.mxu0 0.0
          %1179 = vmatpush.msra.mxu0 0.0
          %1180 = vmatpush.msra.mxu0 0.0
          %1181 = vmatpush.msra.mxu0 0.0
          %1182 = vmatpush.msra.mxu0 %v1162
          %1183 = vmatpush.msra.mxu0 %v1161
          %1184 = vmatmul.f32.gmra.mxu0 %v1166
          %v1185 = vpop.f32.mrf.mxu0
          %v1186 = vadd.f32 0.0, %v1185
          %1187 = vdwg.mxu0
          %1189 = vrot.lane.b32.xlu0 %v1186, 64
          %v1190 = vpop.permute.xlu0 %1189
          %1192 = vst.msk [vmem:[#allocation4 + $0x78] sm:$0xff] %vm938, %v1190
          %1193 = vst.msk [vmem:[#allocation4 + $0x80] sm:$0xff] %vm940, %v1186
          %1194 = vst.msk [vmem:[#allocation4 + $0x80] sm:$0xff] %vm938, %v1190
          %s1195 = scalar_lea.vmem [#allocation4], 152
          %1196 = vst.msk [vmem:[%s1195] sm:$0xff] %vm938, %v1190
          %1197 = vst.msk [vmem:[#allocation4 + $0x88] sm:$0xff] %vm940, %v1186
          %1198 = vst.msk [vmem:[%s1195 + $0x8] sm:$0xff] %vm940, %v1186
          %v1199 = vld [vmem:[#allocation3 + $0x8] sm:$0xff]
          %v1200 = vld [vmem:[#allocation14] sm:$0xff]
          %v1201 = vld [vmem:[#allocation14 + $0x8] sm:$0xff]
          %v1203 = vsel %vm910, %v1199, 0
          %1205 = vmatpush.msra.mxu0 0.0
          %1206 = vmatpush.msra.mxu0 0.0
          %1207 = vmatpush.msra.mxu0 0.0
          %1208 = vmatpush.msra.mxu0 0.0
          %1209 = vmatpush.msra.mxu0 0.0
          %1210 = vmatpush.msra.mxu0 0.0
          %1211 = vmatpush.msra.mxu0 0.0
          %1212 = vmatpush.msra.mxu0 0.0
          %1213 = vmatpush.msra.mxu0 0.0
          %1214 = vmatpush.msra.mxu0 0.0
          %1215 = vmatpush.msra.mxu0 0.0
          %1216 = vmatpush.msra.mxu0 0.0
          %1217 = vmatpush.msra.mxu0 0.0
          %1218 = vmatpush.msra.mxu0 0.0
          %1219 = vmatpush.msra.mxu0 %v1201
          %1220 = vmatpush.msra.mxu0 %v1200
          %1221 = vmatmul.f32.gmra.mxu0 %v1203
          %v1222 = vpop.f32.mrf.mxu0
          %v1223 = vadd.f32 0.0, %v1222
          %1224 = vdwg.mxu0
          %1226 = vrot.lane.b32.xlu0 %v1223, 64
          %v1227 = vpop.permute.xlu0 %1226
          %1229 = vst.msk [vmem:[#allocation4 + $0x88] sm:$0xff] %vm938, %v1227
          %1230 = vst.msk [vmem:[%s1195 + $0x8] sm:$0xff] %vm938, %v1227
          %1231 = vst.msk [vmem:[#allocation4 + $0x90] sm:$0xff] %vm940, %v1223
          %1232 = vst.msk [vmem:[%s1195 + $0x10] sm:$0xff] %vm940, %v1223
          %1233 = vst.msk [vmem:[%s1195 + $0x10] sm:$0xff] %vm938, %v1227
          %1234 = vst.msk [vmem:[%s1195 + $0x18] sm:$0xff] %vm940, %v1223
          %v1235 = vld [vmem:[#allocation3 + $0x8] sm:$0xff]
          %v1236 = vld [vmem:[#allocation14] sm:$0xff]
          %v1237 = vld [vmem:[#allocation14 + $0x8] sm:$0xff]
          %1239 = vrot.lane.b32.xlu0 %v1235, 112
          %v1240 = vpop.permute.xlu0 %1239
          %v1241 = vsel %vm910, %v1240, 0
          %1243 = vmatpush.msra.mxu0 0.0
          %1244 = vmatpush.msra.mxu0 0.0
          %1245 = vmatpush.msra.mxu0 0.0
          %1246 = vmatpush.msra.mxu0 0.0
          %1247 = vmatpush.msra.mxu0 0.0
          %1248 = vmatpush.msra.mxu0 0.0
          %1249 = vmatpush.msra.mxu0 0.0
          %1250 = vmatpush.msra.mxu0 0.0
          %1251 = vmatpush.msra.mxu0 0.0
          %1252 = vmatpush.msra.mxu0 0.0
          %1253 = vmatpush.msra.mxu0 0.0
          %1254 = vmatpush.msra.mxu0 0.0
          %1255 = vmatpush.msra.mxu0 0.0
          %1256 = vmatpush.msra.mxu0 0.0
          %1257 = vmatpush.msra.mxu0 %v1237
          %1258 = vmatpush.msra.mxu0 %v1236
          %1259 = vmatmul.f32.gmra.mxu0 %v1241
          %v1260 = vpop.f32.mrf.mxu0
          %v1261 = vadd.f32 0.0, %v1260
          %1262 = vdwg.mxu0
          %1264 = vrot.lane.b32.xlu0 %v1261, 64
          %v1265 = vpop.permute.xlu0 %1264
          %1267 = vst.msk [vmem:[%s1195 + $0x18] sm:$0xff] %vm938, %v1265
          %1268 = vst.msk [vmem:[%s1195 + $0x20] sm:$0xff] %vm940, %v1261
          %1269 = vst.msk [vmem:[%s1195 + $0x20] sm:$0xff] %vm938, %v1265
          %1270 = vst.msk [vmem:[%s1195 + $0x28] sm:$0xff] %vm940, %v1261
          %v1271 = vld [vmem:[#allocation3 + $0x8] sm:$0xff]
          %v1272 = vld [vmem:[#allocation14] sm:$0xff]
          %v1273 = vld [vmem:[#allocation14 + $0x8] sm:$0xff]
          %1275 = vrot.lane.b32.xlu0 %v1271, 96
          %v1276 = vpop.permute.xlu0 %1275
          %v1277 = vsel %vm910, %v1276, 0
          %1279 = vmatpush.msra.mxu0 0.0
          %1280 = vmatpush.msra.mxu0 0.0
          %1281 = vmatpush.msra.mxu0 0.0
          %1282 = vmatpush.msra.mxu0 0.0
          %1283 = vmatpush.msra.mxu0 0.0
          %1284 = vmatpush.msra.mxu0 0.0
          %1285 = vmatpush.msra.mxu0 0.0
          %1286 = vmatpush.msra.mxu0 0.0
          %1287 = vmatpush.msra.mxu0 0.0
          %1288 = vmatpush.msra.mxu0 0.0
          %1289 = vmatpush.msra.mxu0 0.0
          %1290 = vmatpush.msra.mxu0 0.0
          %1291 = vmatpush.msra.mxu0 0.0
          %1292 = vmatpush.msra.mxu0 0.0
          %1293 = vmatpush.msra.mxu0 %v1273
          %1294 = vmatpush.msra.mxu0 %v1272
          %1295 = vmatmul.f32.gmra.mxu0 %v1277
          %v1296 = vpop.f32.mrf.mxu0
          %v1297 = vadd.f32 0.0, %v1296
          %1298 = vdwg.mxu0
          %1300 = vrot.lane.b32.xlu0 %v1297, 64
          %v1301 = vpop.permute.xlu0 %1300
          %1303 = vst.msk [vmem:[%s1195 + $0x28] sm:$0xff] %vm938, %v1301
          %1304 = vst.msk [vmem:[%s1195 + $0x30] sm:$0xff] %vm940, %v1297
          %1305 = vst.msk [vmem:[%s1195 + $0x30] sm:$0xff] %vm938, %v1301
          %1306 = vst.msk [vmem:[%s1195 + $0x38] sm:$0xff] %vm940, %v1297
          %v1307 = vld [vmem:[#allocation3 + $0x8] sm:$0xff]
          %v1308 = vld [vmem:[#allocation14] sm:$0xff]
          %v1309 = vld [vmem:[#allocation14 + $0x8] sm:$0xff]
          %1311 = vrot.lane.b32.xlu0 %v1307, 80
          %v1312 = vpop.permute.xlu0 %1311
          %v1313 = vsel %vm910, %v1312, 0
          %1315 = vmatpush.msra.mxu0 0.0
          %1316 = vmatpush.msra.mxu0 0.0
          %1317 = vmatpush.msra.mxu0 0.0
          %1318 = vmatpush.msra.mxu0 0.0
          %1319 = vmatpush.msra.mxu0 0.0
          %1320 = vmatpush.msra.mxu0 0.0
          %1321 = vmatpush.msra.mxu0 0.0
          %1322 = vmatpush.msra.mxu0 0.0
          %1323 = vmatpush.msra.mxu0 0.0
          %1324 = vmatpush.msra.mxu0 0.0
          %1325 = vmatpush.msra.mxu0 0.0
          %1326 = vmatpush.msra.mxu0 0.0
          %1327 = vmatpush.msra.mxu0 0.0
          %1328 = vmatpush.msra.mxu0 0.0
          %1329 = vmatpush.msra.mxu0 %v1309
          %1330 = vmatpush.msra.mxu0 %v1308
          %1331 = vmatmul.f32.gmra.mxu0 %v1313
          %v1332 = vpop.f32.mrf.mxu0
          %v1333 = vadd.f32 0.0, %v1332
          %1334 = vdwg.mxu0
          %1336 = vrot.lane.b32.xlu0 %v1333, 64
          %v1337 = vpop.permute.xlu0 %1336
          %1339 = vst.msk [vmem:[%s1195 + $0x38] sm:$0xff] %vm938, %v1337
          %1340 = vst.msk [vmem:[%s1195 + $0x40] sm:$0xff] %vm940, %v1333
          %1341 = vst.msk [vmem:[%s1195 + $0x40] sm:$0xff] %vm938, %v1337
          %1342 = vst.msk [vmem:[%s1195 + $0x48] sm:$0xff] %vm940, %v1333
          %v1343 = vld [vmem:[#allocation3 + $0x8] sm:$0xff]
          %v1344 = vld [vmem:[#allocation14] sm:$0xff]
          %v1345 = vld [vmem:[#allocation14 + $0x8] sm:$0xff]
          %1347 = vrot.lane.b32.xlu0 %v1343, 64
          %v1348 = vpop.permute.xlu0 %1347
          %v1349 = vsel %vm910, %v1348, 0
          %1351 = vmatpush.msra.mxu0 0.0
          %1352 = vmatpush.msra.mxu0 0.0
          %1353 = vmatpush.msra.mxu0 0.0
          %1354 = vmatpush.msra.mxu0 0.0
          %1355 = vmatpush.msra.mxu0 0.0
          %1356 = vmatpush.msra.mxu0 0.0
          %1357 = vmatpush.msra.mxu0 0.0
          %1358 = vmatpush.msra.mxu0 0.0
          %1359 = vmatpush.msra.mxu0 0.0
          %1360 = vmatpush.msra.mxu0 0.0
          %1361 = vmatpush.msra.mxu0 0.0
          %1362 = vmatpush.msra.mxu0 0.0
          %1363 = vmatpush.msra.mxu0 0.0
          %1364 = vmatpush.msra.mxu0 0.0
          %1365 = vmatpush.msra.mxu0 %v1345
          %1366 = vmatpush.msra.mxu0 %v1344
          %1367 = vmatmul.f32.gmra.mxu0 %v1349
          %v1368 = vpop.f32.mrf.mxu0
          %v1369 = vadd.f32 0.0, %v1368
          %1370 = vdwg.mxu0
          %1372 = vrot.lane.b32.xlu0 %v1369, 64
          %v1373 = vpop.permute.xlu0 %1372
          %1375 = vst.msk [vmem:[%s1195 + $0x48] sm:$0xff] %vm938, %v1373
          %1376 = vst.msk [vmem:[%s1195 + $0x50] sm:$0xff] %vm940, %v1369
          %1377 = vst.msk [vmem:[%s1195 + $0x50] sm:$0xff] %vm938, %v1373
          %1378 = vst.msk [vmem:[%s1195 + $0x58] sm:$0xff] %vm940, %v1369
          %v1379 = vld [vmem:[#allocation3 + $0x8] sm:$0xff]
          %v1380 = vld [vmem:[#allocation14] sm:$0xff]
          %v1381 = vld [vmem:[#allocation14 + $0x8] sm:$0xff]
          %1383 = vrot.lane.b32.xlu0 %v1379, 48
          %v1384 = vpop.permute.xlu0 %1383
          %v1385 = vsel %vm910, %v1384, 0
          %1387 = vmatpush.msra.mxu0 0.0
          %1388 = vmatpush.msra.mxu0 0.0
          %1389 = vmatpush.msra.mxu0 0.0
          %1390 = vmatpush.msra.mxu0 0.0
          %1391 = vmatpush.msra.mxu0 0.0
          %1392 = vmatpush.msra.mxu0 0.0
          %1393 = vmatpush.msra.mxu0 0.0
          %1394 = vmatpush.msra.mxu0 0.0
          %1395 = vmatpush.msra.mxu0 0.0
          %1396 = vmatpush.msra.mxu0 0.0
          %1397 = vmatpush.msra.mxu0 0.0
          %1398 = vmatpush.msra.mxu0 0.0
          %1399 = vmatpush.msra.mxu0 0.0
          %1400 = vmatpush.msra.mxu0 0.0
          %1401 = vmatpush.msra.mxu0 %v1381
          %1402 = vmatpush.msra.mxu0 %v1380
          %1403 = vmatmul.f32.gmra.mxu0 %v1385
          %v1404 = vpop.f32.mrf.mxu0
          %v1405 = vadd.f32 0.0, %v1404
          %1406 = vdwg.mxu0
          %1408 = vrot.lane.b32.xlu0 %v1405, 64
          %v1409 = vpop.permute.xlu0 %1408
          %1411 = vst.msk [vmem:[%s1195 + $0x58] sm:$0xff] %vm938, %v1409
          %1412 = vst.msk [vmem:[%s1195 + $0x60] sm:$0xff] %vm940, %v1405
          %1413 = vst.msk [vmem:[%s1195 + $0x60] sm:$0xff] %vm938, %v1409
          %1414 = vst.msk [vmem:[%s1195 + $0x68] sm:$0xff] %vm940, %v1405
          %v1415 = vld [vmem:[#allocation3 + $0x8] sm:$0xff]
          %v1416 = vld [vmem:[#allocation14] sm:$0xff]
          %v1417 = vld [vmem:[#allocation14 + $0x8] sm:$0xff]
          %1419 = vrot.lane.b32.xlu0 %v1415, 32
          %v1420 = vpop.permute.xlu0 %1419
          %v1421 = vsel %vm910, %v1420, 0
          %1423 = vmatpush.msra.mxu0 0.0
          %1424 = vmatpush.msra.mxu0 0.0
          %1425 = vmatpush.msra.mxu0 0.0
          %1426 = vmatpush.msra.mxu0 0.0
          %1427 = vmatpush.msra.mxu0 0.0
          %1428 = vmatpush.msra.mxu0 0.0
          %1429 = vmatpush.msra.mxu0 0.0
          %1430 = vmatpush.msra.mxu0 0.0
          %1431 = vmatpush.msra.mxu0 0.0
          %1432 = vmatpush.msra.mxu0 0.0
          %1433 = vmatpush.msra.mxu0 0.0
          %1434 = vmatpush.msra.mxu0 0.0
          %1435 = vmatpush.msra.mxu0 0.0
          %1436 = vmatpush.msra.mxu0 0.0
          %1437 = vmatpush.msra.mxu0 %v1417
          %1438 = vmatpush.msra.mxu0 %v1416
          %1439 = vmatmul.f32.gmra.mxu0 %v1421
          %v1440 = vpop.f32.mrf.mxu0
          %v1441 = vadd.f32 0.0, %v1440
          %1442 = vdwg.mxu0
          %1444 = vrot.lane.b32.xlu0 %v1441, 64
          %v1445 = vpop.permute.xlu0 %1444
          %1447 = vst.msk [vmem:[%s1195 + $0x68] sm:$0xff] %vm938, %v1445
          %1448 = vst.msk [vmem:[%s1195 + $0x70] sm:$0xff] %vm940, %v1441
          %1449 = vst.msk [vmem:[%s1195 + $0x70] sm:$0xff] %vm938, %v1445
          %1450 = vst.msk [vmem:[%s1195 + $0x78] sm:$0xff] %vm940, %v1441
          %v1451 = vld [vmem:[#allocation3 + $0x8] sm:$0xff]
          %v1452 = vld [vmem:[#allocation14] sm:$0xff]
          %v1453 = vld [vmem:[#allocation14 + $0x8] sm:$0xff]
          %1455 = vrot.lane.b32.xlu0 %v1451, 16
          %v1456 = vpop.permute.xlu0 %1455
          %v1457 = vsel %vm910, %v1456, 0
          %1459 = vmatpush.msra.mxu0 0.0
          %1460 = vmatpush.msra.mxu0 0.0
          %1461 = vmatpush.msra.mxu0 0.0
          %1462 = vmatpush.msra.mxu0 0.0
          %1463 = vmatpush.msra.mxu0 0.0
          %1464 = vmatpush.msra.mxu0 0.0
          %1465 = vmatpush.msra.mxu0 0.0
          %1466 = vmatpush.msra.mxu0 0.0
          %1467 = vmatpush.msra.mxu0 0.0
          %1468 = vmatpush.msra.mxu0 0.0
          %1469 = vmatpush.msra.mxu0 0.0
          %1470 = vmatpush.msra.mxu0 0.0
          %1471 = vmatpush.msra.mxu0 0.0
          %1472 = vmatpush.msra.mxu0 0.0
          %1473 = vmatpush.msra.mxu0 %v1453
          %1474 = vmatpush.msra.mxu0 %v1452
          %1475 = vmatmul.f32.gmra.mxu0 %v1457
          %v1476 = vpop.f32.mrf.mxu0
          %v1477 = vadd.f32 0.0, %v1476
          %1478 = vdwg.mxu0
          %1480 = vrot.lane.b32.xlu0 %v1477, 64
          %v1481 = vpop.permute.xlu0 %1480
          %1483 = vst.msk [vmem:[%s1195 + $0x78] sm:$0xff] %vm938, %v1481
          %1484 = vst.msk [vmem:[%s1195 + $0x80] sm:$0xff] %vm940, %v1477
          %1485 = vst.msk [vmem:[%s1195 + $0x80] sm:$0xff] %vm938, %v1481
          %1486 = vst.msk [vmem:[%s1195 + $0x88] sm:$0xff] %vm940, %v1477
        $region92: #{tpu_custom_call.1} parent=67 // pred_fallthru
          _
        %s1487 = smul.u32 %s36, 19
        %s1488 = smul.addr %s1487, 8
        %s1489 = scalar_lea.vmem [#allocation4], %s1488
        %v1490 = vld [vmem:[%s1489] sm:$0xff]
        %v1491 = vld [vmem:[%s1489 + $0x8] sm:$0xff]
        %v1492 = vld [vmem:[%s1489 + $0x10] sm:$0xff]
        %v1493 = vld [vmem:[%s1489 + $0x18] sm:$0xff]
        %v1494 = vld [vmem:[%s1489 + $0x20] sm:$0xff]
        %v1495 = vld [vmem:[%s1489 + $0x28] sm:$0xff]
        %v1496 = vld [vmem:[%s1489 + $0x30] sm:$0xff]
        %v1497 = vld [vmem:[%s1489 + $0x38] sm:$0xff]
        %v1498 = vld [vmem:[%s1489 + $0x40] sm:$0xff]
        %v1499 = vld [vmem:[%s1489 + $0x48] sm:$0xff]
        %v1500 = vld [vmem:[%s1489 + $0x50] sm:$0xff]
        %v1501 = vld [vmem:[%s1489 + $0x58] sm:$0xff]
        %v1502 = vld [vmem:[%s1489 + $0x60] sm:$0xff]
        %v1503 = vld [vmem:[%s1489 + $0x68] sm:$0xff]
        %v1504 = vld [vmem:[%s1489 + $0x70] sm:$0xff]
        %v1505 = vld [vmem:[%s1489 + $0x78] sm:$0xff]
        %v1506 = vld [vmem:[%s1489 + $0x80] sm:$0xff]
        %v1507 = vld [vmem:[%s1489 + $0x88] sm:$0xff]
        %v1508 = vld [vmem:[%s9] sm:$0xff]
        %v1509 = vld [vmem:[%s9 + $0x8] sm:$0xff]
        %v1510 = vld [vmem:[%s9 + $0x10] sm:$0x1]
        %v1514 = vperm.slane %v1508, 0
        %v1515 = vperm.slane %v1508, 1
        %v1516 = vperm.slane %v1508, 2
        %v1517 = vperm.slane %v1508, 3
        %v1518 = vperm.slane %v1508, 4
        %v1519 = vperm.slane %v1508, 5
        %v1520 = vperm.slane %v1508, 6
        %v1521 = vperm.slane %v1508, 7
        %v1522 = vperm.slane %v1509, 0
        %v1523 = vperm.slane %v1509, 1
        %v1524 = vperm.slane %v1509, 2
        %v1525 = vperm.slane %v1509, 3
        %v1526 = vperm.slane %v1509, 4
        %v1527 = vperm.slane %v1509, 5
        %v1528 = vperm.slane %v1509, 6
        %v1529 = vperm.slane %v1509, 7
        %v1530 = vperm.slane %v1510, 0
        %1531 = vrot.lane.b32.xlu0 %v1514, 63
        %v1532 = vpop.permute.xlu0 %1531
        %1533 = vrot.lane.b32.xlu0 %v1515, 63
        %v1534 = vpop.permute.xlu0 %1533
        %1535 = vrot.lane.b32.xlu0 %v1516, 63
        %v1536 = vpop.permute.xlu0 %1535
        %1537 = vrot.lane.b32.xlu0 %v1517, 63
        %v1538 = vpop.permute.xlu0 %1537
        %1539 = vrot.lane.b32.xlu0 %v1518, 63
        %v1540 = vpop.permute.xlu0 %1539
        %1541 = vrot.lane.b32.xlu0 %v1519, 63
        %v1542 = vpop.permute.xlu0 %1541
        %1543 = vrot.lane.b32.xlu0 %v1520, 63
        %v1544 = vpop.permute.xlu0 %1543
        %1545 = vrot.lane.b32.xlu0 %v1521, 63
        %v1546 = vpop.permute.xlu0 %1545
        %1547 = vrot.lane.b32.xlu0 %v1522, 63
        %v1548 = vpop.permute.xlu0 %1547
        %1549 = vrot.lane.b32.xlu0 %v1523, 63
        %v1550 = vpop.permute.xlu0 %1549
        %1551 = vrot.lane.b32.xlu0 %v1524, 63
        %v1552 = vpop.permute.xlu0 %1551
        %1553 = vrot.lane.b32.xlu0 %v1525, 63
        %v1554 = vpop.permute.xlu0 %1553
        %1555 = vrot.lane.b32.xlu0 %v1526, 63
        %v1556 = vpop.permute.xlu0 %1555
        %1557 = vrot.lane.b32.xlu0 %v1527, 63
        %v1558 = vpop.permute.xlu0 %1557
        %1559 = vrot.lane.b32.xlu0 %v1528, 63
        %v1560 = vpop.permute.xlu0 %1559
        %1561 = vrot.lane.b32.xlu0 %v1529, 63
        %v1562 = vpop.permute.xlu0 %1561
        %1563 = vrot.lane.b32.xlu0 %v1530, 63
        %v1564 = vpop.permute.xlu0 %1563
        %vm1565 = vcmask 515072
        %v1566 = vsel %vm1565, %v1532, %v1534
        %v1567 = vsel %vm1565, %v1534, %v1536
        %v1568 = vsel %vm1565, %v1536, %v1538
        %v1569 = vsel %vm1565, %v1538, %v1540
        %v1570 = vsel %vm1565, %v1540, %v1542
        %v1571 = vsel %vm1565, %v1542, %v1544
        %v1572 = vsel %vm1565, %v1544, %v1546
        %v1573 = vsel %vm1565, %v1546, %v1548
        %v1574 = vsel %vm1565, %v1548, %v1550
        %v1575 = vsel %vm1565, %v1550, %v1552
        %v1576 = vsel %vm1565, %v1552, %v1554
        %v1577 = vsel %vm1565, %v1554, %v1556
        %v1578 = vsel %vm1565, %v1556, %v1558
        %v1579 = vsel %vm1565, %v1558, %v1560
        %v1580 = vsel %vm1565, %v1560, %v1562
        %v1581 = vsel %vm1565, %v1562, %v1564
        %v1600 = vmul.f32 %v1490, %v1532
        %v1601 = vmul.f32 %v1491, %v1566
        %v1602 = vmul.f32 %v1492, %v1567
        %v1603 = vmul.f32 %v1493, %v1568
        %v1604 = vmul.f32 %v1494, %v1569
        %v1605 = vmul.f32 %v1495, %v1570
        %v1606 = vmul.f32 %v1496, %v1571
        %v1607 = vmul.f32 %v1497, %v1572
        %v1608 = vmul.f32 %v1498, %v1573
        %v1609 = vmul.f32 %v1499, %v1574
        %v1610 = vmul.f32 %v1500, %v1575
        %v1611 = vmul.f32 %v1501, %v1576
        %v1612 = vmul.f32 %v1502, %v1577
        %v1613 = vmul.f32 %v1503, %v1578
        %v1614 = vmul.f32 %v1504, %v1579
        %v1615 = vmul.f32 %v1505, %v1580
        %v1616 = vmul.f32 %v1506, %v1581
        %v1617 = vmul.f32 %v1507, %v1564
        %1636 = vrot.lane.b32.xlu0 %v1600, 65
        %v1637 = vpop.permute.xlu0 %1636
        %1638 = vrot.lane.b32.xlu0 %v1601, 65
        %v1639 = vpop.permute.xlu0 %1638
        %1640 = vrot.lane.b32.xlu0 %v1602, 65
        %v1641 = vpop.permute.xlu0 %1640
        %1642 = vrot.lane.b32.xlu0 %v1603, 65
        %v1643 = vpop.permute.xlu0 %1642
        %1644 = vrot.lane.b32.xlu0 %v1604, 65
        %v1645 = vpop.permute.xlu0 %1644
        %1646 = vrot.lane.b32.xlu0 %v1605, 65
        %v1647 = vpop.permute.xlu0 %1646
        %1648 = vrot.lane.b32.xlu0 %v1606, 65
        %v1649 = vpop.permute.xlu0 %1648
        %1650 = vrot.lane.b32.xlu0 %v1607, 65
        %v1651 = vpop.permute.xlu0 %1650
        %1652 = vrot.lane.b32.xlu0 %v1608, 65
        %v1653 = vpop.permute.xlu0 %1652
        %1654 = vrot.lane.b32.xlu0 %v1609, 65
        %v1655 = vpop.permute.xlu0 %1654
        %1656 = vrot.lane.b32.xlu0 %v1610, 65
        %v1657 = vpop.permute.xlu0 %1656
        %1658 = vrot.lane.b32.xlu0 %v1611, 65
        %v1659 = vpop.permute.xlu0 %1658
        %1660 = vrot.lane.b32.xlu0 %v1612, 65
        %v1661 = vpop.permute.xlu0 %1660
        %1662 = vrot.lane.b32.xlu0 %v1613, 65
        %v1663 = vpop.permute.xlu0 %1662
        %1664 = vrot.lane.b32.xlu0 %v1614, 65
        %v1665 = vpop.permute.xlu0 %1664
        %1666 = vrot.lane.b32.xlu0 %v1615, 65
        %v1667 = vpop.permute.xlu0 %1666
        %1668 = vrot.lane.b32.xlu0 %v1616, 65
        %v1669 = vpop.permute.xlu0 %1668
        %1670 = vrot.lane.b32.xlu0 %v1617, 65
        %v1671 = vpop.permute.xlu0 %1670
        %vm1672 = vcmask 531456
        %v1673 = vsel %vm1672, %v1637, %v1639
        %v1674 = vsel %vm1672, %v1639, %v1641
        %v1675 = vsel %vm1672, %v1641, %v1643
        %v1676 = vsel %vm1672, %v1643, %v1645
        %v1677 = vsel %vm1672, %v1645, %v1647
        %v1678 = vsel %vm1672, %v1647, %v1649
        %v1679 = vsel %vm1672, %v1649, %v1651
        %v1680 = vsel %vm1672, %v1651, %v1653
        %v1681 = vsel %vm1672, %v1653, %v1655
        %v1682 = vsel %vm1672, %v1655, %v1657
        %v1683 = vsel %vm1672, %v1657, %v1659
        %v1684 = vsel %vm1672, %v1659, %v1661
        %v1685 = vsel %vm1672, %v1661, %v1663
        %v1686 = vsel %vm1672, %v1663, %v1665
        %v1687 = vsel %vm1672, %v1665, %v1667
        %v1688 = vsel %vm1672, %v1667, %v1669
        %v1689 = vsel %vm1672, %v1669, %v1671
        %1707 = vst [vmem:[#allocation2] sm:$0xff] %v1673
        %1708 = vst [vmem:[#allocation2 + $0x8] sm:$0xff] %v1674
        %1709 = vst [vmem:[#allocation2 + $0x10] sm:$0xff] %v1675
        %1710 = vst [vmem:[#allocation2 + $0x18] sm:$0xff] %v1676
        %1711 = vst [vmem:[#allocation2 + $0x20] sm:$0xff] %v1677
        %1712 = vst [vmem:[#allocation2 + $0x28] sm:$0xff] %v1678
        %1713 = vst [vmem:[#allocation2 + $0x30] sm:$0xff] %v1679
        %1714 = vst [vmem:[#allocation2 + $0x38] sm:$0xff] %v1680
        %1715 = vst [vmem:[#allocation2 + $0x40] sm:$0xff] %v1681
        %1716 = vst [vmem:[#allocation2 + $0x48] sm:$0xff] %v1682
        %1717 = vst [vmem:[#allocation2 + $0x50] sm:$0xff] %v1683
        %1718 = vst [vmem:[#allocation2 + $0x58] sm:$0xff] %v1684
        %1719 = vst [vmem:[#allocation2 + $0x60] sm:$0xff] %v1685
        %1720 = vst [vmem:[#allocation2 + $0x68] sm:$0xff] %v1686
        %1721 = vst [vmem:[#allocation2 + $0x70] sm:$0xff] %v1687
        %1722 = vst [vmem:[#allocation2 + $0x78] sm:$0xff] %v1688
        %1723 = vst [vmem:[#allocation2 + $0x80] sm:$0xff] %v1689
        %v1724 = vld [vmem:[%s1489] sm:$0xff]
        %v1725 = vld [vmem:[%s1489 + $0x8] sm:$0xff]
        %v1726 = vld [vmem:[%s1489 + $0x10] sm:$0xff]
        %v1727 = vld [vmem:[%s1489 + $0x18] sm:$0xff]
        %v1728 = vld [vmem:[%s1489 + $0x20] sm:$0xff]
        %v1729 = vld [vmem:[%s1489 + $0x28] sm:$0xff]
        %v1730 = vld [vmem:[%s1489 + $0x30] sm:$0xff]
        %v1731 = vld [vmem:[%s1489 + $0x38] sm:$0xff]
        %v1732 = vld [vmem:[%s1489 + $0x40] sm:$0xff]
        %v1733 = vld [vmem:[%s1489 + $0x48] sm:$0xff]
        %v1734 = vld [vmem:[%s1489 + $0x50] sm:$0xff]
        %v1735 = vld [vmem:[%s1489 + $0x58] sm:$0xff]
        %v1736 = vld [vmem:[%s1489 + $0x60] sm:$0xff]
        %v1737 = vld [vmem:[%s1489 + $0x68] sm:$0xff]
        %v1738 = vld [vmem:[%s1489 + $0x70] sm:$0xff]
        %v1739 = vld [vmem:[%s1489 + $0x78] sm:$0xff]
        %v1740 = vld [vmem:[%s1489 + $0x80] sm:$0xff]
        %v1741 = vld [vmem:[%s1489 + $0x88] sm:$0xff]
        %1760 = vrot.lane.b32.xlu0 %v1724, 64
        %v1761 = vpop.permute.xlu0 %1760
        %1762 = vrot.lane.b32.xlu0 %v1725, 64
        %v1763 = vpop.permute.xlu0 %1762
        %1764 = vrot.lane.b32.xlu0 %v1726, 64
        %v1765 = vpop.permute.xlu0 %1764
        %1766 = vrot.lane.b32.xlu0 %v1727, 64
        %v1767 = vpop.permute.xlu0 %1766
        %1768 = vrot.lane.b32.xlu0 %v1728, 64
        %v1769 = vpop.permute.xlu0 %1768
        %1770 = vrot.lane.b32.xlu0 %v1729, 64
        %v1771 = vpop.permute.xlu0 %1770
        %1772 = vrot.lane.b32.xlu0 %v1730, 64
        %v1773 = vpop.permute.xlu0 %1772
        %1774 = vrot.lane.b32.xlu0 %v1731, 64
        %v1775 = vpop.permute.xlu0 %1774
        %1776 = vrot.lane.b32.xlu0 %v1732, 64
        %v1777 = vpop.permute.xlu0 %1776
        %1778 = vrot.lane.b32.xlu0 %v1733, 64
        %v1779 = vpop.permute.xlu0 %1778
        %1780 = vrot.lane.b32.xlu0 %v1734, 64
        %v1781 = vpop.permute.xlu0 %1780
        %1782 = vrot.lane.b32.xlu0 %v1735, 64
        %v1783 = vpop.permute.xlu0 %1782
        %1784 = vrot.lane.b32.xlu0 %v1736, 64
        %v1785 = vpop.permute.xlu0 %1784
        %1786 = vrot.lane.b32.xlu0 %v1737, 64
        %v1787 = vpop.permute.xlu0 %1786
        %1788 = vrot.lane.b32.xlu0 %v1738, 64
        %v1789 = vpop.permute.xlu0 %1788
        %1790 = vrot.lane.b32.xlu0 %v1739, 64
        %v1791 = vpop.permute.xlu0 %1790
        %1792 = vrot.lane.b32.xlu0 %v1740, 64
        %v1793 = vpop.permute.xlu0 %1792
        %1794 = vrot.lane.b32.xlu0 %v1741, 64
        %v1795 = vpop.permute.xlu0 %1794
        %vm1796 = vcmask 523264
        %v1797 = vsel %vm1796, %v1761, %v1763
        %v1798 = vsel %vm1796, %v1763, %v1765
        %v1799 = vsel %vm1796, %v1765, %v1767
        %v1800 = vsel %vm1796, %v1767, %v1769
        %v1801 = vsel %vm1796, %v1769, %v1771
        %v1802 = vsel %vm1796, %v1771, %v1773
        %v1803 = vsel %vm1796, %v1773, %v1775
        %v1804 = vsel %vm1796, %v1775, %v1777
        %v1805 = vsel %vm1796, %v1777, %v1779
        %v1806 = vsel %vm1796, %v1779, %v1781
        %v1807 = vsel %vm1796, %v1781, %v1783
        %v1808 = vsel %vm1796, %v1783, %v1785
        %v1809 = vsel %vm1796, %v1785, %v1787
        %v1810 = vsel %vm1796, %v1787, %v1789
        %v1811 = vsel %vm1796, %v1789, %v1791
        %v1812 = vsel %vm1796, %v1791, %v1793
        %v1813 = vsel %vm1796, %v1793, %v1795
        %1831 = vst [vmem:[#allocation2 + $0x88] sm:$0xff] %v1797
        %1832 = vst [vmem:[#allocation2 + $0x90] sm:$0xff] %v1798
        %1833 = vst [vmem:[#allocation2 + $0x98] sm:$0xff] %v1799
        %1834 = vst [vmem:[#allocation2 + $0xa0] sm:$0xff] %v1800
        %1835 = vst [vmem:[#allocation2 + $0xa8] sm:$0xff] %v1801
        %1836 = vst [vmem:[#allocation2 + $0xb0] sm:$0xff] %v1802
        %1837 = vst [vmem:[#allocation2 + $0xb8] sm:$0xff] %v1803
        %1838 = vst [vmem:[#allocation2 + $0xc0] sm:$0xff] %v1804
        %1839 = vst [vmem:[#allocation2 + $0xc8] sm:$0xff] %v1805
        %1840 = vst [vmem:[#allocation2 + $0xd0] sm:$0xff] %v1806
        %1841 = vst [vmem:[#allocation2 + $0xd8] sm:$0xff] %v1807
        %1842 = vst [vmem:[#allocation2 + $0xe0] sm:$0xff] %v1808
        %1843 = vst [vmem:[#allocation2 + $0xe8] sm:$0xff] %v1809
        %1844 = vst [vmem:[#allocation2 + $0xf0] sm:$0xff] %v1810
        %1845 = vst [vmem:[#allocation2 + $0xf8] sm:$0xff] %v1811
        %1846 = vst [vmem:[#allocation2 + $0x100] sm:$0xff] %v1812
        %1847 = vst [vmem:[#allocation2 + $0x108] sm:$0xff] %v1813
        %v1848 = vld [vmem:[%s1489] sm:$0xff]
        %v1849 = vld [vmem:[%s1489 + $0x8] sm:$0xff]
        %v1850 = vld [vmem:[%s1489 + $0x10] sm:$0xff]
        %v1851 = vld [vmem:[%s1489 + $0x18] sm:$0xff]
        %v1852 = vld [vmem:[%s1489 + $0x20] sm:$0xff]
        %v1853 = vld [vmem:[%s1489 + $0x28] sm:$0xff]
        %v1854 = vld [vmem:[%s1489 + $0x30] sm:$0xff]
        %v1855 = vld [vmem:[%s1489 + $0x38] sm:$0xff]
        %v1856 = vld [vmem:[%s1489 + $0x40] sm:$0xff]
        %v1857 = vld [vmem:[%s1489 + $0x48] sm:$0xff]
        %v1858 = vld [vmem:[%s1489 + $0x50] sm:$0xff]
        %v1859 = vld [vmem:[%s1489 + $0x58] sm:$0xff]
        %v1860 = vld [vmem:[%s1489 + $0x60] sm:$0xff]
        %v1861 = vld [vmem:[%s1489 + $0x68] sm:$0xff]
        %v1862 = vld [vmem:[%s1489 + $0x70] sm:$0xff]
        %v1863 = vld [vmem:[%s1489 + $0x78] sm:$0xff]
        %v1864 = vld [vmem:[%s1489 + $0x80] sm:$0xff]
        %v1865 = vld [vmem:[%s1489 + $0x88] sm:$0xff]
        %v1866 = vld [vmem:[#allocation12] sm:$0xff]
        %v1867 = vld [vmem:[#allocation12 + $0x8] sm:$0xff]
        %v1868 = vld [vmem:[#allocation12 + $0x10] sm:$0x1]
        %v1872 = vperm.slane %v1866, 0
        %v1873 = vperm.slane %v1866, 1
        %v1874 = vperm.slane %v1866, 2
        %v1875 = vperm.slane %v1866, 3
        %v1876 = vperm.slane %v1866, 4
        %v1877 = vperm.slane %v1866, 5
        %v1878 = vperm.slane %v1866, 6
        %v1879 = vperm.slane %v1866, 7
        %v1880 = vperm.slane %v1867, 0
        %v1881 = vperm.slane %v1867, 1
        %v1882 = vperm.slane %v1867, 2
        %v1883 = vperm.slane %v1867, 3
        %v1884 = vperm.slane %v1867, 4
        %v1885 = vperm.slane %v1867, 5
        %v1886 = vperm.slane %v1867, 6
        %v1887 = vperm.slane %v1867, 7
        %v1888 = vperm.slane %v1868, 0
        %1889 = vrot.lane.b32.xlu0 %v1872, 65
        %v1890 = vpop.permute.xlu0 %1889
        %1891 = vrot.lane.b32.xlu0 %v1873, 65
        %v1892 = vpop.permute.xlu0 %1891
        %1893 = vrot.lane.b32.xlu0 %v1874, 65
        %v1894 = vpop.permute.xlu0 %1893
        %1895 = vrot.lane.b32.xlu0 %v1875, 65
        %v1896 = vpop.permute.xlu0 %1895
        %1897 = vrot.lane.b32.xlu0 %v1876, 65
        %v1898 = vpop.permute.xlu0 %1897
        %1899 = vrot.lane.b32.xlu0 %v1877, 65
        %v1900 = vpop.permute.xlu0 %1899
        %1901 = vrot.lane.b32.xlu0 %v1878, 65
        %v1902 = vpop.permute.xlu0 %1901
        %1903 = vrot.lane.b32.xlu0 %v1879, 65
        %v1904 = vpop.permute.xlu0 %1903
        %1905 = vrot.lane.b32.xlu0 %v1880, 65
        %v1906 = vpop.permute.xlu0 %1905
        %1907 = vrot.lane.b32.xlu0 %v1881, 65
        %v1908 = vpop.permute.xlu0 %1907
        %1909 = vrot.lane.b32.xlu0 %v1882, 65
        %v1910 = vpop.permute.xlu0 %1909
        %1911 = vrot.lane.b32.xlu0 %v1883, 65
        %v1912 = vpop.permute.xlu0 %1911
        %1913 = vrot.lane.b32.xlu0 %v1884, 65
        %v1914 = vpop.permute.xlu0 %1913
        %1915 = vrot.lane.b32.xlu0 %v1885, 65
        %v1916 = vpop.permute.xlu0 %1915
        %1917 = vrot.lane.b32.xlu0 %v1886, 65
        %v1918 = vpop.permute.xlu0 %1917
        %1919 = vrot.lane.b32.xlu0 %v1887, 65
        %v1920 = vpop.permute.xlu0 %1919
        %1921 = vrot.lane.b32.xlu0 %v1888, 65
        %v1922 = vpop.permute.xlu0 %1921
        %v1923 = vsel %vm1672, %v1890, %v1892
        %v1924 = vsel %vm1672, %v1892, %v1894
        %v1925 = vsel %vm1672, %v1894, %v1896
        %v1926 = vsel %vm1672, %v1896, %v1898
        %v1927 = vsel %vm1672, %v1898, %v1900
        %v1928 = vsel %vm1672, %v1900, %v1902
        %v1929 = vsel %vm1672, %v1902, %v1904
        %v1930 = vsel %vm1672, %v1904, %v1906
        %v1931 = vsel %vm1672, %v1906, %v1908
        %v1932 = vsel %vm1672, %v1908, %v1910
        %v1933 = vsel %vm1672, %v1910, %v1912
        %v1934 = vsel %vm1672, %v1912, %v1914
        %v1935 = vsel %vm1672, %v1914, %v1916
        %v1936 = vsel %vm1672, %v1916, %v1918
        %v1937 = vsel %vm1672, %v1918, %v1920
        %v1938 = vsel %vm1672, %v1920, %v1922
        %v1957 = vmul.f32 %v1848, %v1890
        %v1958 = vmul.f32 %v1849, %v1923
        %v1959 = vmul.f32 %v1850, %v1924
        %v1960 = vmul.f32 %v1851, %v1925
        %v1961 = vmul.f32 %v1852, %v1926
        %v1962 = vmul.f32 %v1853, %v1927
        %v1963 = vmul.f32 %v1854, %v1928
        %v1964 = vmul.f32 %v1855, %v1929
        %v1965 = vmul.f32 %v1856, %v1930
        %v1966 = vmul.f32 %v1857, %v1931
        %v1967 = vmul.f32 %v1858, %v1932
        %v1968 = vmul.f32 %v1859, %v1933
        %v1969 = vmul.f32 %v1860, %v1934
        %v1970 = vmul.f32 %v1861, %v1935
        %v1971 = vmul.f32 %v1862, %v1936
        %v1972 = vmul.f32 %v1863, %v1937
        %v1973 = vmul.f32 %v1864, %v1938
        %v1974 = vmul.f32 %v1865, %v1922
        %1993 = vrot.lane.b32.xlu0 %v1957, 63
        %v1994 = vpop.permute.xlu0 %1993
        %1995 = vrot.lane.b32.xlu0 %v1958, 63
        %v1996 = vpop.permute.xlu0 %1995
        %1997 = vrot.lane.b32.xlu0 %v1959, 63
        %v1998 = vpop.permute.xlu0 %1997
        %1999 = vrot.lane.b32.xlu0 %v1960, 63
        %v2000 = vpop.permute.xlu0 %1999
        %2001 = vrot.lane.b32.xlu0 %v1961, 63
        %v2002 = vpop.permute.xlu0 %2001
        %2003 = vrot.lane.b32.xlu0 %v1962, 63
        %v2004 = vpop.permute.xlu0 %2003
        %2005 = vrot.lane.b32.xlu0 %v1963, 63
        %v2006 = vpop.permute.xlu0 %2005
        %2007 = vrot.lane.b32.xlu0 %v1964, 63
        %v2008 = vpop.permute.xlu0 %2007
        %2009 = vrot.lane.b32.xlu0 %v1965, 63
        %v2010 = vpop.permute.xlu0 %2009
        %2011 = vrot.lane.b32.xlu0 %v1966, 63
        %v2012 = vpop.permute.xlu0 %2011
        %2013 = vrot.lane.b32.xlu0 %v1967, 63
        %v2014 = vpop.permute.xlu0 %2013
        %2015 = vrot.lane.b32.xlu0 %v1968, 63
        %v2016 = vpop.permute.xlu0 %2015
        %2017 = vrot.lane.b32.xlu0 %v1969, 63
        %v2018 = vpop.permute.xlu0 %2017
        %2019 = vrot.lane.b32.xlu0 %v1970, 63
        %v2020 = vpop.permute.xlu0 %2019
        %2021 = vrot.lane.b32.xlu0 %v1971, 63
        %v2022 = vpop.permute.xlu0 %2021
        %2023 = vrot.lane.b32.xlu0 %v1972, 63
        %v2024 = vpop.permute.xlu0 %2023
        %2025 = vrot.lane.b32.xlu0 %v1973, 63
        %v2026 = vpop.permute.xlu0 %2025
        %2027 = vrot.lane.b32.xlu0 %v1974, 63
        %v2028 = vpop.permute.xlu0 %2027
        %v2029 = vsel %vm1565, %v1994, %v1996
        %v2030 = vsel %vm1565, %v1996, %v1998
        %v2031 = vsel %vm1565, %v1998, %v2000
        %v2032 = vsel %vm1565, %v2000, %v2002
        %v2033 = vsel %vm1565, %v2002, %v2004
        %v2034 = vsel %vm1565, %v2004, %v2006
        %v2035 = vsel %vm1565, %v2006, %v2008
        %v2036 = vsel %vm1565, %v2008, %v2010
        %v2037 = vsel %vm1565, %v2010, %v2012
        %v2038 = vsel %vm1565, %v2012, %v2014
        %v2039 = vsel %vm1565, %v2014, %v2016
        %v2040 = vsel %vm1565, %v2016, %v2018
        %v2041 = vsel %vm1565, %v2018, %v2020
        %v2042 = vsel %vm1565, %v2020, %v2022
        %v2043 = vsel %vm1565, %v2022, %v2024
        %v2044 = vsel %vm1565, %v2024, %v2026
        %v2045 = vsel %vm1565, %v2026, %v2028
        %2063 = vst [vmem:[#allocation2 + $0x110] sm:$0xff] %v2029
        %2064 = vst [vmem:[#allocation2 + $0x118] sm:$0xff] %v2030
        %2065 = vst [vmem:[#allocation2 + $0x120] sm:$0xff] %v2031
        %2066 = vst [vmem:[#allocation2 + $0x128] sm:$0xff] %v2032
        %2067 = vst [vmem:[#allocation2 + $0x130] sm:$0xff] %v2033
        %2068 = vst [vmem:[#allocation2 + $0x138] sm:$0xff] %v2034
        %2069 = vst [vmem:[#allocation2 + $0x140] sm:$0xff] %v2035
        %2070 = vst [vmem:[#allocation2 + $0x148] sm:$0xff] %v2036
        %2071 = vst [vmem:[#allocation2 + $0x150] sm:$0xff] %v2037
        %2072 = vst [vmem:[#allocation2 + $0x158] sm:$0xff] %v2038
        %2073 = vst [vmem:[#allocation2 + $0x160] sm:$0xff] %v2039
        %2074 = vst [vmem:[#allocation2 + $0x168] sm:$0xff] %v2040
        %2075 = vst [vmem:[#allocation2 + $0x170] sm:$0xff] %v2041
        %2076 = vst [vmem:[#allocation2 + $0x178] sm:$0xff] %v2042
        %2077 = vst [vmem:[#allocation2 + $0x180] sm:$0xff] %v2043
        %2078 = vst [vmem:[#allocation2 + $0x188] sm:$0xff] %v2044
        %2079 = vst [vmem:[#allocation2 + $0x190] sm:$0xff] %v2045
        %v2080 = vld [vmem:[%s1489] sm:$0xff]
        %v2081 = vld [vmem:[%s1489 + $0x8] sm:$0xff]
        %v2082 = vld [vmem:[%s1489 + $0x10] sm:$0xff]
        %v2083 = vld [vmem:[%s1489 + $0x18] sm:$0xff]
        %v2084 = vld [vmem:[%s1489 + $0x20] sm:$0xff]
        %v2085 = vld [vmem:[%s1489 + $0x28] sm:$0xff]
        %v2086 = vld [vmem:[%s1489 + $0x30] sm:$0xff]
        %v2087 = vld [vmem:[%s1489 + $0x38] sm:$0xff]
        %v2088 = vld [vmem:[%s1489 + $0x40] sm:$0xff]
        %v2089 = vld [vmem:[%s1489 + $0x48] sm:$0xff]
        %v2090 = vld [vmem:[%s1489 + $0x50] sm:$0xff]
        %v2091 = vld [vmem:[%s1489 + $0x58] sm:$0xff]
        %v2092 = vld [vmem:[%s1489 + $0x60] sm:$0xff]
        %v2093 = vld [vmem:[%s1489 + $0x68] sm:$0xff]
        %v2094 = vld [vmem:[%s1489 + $0x70] sm:$0xff]
        %v2095 = vld [vmem:[%s1489 + $0x78] sm:$0xff]
        %v2096 = vld [vmem:[%s1489 + $0x80] sm:$0xff]
        %v2097 = vld [vmem:[%s1489 + $0x88] sm:$0xff]
        %v2098 = vld [vmem:[%s9] sm:$0xff]
        %v2099 = vld [vmem:[%s9 + $0x8] sm:$0xff]
        %v2100 = vld [vmem:[%s9 + $0x10] sm:$0x1]
        %v2104 = vperm.slane %v2098, 0
        %v2105 = vperm.slane %v2098, 1
        %v2106 = vperm.slane %v2098, 2
        %v2107 = vperm.slane %v2098, 3
        %v2108 = vperm.slane %v2098, 4
        %v2109 = vperm.slane %v2098, 5
        %v2110 = vperm.slane %v2098, 6
        %v2111 = vperm.slane %v2098, 7
        %v2112 = vperm.slane %v2099, 0
        %v2113 = vperm.slane %v2099, 1
        %v2114 = vperm.slane %v2099, 2
        %v2115 = vperm.slane %v2099, 3
        %v2116 = vperm.slane %v2099, 4
        %v2117 = vperm.slane %v2099, 5
        %v2118 = vperm.slane %v2099, 6
        %v2119 = vperm.slane %v2099, 7
        %v2120 = vperm.slane %v2100, 0
        %2121 = vrot.lane.b32.xlu0 %v2104, 127
        %v2122 = vpop.permute.xlu0 %2121
        %2123 = vrot.lane.b32.xlu0 %v2105, 127
        %v2124 = vpop.permute.xlu0 %2123
        %2125 = vrot.lane.b32.xlu0 %v2106, 127
        %v2126 = vpop.permute.xlu0 %2125
        %2127 = vrot.lane.b32.xlu0 %v2107, 127
        %v2128 = vpop.permute.xlu0 %2127
        %2129 = vrot.lane.b32.xlu0 %v2108, 127
        %v2130 = vpop.permute.xlu0 %2129
        %2131 = vrot.lane.b32.xlu0 %v2109, 127
        %v2132 = vpop.permute.xlu0 %2131
        %2133 = vrot.lane.b32.xlu0 %v2110, 127
        %v2134 = vpop.permute.xlu0 %2133
        %2135 = vrot.lane.b32.xlu0 %v2111, 127
        %v2136 = vpop.permute.xlu0 %2135
        %2137 = vrot.lane.b32.xlu0 %v2112, 127
        %v2138 = vpop.permute.xlu0 %2137
        %2139 = vrot.lane.b32.xlu0 %v2113, 127
        %v2140 = vpop.permute.xlu0 %2139
        %2141 = vrot.lane.b32.xlu0 %v2114, 127
        %v2142 = vpop.permute.xlu0 %2141
        %2143 = vrot.lane.b32.xlu0 %v2115, 127
        %v2144 = vpop.permute.xlu0 %2143
        %2145 = vrot.lane.b32.xlu0 %v2116, 127
        %v2146 = vpop.permute.xlu0 %2145
        %2147 = vrot.lane.b32.xlu0 %v2117, 127
        %v2148 = vpop.permute.xlu0 %2147
        %2149 = vrot.lane.b32.xlu0 %v2118, 127
        %v2150 = vpop.permute.xlu0 %2149
        %2151 = vrot.lane.b32.xlu0 %v2119, 127
        %v2152 = vpop.permute.xlu0 %2151
        %2153 = vrot.lane.b32.xlu0 %v2120, 127
        %v2154 = vpop.permute.xlu0 %2153
        %vm2155 = vcmask 1039360
        %v2156 = vsel %vm2155, %v2122, %v2124
        %v2157 = vsel %vm2155, %v2124, %v2126
        %v2158 = vsel %vm2155, %v2126, %v2128
        %v2159 = vsel %vm2155, %v2128, %v2130
        %v2160 = vsel %vm2155, %v2130, %v2132
        %v2161 = vsel %vm2155, %v2132, %v2134
        %v2162 = vsel %vm2155, %v2134, %v2136
        %v2163 = vsel %vm2155, %v2136, %v2138
        %v2164 = vsel %vm2155, %v2138, %v2140
        %v2165 = vsel %vm2155, %v2140, %v2142
        %v2166 = vsel %vm2155, %v2142, %v2144
        %v2167 = vsel %vm2155, %v2144, %v2146
        %v2168 = vsel %vm2155, %v2146, %v2148
        %v2169 = vsel %vm2155, %v2148, %v2150
        %v2170 = vsel %vm2155, %v2150, %v2152
        %v2171 = vsel %vm2155, %v2152, %v2154
        %v2190 = vmul.f32 %v2080, %v2122
        %v2191 = vmul.f32 %v2081, %v2156
        %v2192 = vmul.f32 %v2082, %v2157
        %v2193 = vmul.f32 %v2083, %v2158
        %v2194 = vmul.f32 %v2084, %v2159
        %v2195 = vmul.f32 %v2085, %v2160
        %v2196 = vmul.f32 %v2086, %v2161
        %v2197 = vmul.f32 %v2087, %v2162
        %v2198 = vmul.f32 %v2088, %v2163
        %v2199 = vmul.f32 %v2089, %v2164
        %v2200 = vmul.f32 %v2090, %v2165
        %v2201 = vmul.f32 %v2091, %v2166
        %v2202 = vmul.f32 %v2092, %v2167
        %v2203 = vmul.f32 %v2093, %v2168
        %v2204 = vmul.f32 %v2094, %v2169
        %v2205 = vmul.f32 %v2095, %v2170
        %v2206 = vmul.f32 %v2096, %v2171
        %v2207 = vmul.f32 %v2097, %v2154
        %2226 = vrot.lane.b32.xlu0 %v2190, 1
        %v2227 = vpop.permute.xlu0 %2226
        %2228 = vrot.lane.b32.xlu0 %v2191, 1
        %v2229 = vpop.permute.xlu0 %2228
        %2230 = vrot.lane.b32.xlu0 %v2192, 1
        %v2231 = vpop.permute.xlu0 %2230
        %2232 = vrot.lane.b32.xlu0 %v2193, 1
        %v2233 = vpop.permute.xlu0 %2232
        %2234 = vrot.lane.b32.xlu0 %v2194, 1
        %v2235 = vpop.permute.xlu0 %2234
        %2236 = vrot.lane.b32.xlu0 %v2195, 1
        %v2237 = vpop.permute.xlu0 %2236
        %2238 = vrot.lane.b32.xlu0 %v2196, 1
        %v2239 = vpop.permute.xlu0 %2238
        %2240 = vrot.lane.b32.xlu0 %v2197, 1
        %v2241 = vpop.permute.xlu0 %2240
        %2242 = vrot.lane.b32.xlu0 %v2198, 1
        %v2243 = vpop.permute.xlu0 %2242
        %2244 = vrot.lane.b32.xlu0 %v2199, 1
        %v2245 = vpop.permute.xlu0 %2244
        %2246 = vrot.lane.b32.xlu0 %v2200, 1
        %v2247 = vpop.permute.xlu0 %2246
        %2248 = vrot.lane.b32.xlu0 %v2201, 1
        %v2249 = vpop.permute.xlu0 %2248
        %2250 = vrot.lane.b32.xlu0 %v2202, 1
        %v2251 = vpop.permute.xlu0 %2250
        %2252 = vrot.lane.b32.xlu0 %v2203, 1
        %v2253 = vpop.permute.xlu0 %2252
        %2254 = vrot.lane.b32.xlu0 %v2204, 1
        %v2255 = vpop.permute.xlu0 %2254
        %2256 = vrot.lane.b32.xlu0 %v2205, 1
        %v2257 = vpop.permute.xlu0 %2256
        %2258 = vrot.lane.b32.xlu0 %v2206, 1
        %v2259 = vpop.permute.xlu0 %2258
        %2260 = vrot.lane.b32.xlu0 %v2207, 1
        %v2261 = vpop.permute.xlu0 %2260
        %vm2262 = vcmask 7168
        %v2263 = vsel %vm2262, %v2227, %v2229
        %v2264 = vsel %vm2262, %v2229, %v2231
        %v2265 = vsel %vm2262, %v2231, %v2233
        %v2266 = vsel %vm2262, %v2233, %v2235
        %v2267 = vsel %vm2262, %v2235, %v2237
        %v2268 = vsel %vm2262, %v2237, %v2239
        %v2269 = vsel %vm2262, %v2239, %v2241
        %v2270 = vsel %vm2262, %v2241, %v2243
        %v2271 = vsel %vm2262, %v2243, %v2245
        %v2272 = vsel %vm2262, %v2245, %v2247
        %v2273 = vsel %vm2262, %v2247, %v2249
        %v2274 = vsel %vm2262, %v2249, %v2251
        %v2275 = vsel %vm2262, %v2251, %v2253
        %v2276 = vsel %vm2262, %v2253, %v2255
        %v2277 = vsel %vm2262, %v2255, %v2257
        %v2278 = vsel %vm2262, %v2257, %v2259
        %v2279 = vsel %vm2262, %v2259, %v2261
        %2297 = vst [vmem:[#allocation2 + $0x198] sm:$0xff] %v2263
        %2298 = vst [vmem:[#allocation2 + $0x1a0] sm:$0xff] %v2264
        %2299 = vst [vmem:[#allocation2 + $0x1a8] sm:$0xff] %v2265
        %2300 = vst [vmem:[#allocation2 + $0x1b0] sm:$0xff] %v2266
        %2301 = vst [vmem:[#allocation2 + $0x1b8] sm:$0xff] %v2267
        %2302 = vst [vmem:[#allocation2 + $0x1c0] sm:$0xff] %v2268
        %2303 = vst [vmem:[#allocation2 + $0x1c8] sm:$0xff] %v2269
        %2304 = vst [vmem:[#allocation2 + $0x1d0] sm:$0xff] %v2270
        %2305 = vst [vmem:[#allocation2 + $0x1d8] sm:$0xff] %v2271
        %2306 = vst [vmem:[#allocation2 + $0x1e0] sm:$0xff] %v2272
        %2307 = vst [vmem:[#allocation2 + $0x1e8] sm:$0xff] %v2273
        %2308 = vst [vmem:[#allocation2 + $0x1f0] sm:$0xff] %v2274
        %2309 = vst [vmem:[#allocation2 + $0x1f8] sm:$0xff] %v2275
        %2310 = vst [vmem:[#allocation2 + $0x200] sm:$0xff] %v2276
        %2311 = vst [vmem:[#allocation2 + $0x208] sm:$0xff] %v2277
        %2312 = vst [vmem:[#allocation2 + $0x210] sm:$0xff] %v2278
        %2313 = vst [vmem:[#allocation2 + $0x218] sm:$0xff] %v2279
        %v2314 = vld [vmem:[%s1489 + $0x8] sm:$0xff]
        %v2315 = vld [vmem:[%s1489 + $0x10] sm:$0xff]
        %v2316 = vld [vmem:[%s1489 + $0x18] sm:$0xff]
        %v2317 = vld [vmem:[%s1489 + $0x20] sm:$0xff]
        %v2318 = vld [vmem:[%s1489 + $0x28] sm:$0xff]
        %v2319 = vld [vmem:[%s1489 + $0x30] sm:$0xff]
        %v2320 = vld [vmem:[%s1489 + $0x38] sm:$0xff]
        %v2321 = vld [vmem:[%s1489 + $0x40] sm:$0xff]
        %v2322 = vld [vmem:[%s1489 + $0x48] sm:$0xff]
        %v2323 = vld [vmem:[%s1489 + $0x50] sm:$0xff]
        %v2324 = vld [vmem:[%s1489 + $0x58] sm:$0xff]
        %v2325 = vld [vmem:[%s1489 + $0x60] sm:$0xff]
        %v2326 = vld [vmem:[%s1489 + $0x68] sm:$0xff]
        %v2327 = vld [vmem:[%s1489 + $0x70] sm:$0xff]
        %v2328 = vld [vmem:[%s1489 + $0x78] sm:$0xff]
        %v2329 = vld [vmem:[%s1489 + $0x80] sm:$0xff]
        %v2330 = vld [vmem:[%s1489 + $0x88] sm:$0xff]
        %2331 = vst [vmem:[#allocation2 + $0x220] sm:$0xff] %v2314
        %2332 = vst [vmem:[#allocation2 + $0x228] sm:$0xff] %v2315
        %2333 = vst [vmem:[#allocation2 + $0x230] sm:$0xff] %v2316
        %2334 = vst [vmem:[#allocation2 + $0x238] sm:$0xff] %v2317
        %2335 = vst [vmem:[#allocation2 + $0x240] sm:$0xff] %v2318
        %2336 = vst [vmem:[#allocation2 + $0x248] sm:$0xff] %v2319
        %2337 = vst [vmem:[#allocation2 + $0x250] sm:$0xff] %v2320
        %2338 = vst [vmem:[#allocation2 + $0x258] sm:$0xff] %v2321
        %2339 = vst [vmem:[#allocation2 + $0x260] sm:$0xff] %v2322
        %2340 = vst [vmem:[#allocation2 + $0x268] sm:$0xff] %v2323
        %2341 = vst [vmem:[#allocation2 + $0x270] sm:$0xff] %v2324
        %2342 = vst [vmem:[#allocation2 + $0x278] sm:$0xff] %v2325
        %2343 = vst [vmem:[#allocation2 + $0x280] sm:$0xff] %v2326
        %2344 = vst [vmem:[#allocation2 + $0x288] sm:$0xff] %v2327
        %2345 = vst [vmem:[#allocation2 + $0x290] sm:$0xff] %v2328
        %2346 = vst [vmem:[#allocation2 + $0x298] sm:$0xff] %v2329
        %2347 = vst [vmem:[#allocation2 + $0x2a0] sm:$0xff] %v2330
        %v2348 = vld [vmem:[%s1489 + $0x8] sm:$0xff]
        %v2349 = vld [vmem:[%s1489 + $0x10] sm:$0xff]
        %v2350 = vld [vmem:[%s1489 + $0x18] sm:$0xff]
        %v2351 = vld [vmem:[%s1489 + $0x20] sm:$0xff]
        %v2352 = vld [vmem:[%s1489 + $0x28] sm:$0xff]
        %v2353 = vld [vmem:[%s1489 + $0x30] sm:$0xff]
        %v2354 = vld [vmem:[%s1489 + $0x38] sm:$0xff]
        %v2355 = vld [vmem:[%s1489 + $0x40] sm:$0xff]
        %v2356 = vld [vmem:[%s1489 + $0x48] sm:$0xff]
        %v2357 = vld [vmem:[%s1489 + $0x50] sm:$0xff]
        %v2358 = vld [vmem:[%s1489 + $0x58] sm:$0xff]
        %v2359 = vld [vmem:[%s1489 + $0x60] sm:$0xff]
        %v2360 = vld [vmem:[%s1489 + $0x68] sm:$0xff]
        %v2361 = vld [vmem:[%s1489 + $0x70] sm:$0xff]
        %v2362 = vld [vmem:[%s1489 + $0x78] sm:$0xff]
        %v2363 = vld [vmem:[%s1489 + $0x80] sm:$0xff]
        %v2364 = vld [vmem:[%s1489 + $0x88] sm:$0xff]
        %v2365 = vld [vmem:[%s1489 + $0x90] sm:$0xff]
        %v2366 = vld [vmem:[#allocation12] sm:$0xff]
        %v2367 = vld [vmem:[#allocation12 + $0x8] sm:$0xff]
        %v2368 = vld [vmem:[#allocation12 + $0x10] sm:$0x1]
        %v2372 = vperm.slane %v2366, 0
        %v2373 = vperm.slane %v2366, 1
        %v2374 = vperm.slane %v2366, 2
        %v2375 = vperm.slane %v2366, 3
        %v2376 = vperm.slane %v2366, 4
        %v2377 = vperm.slane %v2366, 5
        %v2378 = vperm.slane %v2366, 6
        %v2379 = vperm.slane %v2366, 7
        %v2380 = vperm.slane %v2367, 0
        %v2381 = vperm.slane %v2367, 1
        %v2382 = vperm.slane %v2367, 2
        %v2383 = vperm.slane %v2367, 3
        %v2384 = vperm.slane %v2367, 4
        %v2385 = vperm.slane %v2367, 5
        %v2386 = vperm.slane %v2367, 6
        %v2387 = vperm.slane %v2367, 7
        %v2388 = vperm.slane %v2368, 0
        %2389 = vrot.lane.b32.xlu0 %v2372, 1
        %v2390 = vpop.permute.xlu0 %2389
        %2391 = vrot.lane.b32.xlu0 %v2373, 1
        %v2392 = vpop.permute.xlu0 %2391
        %2393 = vrot.lane.b32.xlu0 %v2374, 1
        %v2394 = vpop.permute.xlu0 %2393
        %2395 = vrot.lane.b32.xlu0 %v2375, 1
        %v2396 = vpop.permute.xlu0 %2395
        %2397 = vrot.lane.b32.xlu0 %v2376, 1
        %v2398 = vpop.permute.xlu0 %2397
        %2399 = vrot.lane.b32.xlu0 %v2377, 1
        %v2400 = vpop.permute.xlu0 %2399
        %2401 = vrot.lane.b32.xlu0 %v2378, 1
        %v2402 = vpop.permute.xlu0 %2401
        %2403 = vrot.lane.b32.xlu0 %v2379, 1
        %v2404 = vpop.permute.xlu0 %2403
        %2405 = vrot.lane.b32.xlu0 %v2380, 1
        %v2406 = vpop.permute.xlu0 %2405
        %2407 = vrot.lane.b32.xlu0 %v2381, 1
        %v2408 = vpop.permute.xlu0 %2407
        %2409 = vrot.lane.b32.xlu0 %v2382, 1
        %v2410 = vpop.permute.xlu0 %2409
        %2411 = vrot.lane.b32.xlu0 %v2383, 1
        %v2412 = vpop.permute.xlu0 %2411
        %2413 = vrot.lane.b32.xlu0 %v2384, 1
        %v2414 = vpop.permute.xlu0 %2413
        %2415 = vrot.lane.b32.xlu0 %v2385, 1
        %v2416 = vpop.permute.xlu0 %2415
        %2417 = vrot.lane.b32.xlu0 %v2386, 1
        %v2418 = vpop.permute.xlu0 %2417
        %2419 = vrot.lane.b32.xlu0 %v2387, 1
        %v2420 = vpop.permute.xlu0 %2419
        %2421 = vrot.lane.b32.xlu0 %v2388, 1
        %v2422 = vpop.permute.xlu0 %2421
        %v2423 = vsel %vm2262, %v2390, %v2392
        %v2424 = vsel %vm2262, %v2392, %v2394
        %v2425 = vsel %vm2262, %v2394, %v2396
        %v2426 = vsel %vm2262, %v2396, %v2398
        %v2427 = vsel %vm2262, %v2398, %v2400
        %v2428 = vsel %vm2262, %v2400, %v2402
        %v2429 = vsel %vm2262, %v2402, %v2404
        %v2430 = vsel %vm2262, %v2404, %v2406
        %v2431 = vsel %vm2262, %v2406, %v2408
        %v2432 = vsel %vm2262, %v2408, %v2410
        %v2433 = vsel %vm2262, %v2410, %v2412
        %v2434 = vsel %vm2262, %v2412, %v2414
        %v2435 = vsel %vm2262, %v2414, %v2416
        %v2436 = vsel %vm2262, %v2416, %v2418
        %v2437 = vsel %vm2262, %v2418, %v2420
        %v2438 = vsel %vm2262, %v2420, %v2422
        %v2457 = vmul.f32 %v2348, %v2390
        %v2458 = vmul.f32 %v2349, %v2423
        %v2459 = vmul.f32 %v2350, %v2424
        %v2460 = vmul.f32 %v2351, %v2425
        %v2461 = vmul.f32 %v2352, %v2426
        %v2462 = vmul.f32 %v2353, %v2427
        %v2463 = vmul.f32 %v2354, %v2428
        %v2464 = vmul.f32 %v2355, %v2429
        %v2465 = vmul.f32 %v2356, %v2430
        %v2466 = vmul.f32 %v2357, %v2431
        %v2467 = vmul.f32 %v2358, %v2432
        %v2468 = vmul.f32 %v2359, %v2433
        %v2469 = vmul.f32 %v2360, %v2434
        %v2470 = vmul.f32 %v2361, %v2435
        %v2471 = vmul.f32 %v2362, %v2436
        %v2472 = vmul.f32 %v2363, %v2437
        %v2473 = vmul.f32 %v2364, %v2438
        %v2474 = vmul.f32 %v2365, %v2422
        %2493 = vrot.lane.b32.xlu0 %v2457, 127
        %v2494 = vpop.permute.xlu0 %2493
        %2495 = vrot.lane.b32.xlu0 %v2458, 127
        %v2496 = vpop.permute.xlu0 %2495
        %2497 = vrot.lane.b32.xlu0 %v2459, 127
        %v2498 = vpop.permute.xlu0 %2497
        %2499 = vrot.lane.b32.xlu0 %v2460, 127
        %v2500 = vpop.permute.xlu0 %2499
        %2501 = vrot.lane.b32.xlu0 %v2461, 127
        %v2502 = vpop.permute.xlu0 %2501
        %2503 = vrot.lane.b32.xlu0 %v2462, 127
        %v2504 = vpop.permute.xlu0 %2503
        %2505 = vrot.lane.b32.xlu0 %v2463, 127
        %v2506 = vpop.permute.xlu0 %2505
        %2507 = vrot.lane.b32.xlu0 %v2464, 127
        %v2508 = vpop.permute.xlu0 %2507
        %2509 = vrot.lane.b32.xlu0 %v2465, 127
        %v2510 = vpop.permute.xlu0 %2509
        %2511 = vrot.lane.b32.xlu0 %v2466, 127
        %v2512 = vpop.permute.xlu0 %2511
        %2513 = vrot.lane.b32.xlu0 %v2467, 127
        %v2514 = vpop.permute.xlu0 %2513
        %2515 = vrot.lane.b32.xlu0 %v2468, 127
        %v2516 = vpop.permute.xlu0 %2515
        %2517 = vrot.lane.b32.xlu0 %v2469, 127
        %v2518 = vpop.permute.xlu0 %2517
        %2519 = vrot.lane.b32.xlu0 %v2470, 127
        %v2520 = vpop.permute.xlu0 %2519
        %2521 = vrot.lane.b32.xlu0 %v2471, 127
        %v2522 = vpop.permute.xlu0 %2521
        %2523 = vrot.lane.b32.xlu0 %v2472, 127
        %v2524 = vpop.permute.xlu0 %2523
        %2525 = vrot.lane.b32.xlu0 %v2473, 127
        %v2526 = vpop.permute.xlu0 %2525
        %2527 = vrot.lane.b32.xlu0 %v2474, 127
        %v2528 = vpop.permute.xlu0 %2527
        %v2529 = vsel %vm2155, %v2494, %v2496
        %v2530 = vsel %vm2155, %v2496, %v2498
        %v2531 = vsel %vm2155, %v2498, %v2500
        %v2532 = vsel %vm2155, %v2500, %v2502
        %v2533 = vsel %vm2155, %v2502, %v2504
        %v2534 = vsel %vm2155, %v2504, %v2506
        %v2535 = vsel %vm2155, %v2506, %v2508
        %v2536 = vsel %vm2155, %v2508, %v2510
        %v2537 = vsel %vm2155, %v2510, %v2512
        %v2538 = vsel %vm2155, %v2512, %v2514
        %v2539 = vsel %vm2155, %v2514, %v2516
        %v2540 = vsel %vm2155, %v2516, %v2518
        %v2541 = vsel %vm2155, %v2518, %v2520
        %v2542 = vsel %vm2155, %v2520, %v2522
        %v2543 = vsel %vm2155, %v2522, %v2524
        %v2544 = vsel %vm2155, %v2524, %v2526
        %v2545 = vsel %vm2155, %v2526, %v2528
        %2563 = vst [vmem:[#allocation2 + $0x2a8] sm:$0xff] %v2529
        %2564 = vst [vmem:[#allocation2 + $0x2b0] sm:$0xff] %v2530
        %2565 = vst [vmem:[#allocation2 + $0x2b8] sm:$0xff] %v2531
        %2566 = vst [vmem:[#allocation2 + $0x2c0] sm:$0xff] %v2532
        %2567 = vst [vmem:[#allocation2 + $0x2c8] sm:$0xff] %v2533
        %2568 = vst [vmem:[#allocation2 + $0x2d0] sm:$0xff] %v2534
        %2569 = vst [vmem:[#allocation2 + $0x2d8] sm:$0xff] %v2535
        %2570 = vst [vmem:[#allocation2 + $0x2e0] sm:$0xff] %v2536
        %2571 = vst [vmem:[#allocation2 + $0x2e8] sm:$0xff] %v2537
        %2572 = vst [vmem:[#allocation2 + $0x2f0] sm:$0xff] %v2538
        %2573 = vst [vmem:[#allocation2 + $0x2f8] sm:$0xff] %v2539
        %2574 = vst [vmem:[#allocation2 + $0x300] sm:$0xff] %v2540
        %2575 = vst [vmem:[#allocation2 + $0x308] sm:$0xff] %v2541
        %2576 = vst [vmem:[#allocation2 + $0x310] sm:$0xff] %v2542
        %2577 = vst [vmem:[#allocation2 + $0x318] sm:$0xff] %v2543
        %2578 = vst [vmem:[#allocation2 + $0x320] sm:$0xff] %v2544
        %2579 = vst [vmem:[#allocation2 + $0x328] sm:$0xff] %v2545
        %v2580 = vld [vmem:[%s1489 + $0x8] sm:$0xff]
        %v2581 = vld [vmem:[%s1489 + $0x10] sm:$0xff]
        %v2582 = vld [vmem:[%s1489 + $0x18] sm:$0xff]
        %v2583 = vld [vmem:[%s1489 + $0x20] sm:$0xff]
        %v2584 = vld [vmem:[%s1489 + $0x28] sm:$0xff]
        %v2585 = vld [vmem:[%s1489 + $0x30] sm:$0xff]
        %v2586 = vld [vmem:[%s1489 + $0x38] sm:$0xff]
        %v2587 = vld [vmem:[%s1489 + $0x40] sm:$0xff]
        %v2588 = vld [vmem:[%s1489 + $0x48] sm:$0xff]
        %v2589 = vld [vmem:[%s1489 + $0x50] sm:$0xff]
        %v2590 = vld [vmem:[%s1489 + $0x58] sm:$0xff]
        %v2591 = vld [vmem:[%s1489 + $0x60] sm:$0xff]
        %v2592 = vld [vmem:[%s1489 + $0x68] sm:$0xff]
        %v2593 = vld [vmem:[%s1489 + $0x70] sm:$0xff]
        %v2594 = vld [vmem:[%s1489 + $0x78] sm:$0xff]
        %v2595 = vld [vmem:[%s1489 + $0x80] sm:$0xff]
        %v2596 = vld [vmem:[%s1489 + $0x88] sm:$0xff]
        %v2597 = vld [vmem:[%s1489 + $0x90] sm:$0xff]
        %v2598 = vld [vmem:[%s9] sm:$0xff]
        %v2599 = vld [vmem:[%s9 + $0x8] sm:$0xff]
        %v2600 = vld [vmem:[%s9 + $0x10] sm:$0x1]
        %v2604 = vperm.slane %v2598, 0
        %v2605 = vperm.slane %v2598, 1
        %v2606 = vperm.slane %v2598, 2
        %v2607 = vperm.slane %v2598, 3
        %v2608 = vperm.slane %v2598, 4
        %v2609 = vperm.slane %v2598, 5
        %v2610 = vperm.slane %v2598, 6
        %v2611 = vperm.slane %v2598, 7
        %v2612 = vperm.slane %v2599, 0
        %v2613 = vperm.slane %v2599, 1
        %v2614 = vperm.slane %v2599, 2
        %v2615 = vperm.slane %v2599, 3
        %v2616 = vperm.slane %v2599, 4
        %v2617 = vperm.slane %v2599, 5
        %v2618 = vperm.slane %v2599, 6
        %v2619 = vperm.slane %v2599, 7
        %v2620 = vperm.slane %v2600, 0
        %2621 = vrot.lane.b32.xlu0 %v2604, 63
        %v2622 = vpop.permute.xlu0 %2621
        %2623 = vrot.lane.b32.xlu0 %v2605, 63
        %v2624 = vpop.permute.xlu0 %2623
        %2625 = vrot.lane.b32.xlu0 %v2606, 63
        %v2626 = vpop.permute.xlu0 %2625
        %2627 = vrot.lane.b32.xlu0 %v2607, 63
        %v2628 = vpop.permute.xlu0 %2627
        %2629 = vrot.lane.b32.xlu0 %v2608, 63
        %v2630 = vpop.permute.xlu0 %2629
        %2631 = vrot.lane.b32.xlu0 %v2609, 63
        %v2632 = vpop.permute.xlu0 %2631
        %2633 = vrot.lane.b32.xlu0 %v2610, 63
        %v2634 = vpop.permute.xlu0 %2633
        %2635 = vrot.lane.b32.xlu0 %v2611, 63
        %v2636 = vpop.permute.xlu0 %2635
        %2637 = vrot.lane.b32.xlu0 %v2612, 63
        %v2638 = vpop.permute.xlu0 %2637
        %2639 = vrot.lane.b32.xlu0 %v2613, 63
        %v2640 = vpop.permute.xlu0 %2639
        %2641 = vrot.lane.b32.xlu0 %v2614, 63
        %v2642 = vpop.permute.xlu0 %2641
        %2643 = vrot.lane.b32.xlu0 %v2615, 63
        %v2644 = vpop.permute.xlu0 %2643
        %2645 = vrot.lane.b32.xlu0 %v2616, 63
        %v2646 = vpop.permute.xlu0 %2645
        %2647 = vrot.lane.b32.xlu0 %v2617, 63
        %v2648 = vpop.permute.xlu0 %2647
        %2649 = vrot.lane.b32.xlu0 %v2618, 63
        %v2650 = vpop.permute.xlu0 %2649
        %2651 = vrot.lane.b32.xlu0 %v2619, 63
        %v2652 = vpop.permute.xlu0 %2651
        %2653 = vrot.lane.b32.xlu0 %v2620, 63
        %v2654 = vpop.permute.xlu0 %2653
        %v2655 = vsel %vm1565, %v2622, %v2624
        %v2656 = vsel %vm1565, %v2624, %v2626
        %v2657 = vsel %vm1565, %v2626, %v2628
        %v2658 = vsel %vm1565, %v2628, %v2630
        %v2659 = vsel %vm1565, %v2630, %v2632
        %v2660 = vsel %vm1565, %v2632, %v2634
        %v2661 = vsel %vm1565, %v2634, %v2636
        %v2662 = vsel %vm1565, %v2636, %v2638
        %v2663 = vsel %vm1565, %v2638, %v2640
        %v2664 = vsel %vm1565, %v2640, %v2642
        %v2665 = vsel %vm1565, %v2642, %v2644
        %v2666 = vsel %vm1565, %v2644, %v2646
        %v2667 = vsel %vm1565, %v2646, %v2648
        %v2668 = vsel %vm1565, %v2648, %v2650
        %v2669 = vsel %vm1565, %v2650, %v2652
        %v2670 = vsel %vm1565, %v2652, %v2654
        %v2689 = vmul.f32 %v2580, %v2622
        %v2690 = vmul.f32 %v2581, %v2655
        %v2691 = vmul.f32 %v2582, %v2656
        %v2692 = vmul.f32 %v2583, %v2657
        %v2693 = vmul.f32 %v2584, %v2658
        %v2694 = vmul.f32 %v2585, %v2659
        %v2695 = vmul.f32 %v2586, %v2660
        %v2696 = vmul.f32 %v2587, %v2661
        %v2697 = vmul.f32 %v2588, %v2662
        %v2698 = vmul.f32 %v2589, %v2663
        %v2699 = vmul.f32 %v2590, %v2664
        %v2700 = vmul.f32 %v2591, %v2665
        %v2701 = vmul.f32 %v2592, %v2666
        %v2702 = vmul.f32 %v2593, %v2667
        %v2703 = vmul.f32 %v2594, %v2668
        %v2704 = vmul.f32 %v2595, %v2669
        %v2705 = vmul.f32 %v2596, %v2670
        %v2706 = vmul.f32 %v2597, %v2654
        %2725 = vrot.lane.b32.xlu0 %v2689, 65
        %v2726 = vpop.permute.xlu0 %2725
        %2727 = vrot.lane.b32.xlu0 %v2690, 65
        %v2728 = vpop.permute.xlu0 %2727
        %2729 = vrot.lane.b32.xlu0 %v2691, 65
        %v2730 = vpop.permute.xlu0 %2729
        %2731 = vrot.lane.b32.xlu0 %v2692, 65
        %v2732 = vpop.permute.xlu0 %2731
        %2733 = vrot.lane.b32.xlu0 %v2693, 65
        %v2734 = vpop.permute.xlu0 %2733
        %2735 = vrot.lane.b32.xlu0 %v2694, 65
        %v2736 = vpop.permute.xlu0 %2735
        %2737 = vrot.lane.b32.xlu0 %v2695, 65
        %v2738 = vpop.permute.xlu0 %2737
        %2739 = vrot.lane.b32.xlu0 %v2696, 65
        %v2740 = vpop.permute.xlu0 %2739
        %2741 = vrot.lane.b32.xlu0 %v2697, 65
        %v2742 = vpop.permute.xlu0 %2741
        %2743 = vrot.lane.b32.xlu0 %v2698, 65
        %v2744 = vpop.permute.xlu0 %2743
        %2745 = vrot.lane.b32.xlu0 %v2699, 65
        %v2746 = vpop.permute.xlu0 %2745
        %2747 = vrot.lane.b32.xlu0 %v2700, 65
        %v2748 = vpop.permute.xlu0 %2747
        %2749 = vrot.lane.b32.xlu0 %v2701, 65
        %v2750 = vpop.permute.xlu0 %2749
        %2751 = vrot.lane.b32.xlu0 %v2702, 65
        %v2752 = vpop.permute.xlu0 %2751
        %2753 = vrot.lane.b32.xlu0 %v2703, 65
        %v2754 = vpop.permute.xlu0 %2753
        %2755 = vrot.lane.b32.xlu0 %v2704, 65
        %v2756 = vpop.permute.xlu0 %2755
        %2757 = vrot.lane.b32.xlu0 %v2705, 65
        %v2758 = vpop.permute.xlu0 %2757
        %2759 = vrot.lane.b32.xlu0 %v2706, 65
        %v2760 = vpop.permute.xlu0 %2759
        %v2761 = vsel %vm1672, %v2726, %v2728
        %v2762 = vsel %vm1672, %v2728, %v2730
        %v2763 = vsel %vm1672, %v2730, %v2732
        %v2764 = vsel %vm1672, %v2732, %v2734
        %v2765 = vsel %vm1672, %v2734, %v2736
        %v2766 = vsel %vm1672, %v2736, %v2738
        %v2767 = vsel %vm1672, %v2738, %v2740
        %v2768 = vsel %vm1672, %v2740, %v2742
        %v2769 = vsel %vm1672, %v2742, %v2744
        %v2770 = vsel %vm1672, %v2744, %v2746
        %v2771 = vsel %vm1672, %v2746, %v2748
        %v2772 = vsel %vm1672, %v2748, %v2750
        %v2773 = vsel %vm1672, %v2750, %v2752
        %v2774 = vsel %vm1672, %v2752, %v2754
        %v2775 = vsel %vm1672, %v2754, %v2756
        %v2776 = vsel %vm1672, %v2756, %v2758
        %v2777 = vsel %vm1672, %v2758, %v2760
        %2795 = vst [vmem:[#allocation2 + $0x330] sm:$0xff] %v2761
        %2796 = vst [vmem:[#allocation2 + $0x338] sm:$0xff] %v2762
        %2797 = vst [vmem:[#allocation2 + $0x340] sm:$0xff] %v2763
        %2798 = vst [vmem:[#allocation2 + $0x348] sm:$0xff] %v2764
        %2799 = vst [vmem:[#allocation2 + $0x350] sm:$0xff] %v2765
        %2800 = vst [vmem:[#allocation2 + $0x358] sm:$0xff] %v2766
        %2801 = vst [vmem:[#allocation2 + $0x360] sm:$0xff] %v2767
        %2802 = vst [vmem:[#allocation2 + $0x368] sm:$0xff] %v2768
        %2803 = vst [vmem:[#allocation2 + $0x370] sm:$0xff] %v2769
        %2804 = vst [vmem:[#allocation2 + $0x378] sm:$0xff] %v2770
        %2805 = vst [vmem:[#allocation2 + $0x380] sm:$0xff] %v2771
        %2806 = vst [vmem:[#allocation2 + $0x388] sm:$0xff] %v2772
        %2807 = vst [vmem:[#allocation2 + $0x390] sm:$0xff] %v2773
        %2808 = vst [vmem:[#allocation2 + $0x398] sm:$0xff] %v2774
        %2809 = vst [vmem:[#allocation2 + $0x3a0] sm:$0xff] %v2775
        %2810 = vst [vmem:[#allocation2 + $0x3a8] sm:$0xff] %v2776
        %2811 = vst [vmem:[#allocation2 + $0x3b0] sm:$0xff] %v2777
        %v2812 = vld [vmem:[%s1489 + $0x8] sm:$0xff]
        %v2813 = vld [vmem:[%s1489 + $0x10] sm:$0xff]
        %v2814 = vld [vmem:[%s1489 + $0x18] sm:$0xff]
        %v2815 = vld [vmem:[%s1489 + $0x20] sm:$0xff]
        %v2816 = vld [vmem:[%s1489 + $0x28] sm:$0xff]
        %v2817 = vld [vmem:[%s1489 + $0x30] sm:$0xff]
        %v2818 = vld [vmem:[%s1489 + $0x38] sm:$0xff]
        %v2819 = vld [vmem:[%s1489 + $0x40] sm:$0xff]
        %v2820 = vld [vmem:[%s1489 + $0x48] sm:$0xff]
        %v2821 = vld [vmem:[%s1489 + $0x50] sm:$0xff]
        %v2822 = vld [vmem:[%s1489 + $0x58] sm:$0xff]
        %v2823 = vld [vmem:[%s1489 + $0x60] sm:$0xff]
        %v2824 = vld [vmem:[%s1489 + $0x68] sm:$0xff]
        %v2825 = vld [vmem:[%s1489 + $0x70] sm:$0xff]
        %v2826 = vld [vmem:[%s1489 + $0x78] sm:$0xff]
        %v2827 = vld [vmem:[%s1489 + $0x80] sm:$0xff]
        %v2828 = vld [vmem:[%s1489 + $0x88] sm:$0xff]
        %v2829 = vld [vmem:[%s1489 + $0x90] sm:$0xff]
        %2848 = vrot.lane.b32.xlu0 %v2812, 64
        %v2849 = vpop.permute.xlu0 %2848
        %2850 = vrot.lane.b32.xlu0 %v2813, 64
        %v2851 = vpop.permute.xlu0 %2850
        %2852 = vrot.lane.b32.xlu0 %v2814, 64
        %v2853 = vpop.permute.xlu0 %2852
        %2854 = vrot.lane.b32.xlu0 %v2815, 64
        %v2855 = vpop.permute.xlu0 %2854
        %2856 = vrot.lane.b32.xlu0 %v2816, 64
        %v2857 = vpop.permute.xlu0 %2856
        %2858 = vrot.lane.b32.xlu0 %v2817, 64
        %v2859 = vpop.permute.xlu0 %2858
        %2860 = vrot.lane.b32.xlu0 %v2818, 64
        %v2861 = vpop.permute.xlu0 %2860
        %2862 = vrot.lane.b32.xlu0 %v2819, 64
        %v2863 = vpop.permute.xlu0 %2862
        %2864 = vrot.lane.b32.xlu0 %v2820, 64
        %v2865 = vpop.permute.xlu0 %2864
        %2866 = vrot.lane.b32.xlu0 %v2821, 64
        %v2867 = vpop.permute.xlu0 %2866
        %2868 = vrot.lane.b32.xlu0 %v2822, 64
        %v2869 = vpop.permute.xlu0 %2868
        %2870 = vrot.lane.b32.xlu0 %v2823, 64
        %v2871 = vpop.permute.xlu0 %2870
        %2872 = vrot.lane.b32.xlu0 %v2824, 64
        %v2873 = vpop.permute.xlu0 %2872
        %2874 = vrot.lane.b32.xlu0 %v2825, 64
        %v2875 = vpop.permute.xlu0 %2874
        %2876 = vrot.lane.b32.xlu0 %v2826, 64
        %v2877 = vpop.permute.xlu0 %2876
        %2878 = vrot.lane.b32.xlu0 %v2827, 64
        %v2879 = vpop.permute.xlu0 %2878
        %2880 = vrot.lane.b32.xlu0 %v2828, 64
        %v2881 = vpop.permute.xlu0 %2880
        %2882 = vrot.lane.b32.xlu0 %v2829, 64
        %v2883 = vpop.permute.xlu0 %2882
        %v2884 = vsel %vm1796, %v2849, %v2851
        %v2885 = vsel %vm1796, %v2851, %v2853
        %v2886 = vsel %vm1796, %v2853, %v2855
        %v2887 = vsel %vm1796, %v2855, %v2857
        %v2888 = vsel %vm1796, %v2857, %v2859
        %v2889 = vsel %vm1796, %v2859, %v2861
        %v2890 = vsel %vm1796, %v2861, %v2863
        %v2891 = vsel %vm1796, %v2863, %v2865
        %v2892 = vsel %vm1796, %v2865, %v2867
        %v2893 = vsel %vm1796, %v2867, %v2869
        %v2894 = vsel %vm1796, %v2869, %v2871
        %v2895 = vsel %vm1796, %v2871, %v2873
        %v2896 = vsel %vm1796, %v2873, %v2875
        %v2897 = vsel %vm1796, %v2875, %v2877
        %v2898 = vsel %vm1796, %v2877, %v2879
        %v2899 = vsel %vm1796, %v2879, %v2881
        %v2900 = vsel %vm1796, %v2881, %v2883
        %2918 = vst [vmem:[#allocation2 + $0x3b8] sm:$0xff] %v2884
        %2919 = vst [vmem:[#allocation2 + $0x3c0] sm:$0xff] %v2885
        %2920 = vst [vmem:[#allocation2 + $0x3c8] sm:$0xff] %v2886
        %2921 = vst [vmem:[#allocation2 + $0x3d0] sm:$0xff] %v2887
        %2922 = vst [vmem:[#allocation2 + $0x3d8] sm:$0xff] %v2888
        %2923 = vst [vmem:[#allocation2 + $0x3e0] sm:$0xff] %v2889
        %2924 = vst [vmem:[#allocation2 + $0x3e8] sm:$0xff] %v2890
        %2925 = vst [vmem:[#allocation2 + $0x3f0] sm:$0xff] %v2891
        %2926 = vst [vmem:[#allocation2 + $0x3f8] sm:$0xff] %v2892
        %2927 = vst [vmem:[#allocation2 + $0x400] sm:$0xff] %v2893
        %2928 = vst [vmem:[#allocation2 + $0x408] sm:$0xff] %v2894
        %2929 = vst [vmem:[#allocation2 + $0x410] sm:$0xff] %v2895
        %2930 = vst [vmem:[#allocation2 + $0x418] sm:$0xff] %v2896
        %2931 = vst [vmem:[#allocation2 + $0x420] sm:$0xff] %v2897
        %2932 = vst [vmem:[#allocation2 + $0x428] sm:$0xff] %v2898
        %2933 = vst [vmem:[#allocation2 + $0x430] sm:$0xff] %v2899
        %2934 = vst [vmem:[#allocation2 + $0x438] sm:$0xff] %v2900
        %v2935 = vld [vmem:[%s1489 + $0x8] sm:$0xff]
        %v2936 = vld [vmem:[%s1489 + $0x10] sm:$0xff]
        %v2937 = vld [vmem:[%s1489 + $0x18] sm:$0xff]
        %v2938 = vld [vmem:[%s1489 + $0x20] sm:$0xff]
        %v2939 = vld [vmem:[%s1489 + $0x28] sm:$0xff]
        %v2940 = vld [vmem:[%s1489 + $0x30] sm:$0xff]
        %v2941 = vld [vmem:[%s1489 + $0x38] sm:$0xff]
        %v2942 = vld [vmem:[%s1489 + $0x40] sm:$0xff]
        %v2943 = vld [vmem:[%s1489 + $0x48] sm:$0xff]
        %v2944 = vld [vmem:[%s1489 + $0x50] sm:$0xff]
        %v2945 = vld [vmem:[%s1489 + $0x58] sm:$0xff]
        %v2946 = vld [vmem:[%s1489 + $0x60] sm:$0xff]
        %v2947 = vld [vmem:[%s1489 + $0x68] sm:$0xff]
        %v2948 = vld [vmem:[%s1489 + $0x70] sm:$0xff]
        %v2949 = vld [vmem:[%s1489 + $0x78] sm:$0xff]
        %v2950 = vld [vmem:[%s1489 + $0x80] sm:$0xff]
        %v2951 = vld [vmem:[%s1489 + $0x88] sm:$0xff]
        %v2952 = vld [vmem:[%s1489 + $0x90] sm:$0xff]
        %v2953 = vld [vmem:[#allocation12] sm:$0xff]
        %v2954 = vld [vmem:[#allocation12 + $0x8] sm:$0xff]
        %v2955 = vld [vmem:[#allocation12 + $0x10] sm:$0x1]
        %v2959 = vperm.slane %v2953, 0
        %v2960 = vperm.slane %v2953, 1
        %v2961 = vperm.slane %v2953, 2
        %v2962 = vperm.slane %v2953, 3
        %v2963 = vperm.slane %v2953, 4
        %v2964 = vperm.slane %v2953, 5
        %v2965 = vperm.slane %v2953, 6
        %v2966 = vperm.slane %v2953, 7
        %v2967 = vperm.slane %v2954, 0
        %v2968 = vperm.slane %v2954, 1
        %v2969 = vperm.slane %v2954, 2
        %v2970 = vperm.slane %v2954, 3
        %v2971 = vperm.slane %v2954, 4
        %v2972 = vperm.slane %v2954, 5
        %v2973 = vperm.slane %v2954, 6
        %v2974 = vperm.slane %v2954, 7
        %v2975 = vperm.slane %v2955, 0
        %2976 = vrot.lane.b32.xlu0 %v2959, 65
        %v2977 = vpop.permute.xlu0 %2976
        %2978 = vrot.lane.b32.xlu0 %v2960, 65
        %v2979 = vpop.permute.xlu0 %2978
        %2980 = vrot.lane.b32.xlu0 %v2961, 65
        %v2981 = vpop.permute.xlu0 %2980
        %2982 = vrot.lane.b32.xlu0 %v2962, 65
        %v2983 = vpop.permute.xlu0 %2982
        %2984 = vrot.lane.b32.xlu0 %v2963, 65
        %v2985 = vpop.permute.xlu0 %2984
        %2986 = vrot.lane.b32.xlu0 %v2964, 65
        %v2987 = vpop.permute.xlu0 %2986
        %2988 = vrot.lane.b32.xlu0 %v2965, 65
        %v2989 = vpop.permute.xlu0 %2988
        %2990 = vrot.lane.b32.xlu0 %v2966, 65
        %v2991 = vpop.permute.xlu0 %2990
        %2992 = vrot.lane.b32.xlu0 %v2967, 65
        %v2993 = vpop.permute.xlu0 %2992
        %2994 = vrot.lane.b32.xlu0 %v2968, 65
        %v2995 = vpop.permute.xlu0 %2994
        %2996 = vrot.lane.b32.xlu0 %v2969, 65
        %v2997 = vpop.permute.xlu0 %2996
        %2998 = vrot.lane.b32.xlu0 %v2970, 65
        %v2999 = vpop.permute.xlu0 %2998
        %3000 = vrot.lane.b32.xlu0 %v2971, 65
        %v3001 = vpop.permute.xlu0 %3000
        %3002 = vrot.lane.b32.xlu0 %v2972, 65
        %v3003 = vpop.permute.xlu0 %3002
        %3004 = vrot.lane.b32.xlu0 %v2973, 65
        %v3005 = vpop.permute.xlu0 %3004
        %3006 = vrot.lane.b32.xlu0 %v2974, 65
        %v3007 = vpop.permute.xlu0 %3006
        %3008 = vrot.lane.b32.xlu0 %v2975, 65
        %v3009 = vpop.permute.xlu0 %3008
        %v3010 = vsel %vm1672, %v2977, %v2979
        %v3011 = vsel %vm1672, %v2979, %v2981
        %v3012 = vsel %vm1672, %v2981, %v2983
        %v3013 = vsel %vm1672, %v2983, %v2985
        %v3014 = vsel %vm1672, %v2985, %v2987
        %v3015 = vsel %vm1672, %v2987, %v2989
        %v3016 = vsel %vm1672, %v2989, %v2991
        %v3017 = vsel %vm1672, %v2991, %v2993
        %v3018 = vsel %vm1672, %v2993, %v2995
        %v3019 = vsel %vm1672, %v2995, %v2997
        %v3020 = vsel %vm1672, %v2997, %v2999
        %v3021 = vsel %vm1672, %v2999, %v3001
        %v3022 = vsel %vm1672, %v3001, %v3003
        %v3023 = vsel %vm1672, %v3003, %v3005
        %v3024 = vsel %vm1672, %v3005, %v3007
        %v3025 = vsel %vm1672, %v3007, %v3009
        %v3044 = vmul.f32 %v2935, %v2977
        %v3045 = vmul.f32 %v2936, %v3010
        %v3046 = vmul.f32 %v2937, %v3011
        %v3047 = vmul.f32 %v2938, %v3012
        %v3048 = vmul.f32 %v2939, %v3013
        %v3049 = vmul.f32 %v2940, %v3014
        %v3050 = vmul.f32 %v2941, %v3015
        %v3051 = vmul.f32 %v2942, %v3016
        %v3052 = vmul.f32 %v2943, %v3017
        %v3053 = vmul.f32 %v2944, %v3018
        %v3054 = vmul.f32 %v2945, %v3019
        %v3055 = vmul.f32 %v2946, %v3020
        %v3056 = vmul.f32 %v2947, %v3021
        %v3057 = vmul.f32 %v2948, %v3022
        %v3058 = vmul.f32 %v2949, %v3023
        %v3059 = vmul.f32 %v2950, %v3024
        %v3060 = vmul.f32 %v2951, %v3025
        %v3061 = vmul.f32 %v2952, %v3009
        %3080 = vrot.lane.b32.xlu0 %v3044, 63
        %v3081 = vpop.permute.xlu0 %3080
        %3082 = vrot.lane.b32.xlu0 %v3045, 63
        %v3083 = vpop.permute.xlu0 %3082
        %3084 = vrot.lane.b32.xlu0 %v3046, 63
        %v3085 = vpop.permute.xlu0 %3084
        %3086 = vrot.lane.b32.xlu0 %v3047, 63
        %v3087 = vpop.permute.xlu0 %3086
        %3088 = vrot.lane.b32.xlu0 %v3048, 63
        %v3089 = vpop.permute.xlu0 %3088
        %3090 = vrot.lane.b32.xlu0 %v3049, 63
        %v3091 = vpop.permute.xlu0 %3090
        %3092 = vrot.lane.b32.xlu0 %v3050, 63
        %v3093 = vpop.permute.xlu0 %3092
        %3094 = vrot.lane.b32.xlu0 %v3051, 63
        %v3095 = vpop.permute.xlu0 %3094
        %3096 = vrot.lane.b32.xlu0 %v3052, 63
        %v3097 = vpop.permute.xlu0 %3096
        %3098 = vrot.lane.b32.xlu0 %v3053, 63
        %v3099 = vpop.permute.xlu0 %3098
        %3100 = vrot.lane.b32.xlu0 %v3054, 63
        %v3101 = vpop.permute.xlu0 %3100
        %3102 = vrot.lane.b32.xlu0 %v3055, 63
        %v3103 = vpop.permute.xlu0 %3102
        %3104 = vrot.lane.b32.xlu0 %v3056, 63
        %v3105 = vpop.permute.xlu0 %3104
        %3106 = vrot.lane.b32.xlu0 %v3057, 63
        %v3107 = vpop.permute.xlu0 %3106
        %3108 = vrot.lane.b32.xlu0 %v3058, 63
        %v3109 = vpop.permute.xlu0 %3108
        %3110 = vrot.lane.b32.xlu0 %v3059, 63
        %v3111 = vpop.permute.xlu0 %3110
        %3112 = vrot.lane.b32.xlu0 %v3060, 63
        %v3113 = vpop.permute.xlu0 %3112
        %3114 = vrot.lane.b32.xlu0 %v3061, 63
        %v3115 = vpop.permute.xlu0 %3114
        %v3116 = vsel %vm1565, %v3081, %v3083
        %v3117 = vsel %vm1565, %v3083, %v3085
        %v3118 = vsel %vm1565, %v3085, %v3087
        %v3119 = vsel %vm1565, %v3087, %v3089
        %v3120 = vsel %vm1565, %v3089, %v3091
        %v3121 = vsel %vm1565, %v3091, %v3093
        %v3122 = vsel %vm1565, %v3093, %v3095
        %v3123 = vsel %vm1565, %v3095, %v3097
        %v3124 = vsel %vm1565, %v3097, %v3099
        %v3125 = vsel %vm1565, %v3099, %v3101
        %v3126 = vsel %vm1565, %v3101, %v3103
        %v3127 = vsel %vm1565, %v3103, %v3105
        %v3128 = vsel %vm1565, %v3105, %v3107
        %v3129 = vsel %vm1565, %v3107, %v3109
        %v3130 = vsel %vm1565, %v3109, %v3111
        %v3131 = vsel %vm1565, %v3111, %v3113
        %v3132 = vsel %vm1565, %v3113, %v3115
        %3150 = vst [vmem:[#allocation2 + $0x440] sm:$0xff] %v3116
        %3151 = vst [vmem:[#allocation2 + $0x448] sm:$0xff] %v3117
        %3152 = vst [vmem:[#allocation2 + $0x450] sm:$0xff] %v3118
        %3153 = vst [vmem:[#allocation2 + $0x458] sm:$0xff] %v3119
        %3154 = vst [vmem:[#allocation2 + $0x460] sm:$0xff] %v3120
        %3155 = vst [vmem:[#allocation2 + $0x468] sm:$0xff] %v3121
        %3156 = vst [vmem:[#allocation2 + $0x470] sm:$0xff] %v3122
        %3157 = vst [vmem:[#allocation2 + $0x478] sm:$0xff] %v3123
        %3158 = vst [vmem:[#allocation2 + $0x480] sm:$0xff] %v3124
        %3159 = vst [vmem:[#allocation2 + $0x488] sm:$0xff] %v3125
        %3160 = vst [vmem:[#allocation2 + $0x490] sm:$0xff] %v3126
        %3161 = vst [vmem:[#allocation2 + $0x498] sm:$0xff] %v3127
        %3162 = vst [vmem:[#allocation2 + $0x4a0] sm:$0xff] %v3128
        %3163 = vst [vmem:[#allocation2 + $0x4a8] sm:$0xff] %v3129
        %3164 = vst [vmem:[#allocation2 + $0x4b0] sm:$0xff] %v3130
        %3165 = vst [vmem:[#allocation2 + $0x4b8] sm:$0xff] %v3131
        %3166 = vst [vmem:[#allocation2 + $0x4c0] sm:$0xff] %v3132
        %v3167 = vld [vmem:[#allocation9] sm:$0xff]
        %v3168 = vld [vmem:[#allocation2] sm:$0xff]
        %v3169 = vld [vmem:[#allocation2 + $0x8] sm:$0xff]
        %v3170 = vld [vmem:[#allocation2 + $0x10] sm:$0xff]
        %v3171 = vld [vmem:[#allocation2 + $0x18] sm:$0xff]
        %v3172 = vld [vmem:[#allocation2 + $0x20] sm:$0xff]
        %v3173 = vld [vmem:[#allocation2 + $0x28] sm:$0xff]
        %v3174 = vld [vmem:[#allocation2 + $0x30] sm:$0xff]
        %v3175 = vld [vmem:[#allocation2 + $0x38] sm:$0xff]
        %v3176 = vld [vmem:[#allocation2 + $0x40] sm:$0xff]
        %v3177 = vld [vmem:[#allocation2 + $0x48] sm:$0xff]
        %v3178 = vld [vmem:[#allocation2 + $0x50] sm:$0xff]
        %v3179 = vld [vmem:[#allocation2 + $0x58] sm:$0xff]
        %v3180 = vld [vmem:[#allocation2 + $0x60] sm:$0xff]
        %v3181 = vld [vmem:[#allocation2 + $0x68] sm:$0xff]
        %v3182 = vld [vmem:[#allocation2 + $0x70] sm:$0xff]
        %v3183 = vld [vmem:[#allocation2 + $0x78] sm:$0xff]
        %v3184 = vld [vmem:[#allocation2 + $0x80] sm:$0xff]
        %v3185 = vld [vmem:[#allocation2 + $0x88] sm:$0xff]
        %v3186 = vld [vmem:[#allocation2 + $0x90] sm:$0xff]
        %v3187 = vld [vmem:[#allocation2 + $0x98] sm:$0xff]
        %v3188 = vld [vmem:[#allocation2 + $0xa0] sm:$0xff]
        %v3189 = vld [vmem:[#allocation2 + $0xa8] sm:$0xff]
        %v3190 = vld [vmem:[#allocation2 + $0xb0] sm:$0xff]
        %v3191 = vld [vmem:[#allocation2 + $0xb8] sm:$0xff]
        %v3192 = vld [vmem:[#allocation2 + $0xc0] sm:$0xff]
        %v3193 = vld [vmem:[#allocation2 + $0xc8] sm:$0xff]
        %v3194 = vld [vmem:[#allocation2 + $0xd0] sm:$0xff]
        %v3195 = vld [vmem:[#allocation2 + $0xd8] sm:$0xff]
        %v3196 = vld [vmem:[#allocation2 + $0xe0] sm:$0xff]
        %v3197 = vld [vmem:[#allocation2 + $0xe8] sm:$0xff]
        %v3198 = vld [vmem:[#allocation2 + $0xf0] sm:$0xff]
        %v3199 = vld [vmem:[#allocation2 + $0xf8] sm:$0xff]
        %v3200 = vld [vmem:[#allocation2 + $0x100] sm:$0xff]
        %v3201 = vld [vmem:[#allocation2 + $0x108] sm:$0xff]
        %v3202 = vld [vmem:[#allocation2 + $0x110] sm:$0xff]
        %v3203 = vld [vmem:[#allocation2 + $0x118] sm:$0xff]
        %v3204 = vld [vmem:[#allocation2 + $0x120] sm:$0xff]
        %v3205 = vld [vmem:[#allocation2 + $0x128] sm:$0xff]
        %v3206 = vld [vmem:[#allocation2 + $0x130] sm:$0xff]
        %v3207 = vld [vmem:[#allocation2 + $0x138] sm:$0xff]
        %v3208 = vld [vmem:[#allocation2 + $0x140] sm:$0xff]
        %v3209 = vld [vmem:[#allocation2 + $0x148] sm:$0xff]
        %v3210 = vld [vmem:[#allocation2 + $0x150] sm:$0xff]
        %v3211 = vld [vmem:[#allocation2 + $0x158] sm:$0xff]
        %v3212 = vld [vmem:[#allocation2 + $0x160] sm:$0xff]
        %v3213 = vld [vmem:[#allocation2 + $0x168] sm:$0xff]
        %v3214 = vld [vmem:[#allocation2 + $0x170] sm:$0xff]
        %v3215 = vld [vmem:[#allocation2 + $0x178] sm:$0xff]
        %v3216 = vld [vmem:[#allocation2 + $0x180] sm:$0xff]
        %v3217 = vld [vmem:[#allocation2 + $0x188] sm:$0xff]
        %v3218 = vld [vmem:[#allocation2 + $0x190] sm:$0xff]
        %v3219 = vld [vmem:[#allocation2 + $0x198] sm:$0xff]
        %v3220 = vld [vmem:[#allocation2 + $0x1a0] sm:$0xff]
        %v3221 = vld [vmem:[#allocation2 + $0x1a8] sm:$0xff]
        %v3222 = vld [vmem:[#allocation2 + $0x1b0] sm:$0xff]
        %v3223 = vld [vmem:[#allocation2 + $0x1b8] sm:$0xff]
        %v3224 = vld [vmem:[#allocation2 + $0x1c0] sm:$0xff]
        %v3225 = vld [vmem:[#allocation2 + $0x1c8] sm:$0xff]
        %v3226 = vld [vmem:[#allocation2 + $0x1d0] sm:$0xff]
        %v3227 = vld [vmem:[#allocation2 + $0x1d8] sm:$0xff]
        %v3228 = vld [vmem:[#allocation2 + $0x1e0] sm:$0xff]
        %v3229 = vld [vmem:[#allocation2 + $0x1e8] sm:$0xff]
        %v3230 = vld [vmem:[#allocation2 + $0x1f0] sm:$0xff]
        %v3231 = vld [vmem:[#allocation2 + $0x1f8] sm:$0xff]
        %v3232 = vld [vmem:[#allocation2 + $0x200] sm:$0xff]
        %v3233 = vld [vmem:[#allocation2 + $0x208] sm:$0xff]
        %v3234 = vld [vmem:[#allocation2 + $0x210] sm:$0xff]
        %v3235 = vld [vmem:[#allocation2 + $0x218] sm:$0xff]
        %v3236 = vld [vmem:[#allocation2 + $0x220] sm:$0xff]
        %v3237 = vld [vmem:[#allocation2 + $0x228] sm:$0xff]
        %v3238 = vld [vmem:[#allocation2 + $0x230] sm:$0xff]
        %v3239 = vld [vmem:[#allocation2 + $0x238] sm:$0xff]
        %v3240 = vld [vmem:[#allocation2 + $0x240] sm:$0xff]
        %v3241 = vld [vmem:[#allocation2 + $0x248] sm:$0xff]
        %v3242 = vld [vmem:[#allocation2 + $0x250] sm:$0xff]
        %v3243 = vld [vmem:[#allocation2 + $0x258] sm:$0xff]
        %v3244 = vld [vmem:[#allocation2 + $0x260] sm:$0xff]
        %v3245 = vld [vmem:[#allocation2 + $0x268] sm:$0xff]
        %v3246 = vld [vmem:[#allocation2 + $0x270] sm:$0xff]
        %v3247 = vld [vmem:[#allocation2 + $0x278] sm:$0xff]
        %v3248 = vld [vmem:[#allocation2 + $0x280] sm:$0xff]
        %v3249 = vld [vmem:[#allocation2 + $0x288] sm:$0xff]
        %v3250 = vld [vmem:[#allocation2 + $0x290] sm:$0xff]
        %v3251 = vld [vmem:[#allocation2 + $0x298] sm:$0xff]
        %v3252 = vld [vmem:[#allocation2 + $0x2a0] sm:$0xff]
        %v3253 = vld [vmem:[#allocation2 + $0x2a8] sm:$0xff]
        %v3254 = vld [vmem:[#allocation2 + $0x2b0] sm:$0xff]
        %v3255 = vld [vmem:[#allocation2 + $0x2b8] sm:$0xff]
        %v3256 = vld [vmem:[#allocation2 + $0x2c0] sm:$0xff]
        %v3257 = vld [vmem:[#allocation2 + $0x2c8] sm:$0xff]
        %v3258 = vld [vmem:[#allocation2 + $0x2d0] sm:$0xff]
        %v3259 = vld [vmem:[#allocation2 + $0x2d8] sm:$0xff]
        %v3260 = vld [vmem:[#allocation2 + $0x2e0] sm:$0xff]
        %v3261 = vld [vmem:[#allocation2 + $0x2e8] sm:$0xff]
        %v3262 = vld [vmem:[#allocation2 + $0x2f0] sm:$0xff]
        %v3263 = vld [vmem:[#allocation2 + $0x2f8] sm:$0xff]
        %v3264 = vld [vmem:[#allocation2 + $0x300] sm:$0xff]
        %v3265 = vld [vmem:[#allocation2 + $0x308] sm:$0xff]
        %v3266 = vld [vmem:[#allocation2 + $0x310] sm:$0xff]
        %v3267 = vld [vmem:[#allocation2 + $0x318] sm:$0xff]
        %v3268 = vld [vmem:[#allocation2 + $0x320] sm:$0xff]
        %v3269 = vld [vmem:[#allocation2 + $0x328] sm:$0xff]
        %v3270 = vld [vmem:[#allocation2 + $0x330] sm:$0xff]
        %v3271 = vld [vmem:[#allocation2 + $0x338] sm:$0xff]
        %v3272 = vld [vmem:[#allocation2 + $0x340] sm:$0xff]
        %v3273 = vld [vmem:[#allocation2 + $0x348] sm:$0xff]
        %v3274 = vld [vmem:[#allocation2 + $0x350] sm:$0xff]
        %v3275 = vld [vmem:[#allocation2 + $0x358] sm:$0xff]
        %v3276 = vld [vmem:[#allocation2 + $0x360] sm:$0xff]
        %v3277 = vld [vmem:[#allocation2 + $0x368] sm:$0xff]
        %v3278 = vld [vmem:[#allocation2 + $0x370] sm:$0xff]
        %v3279 = vld [vmem:[#allocation2 + $0x378] sm:$0xff]
        %v3280 = vld [vmem:[#allocation2 + $0x380] sm:$0xff]
        %v3281 = vld [vmem:[#allocation2 + $0x388] sm:$0xff]
        %v3282 = vld [vmem:[#allocation2 + $0x390] sm:$0xff]
        %v3283 = vld [vmem:[#allocation2 + $0x398] sm:$0xff]
        %v3284 = vld [vmem:[#allocation2 + $0x3a0] sm:$0xff]
        %v3285 = vld [vmem:[#allocation2 + $0x3a8] sm:$0xff]
        %v3286 = vld [vmem:[#allocation2 + $0x3b0] sm:$0xff]
        %v3287 = vld [vmem:[#allocation2 + $0x3b8] sm:$0xff]
        %v3288 = vld [vmem:[#allocation2 + $0x3c0] sm:$0xff]
        %v3289 = vld [vmem:[#allocation2 + $0x3c8] sm:$0xff]
        %v3290 = vld [vmem:[#allocation2 + $0x3d0] sm:$0xff]
        %v3291 = vld [vmem:[#allocation2 + $0x3d8] sm:$0xff]
        %v3292 = vld [vmem:[#allocation2 + $0x3e0] sm:$0xff]
        %v3293 = vld [vmem:[#allocation2 + $0x3e8] sm:$0xff]
        %v3294 = vld [vmem:[#allocation2 + $0x3f0] sm:$0xff]
        %v3295 = vld [vmem:[#allocation2 + $0x3f8] sm:$0xff]
        %v3296 = vld [vmem:[#allocation2 + $0x400] sm:$0xff]
        %v3297 = vld [vmem:[#allocation2 + $0x408] sm:$0xff]
        %v3298 = vld [vmem:[#allocation2 + $0x410] sm:$0xff]
        %v3299 = vld [vmem:[#allocation2 + $0x418] sm:$0xff]
        %v3300 = vld [vmem:[#allocation2 + $0x420] sm:$0xff]
        %v3301 = vld [vmem:[#allocation2 + $0x428] sm:$0xff]
        %v3302 = vld [vmem:[#allocation2 + $0x430] sm:$0xff]
        %v3303 = vld [vmem:[#allocation2 + $0x438] sm:$0xff]
        %v3304 = vld [vmem:[#allocation2 + $0x440] sm:$0xff]
        %v3305 = vld [vmem:[#allocation2 + $0x448] sm:$0xff]
        %v3306 = vld [vmem:[#allocation2 + $0x450] sm:$0xff]
        %v3307 = vld [vmem:[#allocation2 + $0x458] sm:$0xff]
        %v3308 = vld [vmem:[#allocation2 + $0x460] sm:$0xff]
        %v3309 = vld [vmem:[#allocation2 + $0x468] sm:$0xff]
        %v3310 = vld [vmem:[#allocation2 + $0x470] sm:$0xff]
        %v3311 = vld [vmem:[#allocation2 + $0x478] sm:$0xff]
        %v3312 = vld [vmem:[#allocation2 + $0x480] sm:$0xff]
        %v3313 = vld [vmem:[#allocation2 + $0x488] sm:$0xff]
        %v3314 = vld [vmem:[#allocation2 + $0x490] sm:$0xff]
        %v3315 = vld [vmem:[#allocation2 + $0x498] sm:$0xff]
        %v3316 = vld [vmem:[#allocation2 + $0x4a0] sm:$0xff]
        %v3317 = vld [vmem:[#allocation2 + $0x4a8] sm:$0xff]
        %v3318 = vld [vmem:[#allocation2 + $0x4b0] sm:$0xff]
        %v3319 = vld [vmem:[#allocation2 + $0x4b8] sm:$0xff]
        %v3320 = vld [vmem:[#allocation2 + $0x4c0] sm:$0xff]
        %v3321 = vld [vmem:[%s4] sm:$0xff]
        %3323 = vset.pattern.permute.xlu0 0
        %3324 = vperm.xlu0 %3323, %v3321
        %v3325 = vpop.permute.xlu0 %3324
        %vm3327 = vcmask 588800
        %v3329 = vsel %vm3327, %v3167, 0
        %3331 = vmatpush.msra.mxu0 0.0
        %3332 = vmatpush.msra.mxu0 0.0
        %3333 = vmatpush.msra.mxu0 0.0
        %3334 = vmatpush.msra.mxu0 0.0
        %3335 = vmatpush.msra.mxu0 0.0
        %3336 = vmatpush.msra.mxu0 0.0
        %3337 = vmatpush.msra.mxu0 0.0
        %3338 = vmatpush.msra.mxu0 %v3304
        %3339 = vmatpush.msra.mxu0 %v3287
        %3340 = vmatpush.msra.mxu0 %v3270
        %3341 = vmatpush.msra.mxu0 %v3253
        %3342 = vmatpush.msra.mxu0 %v3236
        %3343 = vmatpush.msra.mxu0 %v3219
        %3344 = vmatpush.msra.mxu0 %v3202
        %3345 = vmatpush.msra.mxu0 %v3185
        %3346 = vmatpush.msra.mxu0 %v3168
        %3347 = vmatmul.f32.gmra.mxu0 %v3329
        %v3348 = vpop.f32.mrf.mxu0
        %v3349 = vadd.f32 %v3325, %v3348
        %3350 = vdwg.mxu0
        %3351 = vmatpush.msra.mxu0 0.0
        %3352 = vmatpush.msra.mxu0 0.0
        %3353 = vmatpush.msra.mxu0 0.0
        %3354 = vmatpush.msra.mxu0 0.0
        %3355 = vmatpush.msra.mxu0 0.0
        %3356 = vmatpush.msra.mxu0 0.0
        %3357 = vmatpush.msra.mxu0 0.0
        %3358 = vmatpush.msra.mxu0 %v3305
        %3359 = vmatpush.msra.mxu0 %v3288
        %3360 = vmatpush.msra.mxu0 %v3271
        %3361 = vmatpush.msra.mxu0 %v3254
        %3362 = vmatpush.msra.mxu0 %v3237
        %3363 = vmatpush.msra.mxu0 %v3220
        %3364 = vmatpush.msra.mxu0 %v3203
        %3365 = vmatpush.msra.mxu0 %v3186
        %3366 = vmatpush.msra.mxu0 %v3169
        %3367 = vmatmul.f32.gmra.mxu0 %v3329
        %v3368 = vpop.f32.mrf.mxu0
        %v3369 = vadd.f32 %v3325, %v3368
        %3370 = vdwg.mxu0
        %3371 = vmatpush.msra.mxu0 0.0
        %3372 = vmatpush.msra.mxu0 0.0
        %3373 = vmatpush.msra.mxu0 0.0
        %3374 = vmatpush.msra.mxu0 0.0
        %3375 = vmatpush.msra.mxu0 0.0
        %3376 = vmatpush.msra.mxu0 0.0
        %3377 = vmatpush.msra.mxu0 0.0
        %3378 = vmatpush.msra.mxu0 %v3306
        %3379 = vmatpush.msra.mxu0 %v3289
        %3380 = vmatpush.msra.mxu0 %v3272
        %3381 = vmatpush.msra.mxu0 %v3255
        %3382 = vmatpush.msra.mxu0 %v3238
        %3383 = vmatpush.msra.mxu0 %v3221
        %3384 = vmatpush.msra.mxu0 %v3204
        %3385 = vmatpush.msra.mxu0 %v3187
        %3386 = vmatpush.msra.mxu0 %v3170
        %3387 = vmatmul.f32.gmra.mxu0 %v3329
        %v3388 = vpop.f32.mrf.mxu0
        %v3389 = vadd.f32 %v3325, %v3388
        %3390 = vdwg.mxu0
        %3391 = vmatpush.msra.mxu0 0.0
        %3392 = vmatpush.msra.mxu0 0.0
        %3393 = vmatpush.msra.mxu0 0.0
        %3394 = vmatpush.msra.mxu0 0.0
        %3395 = vmatpush.msra.mxu0 0.0
        %3396 = vmatpush.msra.mxu0 0.0
        %3397 = vmatpush.msra.mxu0 0.0
        %3398 = vmatpush.msra.mxu0 %v3307
        %3399 = vmatpush.msra.mxu0 %v3290
        %3400 = vmatpush.msra.mxu0 %v3273
        %3401 = vmatpush.msra.mxu0 %v3256
        %3402 = vmatpush.msra.mxu0 %v3239
        %3403 = vmatpush.msra.mxu0 %v3222
        %3404 = vmatpush.msra.mxu0 %v3205
        %3405 = vmatpush.msra.mxu0 %v3188
        %3406 = vmatpush.msra.mxu0 %v3171
        %3407 = vmatmul.f32.gmra.mxu0 %v3329
        %v3408 = vpop.f32.mrf.mxu0
        %v3409 = vadd.f32 %v3325, %v3408
        %3410 = vdwg.mxu0
        %3411 = vmatpush.msra.mxu0 0.0
        %3412 = vmatpush.msra.mxu0 0.0
        %3413 = vmatpush.msra.mxu0 0.0
        %3414 = vmatpush.msra.mxu0 0.0
        %3415 = vmatpush.msra.mxu0 0.0
        %3416 = vmatpush.msra.mxu0 0.0
        %3417 = vmatpush.msra.mxu0 0.0
        %3418 = vmatpush.msra.mxu0 %v3308
        %3419 = vmatpush.msra.mxu0 %v3291
        %3420 = vmatpush.msra.mxu0 %v3274
        %3421 = vmatpush.msra.mxu0 %v3257
        %3422 = vmatpush.msra.mxu0 %v3240
        %3423 = vmatpush.msra.mxu0 %v3223
        %3424 = vmatpush.msra.mxu0 %v3206
        %3425 = vmatpush.msra.mxu0 %v3189
        %3426 = vmatpush.msra.mxu0 %v3172
        %3427 = vmatmul.f32.gmra.mxu0 %v3329
        %v3428 = vpop.f32.mrf.mxu0
        %v3429 = vadd.f32 %v3325, %v3428
        %3430 = vdwg.mxu0
        %3431 = vmatpush.msra.mxu0 0.0
        %3432 = vmatpush.msra.mxu0 0.0
        %3433 = vmatpush.msra.mxu0 0.0
        %3434 = vmatpush.msra.mxu0 0.0
        %3435 = vmatpush.msra.mxu0 0.0
        %3436 = vmatpush.msra.mxu0 0.0
        %3437 = vmatpush.msra.mxu0 0.0
        %3438 = vmatpush.msra.mxu0 %v3309
        %3439 = vmatpush.msra.mxu0 %v3292
        %3440 = vmatpush.msra.mxu0 %v3275
        %3441 = vmatpush.msra.mxu0 %v3258
        %3442 = vmatpush.msra.mxu0 %v3241
        %3443 = vmatpush.msra.mxu0 %v3224
        %3444 = vmatpush.msra.mxu0 %v3207
        %3445 = vmatpush.msra.mxu0 %v3190
        %3446 = vmatpush.msra.mxu0 %v3173
        %3447 = vmatmul.f32.gmra.mxu0 %v3329
        %v3448 = vpop.f32.mrf.mxu0
        %v3449 = vadd.f32 %v3325, %v3448
        %3450 = vdwg.mxu0
        %3451 = vmatpush.msra.mxu0 0.0
        %3452 = vmatpush.msra.mxu0 0.0
        %3453 = vmatpush.msra.mxu0 0.0
        %3454 = vmatpush.msra.mxu0 0.0
        %3455 = vmatpush.msra.mxu0 0.0
        %3456 = vmatpush.msra.mxu0 0.0
        %3457 = vmatpush.msra.mxu0 0.0
        %3458 = vmatpush.msra.mxu0 %v3310
        %3459 = vmatpush.msra.mxu0 %v3293
        %3460 = vmatpush.msra.mxu0 %v3276
        %3461 = vmatpush.msra.mxu0 %v3259
        %3462 = vmatpush.msra.mxu0 %v3242
        %3463 = vmatpush.msra.mxu0 %v3225
        %3464 = vmatpush.msra.mxu0 %v3208
        %3465 = vmatpush.msra.mxu0 %v3191
        %3466 = vmatpush.msra.mxu0 %v3174
        %3467 = vmatmul.f32.gmra.mxu0 %v3329
        %v3468 = vpop.f32.mrf.mxu0
        %v3469 = vadd.f32 %v3325, %v3468
        %3470 = vdwg.mxu0
        %3471 = vmatpush.msra.mxu0 0.0
        %3472 = vmatpush.msra.mxu0 0.0
        %3473 = vmatpush.msra.mxu0 0.0
        %3474 = vmatpush.msra.mxu0 0.0
        %3475 = vmatpush.msra.mxu0 0.0
        %3476 = vmatpush.msra.mxu0 0.0
        %3477 = vmatpush.msra.mxu0 0.0
        %3478 = vmatpush.msra.mxu0 %v3311
        %3479 = vmatpush.msra.mxu0 %v3294
        %3480 = vmatpush.msra.mxu0 %v3277
        %3481 = vmatpush.msra.mxu0 %v3260
        %3482 = vmatpush.msra.mxu0 %v3243
        %3483 = vmatpush.msra.mxu0 %v3226
        %3484 = vmatpush.msra.mxu0 %v3209
        %3485 = vmatpush.msra.mxu0 %v3192
        %3486 = vmatpush.msra.mxu0 %v3175
        %3487 = vmatmul.f32.gmra.mxu0 %v3329
        %v3488 = vpop.f32.mrf.mxu0
        %v3489 = vadd.f32 %v3325, %v3488
        %3490 = vdwg.mxu0
        %3491 = vmatpush.msra.mxu0 0.0
        %3492 = vmatpush.msra.mxu0 0.0
        %3493 = vmatpush.msra.mxu0 0.0
        %3494 = vmatpush.msra.mxu0 0.0
        %3495 = vmatpush.msra.mxu0 0.0
        %3496 = vmatpush.msra.mxu0 0.0
        %3497 = vmatpush.msra.mxu0 0.0
        %3498 = vmatpush.msra.mxu0 %v3312
        %3499 = vmatpush.msra.mxu0 %v3295
        %3500 = vmatpush.msra.mxu0 %v3278
        %3501 = vmatpush.msra.mxu0 %v3261
        %3502 = vmatpush.msra.mxu0 %v3244
        %3503 = vmatpush.msra.mxu0 %v3227
        %3504 = vmatpush.msra.mxu0 %v3210
        %3505 = vmatpush.msra.mxu0 %v3193
        %3506 = vmatpush.msra.mxu0 %v3176
        %3507 = vmatmul.f32.gmra.mxu0 %v3329
        %v3508 = vpop.f32.mrf.mxu0
        %v3509 = vadd.f32 %v3325, %v3508
        %3510 = vdwg.mxu0
        %3511 = vmatpush.msra.mxu0 0.0
        %3512 = vmatpush.msra.mxu0 0.0
        %3513 = vmatpush.msra.mxu0 0.0
        %3514 = vmatpush.msra.mxu0 0.0
        %3515 = vmatpush.msra.mxu0 0.0
        %3516 = vmatpush.msra.mxu0 0.0
        %3517 = vmatpush.msra.mxu0 0.0
        %3518 = vmatpush.msra.mxu0 %v3313
        %3519 = vmatpush.msra.mxu0 %v3296
        %3520 = vmatpush.msra.mxu0 %v3279
        %3521 = vmatpush.msra.mxu0 %v3262
        %3522 = vmatpush.msra.mxu0 %v3245
        %3523 = vmatpush.msra.mxu0 %v3228
        %3524 = vmatpush.msra.mxu0 %v3211
        %3525 = vmatpush.msra.mxu0 %v3194
        %3526 = vmatpush.msra.mxu0 %v3177
        %3527 = vmatmul.f32.gmra.mxu0 %v3329
        %v3528 = vpop.f32.mrf.mxu0
        %v3529 = vadd.f32 %v3325, %v3528
        %3530 = vdwg.mxu0
        %3531 = vmatpush.msra.mxu0 0.0
        %3532 = vmatpush.msra.mxu0 0.0
        %3533 = vmatpush.msra.mxu0 0.0
        %3534 = vmatpush.msra.mxu0 0.0
        %3535 = vmatpush.msra.mxu0 0.0
        %3536 = vmatpush.msra.mxu0 0.0
        %3537 = vmatpush.msra.mxu0 0.0
        %3538 = vmatpush.msra.mxu0 %v3314
        %3539 = vmatpush.msra.mxu0 %v3297
        %3540 = vmatpush.msra.mxu0 %v3280
        %3541 = vmatpush.msra.mxu0 %v3263
        %3542 = vmatpush.msra.mxu0 %v3246
        %3543 = vmatpush.msra.mxu0 %v3229
        %3544 = vmatpush.msra.mxu0 %v3212
        %3545 = vmatpush.msra.mxu0 %v3195
        %3546 = vmatpush.msra.mxu0 %v3178
        %3547 = vmatmul.f32.gmra.mxu0 %v3329
        %v3548 = vpop.f32.mrf.mxu0
        %v3549 = vadd.f32 %v3325, %v3548
        %3550 = vdwg.mxu0
        %3551 = vmatpush.msra.mxu0 0.0
        %3552 = vmatpush.msra.mxu0 0.0
        %3553 = vmatpush.msra.mxu0 0.0
        %3554 = vmatpush.msra.mxu0 0.0
        %3555 = vmatpush.msra.mxu0 0.0
        %3556 = vmatpush.msra.mxu0 0.0
        %3557 = vmatpush.msra.mxu0 0.0
        %3558 = vmatpush.msra.mxu0 %v3315
        %3559 = vmatpush.msra.mxu0 %v3298
        %3560 = vmatpush.msra.mxu0 %v3281
        %3561 = vmatpush.msra.mxu0 %v3264
        %3562 = vmatpush.msra.mxu0 %v3247
        %3563 = vmatpush.msra.mxu0 %v3230
        %3564 = vmatpush.msra.mxu0 %v3213
        %3565 = vmatpush.msra.mxu0 %v3196
        %3566 = vmatpush.msra.mxu0 %v3179
        %3567 = vmatmul.f32.gmra.mxu0 %v3329
        %v3568 = vpop.f32.mrf.mxu0
        %v3569 = vadd.f32 %v3325, %v3568
        %3570 = vdwg.mxu0
        %3571 = vmatpush.msra.mxu0 0.0
        %3572 = vmatpush.msra.mxu0 0.0
        %3573 = vmatpush.msra.mxu0 0.0
        %3574 = vmatpush.msra.mxu0 0.0
        %3575 = vmatpush.msra.mxu0 0.0
        %3576 = vmatpush.msra.mxu0 0.0
        %3577 = vmatpush.msra.mxu0 0.0
        %3578 = vmatpush.msra.mxu0 %v3316
        %3579 = vmatpush.msra.mxu0 %v3299
        %3580 = vmatpush.msra.mxu0 %v3282
        %3581 = vmatpush.msra.mxu0 %v3265
        %3582 = vmatpush.msra.mxu0 %v3248
        %3583 = vmatpush.msra.mxu0 %v3231
        %3584 = vmatpush.msra.mxu0 %v3214
        %3585 = vmatpush.msra.mxu0 %v3197
        %3586 = vmatpush.msra.mxu0 %v3180
        %3587 = vmatmul.f32.gmra.mxu0 %v3329
        %v3588 = vpop.f32.mrf.mxu0
        %v3589 = vadd.f32 %v3325, %v3588
        %3590 = vdwg.mxu0
        %3591 = vmatpush.msra.mxu0 0.0
        %3592 = vmatpush.msra.mxu0 0.0
        %3593 = vmatpush.msra.mxu0 0.0
        %3594 = vmatpush.msra.mxu0 0.0
        %3595 = vmatpush.msra.mxu0 0.0
        %3596 = vmatpush.msra.mxu0 0.0
        %3597 = vmatpush.msra.mxu0 0.0
        %3598 = vmatpush.msra.mxu0 %v3317
        %3599 = vmatpush.msra.mxu0 %v3300
        %3600 = vmatpush.msra.mxu0 %v3283
        %3601 = vmatpush.msra.mxu0 %v3266
        %3602 = vmatpush.msra.mxu0 %v3249
        %3603 = vmatpush.msra.mxu0 %v3232
        %3604 = vmatpush.msra.mxu0 %v3215
        %3605 = vmatpush.msra.mxu0 %v3198
        %3606 = vmatpush.msra.mxu0 %v3181
        %3607 = vmatmul.f32.gmra.mxu0 %v3329
        %v3608 = vpop.f32.mrf.mxu0
        %v3609 = vadd.f32 %v3325, %v3608
        %3610 = vdwg.mxu0
        %3611 = vmatpush.msra.mxu0 0.0
        %3612 = vmatpush.msra.mxu0 0.0
        %3613 = vmatpush.msra.mxu0 0.0
        %3614 = vmatpush.msra.mxu0 0.0
        %3615 = vmatpush.msra.mxu0 0.0
        %3616 = vmatpush.msra.mxu0 0.0
        %3617 = vmatpush.msra.mxu0 0.0
        %3618 = vmatpush.msra.mxu0 %v3318
        %3619 = vmatpush.msra.mxu0 %v3301
        %3620 = vmatpush.msra.mxu0 %v3284
        %3621 = vmatpush.msra.mxu0 %v3267
        %3622 = vmatpush.msra.mxu0 %v3250
        %3623 = vmatpush.msra.mxu0 %v3233
        %3624 = vmatpush.msra.mxu0 %v3216
        %3625 = vmatpush.msra.mxu0 %v3199
        %3626 = vmatpush.msra.mxu0 %v3182
        %3627 = vmatmul.f32.gmra.mxu0 %v3329
        %v3628 = vpop.f32.mrf.mxu0
        %v3629 = vadd.f32 %v3325, %v3628
        %3630 = vdwg.mxu0
        %3631 = vmatpush.msra.mxu0 0.0
        %3632 = vmatpush.msra.mxu0 0.0
        %3633 = vmatpush.msra.mxu0 0.0
        %3634 = vmatpush.msra.mxu0 0.0
        %3635 = vmatpush.msra.mxu0 0.0
        %3636 = vmatpush.msra.mxu0 0.0
        %3637 = vmatpush.msra.mxu0 0.0
        %3638 = vmatpush.msra.mxu0 %v3319
        %3639 = vmatpush.msra.mxu0 %v3302
        %3640 = vmatpush.msra.mxu0 %v3285
        %3641 = vmatpush.msra.mxu0 %v3268
        %3642 = vmatpush.msra.mxu0 %v3251
        %3643 = vmatpush.msra.mxu0 %v3234
        %3644 = vmatpush.msra.mxu0 %v3217
        %3645 = vmatpush.msra.mxu0 %v3200
        %3646 = vmatpush.msra.mxu0 %v3183
        %3647 = vmatmul.f32.gmra.mxu0 %v3329
        %v3648 = vpop.f32.mrf.mxu0
        %v3649 = vadd.f32 %v3325, %v3648
        %3650 = vdwg.mxu0
        %3651 = vmatpush.msra.mxu0 0.0
        %3652 = vmatpush.msra.mxu0 0.0
        %3653 = vmatpush.msra.mxu0 0.0
        %3654 = vmatpush.msra.mxu0 0.0
        %3655 = vmatpush.msra.mxu0 0.0
        %3656 = vmatpush.msra.mxu0 0.0
        %3657 = vmatpush.msra.mxu0 0.0
        %3658 = vmatpush.msra.mxu0 %v3320
        %3659 = vmatpush.msra.mxu0 %v3303
        %3660 = vmatpush.msra.mxu0 %v3286
        %3661 = vmatpush.msra.mxu0 %v3269
        %3662 = vmatpush.msra.mxu0 %v3252
        %3663 = vmatpush.msra.mxu0 %v3235
        %3664 = vmatpush.msra.mxu0 %v3218
        %3665 = vmatpush.msra.mxu0 %v3201
        %3666 = vmatpush.msra.mxu0 %v3184
        %3667 = vmatmul.f32.gmra.mxu0 %v3329
        %v3668 = vpop.f32.mrf.mxu0
        %v3669 = vadd.f32 %v3325, %v3668
        %3670 = vdwg.mxu0
        %3688 = vrot.lane.b32.xlu0 %v3349, 64
        %v3689 = vpop.permute.xlu0 %3688
        %3690 = vrot.lane.b32.xlu0 %v3369, 64
        %v3691 = vpop.permute.xlu0 %3690
        %3692 = vrot.lane.b32.xlu0 %v3389, 64
        %v3693 = vpop.permute.xlu0 %3692
        %3694 = vrot.lane.b32.xlu0 %v3409, 64
        %v3695 = vpop.permute.xlu0 %3694
        %3696 = vrot.lane.b32.xlu0 %v3429, 64
        %v3697 = vpop.permute.xlu0 %3696
        %3698 = vrot.lane.b32.xlu0 %v3449, 64
        %v3699 = vpop.permute.xlu0 %3698
        %3700 = vrot.lane.b32.xlu0 %v3469, 64
        %v3701 = vpop.permute.xlu0 %3700
        %3702 = vrot.lane.b32.xlu0 %v3489, 64
        %v3703 = vpop.permute.xlu0 %3702
        %3704 = vrot.lane.b32.xlu0 %v3509, 64
        %v3705 = vpop.permute.xlu0 %3704
        %3706 = vrot.lane.b32.xlu0 %v3529, 64
        %v3707 = vpop.permute.xlu0 %3706
        %3708 = vrot.lane.b32.xlu0 %v3549, 64
        %v3709 = vpop.permute.xlu0 %3708
        %3710 = vrot.lane.b32.xlu0 %v3569, 64
        %v3711 = vpop.permute.xlu0 %3710
        %3712 = vrot.lane.b32.xlu0 %v3589, 64
        %v3713 = vpop.permute.xlu0 %3712
        %3714 = vrot.lane.b32.xlu0 %v3609, 64
        %v3715 = vpop.permute.xlu0 %3714
        %3716 = vrot.lane.b32.xlu0 %v3629, 64
        %v3717 = vpop.permute.xlu0 %3716
        %3718 = vrot.lane.b32.xlu0 %v3649, 64
        %v3719 = vpop.permute.xlu0 %3718
        %3720 = vrot.lane.b32.xlu0 %v3669, 64
        %v3721 = vpop.permute.xlu0 %3720
        %v3722 = vsel %vm1796, %v3689, %v3691
        %v3723 = vsel %vm1796, %v3691, %v3693
        %v3724 = vsel %vm1796, %v3693, %v3695
        %v3725 = vsel %vm1796, %v3695, %v3697
        %v3726 = vsel %vm1796, %v3697, %v3699
        %v3727 = vsel %vm1796, %v3699, %v3701
        %v3728 = vsel %vm1796, %v3701, %v3703
        %v3729 = vsel %vm1796, %v3703, %v3705
        %v3730 = vsel %vm1796, %v3705, %v3707
        %v3731 = vsel %vm1796, %v3707, %v3709
        %v3732 = vsel %vm1796, %v3709, %v3711
        %v3733 = vsel %vm1796, %v3711, %v3713
        %v3734 = vsel %vm1796, %v3713, %v3715
        %v3735 = vsel %vm1796, %v3715, %v3717
        %v3736 = vsel %vm1796, %v3717, %v3719
        %v3737 = vsel %vm1796, %v3719, %v3721
        %vm3756 = vcmask 1048064
        %3757 = vst.msk [vmem:[#allocation5] sm:$0xff] %vm3756, %v3689
        %3758 = vst [vmem:[#allocation5 + $0x8] sm:$0xff] %v3722
        %3759 = vst [vmem:[#allocation5 + $0x10] sm:$0xff] %v3723
        %3760 = vst [vmem:[#allocation5 + $0x18] sm:$0xff] %v3724
        %3761 = vst [vmem:[#allocation5 + $0x20] sm:$0xff] %v3725
        %3762 = vst [vmem:[#allocation5 + $0x28] sm:$0xff] %v3726
        %3763 = vst [vmem:[#allocation5 + $0x30] sm:$0xff] %v3727
        %3764 = vst [vmem:[#allocation5 + $0x38] sm:$0xff] %v3728
        %3765 = vst [vmem:[#allocation5 + $0x40] sm:$0xff] %v3729
        %3766 = vst [vmem:[#allocation5 + $0x48] sm:$0xff] %v3730
        %3767 = vst [vmem:[#allocation5 + $0x50] sm:$0xff] %v3731
        %3768 = vst [vmem:[#allocation5 + $0x58] sm:$0xff] %v3732
        %3769 = vst [vmem:[#allocation5 + $0x60] sm:$0xff] %v3733
        %3770 = vst [vmem:[#allocation5 + $0x68] sm:$0xff] %v3734
        %3771 = vst [vmem:[#allocation5 + $0x70] sm:$0xff] %v3735
        %3772 = vst [vmem:[#allocation5 + $0x78] sm:$0xff] %v3736
        %3773 = vst [vmem:[#allocation5 + $0x80] sm:$0xff] %v3737
        %3774 = vst.msk [vmem:[#allocation5 + $0x88] sm:$0xff] %vm1796, %v3721
        // Predicated region
        $region93: #{tpu_custom_call.1} parent=67 // pred_check
          %p3775 = pneg %p507
        $region94: #{tpu_custom_call.1} parent=67 // pred_check_branch
          %3777 = sbr.rel (%p3775) target = $region96
        $region95: #{tpu_custom_call.1} parent=67 // pred_region
          %3778 = vst.msk [vmem:[#allocation5] sm:$0xff] %vm3756, 0.0
        $region96: #{tpu_custom_call.1} parent=67 // pred_fallthru
          _
        %p3779 = scmp.eq.s32.totalorder %s36, 1
        // Predicated region
        $region97: #{tpu_custom_call.1} parent=67 // pred_check
          %p3780 = pneg %p3779
        $region98: #{tpu_custom_call.1} parent=67 // pred_check_branch
          %3782 = sbr.rel (%p3780) target = $region100
        $region99: #{tpu_custom_call.1} parent=67 // pred_region
          %3783 = vst.msk [vmem:[#allocation5 + $0x88] sm:$0xff] %vm1796, 0.0
        $region100: #{tpu_custom_call.1} parent=67 // pred_fallthru
          _
        %v3784 = vld [vmem:[#allocation5] sm:$0xff]
        %v3785 = vld [vmem:[#allocation5 + $0x8] sm:$0xff]
        %v3786 = vld [vmem:[#allocation5 + $0x10] sm:$0xff]
        %v3787 = vld [vmem:[#allocation5 + $0x18] sm:$0xff]
        %v3788 = vld [vmem:[#allocation5 + $0x20] sm:$0xff]
        %v3789 = vld [vmem:[#allocation5 + $0x28] sm:$0xff]
        %v3790 = vld [vmem:[#allocation5 + $0x30] sm:$0xff]
        %v3791 = vld [vmem:[#allocation5 + $0x38] sm:$0xff]
        %v3792 = vld [vmem:[#allocation5 + $0x40] sm:$0xff]
        %v3793 = vld [vmem:[#allocation5 + $0x48] sm:$0xff]
        %v3794 = vld [vmem:[#allocation5 + $0x50] sm:$0xff]
        %v3795 = vld [vmem:[#allocation5 + $0x58] sm:$0xff]
        %v3796 = vld [vmem:[#allocation5 + $0x60] sm:$0xff]
        %v3797 = vld [vmem:[#allocation5 + $0x68] sm:$0xff]
        %v3798 = vld [vmem:[#allocation5 + $0x70] sm:$0xff]
        %v3799 = vld [vmem:[#allocation5 + $0x78] sm:$0xff]
        %v3800 = vld [vmem:[#allocation5 + $0x80] sm:$0xff]
        %v3801 = vld [vmem:[%s9] sm:$0xff]
        %v3802 = vld [vmem:[%s9 + $0x8] sm:$0xff]
        %v3805 = vperm.slane %v3801, 0
        %v3806 = vperm.slane %v3801, 1
        %v3807 = vperm.slane %v3801, 2
        %v3808 = vperm.slane %v3801, 3
        %v3809 = vperm.slane %v3801, 4
        %v3810 = vperm.slane %v3801, 5
        %v3811 = vperm.slane %v3801, 6
        %v3812 = vperm.slane %v3801, 7
        %v3813 = vperm.slane %v3802, 0
        %v3814 = vperm.slane %v3802, 1
        %v3815 = vperm.slane %v3802, 2
        %v3816 = vperm.slane %v3802, 3
        %v3817 = vperm.slane %v3802, 4
        %v3818 = vperm.slane %v3802, 5
        %v3819 = vperm.slane %v3802, 6
        %v3820 = vperm.slane %v3802, 7
        %3821 = vrot.lane.b32.xlu0 %v3805, 63
        %v3822 = vpop.permute.xlu0 %3821
        %3823 = vrot.lane.b32.xlu0 %v3806, 63
        %v3824 = vpop.permute.xlu0 %3823
        %3825 = vrot.lane.b32.xlu0 %v3807, 63
        %v3826 = vpop.permute.xlu0 %3825
        %3827 = vrot.lane.b32.xlu0 %v3808, 63
        %v3828 = vpop.permute.xlu0 %3827
        %3829 = vrot.lane.b32.xlu0 %v3809, 63
        %v3830 = vpop.permute.xlu0 %3829
        %3831 = vrot.lane.b32.xlu0 %v3810, 63
        %v3832 = vpop.permute.xlu0 %3831
        %3833 = vrot.lane.b32.xlu0 %v3811, 63
        %v3834 = vpop.permute.xlu0 %3833
        %3835 = vrot.lane.b32.xlu0 %v3812, 63
        %v3836 = vpop.permute.xlu0 %3835
        %3837 = vrot.lane.b32.xlu0 %v3813, 63
        %v3838 = vpop.permute.xlu0 %3837
        %3839 = vrot.lane.b32.xlu0 %v3814, 63
        %v3840 = vpop.permute.xlu0 %3839
        %3841 = vrot.lane.b32.xlu0 %v3815, 63
        %v3842 = vpop.permute.xlu0 %3841
        %3843 = vrot.lane.b32.xlu0 %v3816, 63
        %v3844 = vpop.permute.xlu0 %3843
        %3845 = vrot.lane.b32.xlu0 %v3817, 63
        %v3846 = vpop.permute.xlu0 %3845
        %3847 = vrot.lane.b32.xlu0 %v3818, 63
        %v3848 = vpop.permute.xlu0 %3847
        %3849 = vrot.lane.b32.xlu0 %v3819, 63
        %v3850 = vpop.permute.xlu0 %3849
        %3851 = vrot.lane.b32.xlu0 %v3820, 63
        %v3852 = vpop.permute.xlu0 %3851
        %v3853 = vsel %vm1565, %v3822, %v3824
        %v3854 = vsel %vm1565, %v3824, %v3826
        %v3855 = vsel %vm1565, %v3826, %v3828
        %v3856 = vsel %vm1565, %v3828, %v3830
        %v3857 = vsel %vm1565, %v3830, %v3832
        %v3858 = vsel %vm1565, %v3832, %v3834
        %v3859 = vsel %vm1565, %v3834, %v3836
        %v3860 = vsel %vm1565, %v3836, %v3838
        %v3861 = vsel %vm1565, %v3838, %v3840
        %v3862 = vsel %vm1565, %v3840, %v3842
        %v3863 = vsel %vm1565, %v3842, %v3844
        %v3864 = vsel %vm1565, %v3844, %v3846
        %v3865 = vsel %vm1565, %v3846, %v3848
        %v3866 = vsel %vm1565, %v3848, %v3850
        %v3867 = vsel %vm1565, %v3850, %v3852
        %v3885 = vmul.f32 %v3784, %v3822
        %v3886 = vmul.f32 %v3785, %v3853
        %v3887 = vmul.f32 %v3786, %v3854
        %v3888 = vmul.f32 %v3787, %v3855
        %v3889 = vmul.f32 %v3788, %v3856
        %v3890 = vmul.f32 %v3789, %v3857
        %v3891 = vmul.f32 %v3790, %v3858
        %v3892 = vmul.f32 %v3791, %v3859
        %v3893 = vmul.f32 %v3792, %v3860
        %v3894 = vmul.f32 %v3793, %v3861
        %v3895 = vmul.f32 %v3794, %v3862
        %v3896 = vmul.f32 %v3795, %v3863
        %v3897 = vmul.f32 %v3796, %v3864
        %v3898 = vmul.f32 %v3797, %v3865
        %v3899 = vmul.f32 %v3798, %v3866
        %v3900 = vmul.f32 %v3799, %v3867
        %v3901 = vmul.f32 %v3800, %v3852
        %3919 = vrot.lane.b32.xlu0 %v3885, 65
        %v3920 = vpop.permute.xlu0 %3919
        %3921 = vrot.lane.b32.xlu0 %v3886, 65
        %v3922 = vpop.permute.xlu0 %3921
        %3923 = vrot.lane.b32.xlu0 %v3887, 65
        %v3924 = vpop.permute.xlu0 %3923
        %3925 = vrot.lane.b32.xlu0 %v3888, 65
        %v3926 = vpop.permute.xlu0 %3925
        %3927 = vrot.lane.b32.xlu0 %v3889, 65
        %v3928 = vpop.permute.xlu0 %3927
        %3929 = vrot.lane.b32.xlu0 %v3890, 65
        %v3930 = vpop.permute.xlu0 %3929
        %3931 = vrot.lane.b32.xlu0 %v3891, 65
        %v3932 = vpop.permute.xlu0 %3931
        %3933 = vrot.lane.b32.xlu0 %v3892, 65
        %v3934 = vpop.permute.xlu0 %3933
        %3935 = vrot.lane.b32.xlu0 %v3893, 65
        %v3936 = vpop.permute.xlu0 %3935
        %3937 = vrot.lane.b32.xlu0 %v3894, 65
        %v3938 = vpop.permute.xlu0 %3937
        %3939 = vrot.lane.b32.xlu0 %v3895, 65
        %v3940 = vpop.permute.xlu0 %3939
        %3941 = vrot.lane.b32.xlu0 %v3896, 65
        %v3942 = vpop.permute.xlu0 %3941
        %3943 = vrot.lane.b32.xlu0 %v3897, 65
        %v3944 = vpop.permute.xlu0 %3943
        %3945 = vrot.lane.b32.xlu0 %v3898, 65
        %v3946 = vpop.permute.xlu0 %3945
        %3947 = vrot.lane.b32.xlu0 %v3899, 65
        %v3948 = vpop.permute.xlu0 %3947
        %3949 = vrot.lane.b32.xlu0 %v3900, 65
        %v3950 = vpop.permute.xlu0 %3949
        %3951 = vrot.lane.b32.xlu0 %v3901, 65
        %v3952 = vpop.permute.xlu0 %3951
        %v3953 = vsel %vm1672, %v3920, %v3922
        %v3954 = vsel %vm1672, %v3922, %v3924
        %v3955 = vsel %vm1672, %v3924, %v3926
        %v3956 = vsel %vm1672, %v3926, %v3928
        %v3957 = vsel %vm1672, %v3928, %v3930
        %v3958 = vsel %vm1672, %v3930, %v3932
        %v3959 = vsel %vm1672, %v3932, %v3934
        %v3960 = vsel %vm1672, %v3934, %v3936
        %v3961 = vsel %vm1672, %v3936, %v3938
        %v3962 = vsel %vm1672, %v3938, %v3940
        %v3963 = vsel %vm1672, %v3940, %v3942
        %v3964 = vsel %vm1672, %v3942, %v3944
        %v3965 = vsel %vm1672, %v3944, %v3946
        %v3966 = vsel %vm1672, %v3946, %v3948
        %v3967 = vsel %vm1672, %v3948, %v3950
        %v3968 = vsel %vm1672, %v3950, %v3952
        %3985 = vst [vmem:[#allocation2] sm:$0xff] %v3953
        %3986 = vst [vmem:[#allocation2 + $0x8] sm:$0xff] %v3954
        %3987 = vst [vmem:[#allocation2 + $0x10] sm:$0xff] %v3955
        %3988 = vst [vmem:[#allocation2 + $0x18] sm:$0xff] %v3956
        %3989 = vst [vmem:[#allocation2 + $0x20] sm:$0xff] %v3957
        %3990 = vst [vmem:[#allocation2 + $0x28] sm:$0xff] %v3958
        %3991 = vst [vmem:[#allocation2 + $0x30] sm:$0xff] %v3959
        %3992 = vst [vmem:[#allocation2 + $0x38] sm:$0xff] %v3960
        %3993 = vst [vmem:[#allocation2 + $0x40] sm:$0xff] %v3961
        %3994 = vst [vmem:[#allocation2 + $0x48] sm:$0xff] %v3962
        %3995 = vst [vmem:[#allocation2 + $0x50] sm:$0xff] %v3963
        %3996 = vst [vmem:[#allocation2 + $0x58] sm:$0xff] %v3964
        %3997 = vst [vmem:[#allocation2 + $0x60] sm:$0xff] %v3965
        %3998 = vst [vmem:[#allocation2 + $0x68] sm:$0xff] %v3966
        %3999 = vst [vmem:[#allocation2 + $0x70] sm:$0xff] %v3967
        %4000 = vst [vmem:[#allocation2 + $0x78] sm:$0xff] %v3968
        %v4001 = vld [vmem:[#allocation5] sm:$0xff]
        %v4002 = vld [vmem:[#allocation5 + $0x8] sm:$0xff]
        %v4003 = vld [vmem:[#allocation5 + $0x10] sm:$0xff]
        %v4004 = vld [vmem:[#allocation5 + $0x18] sm:$0xff]
        %v4005 = vld [vmem:[#allocation5 + $0x20] sm:$0xff]
        %v4006 = vld [vmem:[#allocation5 + $0x28] sm:$0xff]
        %v4007 = vld [vmem:[#allocation5 + $0x30] sm:$0xff]
        %v4008 = vld [vmem:[#allocation5 + $0x38] sm:$0xff]
        %v4009 = vld [vmem:[#allocation5 + $0x40] sm:$0xff]
        %v4010 = vld [vmem:[#allocation5 + $0x48] sm:$0xff]
        %v4011 = vld [vmem:[#allocation5 + $0x50] sm:$0xff]
        %v4012 = vld [vmem:[#allocation5 + $0x58] sm:$0xff]
        %v4013 = vld [vmem:[#allocation5 + $0x60] sm:$0xff]
        %v4014 = vld [vmem:[#allocation5 + $0x68] sm:$0xff]
        %v4015 = vld [vmem:[#allocation5 + $0x70] sm:$0xff]
        %v4016 = vld [vmem:[#allocation5 + $0x78] sm:$0xff]
        %v4017 = vld [vmem:[#allocation5 + $0x80] sm:$0xff]
        %4035 = vrot.lane.b32.xlu0 %v4001, 64
        %v4036 = vpop.permute.xlu0 %4035
        %4037 = vrot.lane.b32.xlu0 %v4002, 64
        %v4038 = vpop.permute.xlu0 %4037
        %4039 = vrot.lane.b32.xlu0 %v4003, 64
        %v4040 = vpop.permute.xlu0 %4039
        %4041 = vrot.lane.b32.xlu0 %v4004, 64
        %v4042 = vpop.permute.xlu0 %4041
        %4043 = vrot.lane.b32.xlu0 %v4005, 64
        %v4044 = vpop.permute.xlu0 %4043
        %4045 = vrot.lane.b32.xlu0 %v4006, 64
        %v4046 = vpop.permute.xlu0 %4045
        %4047 = vrot.lane.b32.xlu0 %v4007, 64
        %v4048 = vpop.permute.xlu0 %4047
        %4049 = vrot.lane.b32.xlu0 %v4008, 64
        %v4050 = vpop.permute.xlu0 %4049
        %4051 = vrot.lane.b32.xlu0 %v4009, 64
        %v4052 = vpop.permute.xlu0 %4051
        %4053 = vrot.lane.b32.xlu0 %v4010, 64
        %v4054 = vpop.permute.xlu0 %4053
        %4055 = vrot.lane.b32.xlu0 %v4011, 64
        %v4056 = vpop.permute.xlu0 %4055
        %4057 = vrot.lane.b32.xlu0 %v4012, 64
        %v4058 = vpop.permute.xlu0 %4057
        %4059 = vrot.lane.b32.xlu0 %v4013, 64
        %v4060 = vpop.permute.xlu0 %4059
        %4061 = vrot.lane.b32.xlu0 %v4014, 64
        %v4062 = vpop.permute.xlu0 %4061
        %4063 = vrot.lane.b32.xlu0 %v4015, 64
        %v4064 = vpop.permute.xlu0 %4063
        %4065 = vrot.lane.b32.xlu0 %v4016, 64
        %v4066 = vpop.permute.xlu0 %4065
        %4067 = vrot.lane.b32.xlu0 %v4017, 64
        %v4068 = vpop.permute.xlu0 %4067
        %v4069 = vsel %vm1796, %v4036, %v4038
        %v4070 = vsel %vm1796, %v4038, %v4040
        %v4071 = vsel %vm1796, %v4040, %v4042
        %v4072 = vsel %vm1796, %v4042, %v4044
        %v4073 = vsel %vm1796, %v4044, %v4046
        %v4074 = vsel %vm1796, %v4046, %v4048
        %v4075 = vsel %vm1796, %v4048, %v4050
        %v4076 = vsel %vm1796, %v4050, %v4052
        %v4077 = vsel %vm1796, %v4052, %v4054
        %v4078 = vsel %vm1796, %v4054, %v4056
        %v4079 = vsel %vm1796, %v4056, %v4058
        %v4080 = vsel %vm1796, %v4058, %v4060
        %v4081 = vsel %vm1796, %v4060, %v4062
        %v4082 = vsel %vm1796, %v4062, %v4064
        %v4083 = vsel %vm1796, %v4064, %v4066
        %v4084 = vsel %vm1796, %v4066, %v4068
        %4101 = vst [vmem:[#allocation2 + $0x88] sm:$0xff] %v4069
        %4102 = vst [vmem:[#allocation2 + $0x90] sm:$0xff] %v4070
        %4103 = vst [vmem:[#allocation2 + $0x98] sm:$0xff] %v4071
        %4104 = vst [vmem:[#allocation2 + $0xa0] sm:$0xff] %v4072
        %4105 = vst [vmem:[#allocation2 + $0xa8] sm:$0xff] %v4073
        %4106 = vst [vmem:[#allocation2 + $0xb0] sm:$0xff] %v4074
        %4107 = vst [vmem:[#allocation2 + $0xb8] sm:$0xff] %v4075
        %4108 = vst [vmem:[#allocation2 + $0xc0] sm:$0xff] %v4076
        %4109 = vst [vmem:[#allocation2 + $0xc8] sm:$0xff] %v4077
        %4110 = vst [vmem:[#allocation2 + $0xd0] sm:$0xff] %v4078
        %4111 = vst [vmem:[#allocation2 + $0xd8] sm:$0xff] %v4079
        %4112 = vst [vmem:[#allocation2 + $0xe0] sm:$0xff] %v4080
        %4113 = vst [vmem:[#allocation2 + $0xe8] sm:$0xff] %v4081
        %4114 = vst [vmem:[#allocation2 + $0xf0] sm:$0xff] %v4082
        %4115 = vst [vmem:[#allocation2 + $0xf8] sm:$0xff] %v4083
        %4116 = vst [vmem:[#allocation2 + $0x100] sm:$0xff] %v4084
        %v4117 = vld [vmem:[#allocation5] sm:$0xff]
        %v4118 = vld [vmem:[#allocation5 + $0x8] sm:$0xff]
        %v4119 = vld [vmem:[#allocation5 + $0x10] sm:$0xff]
        %v4120 = vld [vmem:[#allocation5 + $0x18] sm:$0xff]
        %v4121 = vld [vmem:[#allocation5 + $0x20] sm:$0xff]
        %v4122 = vld [vmem:[#allocation5 + $0x28] sm:$0xff]
        %v4123 = vld [vmem:[#allocation5 + $0x30] sm:$0xff]
        %v4124 = vld [vmem:[#allocation5 + $0x38] sm:$0xff]
        %v4125 = vld [vmem:[#allocation5 + $0x40] sm:$0xff]
        %v4126 = vld [vmem:[#allocation5 + $0x48] sm:$0xff]
        %v4127 = vld [vmem:[#allocation5 + $0x50] sm:$0xff]
        %v4128 = vld [vmem:[#allocation5 + $0x58] sm:$0xff]
        %v4129 = vld [vmem:[#allocation5 + $0x60] sm:$0xff]
        %v4130 = vld [vmem:[#allocation5 + $0x68] sm:$0xff]
        %v4131 = vld [vmem:[#allocation5 + $0x70] sm:$0xff]
        %v4132 = vld [vmem:[#allocation5 + $0x78] sm:$0xff]
        %v4133 = vld [vmem:[#allocation5 + $0x80] sm:$0xff]
        %v4134 = vld [vmem:[#allocation12] sm:$0xff]
        %v4135 = vld [vmem:[#allocation12 + $0x8] sm:$0xff]
        %v4138 = vperm.slane %v4134, 0
        %v4139 = vperm.slane %v4134, 1
        %v4140 = vperm.slane %v4134, 2
        %v4141 = vperm.slane %v4134, 3
        %v4142 = vperm.slane %v4134, 4
        %v4143 = vperm.slane %v4134, 5
        %v4144 = vperm.slane %v4134, 6
        %v4145 = vperm.slane %v4134, 7
        %v4146 = vperm.slane %v4135, 0
        %v4147 = vperm.slane %v4135, 1
        %v4148 = vperm.slane %v4135, 2
        %v4149 = vperm.slane %v4135, 3
        %v4150 = vperm.slane %v4135, 4
        %v4151 = vperm.slane %v4135, 5
        %v4152 = vperm.slane %v4135, 6
        %v4153 = vperm.slane %v4135, 7
        %4154 = vrot.lane.b32.xlu0 %v4138, 65
        %v4155 = vpop.permute.xlu0 %4154
        %4156 = vrot.lane.b32.xlu0 %v4139, 65
        %v4157 = vpop.permute.xlu0 %4156
        %4158 = vrot.lane.b32.xlu0 %v4140, 65
        %v4159 = vpop.permute.xlu0 %4158
        %4160 = vrot.lane.b32.xlu0 %v4141, 65
        %v4161 = vpop.permute.xlu0 %4160
        %4162 = vrot.lane.b32.xlu0 %v4142, 65
        %v4163 = vpop.permute.xlu0 %4162
        %4164 = vrot.lane.b32.xlu0 %v4143, 65
        %v4165 = vpop.permute.xlu0 %4164
        %4166 = vrot.lane.b32.xlu0 %v4144, 65
        %v4167 = vpop.permute.xlu0 %4166
        %4168 = vrot.lane.b32.xlu0 %v4145, 65
        %v4169 = vpop.permute.xlu0 %4168
        %4170 = vrot.lane.b32.xlu0 %v4146, 65
        %v4171 = vpop.permute.xlu0 %4170
        %4172 = vrot.lane.b32.xlu0 %v4147, 65
        %v4173 = vpop.permute.xlu0 %4172
        %4174 = vrot.lane.b32.xlu0 %v4148, 65
        %v4175 = vpop.permute.xlu0 %4174
        %4176 = vrot.lane.b32.xlu0 %v4149, 65
        %v4177 = vpop.permute.xlu0 %4176
        %4178 = vrot.lane.b32.xlu0 %v4150, 65
        %v4179 = vpop.permute.xlu0 %4178
        %4180 = vrot.lane.b32.xlu0 %v4151, 65
        %v4181 = vpop.permute.xlu0 %4180
        %4182 = vrot.lane.b32.xlu0 %v4152, 65
        %v4183 = vpop.permute.xlu0 %4182
        %4184 = vrot.lane.b32.xlu0 %v4153, 65
        %v4185 = vpop.permute.xlu0 %4184
        %v4186 = vsel %vm1672, %v4155, %v4157
        %v4187 = vsel %vm1672, %v4157, %v4159
        %v4188 = vsel %vm1672, %v4159, %v4161
        %v4189 = vsel %vm1672, %v4161, %v4163
        %v4190 = vsel %vm1672, %v4163, %v4165
        %v4191 = vsel %vm1672, %v4165, %v4167
        %v4192 = vsel %vm1672, %v4167, %v4169
        %v4193 = vsel %vm1672, %v4169, %v4171
        %v4194 = vsel %vm1672, %v4171, %v4173
        %v4195 = vsel %vm1672, %v4173, %v4175
        %v4196 = vsel %vm1672, %v4175, %v4177
        %v4197 = vsel %vm1672, %v4177, %v4179
        %v4198 = vsel %vm1672, %v4179, %v4181
        %v4199 = vsel %vm1672, %v4181, %v4183
        %v4200 = vsel %vm1672, %v4183, %v4185
        %v4218 = vmul.f32 %v4117, %v4155
        %v4219 = vmul.f32 %v4118, %v4186
        %v4220 = vmul.f32 %v4119, %v4187
        %v4221 = vmul.f32 %v4120, %v4188
        %v4222 = vmul.f32 %v4121, %v4189
        %v4223 = vmul.f32 %v4122, %v4190
        %v4224 = vmul.f32 %v4123, %v4191
        %v4225 = vmul.f32 %v4124, %v4192
        %v4226 = vmul.f32 %v4125, %v4193
        %v4227 = vmul.f32 %v4126, %v4194
        %v4228 = vmul.f32 %v4127, %v4195
        %v4229 = vmul.f32 %v4128, %v4196
        %v4230 = vmul.f32 %v4129, %v4197
        %v4231 = vmul.f32 %v4130, %v4198
        %v4232 = vmul.f32 %v4131, %v4199
        %v4233 = vmul.f32 %v4132, %v4200
        %v4234 = vmul.f32 %v4133, %v4185
        %4252 = vrot.lane.b32.xlu0 %v4218, 63
        %v4253 = vpop.permute.xlu0 %4252
        %4254 = vrot.lane.b32.xlu0 %v4219, 63
        %v4255 = vpop.permute.xlu0 %4254
        %4256 = vrot.lane.b32.xlu0 %v4220, 63
        %v4257 = vpop.permute.xlu0 %4256
        %4258 = vrot.lane.b32.xlu0 %v4221, 63
        %v4259 = vpop.permute.xlu0 %4258
        %4260 = vrot.lane.b32.xlu0 %v4222, 63
        %v4261 = vpop.permute.xlu0 %4260
        %4262 = vrot.lane.b32.xlu0 %v4223, 63
        %v4263 = vpop.permute.xlu0 %4262
        %4264 = vrot.lane.b32.xlu0 %v4224, 63
        %v4265 = vpop.permute.xlu0 %4264
        %4266 = vrot.lane.b32.xlu0 %v4225, 63
        %v4267 = vpop.permute.xlu0 %4266
        %4268 = vrot.lane.b32.xlu0 %v4226, 63
        %v4269 = vpop.permute.xlu0 %4268
        %4270 = vrot.lane.b32.xlu0 %v4227, 63
        %v4271 = vpop.permute.xlu0 %4270
        %4272 = vrot.lane.b32.xlu0 %v4228, 63
        %v4273 = vpop.permute.xlu0 %4272
        %4274 = vrot.lane.b32.xlu0 %v4229, 63
        %v4275 = vpop.permute.xlu0 %4274
        %4276 = vrot.lane.b32.xlu0 %v4230, 63
        %v4277 = vpop.permute.xlu0 %4276
        %4278 = vrot.lane.b32.xlu0 %v4231, 63
        %v4279 = vpop.permute.xlu0 %4278
        %4280 = vrot.lane.b32.xlu0 %v4232, 63
        %v4281 = vpop.permute.xlu0 %4280
        %4282 = vrot.lane.b32.xlu0 %v4233, 63
        %v4283 = vpop.permute.xlu0 %4282
        %4284 = vrot.lane.b32.xlu0 %v4234, 63
        %v4285 = vpop.permute.xlu0 %4284
        %v4286 = vsel %vm1565, %v4253, %v4255
        %v4287 = vsel %vm1565, %v4255, %v4257
        %v4288 = vsel %vm1565, %v4257, %v4259
        %v4289 = vsel %vm1565, %v4259, %v4261
        %v4290 = vsel %vm1565, %v4261, %v4263
        %v4291 = vsel %vm1565, %v4263, %v4265
        %v4292 = vsel %vm1565, %v4265, %v4267
        %v4293 = vsel %vm1565, %v4267, %v4269
        %v4294 = vsel %vm1565, %v4269, %v4271
        %v4295 = vsel %vm1565, %v4271, %v4273
        %v4296 = vsel %vm1565, %v4273, %v4275
        %v4297 = vsel %vm1565, %v4275, %v4277
        %v4298 = vsel %vm1565, %v4277, %v4279
        %v4299 = vsel %vm1565, %v4279, %v4281
        %v4300 = vsel %vm1565, %v4281, %v4283
        %v4301 = vsel %vm1565, %v4283, %v4285
        %4318 = vst [vmem:[#allocation2 + $0x110] sm:$0xff] %v4286
        %4319 = vst [vmem:[#allocation2 + $0x118] sm:$0xff] %v4287
        %4320 = vst [vmem:[#allocation2 + $0x120] sm:$0xff] %v4288
        %4321 = vst [vmem:[#allocation2 + $0x128] sm:$0xff] %v4289
        %4322 = vst [vmem:[#allocation2 + $0x130] sm:$0xff] %v4290
        %4323 = vst [vmem:[#allocation2 + $0x138] sm:$0xff] %v4291
        %4324 = vst [vmem:[#allocation2 + $0x140] sm:$0xff] %v4292
        %4325 = vst [vmem:[#allocation2 + $0x148] sm:$0xff] %v4293
        %4326 = vst [vmem:[#allocation2 + $0x150] sm:$0xff] %v4294
        %4327 = vst [vmem:[#allocation2 + $0x158] sm:$0xff] %v4295
        %4328 = vst [vmem:[#allocation2 + $0x160] sm:$0xff] %v4296
        %4329 = vst [vmem:[#allocation2 + $0x168] sm:$0xff] %v4297
        %4330 = vst [vmem:[#allocation2 + $0x170] sm:$0xff] %v4298
        %4331 = vst [vmem:[#allocation2 + $0x178] sm:$0xff] %v4299
        %4332 = vst [vmem:[#allocation2 + $0x180] sm:$0xff] %v4300
        %4333 = vst [vmem:[#allocation2 + $0x188] sm:$0xff] %v4301
        %v4334 = vld [vmem:[#allocation5] sm:$0xff]
        %v4335 = vld [vmem:[#allocation5 + $0x8] sm:$0xff]
        %v4336 = vld [vmem:[#allocation5 + $0x10] sm:$0xff]
        %v4337 = vld [vmem:[#allocation5 + $0x18] sm:$0xff]
        %v4338 = vld [vmem:[#allocation5 + $0x20] sm:$0xff]
        %v4339 = vld [vmem:[#allocation5 + $0x28] sm:$0xff]
        %v4340 = vld [vmem:[#allocation5 + $0x30] sm:$0xff]
        %v4341 = vld [vmem:[#allocation5 + $0x38] sm:$0xff]
        %v4342 = vld [vmem:[#allocation5 + $0x40] sm:$0xff]
        %v4343 = vld [vmem:[#allocation5 + $0x48] sm:$0xff]
        %v4344 = vld [vmem:[#allocation5 + $0x50] sm:$0xff]
        %v4345 = vld [vmem:[#allocation5 + $0x58] sm:$0xff]
        %v4346 = vld [vmem:[#allocation5 + $0x60] sm:$0xff]
        %v4347 = vld [vmem:[#allocation5 + $0x68] sm:$0xff]
        %v4348 = vld [vmem:[#allocation5 + $0x70] sm:$0xff]
        %v4349 = vld [vmem:[#allocation5 + $0x78] sm:$0xff]
        %v4350 = vld [vmem:[#allocation5 + $0x80] sm:$0xff]
        %v4351 = vld [vmem:[%s9] sm:$0xff]
        %v4352 = vld [vmem:[%s9 + $0x8] sm:$0xff]
        %v4355 = vperm.slane %v4351, 0
        %v4356 = vperm.slane %v4351, 1
        %v4357 = vperm.slane %v4351, 2
        %v4358 = vperm.slane %v4351, 3
        %v4359 = vperm.slane %v4351, 4
        %v4360 = vperm.slane %v4351, 5
        %v4361 = vperm.slane %v4351, 6
        %v4362 = vperm.slane %v4351, 7
        %v4363 = vperm.slane %v4352, 0
        %v4364 = vperm.slane %v4352, 1
        %v4365 = vperm.slane %v4352, 2
        %v4366 = vperm.slane %v4352, 3
        %v4367 = vperm.slane %v4352, 4
        %v4368 = vperm.slane %v4352, 5
        %v4369 = vperm.slane %v4352, 6
        %v4370 = vperm.slane %v4352, 7
        %4371 = vrot.lane.b32.xlu0 %v4355, 127
        %v4372 = vpop.permute.xlu0 %4371
        %4373 = vrot.lane.b32.xlu0 %v4356, 127
        %v4374 = vpop.permute.xlu0 %4373
        %4375 = vrot.lane.b32.xlu0 %v4357, 127
        %v4376 = vpop.permute.xlu0 %4375
        %4377 = vrot.lane.b32.xlu0 %v4358, 127
        %v4378 = vpop.permute.xlu0 %4377
        %4379 = vrot.lane.b32.xlu0 %v4359, 127
        %v4380 = vpop.permute.xlu0 %4379
        %4381 = vrot.lane.b32.xlu0 %v4360, 127
        %v4382 = vpop.permute.xlu0 %4381
        %4383 = vrot.lane.b32.xlu0 %v4361, 127
        %v4384 = vpop.permute.xlu0 %4383
        %4385 = vrot.lane.b32.xlu0 %v4362, 127
        %v4386 = vpop.permute.xlu0 %4385
        %4387 = vrot.lane.b32.xlu0 %v4363, 127
        %v4388 = vpop.permute.xlu0 %4387
        %4389 = vrot.lane.b32.xlu0 %v4364, 127
        %v4390 = vpop.permute.xlu0 %4389
        %4391 = vrot.lane.b32.xlu0 %v4365, 127
        %v4392 = vpop.permute.xlu0 %4391
        %4393 = vrot.lane.b32.xlu0 %v4366, 127
        %v4394 = vpop.permute.xlu0 %4393
        %4395 = vrot.lane.b32.xlu0 %v4367, 127
        %v4396 = vpop.permute.xlu0 %4395
        %4397 = vrot.lane.b32.xlu0 %v4368, 127
        %v4398 = vpop.permute.xlu0 %4397
        %4399 = vrot.lane.b32.xlu0 %v4369, 127
        %v4400 = vpop.permute.xlu0 %4399
        %4401 = vrot.lane.b32.xlu0 %v4370, 127
        %v4402 = vpop.permute.xlu0 %4401
        %v4403 = vsel %vm2155, %v4372, %v4374
        %v4404 = vsel %vm2155, %v4374, %v4376
        %v4405 = vsel %vm2155, %v4376, %v4378
        %v4406 = vsel %vm2155, %v4378, %v4380
        %v4407 = vsel %vm2155, %v4380, %v4382
        %v4408 = vsel %vm2155, %v4382, %v4384
        %v4409 = vsel %vm2155, %v4384, %v4386
        %v4410 = vsel %vm2155, %v4386, %v4388
        %v4411 = vsel %vm2155, %v4388, %v4390
        %v4412 = vsel %vm2155, %v4390, %v4392
        %v4413 = vsel %vm2155, %v4392, %v4394
        %v4414 = vsel %vm2155, %v4394, %v4396
        %v4415 = vsel %vm2155, %v4396, %v4398
        %v4416 = vsel %vm2155, %v4398, %v4400
        %v4417 = vsel %vm2155, %v4400, %v4402
        %v4435 = vmul.f32 %v4334, %v4372
        %v4436 = vmul.f32 %v4335, %v4403
        %v4437 = vmul.f32 %v4336, %v4404
        %v4438 = vmul.f32 %v4337, %v4405
        %v4439 = vmul.f32 %v4338, %v4406
        %v4440 = vmul.f32 %v4339, %v4407
        %v4441 = vmul.f32 %v4340, %v4408
        %v4442 = vmul.f32 %v4341, %v4409
        %v4443 = vmul.f32 %v4342, %v4410
        %v4444 = vmul.f32 %v4343, %v4411
        %v4445 = vmul.f32 %v4344, %v4412
        %v4446 = vmul.f32 %v4345, %v4413
        %v4447 = vmul.f32 %v4346, %v4414
        %v4448 = vmul.f32 %v4347, %v4415
        %v4449 = vmul.f32 %v4348, %v4416
        %v4450 = vmul.f32 %v4349, %v4417
        %v4451 = vmul.f32 %v4350, %v4402
        %4469 = vrot.lane.b32.xlu0 %v4435, 1
        %v4470 = vpop.permute.xlu0 %4469
        %4471 = vrot.lane.b32.xlu0 %v4436, 1
        %v4472 = vpop.permute.xlu0 %4471
        %4473 = vrot.lane.b32.xlu0 %v4437, 1
        %v4474 = vpop.permute.xlu0 %4473
        %4475 = vrot.lane.b32.xlu0 %v4438, 1
        %v4476 = vpop.permute.xlu0 %4475
        %4477 = vrot.lane.b32.xlu0 %v4439, 1
        %v4478 = vpop.permute.xlu0 %4477
        %4479 = vrot.lane.b32.xlu0 %v4440, 1
        %v4480 = vpop.permute.xlu0 %4479
        %4481 = vrot.lane.b32.xlu0 %v4441, 1
        %v4482 = vpop.permute.xlu0 %4481
        %4483 = vrot.lane.b32.xlu0 %v4442, 1
        %v4484 = vpop.permute.xlu0 %4483
        %4485 = vrot.lane.b32.xlu0 %v4443, 1
        %v4486 = vpop.permute.xlu0 %4485
        %4487 = vrot.lane.b32.xlu0 %v4444, 1
        %v4488 = vpop.permute.xlu0 %4487
        %4489 = vrot.lane.b32.xlu0 %v4445, 1
        %v4490 = vpop.permute.xlu0 %4489
        %4491 = vrot.lane.b32.xlu0 %v4446, 1
        %v4492 = vpop.permute.xlu0 %4491
        %4493 = vrot.lane.b32.xlu0 %v4447, 1
        %v4494 = vpop.permute.xlu0 %4493
        %4495 = vrot.lane.b32.xlu0 %v4448, 1
        %v4496 = vpop.permute.xlu0 %4495
        %4497 = vrot.lane.b32.xlu0 %v4449, 1
        %v4498 = vpop.permute.xlu0 %4497
        %4499 = vrot.lane.b32.xlu0 %v4450, 1
        %v4500 = vpop.permute.xlu0 %4499
        %4501 = vrot.lane.b32.xlu0 %v4451, 1
        %v4502 = vpop.permute.xlu0 %4501
        %v4503 = vsel %vm2262, %v4470, %v4472
        %v4504 = vsel %vm2262, %v4472, %v4474
        %v4505 = vsel %vm2262, %v4474, %v4476
        %v4506 = vsel %vm2262, %v4476, %v4478
        %v4507 = vsel %vm2262, %v4478, %v4480
        %v4508 = vsel %vm2262, %v4480, %v4482
        %v4509 = vsel %vm2262, %v4482, %v4484
        %v4510 = vsel %vm2262, %v4484, %v4486
        %v4511 = vsel %vm2262, %v4486, %v4488
        %v4512 = vsel %vm2262, %v4488, %v4490
        %v4513 = vsel %vm2262, %v4490, %v4492
        %v4514 = vsel %vm2262, %v4492, %v4494
        %v4515 = vsel %vm2262, %v4494, %v4496
        %v4516 = vsel %vm2262, %v4496, %v4498
        %v4517 = vsel %vm2262, %v4498, %v4500
        %v4518 = vsel %vm2262, %v4500, %v4502
        %4535 = vst [vmem:[#allocation2 + $0x198] sm:$0xff] %v4503
        %4536 = vst [vmem:[#allocation2 + $0x1a0] sm:$0xff] %v4504
        %4537 = vst [vmem:[#allocation2 + $0x1a8] sm:$0xff] %v4505
        %4538 = vst [vmem:[#allocation2 + $0x1b0] sm:$0xff] %v4506
        %4539 = vst [vmem:[#allocation2 + $0x1b8] sm:$0xff] %v4507
        %4540 = vst [vmem:[#allocation2 + $0x1c0] sm:$0xff] %v4508
        %4541 = vst [vmem:[#allocation2 + $0x1c8] sm:$0xff] %v4509
        %4542 = vst [vmem:[#allocation2 + $0x1d0] sm:$0xff] %v4510
        %4543 = vst [vmem:[#allocation2 + $0x1d8] sm:$0xff] %v4511
        %4544 = vst [vmem:[#allocation2 + $0x1e0] sm:$0xff] %v4512
        %4545 = vst [vmem:[#allocation2 + $0x1e8] sm:$0xff] %v4513
        %4546 = vst [vmem:[#allocation2 + $0x1f0] sm:$0xff] %v4514
        %4547 = vst [vmem:[#allocation2 + $0x1f8] sm:$0xff] %v4515
        %4548 = vst [vmem:[#allocation2 + $0x200] sm:$0xff] %v4516
        %4549 = vst [vmem:[#allocation2 + $0x208] sm:$0xff] %v4517
        %4550 = vst [vmem:[#allocation2 + $0x210] sm:$0xff] %v4518
        %v4551 = vld [vmem:[#allocation5 + $0x8] sm:$0xff]
        %v4552 = vld [vmem:[#allocation5 + $0x10] sm:$0xff]
        %v4553 = vld [vmem:[#allocation5 + $0x18] sm:$0xff]
        %v4554 = vld [vmem:[#allocation5 + $0x20] sm:$0xff]
        %v4555 = vld [vmem:[#allocation5 + $0x28] sm:$0xff]
        %v4556 = vld [vmem:[#allocation5 + $0x30] sm:$0xff]
        %v4557 = vld [vmem:[#allocation5 + $0x38] sm:$0xff]
        %v4558 = vld [vmem:[#allocation5 + $0x40] sm:$0xff]
        %v4559 = vld [vmem:[#allocation5 + $0x48] sm:$0xff]
        %v4560 = vld [vmem:[#allocation5 + $0x50] sm:$0xff]
        %v4561 = vld [vmem:[#allocation5 + $0x58] sm:$0xff]
        %v4562 = vld [vmem:[#allocation5 + $0x60] sm:$0xff]
        %v4563 = vld [vmem:[#allocation5 + $0x68] sm:$0xff]
        %v4564 = vld [vmem:[#allocation5 + $0x70] sm:$0xff]
        %v4565 = vld [vmem:[#allocation5 + $0x78] sm:$0xff]
        %v4566 = vld [vmem:[#allocation5 + $0x80] sm:$0xff]
        %4567 = vst [vmem:[#allocation2 + $0x220] sm:$0xff] %v4551
        %4568 = vst [vmem:[#allocation2 + $0x228] sm:$0xff] %v4552
        %4569 = vst [vmem:[#allocation2 + $0x230] sm:$0xff] %v4553
        %4570 = vst [vmem:[#allocation2 + $0x238] sm:$0xff] %v4554
        %4571 = vst [vmem:[#allocation2 + $0x240] sm:$0xff] %v4555
        %4572 = vst [vmem:[#allocation2 + $0x248] sm:$0xff] %v4556
        %4573 = vst [vmem:[#allocation2 + $0x250] sm:$0xff] %v4557
        %4574 = vst [vmem:[#allocation2 + $0x258] sm:$0xff] %v4558
        %4575 = vst [vmem:[#allocation2 + $0x260] sm:$0xff] %v4559
        %4576 = vst [vmem:[#allocation2 + $0x268] sm:$0xff] %v4560
        %4577 = vst [vmem:[#allocation2 + $0x270] sm:$0xff] %v4561
        %4578 = vst [vmem:[#allocation2 + $0x278] sm:$0xff] %v4562
        %4579 = vst [vmem:[#allocation2 + $0x280] sm:$0xff] %v4563
        %4580 = vst [vmem:[#allocation2 + $0x288] sm:$0xff] %v4564
        %4581 = vst [vmem:[#allocation2 + $0x290] sm:$0xff] %v4565
        %4582 = vst [vmem:[#allocation2 + $0x298] sm:$0xff] %v4566
        %v4583 = vld [vmem:[#allocation5 + $0x8] sm:$0xff]
        %v4584 = vld [vmem:[#allocation5 + $0x10] sm:$0xff]
        %v4585 = vld [vmem:[#allocation5 + $0x18] sm:$0xff]
        %v4586 = vld [vmem:[#allocation5 + $0x20] sm:$0xff]
        %v4587 = vld [vmem:[#allocation5 + $0x28] sm:$0xff]
        %v4588 = vld [vmem:[#allocation5 + $0x30] sm:$0xff]
        %v4589 = vld [vmem:[#allocation5 + $0x38] sm:$0xff]
        %v4590 = vld [vmem:[#allocation5 + $0x40] sm:$0xff]
        %v4591 = vld [vmem:[#allocation5 + $0x48] sm:$0xff]
        %v4592 = vld [vmem:[#allocation5 + $0x50] sm:$0xff]
        %v4593 = vld [vmem:[#allocation5 + $0x58] sm:$0xff]
        %v4594 = vld [vmem:[#allocation5 + $0x60] sm:$0xff]
        %v4595 = vld [vmem:[#allocation5 + $0x68] sm:$0xff]
        %v4596 = vld [vmem:[#allocation5 + $0x70] sm:$0xff]
        %v4597 = vld [vmem:[#allocation5 + $0x78] sm:$0xff]
        %v4598 = vld [vmem:[#allocation5 + $0x80] sm:$0xff]
        %v4599 = vld [vmem:[#allocation5 + $0x88] sm:$0xff]
        %v4600 = vld [vmem:[#allocation12] sm:$0xff]
        %v4601 = vld [vmem:[#allocation12 + $0x8] sm:$0xff]
        %v4604 = vperm.slane %v4600, 0
        %v4605 = vperm.slane %v4600, 1
        %v4606 = vperm.slane %v4600, 2
        %v4607 = vperm.slane %v4600, 3
        %v4608 = vperm.slane %v4600, 4
        %v4609 = vperm.slane %v4600, 5
        %v4610 = vperm.slane %v4600, 6
        %v4611 = vperm.slane %v4600, 7
        %v4612 = vperm.slane %v4601, 0
        %v4613 = vperm.slane %v4601, 1
        %v4614 = vperm.slane %v4601, 2
        %v4615 = vperm.slane %v4601, 3
        %v4616 = vperm.slane %v4601, 4
        %v4617 = vperm.slane %v4601, 5
        %v4618 = vperm.slane %v4601, 6
        %v4619 = vperm.slane %v4601, 7
        %4620 = vrot.lane.b32.xlu0 %v4604, 1
        %v4621 = vpop.permute.xlu0 %4620
        %4622 = vrot.lane.b32.xlu0 %v4605, 1
        %v4623 = vpop.permute.xlu0 %4622
        %4624 = vrot.lane.b32.xlu0 %v4606, 1
        %v4625 = vpop.permute.xlu0 %4624
        %4626 = vrot.lane.b32.xlu0 %v4607, 1
        %v4627 = vpop.permute.xlu0 %4626
        %4628 = vrot.lane.b32.xlu0 %v4608, 1
        %v4629 = vpop.permute.xlu0 %4628
        %4630 = vrot.lane.b32.xlu0 %v4609, 1
        %v4631 = vpop.permute.xlu0 %4630
        %4632 = vrot.lane.b32.xlu0 %v4610, 1
        %v4633 = vpop.permute.xlu0 %4632
        %4634 = vrot.lane.b32.xlu0 %v4611, 1
        %v4635 = vpop.permute.xlu0 %4634
        %4636 = vrot.lane.b32.xlu0 %v4612, 1
        %v4637 = vpop.permute.xlu0 %4636
        %4638 = vrot.lane.b32.xlu0 %v4613, 1
        %v4639 = vpop.permute.xlu0 %4638
        %4640 = vrot.lane.b32.xlu0 %v4614, 1
        %v4641 = vpop.permute.xlu0 %4640
        %4642 = vrot.lane.b32.xlu0 %v4615, 1
        %v4643 = vpop.permute.xlu0 %4642
        %4644 = vrot.lane.b32.xlu0 %v4616, 1
        %v4645 = vpop.permute.xlu0 %4644
        %4646 = vrot.lane.b32.xlu0 %v4617, 1
        %v4647 = vpop.permute.xlu0 %4646
        %4648 = vrot.lane.b32.xlu0 %v4618, 1
        %v4649 = vpop.permute.xlu0 %4648
        %4650 = vrot.lane.b32.xlu0 %v4619, 1
        %v4651 = vpop.permute.xlu0 %4650
        %v4652 = vsel %vm2262, %v4621, %v4623
        %v4653 = vsel %vm2262, %v4623, %v4625
        %v4654 = vsel %vm2262, %v4625, %v4627
        %v4655 = vsel %vm2262, %v4627, %v4629
        %v4656 = vsel %vm2262, %v4629, %v4631
        %v4657 = vsel %vm2262, %v4631, %v4633
        %v4658 = vsel %vm2262, %v4633, %v4635
        %v4659 = vsel %vm2262, %v4635, %v4637
        %v4660 = vsel %vm2262, %v4637, %v4639
        %v4661 = vsel %vm2262, %v4639, %v4641
        %v4662 = vsel %vm2262, %v4641, %v4643
        %v4663 = vsel %vm2262, %v4643, %v4645
        %v4664 = vsel %vm2262, %v4645, %v4647
        %v4665 = vsel %vm2262, %v4647, %v4649
        %v4666 = vsel %vm2262, %v4649, %v4651
        %v4684 = vmul.f32 %v4583, %v4621
        %v4685 = vmul.f32 %v4584, %v4652
        %v4686 = vmul.f32 %v4585, %v4653
        %v4687 = vmul.f32 %v4586, %v4654
        %v4688 = vmul.f32 %v4587, %v4655
        %v4689 = vmul.f32 %v4588, %v4656
        %v4690 = vmul.f32 %v4589, %v4657
        %v4691 = vmul.f32 %v4590, %v4658
        %v4692 = vmul.f32 %v4591, %v4659
        %v4693 = vmul.f32 %v4592, %v4660
        %v4694 = vmul.f32 %v4593, %v4661
        %v4695 = vmul.f32 %v4594, %v4662
        %v4696 = vmul.f32 %v4595, %v4663
        %v4697 = vmul.f32 %v4596, %v4664
        %v4698 = vmul.f32 %v4597, %v4665
        %v4699 = vmul.f32 %v4598, %v4666
        %v4700 = vmul.f32 %v4599, %v4651
        %4718 = vrot.lane.b32.xlu0 %v4684, 127
        %v4719 = vpop.permute.xlu0 %4718
        %4720 = vrot.lane.b32.xlu0 %v4685, 127
        %v4721 = vpop.permute.xlu0 %4720
        %4722 = vrot.lane.b32.xlu0 %v4686, 127
        %v4723 = vpop.permute.xlu0 %4722
        %4724 = vrot.lane.b32.xlu0 %v4687, 127
        %v4725 = vpop.permute.xlu0 %4724
        %4726 = vrot.lane.b32.xlu0 %v4688, 127
        %v4727 = vpop.permute.xlu0 %4726
        %4728 = vrot.lane.b32.xlu0 %v4689, 127
        %v4729 = vpop.permute.xlu0 %4728
        %4730 = vrot.lane.b32.xlu0 %v4690, 127
        %v4731 = vpop.permute.xlu0 %4730
        %4732 = vrot.lane.b32.xlu0 %v4691, 127
        %v4733 = vpop.permute.xlu0 %4732
        %4734 = vrot.lane.b32.xlu0 %v4692, 127
        %v4735 = vpop.permute.xlu0 %4734
        %4736 = vrot.lane.b32.xlu0 %v4693, 127
        %v4737 = vpop.permute.xlu0 %4736
        %4738 = vrot.lane.b32.xlu0 %v4694, 127
        %v4739 = vpop.permute.xlu0 %4738
        %4740 = vrot.lane.b32.xlu0 %v4695, 127
        %v4741 = vpop.permute.xlu0 %4740
        %4742 = vrot.lane.b32.xlu0 %v4696, 127
        %v4743 = vpop.permute.xlu0 %4742
        %4744 = vrot.lane.b32.xlu0 %v4697, 127
        %v4745 = vpop.permute.xlu0 %4744
        %4746 = vrot.lane.b32.xlu0 %v4698, 127
        %v4747 = vpop.permute.xlu0 %4746
        %4748 = vrot.lane.b32.xlu0 %v4699, 127
        %v4749 = vpop.permute.xlu0 %4748
        %4750 = vrot.lane.b32.xlu0 %v4700, 127
        %v4751 = vpop.permute.xlu0 %4750
        %v4752 = vsel %vm2155, %v4719, %v4721
        %v4753 = vsel %vm2155, %v4721, %v4723
        %v4754 = vsel %vm2155, %v4723, %v4725
        %v4755 = vsel %vm2155, %v4725, %v4727
        %v4756 = vsel %vm2155, %v4727, %v4729
        %v4757 = vsel %vm2155, %v4729, %v4731
        %v4758 = vsel %vm2155, %v4731, %v4733
        %v4759 = vsel %vm2155, %v4733, %v4735
        %v4760 = vsel %vm2155, %v4735, %v4737
        %v4761 = vsel %vm2155, %v4737, %v4739
        %v4762 = vsel %vm2155, %v4739, %v4741
        %v4763 = vsel %vm2155, %v4741, %v4743
        %v4764 = vsel %vm2155, %v4743, %v4745
        %v4765 = vsel %vm2155, %v4745, %v4747
        %v4766 = vsel %vm2155, %v4747, %v4749
        %v4767 = vsel %vm2155, %v4749, %v4751
        %4784 = vst [vmem:[#allocation2 + $0x2a8] sm:$0xff] %v4752
        %4785 = vst [vmem:[#allocation2 + $0x2b0] sm:$0xff] %v4753
        %4786 = vst [vmem:[#allocation2 + $0x2b8] sm:$0xff] %v4754
        %4787 = vst [vmem:[#allocation2 + $0x2c0] sm:$0xff] %v4755
        %4788 = vst [vmem:[#allocation2 + $0x2c8] sm:$0xff] %v4756
        %4789 = vst [vmem:[#allocation2 + $0x2d0] sm:$0xff] %v4757
        %4790 = vst [vmem:[#allocation2 + $0x2d8] sm:$0xff] %v4758
        %4791 = vst [vmem:[#allocation2 + $0x2e0] sm:$0xff] %v4759
        %4792 = vst [vmem:[#allocation2 + $0x2e8] sm:$0xff] %v4760
        %4793 = vst [vmem:[#allocation2 + $0x2f0] sm:$0xff] %v4761
        %4794 = vst [vmem:[#allocation2 + $0x2f8] sm:$0xff] %v4762
        %4795 = vst [vmem:[#allocation2 + $0x300] sm:$0xff] %v4763
        %4796 = vst [vmem:[#allocation2 + $0x308] sm:$0xff] %v4764
        %4797 = vst [vmem:[#allocation2 + $0x310] sm:$0xff] %v4765
        %4798 = vst [vmem:[#allocation2 + $0x318] sm:$0xff] %v4766
        %4799 = vst [vmem:[#allocation2 + $0x320] sm:$0xff] %v4767
        %v4800 = vld [vmem:[#allocation5 + $0x8] sm:$0xff]
        %v4801 = vld [vmem:[#allocation5 + $0x10] sm:$0xff]
        %v4802 = vld [vmem:[#allocation5 + $0x18] sm:$0xff]
        %v4803 = vld [vmem:[#allocation5 + $0x20] sm:$0xff]
        %v4804 = vld [vmem:[#allocation5 + $0x28] sm:$0xff]
        %v4805 = vld [vmem:[#allocation5 + $0x30] sm:$0xff]
        %v4806 = vld [vmem:[#allocation5 + $0x38] sm:$0xff]
        %v4807 = vld [vmem:[#allocation5 + $0x40] sm:$0xff]
        %v4808 = vld [vmem:[#allocation5 + $0x48] sm:$0xff]
        %v4809 = vld [vmem:[#allocation5 + $0x50] sm:$0xff]
        %v4810 = vld [vmem:[#allocation5 + $0x58] sm:$0xff]
        %v4811 = vld [vmem:[#allocation5 + $0x60] sm:$0xff]
        %v4812 = vld [vmem:[#allocation5 + $0x68] sm:$0xff]
        %v4813 = vld [vmem:[#allocation5 + $0x70] sm:$0xff]
        %v4814 = vld [vmem:[#allocation5 + $0x78] sm:$0xff]
        %v4815 = vld [vmem:[#allocation5 + $0x80] sm:$0xff]
        %v4816 = vld [vmem:[#allocation5 + $0x88] sm:$0xff]
        %v4817 = vld [vmem:[%s9] sm:$0xff]
        %v4818 = vld [vmem:[%s9 + $0x8] sm:$0xff]
        %v4821 = vperm.slane %v4817, 0
        %v4822 = vperm.slane %v4817, 1
        %v4823 = vperm.slane %v4817, 2
        %v4824 = vperm.slane %v4817, 3
        %v4825 = vperm.slane %v4817, 4
        %v4826 = vperm.slane %v4817, 5
        %v4827 = vperm.slane %v4817, 6
        %v4828 = vperm.slane %v4817, 7
        %v4829 = vperm.slane %v4818, 0
        %v4830 = vperm.slane %v4818, 1
        %v4831 = vperm.slane %v4818, 2
        %v4832 = vperm.slane %v4818, 3
        %v4833 = vperm.slane %v4818, 4
        %v4834 = vperm.slane %v4818, 5
        %v4835 = vperm.slane %v4818, 6
        %v4836 = vperm.slane %v4818, 7
        %4837 = vrot.lane.b32.xlu0 %v4821, 63
        %v4838 = vpop.permute.xlu0 %4837
        %4839 = vrot.lane.b32.xlu0 %v4822, 63
        %v4840 = vpop.permute.xlu0 %4839
        %4841 = vrot.lane.b32.xlu0 %v4823, 63
        %v4842 = vpop.permute.xlu0 %4841
        %4843 = vrot.lane.b32.xlu0 %v4824, 63
        %v4844 = vpop.permute.xlu0 %4843
        %4845 = vrot.lane.b32.xlu0 %v4825, 63
        %v4846 = vpop.permute.xlu0 %4845
        %4847 = vrot.lane.b32.xlu0 %v4826, 63
        %v4848 = vpop.permute.xlu0 %4847
        %4849 = vrot.lane.b32.xlu0 %v4827, 63
        %v4850 = vpop.permute.xlu0 %4849
        %4851 = vrot.lane.b32.xlu0 %v4828, 63
        %v4852 = vpop.permute.xlu0 %4851
        %4853 = vrot.lane.b32.xlu0 %v4829, 63
        %v4854 = vpop.permute.xlu0 %4853
        %4855 = vrot.lane.b32.xlu0 %v4830, 63
        %v4856 = vpop.permute.xlu0 %4855
        %4857 = vrot.lane.b32.xlu0 %v4831, 63
        %v4858 = vpop.permute.xlu0 %4857
        %4859 = vrot.lane.b32.xlu0 %v4832, 63
        %v4860 = vpop.permute.xlu0 %4859
        %4861 = vrot.lane.b32.xlu0 %v4833, 63
        %v4862 = vpop.permute.xlu0 %4861
        %4863 = vrot.lane.b32.xlu0 %v4834, 63
        %v4864 = vpop.permute.xlu0 %4863
        %4865 = vrot.lane.b32.xlu0 %v4835, 63
        %v4866 = vpop.permute.xlu0 %4865
        %4867 = vrot.lane.b32.xlu0 %v4836, 63
        %v4868 = vpop.permute.xlu0 %4867
        %v4869 = vsel %vm1565, %v4838, %v4840
        %v4870 = vsel %vm1565, %v4840, %v4842
        %v4871 = vsel %vm1565, %v4842, %v4844
        %v4872 = vsel %vm1565, %v4844, %v4846
        %v4873 = vsel %vm1565, %v4846, %v4848
        %v4874 = vsel %vm1565, %v4848, %v4850
        %v4875 = vsel %vm1565, %v4850, %v4852
        %v4876 = vsel %vm1565, %v4852, %v4854
        %v4877 = vsel %vm1565, %v4854, %v4856
        %v4878 = vsel %vm1565, %v4856, %v4858
        %v4879 = vsel %vm1565, %v4858, %v4860
        %v4880 = vsel %vm1565, %v4860, %v4862
        %v4881 = vsel %vm1565, %v4862, %v4864
        %v4882 = vsel %vm1565, %v4864, %v4866
        %v4883 = vsel %vm1565, %v4866, %v4868
        %v4901 = vmul.f32 %v4800, %v4838
        %v4902 = vmul.f32 %v4801, %v4869
        %v4903 = vmul.f32 %v4802, %v4870
        %v4904 = vmul.f32 %v4803, %v4871
        %v4905 = vmul.f32 %v4804, %v4872
        %v4906 = vmul.f32 %v4805, %v4873
        %v4907 = vmul.f32 %v4806, %v4874
        %v4908 = vmul.f32 %v4807, %v4875
        %v4909 = vmul.f32 %v4808, %v4876
        %v4910 = vmul.f32 %v4809, %v4877
        %v4911 = vmul.f32 %v4810, %v4878
        %v4912 = vmul.f32 %v4811, %v4879
        %v4913 = vmul.f32 %v4812, %v4880
        %v4914 = vmul.f32 %v4813, %v4881
        %v4915 = vmul.f32 %v4814, %v4882
        %v4916 = vmul.f32 %v4815, %v4883
        %v4917 = vmul.f32 %v4816, %v4868
        %4935 = vrot.lane.b32.xlu0 %v4901, 65
        %v4936 = vpop.permute.xlu0 %4935
        %4937 = vrot.lane.b32.xlu0 %v4902, 65
        %v4938 = vpop.permute.xlu0 %4937
        %4939 = vrot.lane.b32.xlu0 %v4903, 65
        %v4940 = vpop.permute.xlu0 %4939
        %4941 = vrot.lane.b32.xlu0 %v4904, 65
        %v4942 = vpop.permute.xlu0 %4941
        %4943 = vrot.lane.b32.xlu0 %v4905, 65
        %v4944 = vpop.permute.xlu0 %4943
        %4945 = vrot.lane.b32.xlu0 %v4906, 65
        %v4946 = vpop.permute.xlu0 %4945
        %4947 = vrot.lane.b32.xlu0 %v4907, 65
        %v4948 = vpop.permute.xlu0 %4947
        %4949 = vrot.lane.b32.xlu0 %v4908, 65
        %v4950 = vpop.permute.xlu0 %4949
        %4951 = vrot.lane.b32.xlu0 %v4909, 65
        %v4952 = vpop.permute.xlu0 %4951
        %4953 = vrot.lane.b32.xlu0 %v4910, 65
        %v4954 = vpop.permute.xlu0 %4953
        %4955 = vrot.lane.b32.xlu0 %v4911, 65
        %v4956 = vpop.permute.xlu0 %4955
        %4957 = vrot.lane.b32.xlu0 %v4912, 65
        %v4958 = vpop.permute.xlu0 %4957
        %4959 = vrot.lane.b32.xlu0 %v4913, 65
        %v4960 = vpop.permute.xlu0 %4959
        %4961 = vrot.lane.b32.xlu0 %v4914, 65
        %v4962 = vpop.permute.xlu0 %4961
        %4963 = vrot.lane.b32.xlu0 %v4915, 65
        %v4964 = vpop.permute.xlu0 %4963
        %4965 = vrot.lane.b32.xlu0 %v4916, 65
        %v4966 = vpop.permute.xlu0 %4965
        %4967 = vrot.lane.b32.xlu0 %v4917, 65
        %v4968 = vpop.permute.xlu0 %4967
        %v4969 = vsel %vm1672, %v4936, %v4938
        %v4970 = vsel %vm1672, %v4938, %v4940
        %v4971 = vsel %vm1672, %v4940, %v4942
        %v4972 = vsel %vm1672, %v4942, %v4944
        %v4973 = vsel %vm1672, %v4944, %v4946
        %v4974 = vsel %vm1672, %v4946, %v4948
        %v4975 = vsel %vm1672, %v4948, %v4950
        %v4976 = vsel %vm1672, %v4950, %v4952
        %v4977 = vsel %vm1672, %v4952, %v4954
        %v4978 = vsel %vm1672, %v4954, %v4956
        %v4979 = vsel %vm1672, %v4956, %v4958
        %v4980 = vsel %vm1672, %v4958, %v4960
        %v4981 = vsel %vm1672, %v4960, %v4962
        %v4982 = vsel %vm1672, %v4962, %v4964
        %v4983 = vsel %vm1672, %v4964, %v4966
        %v4984 = vsel %vm1672, %v4966, %v4968
        %5001 = vst [vmem:[#allocation2 + $0x330] sm:$0xff] %v4969
        %5002 = vst [vmem:[#allocation2 + $0x338] sm:$0xff] %v4970
        %5003 = vst [vmem:[#allocation2 + $0x340] sm:$0xff] %v4971
        %5004 = vst [vmem:[#allocation2 + $0x348] sm:$0xff] %v4972
        %5005 = vst [vmem:[#allocation2 + $0x350] sm:$0xff] %v4973
        %5006 = vst [vmem:[#allocation2 + $0x358] sm:$0xff] %v4974
        %5007 = vst [vmem:[#allocation2 + $0x360] sm:$0xff] %v4975
        %5008 = vst [vmem:[#allocation2 + $0x368] sm:$0xff] %v4976
        %5009 = vst [vmem:[#allocation2 + $0x370] sm:$0xff] %v4977
        %5010 = vst [vmem:[#allocation2 + $0x378] sm:$0xff] %v4978
        %5011 = vst [vmem:[#allocation2 + $0x380] sm:$0xff] %v4979
        %5012 = vst [vmem:[#allocation2 + $0x388] sm:$0xff] %v4980
        %5013 = vst [vmem:[#allocation2 + $0x390] sm:$0xff] %v4981
        %5014 = vst [vmem:[#allocation2 + $0x398] sm:$0xff] %v4982
        %5015 = vst [vmem:[#allocation2 + $0x3a0] sm:$0xff] %v4983
        %5016 = vst [vmem:[#allocation2 + $0x3a8] sm:$0xff] %v4984
        %v5017 = vld [vmem:[#allocation5 + $0x8] sm:$0xff]
        %v5018 = vld [vmem:[#allocation5 + $0x10] sm:$0xff]
        %v5019 = vld [vmem:[#allocation5 + $0x18] sm:$0xff]
        %v5020 = vld [vmem:[#allocation5 + $0x20] sm:$0xff]
        %v5021 = vld [vmem:[#allocation5 + $0x28] sm:$0xff]
        %v5022 = vld [vmem:[#allocation5 + $0x30] sm:$0xff]
        %v5023 = vld [vmem:[#allocation5 + $0x38] sm:$0xff]
        %v5024 = vld [vmem:[#allocation5 + $0x40] sm:$0xff]
        %v5025 = vld [vmem:[#allocation5 + $0x48] sm:$0xff]
        %v5026 = vld [vmem:[#allocation5 + $0x50] sm:$0xff]
        %v5027 = vld [vmem:[#allocation5 + $0x58] sm:$0xff]
        %v5028 = vld [vmem:[#allocation5 + $0x60] sm:$0xff]
        %v5029 = vld [vmem:[#allocation5 + $0x68] sm:$0xff]
        %v5030 = vld [vmem:[#allocation5 + $0x70] sm:$0xff]
        %v5031 = vld [vmem:[#allocation5 + $0x78] sm:$0xff]
        %v5032 = vld [vmem:[#allocation5 + $0x80] sm:$0xff]
        %v5033 = vld [vmem:[#allocation5 + $0x88] sm:$0xff]
        %5051 = vrot.lane.b32.xlu0 %v5017, 64
        %v5052 = vpop.permute.xlu0 %5051
        %5053 = vrot.lane.b32.xlu0 %v5018, 64
        %v5054 = vpop.permute.xlu0 %5053
        %5055 = vrot.lane.b32.xlu0 %v5019, 64
        %v5056 = vpop.permute.xlu0 %5055
        %5057 = vrot.lane.b32.xlu0 %v5020, 64
        %v5058 = vpop.permute.xlu0 %5057
        %5059 = vrot.lane.b32.xlu0 %v5021, 64
        %v5060 = vpop.permute.xlu0 %5059
        %5061 = vrot.lane.b32.xlu0 %v5022, 64
        %v5062 = vpop.permute.xlu0 %5061
        %5063 = vrot.lane.b32.xlu0 %v5023, 64
        %v5064 = vpop.permute.xlu0 %5063
        %5065 = vrot.lane.b32.xlu0 %v5024, 64
        %v5066 = vpop.permute.xlu0 %5065
        %5067 = vrot.lane.b32.xlu0 %v5025, 64
        %v5068 = vpop.permute.xlu0 %5067
        %5069 = vrot.lane.b32.xlu0 %v5026, 64
        %v5070 = vpop.permute.xlu0 %5069
        %5071 = vrot.lane.b32.xlu0 %v5027, 64
        %v5072 = vpop.permute.xlu0 %5071
        %5073 = vrot.lane.b32.xlu0 %v5028, 64
        %v5074 = vpop.permute.xlu0 %5073
        %5075 = vrot.lane.b32.xlu0 %v5029, 64
        %v5076 = vpop.permute.xlu0 %5075
        %5077 = vrot.lane.b32.xlu0 %v5030, 64
        %v5078 = vpop.permute.xlu0 %5077
        %5079 = vrot.lane.b32.xlu0 %v5031, 64
        %v5080 = vpop.permute.xlu0 %5079
        %5081 = vrot.lane.b32.xlu0 %v5032, 64
        %v5082 = vpop.permute.xlu0 %5081
        %5083 = vrot.lane.b32.xlu0 %v5033, 64
        %v5084 = vpop.permute.xlu0 %5083
        %v5085 = vsel %vm1796, %v5052, %v5054
        %v5086 = vsel %vm1796, %v5054, %v5056
        %v5087 = vsel %vm1796, %v5056, %v5058
        %v5088 = vsel %vm1796, %v5058, %v5060
        %v5089 = vsel %vm1796, %v5060, %v5062
        %v5090 = vsel %vm1796, %v5062, %v5064
        %v5091 = vsel %vm1796, %v5064, %v5066
        %v5092 = vsel %vm1796, %v5066, %v5068
        %v5093 = vsel %vm1796, %v5068, %v5070
        %v5094 = vsel %vm1796, %v5070, %v5072
        %v5095 = vsel %vm1796, %v5072, %v5074
        %v5096 = vsel %vm1796, %v5074, %v5076
        %v5097 = vsel %vm1796, %v5076, %v5078
        %v5098 = vsel %vm1796, %v5078, %v5080
        %v5099 = vsel %vm1796, %v5080, %v5082
        %v5100 = vsel %vm1796, %v5082, %v5084
        %5117 = vst [vmem:[#allocation2 + $0x3b8] sm:$0xff] %v5085
        %5118 = vst [vmem:[#allocation2 + $0x3c0] sm:$0xff] %v5086
        %5119 = vst [vmem:[#allocation2 + $0x3c8] sm:$0xff] %v5087
        %5120 = vst [vmem:[#allocation2 + $0x3d0] sm:$0xff] %v5088
        %5121 = vst [vmem:[#allocation2 + $0x3d8] sm:$0xff] %v5089
        %5122 = vst [vmem:[#allocation2 + $0x3e0] sm:$0xff] %v5090
        %5123 = vst [vmem:[#allocation2 + $0x3e8] sm:$0xff] %v5091
        %5124 = vst [vmem:[#allocation2 + $0x3f0] sm:$0xff] %v5092
        %5125 = vst [vmem:[#allocation2 + $0x3f8] sm:$0xff] %v5093
        %5126 = vst [vmem:[#allocation2 + $0x400] sm:$0xff] %v5094
        %5127 = vst [vmem:[#allocation2 + $0x408] sm:$0xff] %v5095
        %5128 = vst [vmem:[#allocation2 + $0x410] sm:$0xff] %v5096
        %5129 = vst [vmem:[#allocation2 + $0x418] sm:$0xff] %v5097
        %5130 = vst [vmem:[#allocation2 + $0x420] sm:$0xff] %v5098
        %5131 = vst [vmem:[#allocation2 + $0x428] sm:$0xff] %v5099
        %5132 = vst [vmem:[#allocation2 + $0x430] sm:$0xff] %v5100
        %v5133 = vld [vmem:[#allocation5 + $0x8] sm:$0xff]
        %v5134 = vld [vmem:[#allocation5 + $0x10] sm:$0xff]
        %v5135 = vld [vmem:[#allocation5 + $0x18] sm:$0xff]
        %v5136 = vld [vmem:[#allocation5 + $0x20] sm:$0xff]
        %v5137 = vld [vmem:[#allocation5 + $0x28] sm:$0xff]
        %v5138 = vld [vmem:[#allocation5 + $0x30] sm:$0xff]
        %v5139 = vld [vmem:[#allocation5 + $0x38] sm:$0xff]
        %v5140 = vld [vmem:[#allocation5 + $0x40] sm:$0xff]
        %v5141 = vld [vmem:[#allocation5 + $0x48] sm:$0xff]
        %v5142 = vld [vmem:[#allocation5 + $0x50] sm:$0xff]
        %v5143 = vld [vmem:[#allocation5 + $0x58] sm:$0xff]
        %v5144 = vld [vmem:[#allocation5 + $0x60] sm:$0xff]
        %v5145 = vld [vmem:[#allocation5 + $0x68] sm:$0xff]
        %v5146 = vld [vmem:[#allocation5 + $0x70] sm:$0xff]
        %v5147 = vld [vmem:[#allocation5 + $0x78] sm:$0xff]
        %v5148 = vld [vmem:[#allocation5 + $0x80] sm:$0xff]
        %v5149 = vld [vmem:[#allocation5 + $0x88] sm:$0xff]
        %v5150 = vld [vmem:[#allocation12] sm:$0xff]
        %v5151 = vld [vmem:[#allocation12 + $0x8] sm:$0xff]
        %v5154 = vperm.slane %v5150, 0
        %v5155 = vperm.slane %v5150, 1
        %v5156 = vperm.slane %v5150, 2
        %v5157 = vperm.slane %v5150, 3
        %v5158 = vperm.slane %v5150, 4
        %v5159 = vperm.slane %v5150, 5
        %v5160 = vperm.slane %v5150, 6
        %v5161 = vperm.slane %v5150, 7
        %v5162 = vperm.slane %v5151, 0
        %v5163 = vperm.slane %v5151, 1
        %v5164 = vperm.slane %v5151, 2
        %v5165 = vperm.slane %v5151, 3
        %v5166 = vperm.slane %v5151, 4
        %v5167 = vperm.slane %v5151, 5
        %v5168 = vperm.slane %v5151, 6
        %v5169 = vperm.slane %v5151, 7
        %5170 = vrot.lane.b32.xlu0 %v5154, 65
        %v5171 = vpop.permute.xlu0 %5170
        %5172 = vrot.lane.b32.xlu0 %v5155, 65
        %v5173 = vpop.permute.xlu0 %5172
        %5174 = vrot.lane.b32.xlu0 %v5156, 65
        %v5175 = vpop.permute.xlu0 %5174
        %5176 = vrot.lane.b32.xlu0 %v5157, 65
        %v5177 = vpop.permute.xlu0 %5176
        %5178 = vrot.lane.b32.xlu0 %v5158, 65
        %v5179 = vpop.permute.xlu0 %5178
        %5180 = vrot.lane.b32.xlu0 %v5159, 65
        %v5181 = vpop.permute.xlu0 %5180
        %5182 = vrot.lane.b32.xlu0 %v5160, 65
        %v5183 = vpop.permute.xlu0 %5182
        %5184 = vrot.lane.b32.xlu0 %v5161, 65
        %v5185 = vpop.permute.xlu0 %5184
        %5186 = vrot.lane.b32.xlu0 %v5162, 65
        %v5187 = vpop.permute.xlu0 %5186
        %5188 = vrot.lane.b32.xlu0 %v5163, 65
        %v5189 = vpop.permute.xlu0 %5188
        %5190 = vrot.lane.b32.xlu0 %v5164, 65
        %v5191 = vpop.permute.xlu0 %5190
        %5192 = vrot.lane.b32.xlu0 %v5165, 65
        %v5193 = vpop.permute.xlu0 %5192
        %5194 = vrot.lane.b32.xlu0 %v5166, 65
        %v5195 = vpop.permute.xlu0 %5194
        %5196 = vrot.lane.b32.xlu0 %v5167, 65
        %v5197 = vpop.permute.xlu0 %5196
        %5198 = vrot.lane.b32.xlu0 %v5168, 65
        %v5199 = vpop.permute.xlu0 %5198
        %5200 = vrot.lane.b32.xlu0 %v5169, 65
        %v5201 = vpop.permute.xlu0 %5200
        %v5202 = vsel %vm1672, %v5171, %v5173
        %v5203 = vsel %vm1672, %v5173, %v5175
        %v5204 = vsel %vm1672, %v5175, %v5177
        %v5205 = vsel %vm1672, %v5177, %v5179
        %v5206 = vsel %vm1672, %v5179, %v5181
        %v5207 = vsel %vm1672, %v5181, %v5183
        %v5208 = vsel %vm1672, %v5183, %v5185
        %v5209 = vsel %vm1672, %v5185, %v5187
        %v5210 = vsel %vm1672, %v5187, %v5189
        %v5211 = vsel %vm1672, %v5189, %v5191
        %v5212 = vsel %vm1672, %v5191, %v5193
        %v5213 = vsel %vm1672, %v5193, %v5195
        %v5214 = vsel %vm1672, %v5195, %v5197
        %v5215 = vsel %vm1672, %v5197, %v5199
        %v5216 = vsel %vm1672, %v5199, %v5201
        %v5234 = vmul.f32 %v5133, %v5171
        %v5235 = vmul.f32 %v5134, %v5202
        %v5236 = vmul.f32 %v5135, %v5203
        %v5237 = vmul.f32 %v5136, %v5204
        %v5238 = vmul.f32 %v5137, %v5205
        %v5239 = vmul.f32 %v5138, %v5206
        %v5240 = vmul.f32 %v5139, %v5207
        %v5241 = vmul.f32 %v5140, %v5208
        %v5242 = vmul.f32 %v5141, %v5209
        %v5243 = vmul.f32 %v5142, %v5210
        %v5244 = vmul.f32 %v5143, %v5211
        %v5245 = vmul.f32 %v5144, %v5212
        %v5246 = vmul.f32 %v5145, %v5213
        %v5247 = vmul.f32 %v5146, %v5214
        %v5248 = vmul.f32 %v5147, %v5215
        %v5249 = vmul.f32 %v5148, %v5216
        %v5250 = vmul.f32 %v5149, %v5201
        %5268 = vrot.lane.b32.xlu0 %v5234, 63
        %v5269 = vpop.permute.xlu0 %5268
        %5270 = vrot.lane.b32.xlu0 %v5235, 63
        %v5271 = vpop.permute.xlu0 %5270
        %5272 = vrot.lane.b32.xlu0 %v5236, 63
        %v5273 = vpop.permute.xlu0 %5272
        %5274 = vrot.lane.b32.xlu0 %v5237, 63
        %v5275 = vpop.permute.xlu0 %5274
        %5276 = vrot.lane.b32.xlu0 %v5238, 63
        %v5277 = vpop.permute.xlu0 %5276
        %5278 = vrot.lane.b32.xlu0 %v5239, 63
        %v5279 = vpop.permute.xlu0 %5278
        %5280 = vrot.lane.b32.xlu0 %v5240, 63
        %v5281 = vpop.permute.xlu0 %5280
        %5282 = vrot.lane.b32.xlu0 %v5241, 63
        %v5283 = vpop.permute.xlu0 %5282
        %5284 = vrot.lane.b32.xlu0 %v5242, 63
        %v5285 = vpop.permute.xlu0 %5284
        %5286 = vrot.lane.b32.xlu0 %v5243, 63
        %v5287 = vpop.permute.xlu0 %5286
        %5288 = vrot.lane.b32.xlu0 %v5244, 63
        %v5289 = vpop.permute.xlu0 %5288
        %5290 = vrot.lane.b32.xlu0 %v5245, 63
        %v5291 = vpop.permute.xlu0 %5290
        %5292 = vrot.lane.b32.xlu0 %v5246, 63
        %v5293 = vpop.permute.xlu0 %5292
        %5294 = vrot.lane.b32.xlu0 %v5247, 63
        %v5295 = vpop.permute.xlu0 %5294
        %5296 = vrot.lane.b32.xlu0 %v5248, 63
        %v5297 = vpop.permute.xlu0 %5296
        %5298 = vrot.lane.b32.xlu0 %v5249, 63
        %v5299 = vpop.permute.xlu0 %5298
        %5300 = vrot.lane.b32.xlu0 %v5250, 63
        %v5301 = vpop.permute.xlu0 %5300
        %v5302 = vsel %vm1565, %v5269, %v5271
        %v5303 = vsel %vm1565, %v5271, %v5273
        %v5304 = vsel %vm1565, %v5273, %v5275
        %v5305 = vsel %vm1565, %v5275, %v5277
        %v5306 = vsel %vm1565, %v5277, %v5279
        %v5307 = vsel %vm1565, %v5279, %v5281
        %v5308 = vsel %vm1565, %v5281, %v5283
        %v5309 = vsel %vm1565, %v5283, %v5285
        %v5310 = vsel %vm1565, %v5285, %v5287
        %v5311 = vsel %vm1565, %v5287, %v5289
        %v5312 = vsel %vm1565, %v5289, %v5291
        %v5313 = vsel %vm1565, %v5291, %v5293
        %v5314 = vsel %vm1565, %v5293, %v5295
        %v5315 = vsel %vm1565, %v5295, %v5297
        %v5316 = vsel %vm1565, %v5297, %v5299
        %v5317 = vsel %vm1565, %v5299, %v5301
        %5334 = vst [vmem:[#allocation2 + $0x440] sm:$0xff] %v5302
        %5335 = vst [vmem:[#allocation2 + $0x448] sm:$0xff] %v5303
        %5336 = vst [vmem:[#allocation2 + $0x450] sm:$0xff] %v5304
        %5337 = vst [vmem:[#allocation2 + $0x458] sm:$0xff] %v5305
        %5338 = vst [vmem:[#allocation2 + $0x460] sm:$0xff] %v5306
        %5339 = vst [vmem:[#allocation2 + $0x468] sm:$0xff] %v5307
        %5340 = vst [vmem:[#allocation2 + $0x470] sm:$0xff] %v5308
        %5341 = vst [vmem:[#allocation2 + $0x478] sm:$0xff] %v5309
        %5342 = vst [vmem:[#allocation2 + $0x480] sm:$0xff] %v5310
        %5343 = vst [vmem:[#allocation2 + $0x488] sm:$0xff] %v5311
        %5344 = vst [vmem:[#allocation2 + $0x490] sm:$0xff] %v5312
        %5345 = vst [vmem:[#allocation2 + $0x498] sm:$0xff] %v5313
        %5346 = vst [vmem:[#allocation2 + $0x4a0] sm:$0xff] %v5314
        %5347 = vst [vmem:[#allocation2 + $0x4a8] sm:$0xff] %v5315
        %5348 = vst [vmem:[#allocation2 + $0x4b0] sm:$0xff] %v5316
        %5349 = vst [vmem:[#allocation2 + $0x4b8] sm:$0xff] %v5317
        %v5350 = vld [vmem:[#allocation11] sm:$0xff]
        %v5351 = vld [vmem:[#allocation2] sm:$0xff]
        %v5352 = vld [vmem:[#allocation2 + $0x8] sm:$0xff]
        %v5353 = vld [vmem:[#allocation2 + $0x10] sm:$0xff]
        %v5354 = vld [vmem:[#allocation2 + $0x18] sm:$0xff]
        %v5355 = vld [vmem:[#allocation2 + $0x20] sm:$0xff]
        %v5356 = vld [vmem:[#allocation2 + $0x28] sm:$0xff]
        %v5357 = vld [vmem:[#allocation2 + $0x30] sm:$0xff]
        %v5358 = vld [vmem:[#allocation2 + $0x38] sm:$0xff]
        %v5359 = vld [vmem:[#allocation2 + $0x40] sm:$0xff]
        %v5360 = vld [vmem:[#allocation2 + $0x48] sm:$0xff]
        %v5361 = vld [vmem:[#allocation2 + $0x50] sm:$0xff]
        %v5362 = vld [vmem:[#allocation2 + $0x58] sm:$0xff]
        %v5363 = vld [vmem:[#allocation2 + $0x60] sm:$0xff]
        %v5364 = vld [vmem:[#allocation2 + $0x68] sm:$0xff]
        %v5365 = vld [vmem:[#allocation2 + $0x70] sm:$0xff]
        %v5366 = vld [vmem:[#allocation2 + $0x78] sm:$0xff]
        %v5367 = vld [vmem:[#allocation2 + $0x88] sm:$0xff]
        %v5368 = vld [vmem:[#allocation2 + $0x90] sm:$0xff]
        %v5369 = vld [vmem:[#allocation2 + $0x98] sm:$0xff]
        %v5370 = vld [vmem:[#allocation2 + $0xa0] sm:$0xff]
        %v5371 = vld [vmem:[#allocation2 + $0xa8] sm:$0xff]
        %v5372 = vld [vmem:[#allocation2 + $0xb0] sm:$0xff]
        %v5373 = vld [vmem:[#allocation2 + $0xb8] sm:$0xff]
        %v5374 = vld [vmem:[#allocation2 + $0xc0] sm:$0xff]
        %v5375 = vld [vmem:[#allocation2 + $0xc8] sm:$0xff]
        %v5376 = vld [vmem:[#allocation2 + $0xd0] sm:$0xff]
        %v5377 = vld [vmem:[#allocation2 + $0xd8] sm:$0xff]
        %v5378 = vld [vmem:[#allocation2 + $0xe0] sm:$0xff]
        %v5379 = vld [vmem:[#allocation2 + $0xe8] sm:$0xff]
        %v5380 = vld [vmem:[#allocation2 + $0xf0] sm:$0xff]
        %v5381 = vld [vmem:[#allocation2 + $0xf8] sm:$0xff]
        %v5382 = vld [vmem:[#allocation2 + $0x100] sm:$0xff]
        %v5383 = vld [vmem:[#allocation2 + $0x110] sm:$0xff]
        %v5384 = vld [vmem:[#allocation2 + $0x118] sm:$0xff]
        %v5385 = vld [vmem:[#allocation2 + $0x120] sm:$0xff]
        %v5386 = vld [vmem:[#allocation2 + $0x128] sm:$0xff]
        %v5387 = vld [vmem:[#allocation2 + $0x130] sm:$0xff]
        %v5388 = vld [vmem:[#allocation2 + $0x138] sm:$0xff]
        %v5389 = vld [vmem:[#allocation2 + $0x140] sm:$0xff]
        %v5390 = vld [vmem:[#allocation2 + $0x148] sm:$0xff]
        %v5391 = vld [vmem:[#allocation2 + $0x150] sm:$0xff]
        %v5392 = vld [vmem:[#allocation2 + $0x158] sm:$0xff]
        %v5393 = vld [vmem:[#allocation2 + $0x160] sm:$0xff]
        %v5394 = vld [vmem:[#allocation2 + $0x168] sm:$0xff]
        %v5395 = vld [vmem:[#allocation2 + $0x170] sm:$0xff]
        %v5396 = vld [vmem:[#allocation2 + $0x178] sm:$0xff]
        %v5397 = vld [vmem:[#allocation2 + $0x180] sm:$0xff]
        %v5398 = vld [vmem:[#allocation2 + $0x188] sm:$0xff]
        %v5399 = vld [vmem:[#allocation2 + $0x198] sm:$0xff]
        %v5400 = vld [vmem:[#allocation2 + $0x1a0] sm:$0xff]
        %v5401 = vld [vmem:[#allocation2 + $0x1a8] sm:$0xff]
        %v5402 = vld [vmem:[#allocation2 + $0x1b0] sm:$0xff]
        %v5403 = vld [vmem:[#allocation2 + $0x1b8] sm:$0xff]
        %v5404 = vld [vmem:[#allocation2 + $0x1c0] sm:$0xff]
        %v5405 = vld [vmem:[#allocation2 + $0x1c8] sm:$0xff]
        %v5406 = vld [vmem:[#allocation2 + $0x1d0] sm:$0xff]
        %v5407 = vld [vmem:[#allocation2 + $0x1d8] sm:$0xff]
        %v5408 = vld [vmem:[#allocation2 + $0x1e0] sm:$0xff]
        %v5409 = vld [vmem:[#allocation2 + $0x1e8] sm:$0xff]
        %v5410 = vld [vmem:[#allocation2 + $0x1f0] sm:$0xff]
        %v5411 = vld [vmem:[#allocation2 + $0x1f8] sm:$0xff]
        %v5412 = vld [vmem:[#allocation2 + $0x200] sm:$0xff]
        %v5413 = vld [vmem:[#allocation2 + $0x208] sm:$0xff]
        %v5414 = vld [vmem:[#allocation2 + $0x210] sm:$0xff]
        %v5415 = vld [vmem:[#allocation2 + $0x220] sm:$0xff]
        %v5416 = vld [vmem:[#allocation2 + $0x228] sm:$0xff]
        %v5417 = vld [vmem:[#allocation2 + $0x230] sm:$0xff]
        %v5418 = vld [vmem:[#allocation2 + $0x238] sm:$0xff]
        %v5419 = vld [vmem:[#allocation2 + $0x240] sm:$0xff]
        %v5420 = vld [vmem:[#allocation2 + $0x248] sm:$0xff]
        %v5421 = vld [vmem:[#allocation2 + $0x250] sm:$0xff]
        %v5422 = vld [vmem:[#allocation2 + $0x258] sm:$0xff]
        %v5423 = vld [vmem:[#allocation2 + $0x260] sm:$0xff]
        %v5424 = vld [vmem:[#allocation2 + $0x268] sm:$0xff]
        %v5425 = vld [vmem:[#allocation2 + $0x270] sm:$0xff]
        %v5426 = vld [vmem:[#allocation2 + $0x278] sm:$0xff]
        %v5427 = vld [vmem:[#allocation2 + $0x280] sm:$0xff]
        %v5428 = vld [vmem:[#allocation2 + $0x288] sm:$0xff]
        %v5429 = vld [vmem:[#allocation2 + $0x290] sm:$0xff]
        %v5430 = vld [vmem:[#allocation2 + $0x298] sm:$0xff]
        %v5431 = vld [vmem:[#allocation2 + $0x2a8] sm:$0xff]
        %v5432 = vld [vmem:[#allocation2 + $0x2b0] sm:$0xff]
        %v5433 = vld [vmem:[#allocation2 + $0x2b8] sm:$0xff]
        %v5434 = vld [vmem:[#allocation2 + $0x2c0] sm:$0xff]
        %v5435 = vld [vmem:[#allocation2 + $0x2c8] sm:$0xff]
        %v5436 = vld [vmem:[#allocation2 + $0x2d0] sm:$0xff]
        %v5437 = vld [vmem:[#allocation2 + $0x2d8] sm:$0xff]
        %v5438 = vld [vmem:[#allocation2 + $0x2e0] sm:$0xff]
        %v5439 = vld [vmem:[#allocation2 + $0x2e8] sm:$0xff]
        %v5440 = vld [vmem:[#allocation2 + $0x2f0] sm:$0xff]
        %v5441 = vld [vmem:[#allocation2 + $0x2f8] sm:$0xff]
        %v5442 = vld [vmem:[#allocation2 + $0x300] sm:$0xff]
        %v5443 = vld [vmem:[#allocation2 + $0x308] sm:$0xff]
        %v5444 = vld [vmem:[#allocation2 + $0x310] sm:$0xff]
        %v5445 = vld [vmem:[#allocation2 + $0x318] sm:$0xff]
        %v5446 = vld [vmem:[#allocation2 + $0x320] sm:$0xff]
        %v5447 = vld [vmem:[#allocation2 + $0x330] sm:$0xff]
        %v5448 = vld [vmem:[#allocation2 + $0x338] sm:$0xff]
        %v5449 = vld [vmem:[#allocation2 + $0x340] sm:$0xff]
        %v5450 = vld [vmem:[#allocation2 + $0x348] sm:$0xff]
        %v5451 = vld [vmem:[#allocation2 + $0x350] sm:$0xff]
        %v5452 = vld [vmem:[#allocation2 + $0x358] sm:$0xff]
        %v5453 = vld [vmem:[#allocation2 + $0x360] sm:$0xff]
        %v5454 = vld [vmem:[#allocation2 + $0x368] sm:$0xff]
        %v5455 = vld [vmem:[#allocation2 + $0x370] sm:$0xff]
        %v5456 = vld [vmem:[#allocation2 + $0x378] sm:$0xff]
        %v5457 = vld [vmem:[#allocation2 + $0x380] sm:$0xff]
        %v5458 = vld [vmem:[#allocation2 + $0x388] sm:$0xff]
        %v5459 = vld [vmem:[#allocation2 + $0x390] sm:$0xff]
        %v5460 = vld [vmem:[#allocation2 + $0x398] sm:$0xff]
        %v5461 = vld [vmem:[#allocation2 + $0x3a0] sm:$0xff]
        %v5462 = vld [vmem:[#allocation2 + $0x3a8] sm:$0xff]
        %v5463 = vld [vmem:[#allocation2 + $0x3b8] sm:$0xff]
        %v5464 = vld [vmem:[#allocation2 + $0x3c0] sm:$0xff]
        %v5465 = vld [vmem:[#allocation2 + $0x3c8] sm:$0xff]
        %v5466 = vld [vmem:[#allocation2 + $0x3d0] sm:$0xff]
        %v5467 = vld [vmem:[#allocation2 + $0x3d8] sm:$0xff]
        %v5468 = vld [vmem:[#allocation2 + $0x3e0] sm:$0xff]
        %v5469 = vld [vmem:[#allocation2 + $0x3e8] sm:$0xff]
        %v5470 = vld [vmem:[#allocation2 + $0x3f0] sm:$0xff]
        %v5471 = vld [vmem:[#allocation2 + $0x3f8] sm:$0xff]
        %v5472 = vld [vmem:[#allocation2 + $0x400] sm:$0xff]
        %v5473 = vld [vmem:[#allocation2 + $0x408] sm:$0xff]
        %v5474 = vld [vmem:[#allocation2 + $0x410] sm:$0xff]
        %v5475 = vld [vmem:[#allocation2 + $0x418] sm:$0xff]
        %v5476 = vld [vmem:[#allocation2 + $0x420] sm:$0xff]
        %v5477 = vld [vmem:[#allocation2 + $0x428] sm:$0xff]
        %v5478 = vld [vmem:[#allocation2 + $0x430] sm:$0xff]
        %v5479 = vld [vmem:[#allocation2 + $0x440] sm:$0xff]
        %v5480 = vld [vmem:[#allocation2 + $0x448] sm:$0xff]
        %v5481 = vld [vmem:[#allocation2 + $0x450] sm:$0xff]
        %v5482 = vld [vmem:[#allocation2 + $0x458] sm:$0xff]
        %v5483 = vld [vmem:[#allocation2 + $0x460] sm:$0xff]
        %v5484 = vld [vmem:[#allocation2 + $0x468] sm:$0xff]
        %v5485 = vld [vmem:[#allocation2 + $0x470] sm:$0xff]
        %v5486 = vld [vmem:[#allocation2 + $0x478] sm:$0xff]
        %v5487 = vld [vmem:[#allocation2 + $0x480] sm:$0xff]
        %v5488 = vld [vmem:[#allocation2 + $0x488] sm:$0xff]
        %v5489 = vld [vmem:[#allocation2 + $0x490] sm:$0xff]
        %v5490 = vld [vmem:[#allocation2 + $0x498] sm:$0xff]
        %v5491 = vld [vmem:[#allocation2 + $0x4a0] sm:$0xff]
        %v5492 = vld [vmem:[#allocation2 + $0x4a8] sm:$0xff]
        %v5493 = vld [vmem:[#allocation2 + $0x4b0] sm:$0xff]
        %v5494 = vld [vmem:[#allocation2 + $0x4b8] sm:$0xff]
        %v5495 = vld [vmem:[%s6] sm:$0xff]
        %5497 = vset.pattern.permute.xlu0 0
        %5498 = vperm.xlu0 %5497, %v5495
        %v5499 = vpop.permute.xlu0 %5498
        %v5502 = vsel %vm3327, %v5350, 0
        %5504 = vmatpush.msra.mxu0 0.0
        %5505 = vmatpush.msra.mxu0 0.0
        %5506 = vmatpush.msra.mxu0 0.0
        %5507 = vmatpush.msra.mxu0 0.0
        %5508 = vmatpush.msra.mxu0 0.0
        %5509 = vmatpush.msra.mxu0 0.0
        %5510 = vmatpush.msra.mxu0 0.0
        %5511 = vmatpush.msra.mxu0 %v5479
        %5512 = vmatpush.msra.mxu0 %v5463
        %5513 = vmatpush.msra.mxu0 %v5447
        %5514 = vmatpush.msra.mxu0 %v5431
        %5515 = vmatpush.msra.mxu0 %v5415
        %5516 = vmatpush.msra.mxu0 %v5399
        %5517 = vmatpush.msra.mxu0 %v5383
        %5518 = vmatpush.msra.mxu0 %v5367
        %5519 = vmatpush.msra.mxu0 %v5351
        %5520 = vmatmul.f32.gmra.mxu0 %v5502
        %v5521 = vpop.f32.mrf.mxu0
        %v5522 = vadd.f32 %v5499, %v5521
        %5523 = vdwg.mxu0
        %5524 = vmatpush.msra.mxu0 0.0
        %5525 = vmatpush.msra.mxu0 0.0
        %5526 = vmatpush.msra.mxu0 0.0
        %5527 = vmatpush.msra.mxu0 0.0
        %5528 = vmatpush.msra.mxu0 0.0
        %5529 = vmatpush.msra.mxu0 0.0
        %5530 = vmatpush.msra.mxu0 0.0
        %5531 = vmatpush.msra.mxu0 %v5480
        %5532 = vmatpush.msra.mxu0 %v5464
        %5533 = vmatpush.msra.mxu0 %v5448
        %5534 = vmatpush.msra.mxu0 %v5432
        %5535 = vmatpush.msra.mxu0 %v5416
        %5536 = vmatpush.msra.mxu0 %v5400
        %5537 = vmatpush.msra.mxu0 %v5384
        %5538 = vmatpush.msra.mxu0 %v5368
        %5539 = vmatpush.msra.mxu0 %v5352
        %5540 = vmatmul.f32.gmra.mxu0 %v5502
        %v5541 = vpop.f32.mrf.mxu0
        %v5542 = vadd.f32 %v5499, %v5541
        %5543 = vdwg.mxu0
        %5544 = vmatpush.msra.mxu0 0.0
        %5545 = vmatpush.msra.mxu0 0.0
        %5546 = vmatpush.msra.mxu0 0.0
        %5547 = vmatpush.msra.mxu0 0.0
        %5548 = vmatpush.msra.mxu0 0.0
        %5549 = vmatpush.msra.mxu0 0.0
        %5550 = vmatpush.msra.mxu0 0.0
        %5551 = vmatpush.msra.mxu0 %v5481
        %5552 = vmatpush.msra.mxu0 %v5465
        %5553 = vmatpush.msra.mxu0 %v5449
        %5554 = vmatpush.msra.mxu0 %v5433
        %5555 = vmatpush.msra.mxu0 %v5417
        %5556 = vmatpush.msra.mxu0 %v5401
        %5557 = vmatpush.msra.mxu0 %v5385
        %5558 = vmatpush.msra.mxu0 %v5369
        %5559 = vmatpush.msra.mxu0 %v5353
        %5560 = vmatmul.f32.gmra.mxu0 %v5502
        %v5561 = vpop.f32.mrf.mxu0
        %v5562 = vadd.f32 %v5499, %v5561
        %5563 = vdwg.mxu0
        %5564 = vmatpush.msra.mxu0 0.0
        %5565 = vmatpush.msra.mxu0 0.0
        %5566 = vmatpush.msra.mxu0 0.0
        %5567 = vmatpush.msra.mxu0 0.0
        %5568 = vmatpush.msra.mxu0 0.0
        %5569 = vmatpush.msra.mxu0 0.0
        %5570 = vmatpush.msra.mxu0 0.0
        %5571 = vmatpush.msra.mxu0 %v5482
        %5572 = vmatpush.msra.mxu0 %v5466
        %5573 = vmatpush.msra.mxu0 %v5450
        %5574 = vmatpush.msra.mxu0 %v5434
        %5575 = vmatpush.msra.mxu0 %v5418
        %5576 = vmatpush.msra.mxu0 %v5402
        %5577 = vmatpush.msra.mxu0 %v5386
        %5578 = vmatpush.msra.mxu0 %v5370
        %5579 = vmatpush.msra.mxu0 %v5354
        %5580 = vmatmul.f32.gmra.mxu0 %v5502
        %v5581 = vpop.f32.mrf.mxu0
        %v5582 = vadd.f32 %v5499, %v5581
        %5583 = vdwg.mxu0
        %5584 = vmatpush.msra.mxu0 0.0
        %5585 = vmatpush.msra.mxu0 0.0
        %5586 = vmatpush.msra.mxu0 0.0
        %5587 = vmatpush.msra.mxu0 0.0
        %5588 = vmatpush.msra.mxu0 0.0
        %5589 = vmatpush.msra.mxu0 0.0
        %5590 = vmatpush.msra.mxu0 0.0
        %5591 = vmatpush.msra.mxu0 %v5483
        %5592 = vmatpush.msra.mxu0 %v5467
        %5593 = vmatpush.msra.mxu0 %v5451
        %5594 = vmatpush.msra.mxu0 %v5435
        %5595 = vmatpush.msra.mxu0 %v5419
        %5596 = vmatpush.msra.mxu0 %v5403
        %5597 = vmatpush.msra.mxu0 %v5387
        %5598 = vmatpush.msra.mxu0 %v5371
        %5599 = vmatpush.msra.mxu0 %v5355
        %5600 = vmatmul.f32.gmra.mxu0 %v5502
        %v5601 = vpop.f32.mrf.mxu0
        %v5602 = vadd.f32 %v5499, %v5601
        %5603 = vdwg.mxu0
        %5604 = vmatpush.msra.mxu0 0.0
        %5605 = vmatpush.msra.mxu0 0.0
        %5606 = vmatpush.msra.mxu0 0.0
        %5607 = vmatpush.msra.mxu0 0.0
        %5608 = vmatpush.msra.mxu0 0.0
        %5609 = vmatpush.msra.mxu0 0.0
        %5610 = vmatpush.msra.mxu0 0.0
        %5611 = vmatpush.msra.mxu0 %v5484
        %5612 = vmatpush.msra.mxu0 %v5468
        %5613 = vmatpush.msra.mxu0 %v5452
        %5614 = vmatpush.msra.mxu0 %v5436
        %5615 = vmatpush.msra.mxu0 %v5420
        %5616 = vmatpush.msra.mxu0 %v5404
        %5617 = vmatpush.msra.mxu0 %v5388
        %5618 = vmatpush.msra.mxu0 %v5372
        %5619 = vmatpush.msra.mxu0 %v5356
        %5620 = vmatmul.f32.gmra.mxu0 %v5502
        %v5621 = vpop.f32.mrf.mxu0
        %v5622 = vadd.f32 %v5499, %v5621
        %5623 = vdwg.mxu0
        %5624 = vmatpush.msra.mxu0 0.0
        %5625 = vmatpush.msra.mxu0 0.0
        %5626 = vmatpush.msra.mxu0 0.0
        %5627 = vmatpush.msra.mxu0 0.0
        %5628 = vmatpush.msra.mxu0 0.0
        %5629 = vmatpush.msra.mxu0 0.0
        %5630 = vmatpush.msra.mxu0 0.0
        %5631 = vmatpush.msra.mxu0 %v5485
        %5632 = vmatpush.msra.mxu0 %v5469
        %5633 = vmatpush.msra.mxu0 %v5453
        %5634 = vmatpush.msra.mxu0 %v5437
        %5635 = vmatpush.msra.mxu0 %v5421
        %5636 = vmatpush.msra.mxu0 %v5405
        %5637 = vmatpush.msra.mxu0 %v5389
        %5638 = vmatpush.msra.mxu0 %v5373
        %5639 = vmatpush.msra.mxu0 %v5357
        %5640 = vmatmul.f32.gmra.mxu0 %v5502
        %v5641 = vpop.f32.mrf.mxu0
        %v5642 = vadd.f32 %v5499, %v5641
        %5643 = vdwg.mxu0
        %5644 = vmatpush.msra.mxu0 0.0
        %5645 = vmatpush.msra.mxu0 0.0
        %5646 = vmatpush.msra.mxu0 0.0
        %5647 = vmatpush.msra.mxu0 0.0
        %5648 = vmatpush.msra.mxu0 0.0
        %5649 = vmatpush.msra.mxu0 0.0
        %5650 = vmatpush.msra.mxu0 0.0
        %5651 = vmatpush.msra.mxu0 %v5486
        %5652 = vmatpush.msra.mxu0 %v5470
        %5653 = vmatpush.msra.mxu0 %v5454
        %5654 = vmatpush.msra.mxu0 %v5438
        %5655 = vmatpush.msra.mxu0 %v5422
        %5656 = vmatpush.msra.mxu0 %v5406
        %5657 = vmatpush.msra.mxu0 %v5390
        %5658 = vmatpush.msra.mxu0 %v5374
        %5659 = vmatpush.msra.mxu0 %v5358
        %5660 = vmatmul.f32.gmra.mxu0 %v5502
        %v5661 = vpop.f32.mrf.mxu0
        %v5662 = vadd.f32 %v5499, %v5661
        %5663 = vdwg.mxu0
        %5664 = vmatpush.msra.mxu0 0.0
        %5665 = vmatpush.msra.mxu0 0.0
        %5666 = vmatpush.msra.mxu0 0.0
        %5667 = vmatpush.msra.mxu0 0.0
        %5668 = vmatpush.msra.mxu0 0.0
        %5669 = vmatpush.msra.mxu0 0.0
        %5670 = vmatpush.msra.mxu0 0.0
        %5671 = vmatpush.msra.mxu0 %v5487
        %5672 = vmatpush.msra.mxu0 %v5471
        %5673 = vmatpush.msra.mxu0 %v5455
        %5674 = vmatpush.msra.mxu0 %v5439
        %5675 = vmatpush.msra.mxu0 %v5423
        %5676 = vmatpush.msra.mxu0 %v5407
        %5677 = vmatpush.msra.mxu0 %v5391
        %5678 = vmatpush.msra.mxu0 %v5375
        %5679 = vmatpush.msra.mxu0 %v5359
        %5680 = vmatmul.f32.gmra.mxu0 %v5502
        %v5681 = vpop.f32.mrf.mxu0
        %v5682 = vadd.f32 %v5499, %v5681
        %5683 = vdwg.mxu0
        %5684 = vmatpush.msra.mxu0 0.0
        %5685 = vmatpush.msra.mxu0 0.0
        %5686 = vmatpush.msra.mxu0 0.0
        %5687 = vmatpush.msra.mxu0 0.0
        %5688 = vmatpush.msra.mxu0 0.0
        %5689 = vmatpush.msra.mxu0 0.0
        %5690 = vmatpush.msra.mxu0 0.0
        %5691 = vmatpush.msra.mxu0 %v5488
        %5692 = vmatpush.msra.mxu0 %v5472
        %5693 = vmatpush.msra.mxu0 %v5456
        %5694 = vmatpush.msra.mxu0 %v5440
        %5695 = vmatpush.msra.mxu0 %v5424
        %5696 = vmatpush.msra.mxu0 %v5408
        %5697 = vmatpush.msra.mxu0 %v5392
        %5698 = vmatpush.msra.mxu0 %v5376
        %5699 = vmatpush.msra.mxu0 %v5360
        %5700 = vmatmul.f32.gmra.mxu0 %v5502
        %v5701 = vpop.f32.mrf.mxu0
        %v5702 = vadd.f32 %v5499, %v5701
        %5703 = vdwg.mxu0
        %5704 = vmatpush.msra.mxu0 0.0
        %5705 = vmatpush.msra.mxu0 0.0
        %5706 = vmatpush.msra.mxu0 0.0
        %5707 = vmatpush.msra.mxu0 0.0
        %5708 = vmatpush.msra.mxu0 0.0
        %5709 = vmatpush.msra.mxu0 0.0
        %5710 = vmatpush.msra.mxu0 0.0
        %5711 = vmatpush.msra.mxu0 %v5489
        %5712 = vmatpush.msra.mxu0 %v5473
        %5713 = vmatpush.msra.mxu0 %v5457
        %5714 = vmatpush.msra.mxu0 %v5441
        %5715 = vmatpush.msra.mxu0 %v5425
        %5716 = vmatpush.msra.mxu0 %v5409
        %5717 = vmatpush.msra.mxu0 %v5393
        %5718 = vmatpush.msra.mxu0 %v5377
        %5719 = vmatpush.msra.mxu0 %v5361
        %5720 = vmatmul.f32.gmra.mxu0 %v5502
        %v5721 = vpop.f32.mrf.mxu0
        %v5722 = vadd.f32 %v5499, %v5721
        %5723 = vdwg.mxu0
        %5724 = vmatpush.msra.mxu0 0.0
        %5725 = vmatpush.msra.mxu0 0.0
        %5726 = vmatpush.msra.mxu0 0.0
        %5727 = vmatpush.msra.mxu0 0.0
        %5728 = vmatpush.msra.mxu0 0.0
        %5729 = vmatpush.msra.mxu0 0.0
        %5730 = vmatpush.msra.mxu0 0.0
        %5731 = vmatpush.msra.mxu0 %v5490
        %5732 = vmatpush.msra.mxu0 %v5474
        %5733 = vmatpush.msra.mxu0 %v5458
        %5734 = vmatpush.msra.mxu0 %v5442
        %5735 = vmatpush.msra.mxu0 %v5426
        %5736 = vmatpush.msra.mxu0 %v5410
        %5737 = vmatpush.msra.mxu0 %v5394
        %5738 = vmatpush.msra.mxu0 %v5378
        %5739 = vmatpush.msra.mxu0 %v5362
        %5740 = vmatmul.f32.gmra.mxu0 %v5502
        %v5741 = vpop.f32.mrf.mxu0
        %v5742 = vadd.f32 %v5499, %v5741
        %5743 = vdwg.mxu0
        %5744 = vmatpush.msra.mxu0 0.0
        %5745 = vmatpush.msra.mxu0 0.0
        %5746 = vmatpush.msra.mxu0 0.0
        %5747 = vmatpush.msra.mxu0 0.0
        %5748 = vmatpush.msra.mxu0 0.0
        %5749 = vmatpush.msra.mxu0 0.0
        %5750 = vmatpush.msra.mxu0 0.0
        %5751 = vmatpush.msra.mxu0 %v5491
        %5752 = vmatpush.msra.mxu0 %v5475
        %5753 = vmatpush.msra.mxu0 %v5459
        %5754 = vmatpush.msra.mxu0 %v5443
        %5755 = vmatpush.msra.mxu0 %v5427
        %5756 = vmatpush.msra.mxu0 %v5411
        %5757 = vmatpush.msra.mxu0 %v5395
        %5758 = vmatpush.msra.mxu0 %v5379
        %5759 = vmatpush.msra.mxu0 %v5363
        %5760 = vmatmul.f32.gmra.mxu0 %v5502
        %v5761 = vpop.f32.mrf.mxu0
        %v5762 = vadd.f32 %v5499, %v5761
        %5763 = vdwg.mxu0
        %5764 = vmatpush.msra.mxu0 0.0
        %5765 = vmatpush.msra.mxu0 0.0
        %5766 = vmatpush.msra.mxu0 0.0
        %5767 = vmatpush.msra.mxu0 0.0
        %5768 = vmatpush.msra.mxu0 0.0
        %5769 = vmatpush.msra.mxu0 0.0
        %5770 = vmatpush.msra.mxu0 0.0
        %5771 = vmatpush.msra.mxu0 %v5492
        %5772 = vmatpush.msra.mxu0 %v5476
        %5773 = vmatpush.msra.mxu0 %v5460
        %5774 = vmatpush.msra.mxu0 %v5444
        %5775 = vmatpush.msra.mxu0 %v5428
        %5776 = vmatpush.msra.mxu0 %v5412
        %5777 = vmatpush.msra.mxu0 %v5396
        %5778 = vmatpush.msra.mxu0 %v5380
        %5779 = vmatpush.msra.mxu0 %v5364
        %5780 = vmatmul.f32.gmra.mxu0 %v5502
        %v5781 = vpop.f32.mrf.mxu0
        %v5782 = vadd.f32 %v5499, %v5781
        %5783 = vdwg.mxu0
        %5784 = vmatpush.msra.mxu0 0.0
        %5785 = vmatpush.msra.mxu0 0.0
        %5786 = vmatpush.msra.mxu0 0.0
        %5787 = vmatpush.msra.mxu0 0.0
        %5788 = vmatpush.msra.mxu0 0.0
        %5789 = vmatpush.msra.mxu0 0.0
        %5790 = vmatpush.msra.mxu0 0.0
        %5791 = vmatpush.msra.mxu0 %v5493
        %5792 = vmatpush.msra.mxu0 %v5477
        %5793 = vmatpush.msra.mxu0 %v5461
        %5794 = vmatpush.msra.mxu0 %v5445
        %5795 = vmatpush.msra.mxu0 %v5429
        %5796 = vmatpush.msra.mxu0 %v5413
        %5797 = vmatpush.msra.mxu0 %v5397
        %5798 = vmatpush.msra.mxu0 %v5381
        %5799 = vmatpush.msra.mxu0 %v5365
        %5800 = vmatmul.f32.gmra.mxu0 %v5502
        %v5801 = vpop.f32.mrf.mxu0
        %v5802 = vadd.f32 %v5499, %v5801
        %5803 = vdwg.mxu0
        %5804 = vmatpush.msra.mxu0 0.0
        %5805 = vmatpush.msra.mxu0 0.0
        %5806 = vmatpush.msra.mxu0 0.0
        %5807 = vmatpush.msra.mxu0 0.0
        %5808 = vmatpush.msra.mxu0 0.0
        %5809 = vmatpush.msra.mxu0 0.0
        %5810 = vmatpush.msra.mxu0 0.0
        %5811 = vmatpush.msra.mxu0 %v5494
        %5812 = vmatpush.msra.mxu0 %v5478
        %5813 = vmatpush.msra.mxu0 %v5462
        %5814 = vmatpush.msra.mxu0 %v5446
        %5815 = vmatpush.msra.mxu0 %v5430
        %5816 = vmatpush.msra.mxu0 %v5414
        %5817 = vmatpush.msra.mxu0 %v5398
        %5818 = vmatpush.msra.mxu0 %v5382
        %5819 = vmatpush.msra.mxu0 %v5366
        %5820 = vmatmul.f32.gmra.mxu0 %v5502
        %v5821 = vpop.f32.mrf.mxu0
        %v5822 = vadd.f32 %v5499, %v5821
        %5823 = vdwg.mxu0
        %v5840 = vrot.slane %v5542, 4
        %v5841 = vrot.slane %v5582, 4
        %v5842 = vrot.slane %v5622, 4
        %v5843 = vrot.slane %v5662, 4
        %v5844 = vrot.slane %v5702, 4
        %v5845 = vrot.slane %v5742, 4
        %v5846 = vrot.slane %v5782, 4
        %v5847 = vrot.slane %v5822, 4
        %vm5848 = vcmask 1043456
        %v5849 = vsel %vm5848, %v5522, %v5840
        %v5850 = vsel %vm5848, %v5562, %v5841
        %v5851 = vsel %vm5848, %v5602, %v5842
        %v5852 = vsel %vm5848, %v5642, %v5843
        %v5853 = vsel %vm5848, %v5682, %v5844
        %v5854 = vsel %vm5848, %v5722, %v5845
        %v5855 = vsel %vm5848, %v5762, %v5846
        %v5856 = vsel %vm5848, %v5802, %v5847
        %5865 = vst [vmem:[%s505] sm:$0xff] %v5849
        %5866 = vst [vmem:[%s505 + $0x8] sm:$0xff] %v5850
        %5867 = vst [vmem:[%s505 + $0x10] sm:$0xff] %v5851
        %5868 = vst [vmem:[%s505 + $0x18] sm:$0xff] %v5852
        %5869 = vst [vmem:[%s505 + $0x20] sm:$0xff] %v5853
        %5870 = vst [vmem:[%s505 + $0x28] sm:$0xff] %v5854
        %5871 = vst [vmem:[%s505 + $0x30] sm:$0xff] %v5855
        %5872 = vst [vmem:[%s505 + $0x38] sm:$0xff] %v5856
        %s5873 = sand.u32 %s310, 1
        %s5874 = scalar_lea.sflag [#allocation8], %s5873
        %s5875 = sand.u32 %s310, 1
        %s5876 = smul.addr %s5875, 64
        %s5877 = scalar_lea.vmem [#allocation15], %s5876
        // Predicated region
        $region101: #{tpu_custom_call.1} parent=67 // pred_check
          %p5878 = pneg %p320
        $region102: #{tpu_custom_call.1} parent=67 // pred_check_branch
          %5880 = sbr.rel (%p5878) target = $region104
        $region103: #{tpu_custom_call.1} parent=67 // pred_region
          %s5881 = smul.u32 16, %s36
          %5883 = vsyncadd %s5874, 0
          %s5884 = smul.addr %s35, 32
          %s5885 = sadd.s32 %s5881, %s5884
          %s5886 = smul.addr %s5885, 4
          %s5887 = scalar_lea.hbm %s12, %s5886
          %s5889 = sshll.u32 %s5877, 4
          %s5890 = int_to_ptr.vmem [resolvable:$true] %s5889
          %s5891 = sshll.u32 %s5887, 4
          %s5892 = int_to_ptr.hbm [resolvable:$true] %s5891
          %5894 = dma.vmem_to_hbm [thread:$0]  %s5890, 1024, %s5892, %s5874
        $region104: #{tpu_custom_call.1} parent=67 // pred_fallthru
          _
      $region68: #{tpu_custom_call.1} parent=5 // pred_fallthru
        _
      %p5895 = scmp.le.s32.totalorder 2, %s26
      // Predicated region
      $region105: #{tpu_custom_call.1} parent=5 // pred_check
        %p5896 = pneg %p5895
      $region106: #{tpu_custom_call.1} parent=5 // pred_check_branch
        %5898 = sbr.rel (%p5896) target = $region108
      $region107: #{tpu_custom_call.1} parent=5 // pred_region
        %s5899 = ssub.s32 %s26, 2
        // Predicated region
        $region109: #{tpu_custom_call.1} parent=107 // pred_check
          %p5900 = pneg %p326
        $region110: #{tpu_custom_call.1} parent=107 // pred_check_branch
          %5902 = sbr.rel (%p5900) target = $region112
        $region111: #{tpu_custom_call.1} parent=107 // pred_region
          %s5903 = sand.u32 %s311, 1
          %s5904 = scalar_lea.sflag [#allocation8], %s5903
          %s5905 = sand.u32 %s311, 1
          %s5906 = smul.addr %s5905, 64
          %s5907 = scalar_lea.vmem [#allocation15], %s5906
          %5909 = dma.done %s5904, 1024
        $region112: #{tpu_custom_call.1} parent=107 // pred_fallthru
          _
      $region108: #{tpu_custom_call.1} parent=5 // pred_fallthru
        _
    $region6: #{tpu_custom_call.1} parent=1 // loop_footer
      %s30 = sadd.s32 1, %s26
    $region7: #{tpu_custom_call.1} parent=1 // loop_footer_branch
      %25 = sbr.rel target = $region3
    $region8: #{tpu_custom_call.1} parent=1 // loop_exit
      _
    %5910 = vsyncpa [#allocation7], 1
    %s5911 = scalar_lea.sflag [#allocation7], 1
    %5912 = vsyncpa %s5911, 1
    %5913 = vsyncpa [#allocation10], 1
    %5914 = vsyncpa [#allocation13], 1
    %5915 = vsyncpa [#allocation8], 1
    %s5916 = scalar_lea.sflag [#allocation8], 1
    %5917 = vsyncpa %s5916, 1

</llo_original>
